<compile_context>
chip_gen: v7x
topology: tpu7x:2x2x1
jax: 0.10.0
libtpu: 0.0.40
codegen_flags: <defaults>
</compile_context>

<pallas_src>
import functools

import jax
import jax.numpy as jnp
from jax import lax
from jax.experimental import pallas as pl
from jax.experimental.pallas import tpu as pltpu

K = 7
PAD = K // 2            # 3
LANE = 128
HALF = LANE // 2        # 64 channels per lane block: x in lanes [0,64), pattn1 in [64,128)
COL0 = 8                # sublane-aligned start column of the strip interior in scratch


def _pixel_attention_kernel(xp_hbm, w_ref, b_ref, o_ref, xpad_ref, dma_sem, *, rch):
    # xp_hbm : (B, Hr + 2*PAD, W, NCB*128) f32 HBM ref (H already reflect-padded)
    # w_ref  : (K*K, 128)  per-tap per-lane weights (lanes = [x-chan taps 64 | pattn1 taps 64])
    # b_ref  : (1, 128)    bias, duplicated in both lane halves
    # o_ref  : (1, SH, W, 128) output strip block
    # xpad_ref: (SH + 2*PAD, WP, 128) VMEM scratch; strip interior lives in cols [COL0, COL0+W)
    b = pl.program_id(0)
    j = pl.program_id(1)
    s = pl.program_id(2)
    _, sh, w_img, cb = o_ref.shape
    rows = sh + 2 * PAD

    # ---- overlapping strip load: SH rows + 2*PAD halo rows of one 128-lane block ----
    lane0 = pl.multiple_of(j * LANE, LANE)
    row0 = s * sh
    copy = pltpu.make_async_copy(
        xp_hbm.at[b, pl.ds(row0, rows), :, pl.ds(lane0, LANE)],
        xpad_ref.at[:, COL0:COL0 + w_img, :],
        dma_sem,
    )
    copy.start()
    copy.wait()
    # TODO(synk): double-buffer this copy (prefetch strip s+1) to overlap with the tap loop.

    # ---- reflect halo along W, built in VMEM (corners double-reflect correctly) ----
    for q in range(PAD):
        xpad_ref[:, COL0 - 1 - q, :] = xpad_ref[:, COL0 + 1 + q, :]
        xpad_ref[:, COL0 + w_img + q, :] = xpad_ref[:, COL0 + w_img - 2 - q, :]

    # hoist per-tap weight vectors / bias out of the row-chunk loop (no re-broadcast per chunk)
    wts = [w_ref[i, :].reshape(1, 1, cb) for i in range(K * K)]
    bias = b_ref[...].reshape(1, 1, cb)

    # ---- 7x7 depthwise taps: row chunks outer, 98 taps inner, single in-vreg accumulator ----
    for r0 in range(0, sh, rch):
        acc = None
        for kh in range(K):
            for kw in range(K):
                win = xpad_ref[r0 + kh:r0 + kh + rch,
                               COL0 - PAD + kw:COL0 - PAD + kw + w_img, :]
                term = win * wts[kh * K + kw]
                acc = term if acc is None else acc + term
        # combine the x-half and pattn1-half of the lanes (both halves end up holding the sum)
        acc = acc + pltpu.roll(acc, shift=HALF, axis=2)
        acc = acc + bias
        # sigmoid via EUP: exp + approximate reciprocal (keeps the epilogue off the VALU)
        o_ref[0, r0:r0 + rch, :, :] = pl.reciprocal(
            1.0 + jnp.exp(-acc), approx=True).astype(o_ref.dtype)


def _vmem_bytes_estimate(sh, w_img, wp, rch):
    return ((sh + 2 * PAD) * wp * LANE * 4       # strip reflect scratch
            + 2 * sh * w_img * LANE * 4          # double-buffered output block
            + 8 * rch * w_img * LANE * 4         # chunk accumulator + tap temporaries
            + 4 * (K * K + 1) * LANE * 4)        # weights + bias (double-buffered)


def pixel_attention(x, pattn1, weight, bias):
    """Pallas implementation of PixelAttention.forward.

    x, pattn1: (B, C, H, W)
    weight: (C, 2, 7, 7)  (PyTorch Conv2d(2C, C, 7, groups=C): [:,0]=x tap, [:,1]=pattn1 tap)
    bias: (C,)
    returns: (B, C, H, W) = sigmoid(grouped 7x7 reflect-padded conv([x, pattn1]))
    """
    B, C, H, W = x.shape
    assert pattn1.shape == x.shape
    assert weight.shape == (C, 2, K, K) and bias.shape == (C,)
    assert H > PAD and W > PAD, "reflect padding requires H, W >= 4 (same as PyTorch)"
    f32 = jnp.float32

    ncb = -(-C // HALF)                 # number of 128-lane channel blocks (64 channels each)
    c_pad = ncb * HALF

    # ---- pack x & pattn1 channels-last, side by side in the lane dim ----
    def to_half_lanes(a):
        a = jnp.transpose(a, (0, 2, 3, 1)).astype(f32)                  # (B,H,W,C)
        a = jnp.pad(a, ((0, 0), (0, 0), (0, 0), (0, c_pad - C)))
        return a.reshape(B, H, W, ncb, HALF)

    xp = jnp.concatenate([to_half_lanes(x), to_half_lanes(pattn1)], axis=-1)
    xp = xp.reshape(B, H, W, ncb * LANE)

    # ---- per-generation strip sizing (v7x: 64 MiB VMEM, v5e/v6e: 128 MiB) ----
    try:
        vmem_cap = int(pltpu.get_tpu_info().vmem_capacity_bytes)
    except Exception:
        vmem_cap = 64 * 1024 * 1024
    budget = max(8 << 20, min(vmem_cap // 3, 48 << 20))

    wp = ((COL0 + W + PAD + 7) // 8) * 8          # scratch width (sublane-rounded)
    rch = 8                                        # rows per in-vreg accumulation chunk
    while rch > 1 and rch * W * LANE * 4 > 192 * 1024:
        rch //= 2
    sh = -(-H // rch) * rch                        # start from a single full-height strip
    while sh > rch and _vmem_bytes_estimate(sh, W, wp, rch) > budget:
        sh -= rch
    ns = -(-H // sh)
    sh = -(-(-(-H // ns)) // rch) * rch            # re-balance strips to minimise padded rows
    hr = ns * sh

    # reflect-pad H in the wrapper (+2*PAD rows only), zero-pad rows up to NS*SH
    xp = jnp.pad(xp, ((0, 0), (PAD, PAD), (0, 0), (0, 0)), mode="reflect")
    if hr > H:
        xp = jnp.pad(xp, ((0, 0), (0, hr - H), (0, 0), (0, 0)))

    # ---- weights: (C,2,7,7) -> (49, ncb*128); row kh*7+kw, lanes [x taps 64 | pattn1 taps 64]
    w = jnp.transpose(weight.astype(f32), (2, 3, 1, 0)).reshape(K * K, 2, C)
    w = jnp.pad(w, ((0, 0), (0, 0), (0, c_pad - C))).reshape(K * K, 2, ncb, HALF)
    w = jnp.transpose(w, (0, 2, 1, 3)).reshape(K * K, ncb * LANE)
    bv = jnp.pad(bias.astype(f32), (0, c_pad - C)).reshape(ncb, HALF)
    bv = jnp.concatenate([bv, bv], axis=-1).reshape(1, ncb * LANE)

    est = _vmem_bytes_estimate(sh, W, wp, rch)
    vmem_limit = int(min(vmem_cap * 3 // 4, max(2 * est, 32 << 20)))

    grid = (B, ncb, ns)
    out = pl.pallas_call(
        functools.partial(_pixel_attention_kernel, rch=rch),
        out_shape=jax.ShapeDtypeStruct((B, hr, W, ncb * LANE), f32),
        grid=grid,
        in_specs=[
            pl.BlockSpec(memory_space=pl.ANY),                      # packed input, manual DMA
            pl.BlockSpec((K * K, LANE), lambda b, j, s: (0, j)),    # per-tap weights
            pl.BlockSpec((1, LANE), lambda b, j, s: (0, j)),        # bias
        ],
        out_specs=pl.BlockSpec((1, sh, W, LANE), lambda b, j, s: (b, s, 0, j)),
        scratch_shapes=[
            pltpu.VMEM((sh + 2 * PAD, wp, LANE), f32),              # strip reflect scratch
            pltpu.SemaphoreType.DMA,
        ],
        compiler_params=pltpu.CompilerParams(
            dimension_semantics=("parallel", "parallel", "parallel"),
            vmem_limit_bytes=vmem_limit,
        ),
    )(xp, w, bv)

    # drop the duplicated pattn1-half lanes, padded rows and padded channels; back to NCHW
    out = out.reshape(B, hr, W, ncb, LANE)[:, :H, :, :, :HALF]
    out = out.reshape(B, H, W, c_pad)[..., :C]
    return jnp.transpose(out, (0, 3, 1, 2)).astype(x.dtype)


def _reference(x, pattn1, weight, bias):
    """Pure-JAX reference mirroring the PyTorch forward exactly."""
    B, C, H, W = x.shape
    # b c t h w -> b (c t) h w  (channels interleaved x_0, p_0, x_1, p_1, ...)
    x2 = jnp.stack([x, pattn1], axis=2).reshape(B, 2 * C, H, W)
    x2p = jnp.pad(x2, ((0, 0), (0, 0), (PAD, PAD), (PAD, PAD)), mode="reflect")
    out = lax.conv_general_dilated(
        x2p, weight, window_strides=(1, 1), padding="VALID",
        dimension_numbers=("NCHW", "OIHW", "NCHW"),
        feature_group_count=C,
        precision=lax.Precision.HIGHEST,
    )
    return jax.nn.sigmoid(out + bias[None, :, None, None])


if __name__ == "__main__":
    B, C, H, W = 2, 4, 16, 16  # dim = C = 4
    key = jax.random.PRNGKey(0)
    k1, k2, k3, k4 = jax.random.split(key, 4)

    x = jax.random.normal(k1, (B, C, H, W), jnp.float32)
    pattn1 = jax.random.normal(k2, (B, C, H, W), jnp.float32)

    # Deterministic params (PyTorch Conv2d default: U(-1/sqrt(fan_in), +1/sqrt(fan_in)),
    # fan_in = (2C/groups) * 7 * 7 = 98).
    fan_in = 2 * K * K
    bound = float(1.0 / (fan_in ** 0.5))
    weight = jax.random.uniform(k3, (C, 2, K, K), jnp.float32, -bound, bound)
    bias = jax.random.uniform(k4, (C,), jnp.float32, -bound, bound)

    out = pixel_attention(x, pattn1, weight, bias)
    out = jax.block_until_ready(out)

    ref = _reference(x, pattn1, weight, bias)
    assert out.shape == (B, C, H, W)
    assert out.dtype == jnp.float32
    max_err = float(jnp.max(jnp.abs(out - ref)))
    # tolerance covers the approximate (EUP) reciprocal in the sigmoid epilogue
    assert max_err < 3e-3, f"mismatch vs reference: {max_err}"

    print("KERNEL_OK")
</pallas_src>

<mosaic_0001>
module attributes {stable_mosaic.version = 11 : i64} {
  func.func @_pixel_attention_kernel(%arg0: i32, %arg1: i32, %arg2: i32, %arg3: memref<2x22x16x128xf32, #tpu.memory_space<any>>, %arg4: memref<49x128xf32, #tpu.memory_space<vmem>>, %arg5: memref<1x128xf32, #tpu.memory_space<vmem>>, %arg6: memref<1x16x16x128xf32, #tpu.memory_space<vmem>>, %arg7: memref<22x32x128xf32, #tpu.memory_space<vmem>>, %arg8: memref<!tpu.dma_semaphore, #tpu.memory_space<semaphore_mem>>) attributes {dimension_semantics = [#tpu.dimension_semantics<parallel>, #tpu.dimension_semantics<parallel>, #tpu.dimension_semantics<parallel>], iteration_bounds = array<i64: 2, 1, 1>, scalar_prefetch = 0 : i64, scratch_operands = 2 : i64, tpu.core_type = #tpu.core_type<tc>, window_params = [{}, {transform_indices = @transform_1, window_bounds = array<i64: 49, 128>}, {transform_indices = @transform_2, window_bounds = array<i64: 1, 128>}, {transform_indices = @transform_3, window_bounds = array<i64: 1, 16, 16, 128>}]} {
    %c128_i32 = arith.constant 128 : i32
    %0 = arith.muli %arg1, %c128_i32 : i32
    %1 = tpu.assume_multiple %0, 128 : i32
    %c16_i32 = arith.constant 16 : i32
    %2 = arith.muli %arg2, %c16_i32 : i32
    %c0_i32 = arith.constant 0 : i32
    %3 = tpu.memref_slice %arg3[%arg0, %2, %c0_i32, %1] : memref<2x22x16x128xf32, #tpu.memory_space<any>> -> memref<1x22x16x128xf32, #tpu.memory_space<any>>
    %4 = tpu.memref_squeeze %3 : memref<1x22x16x128xf32, #tpu.memory_space<any>> -> memref<22x16x128xf32, #tpu.memory_space<any>>
    %c0_i32_0 = arith.constant 0 : i32
    %c8_i32 = arith.constant 8 : i32
    %c0_i32_1 = arith.constant 0 : i32
    %5 = tpu.memref_slice %arg7[%c0_i32_0, %c8_i32, %c0_i32_1] : memref<22x32x128xf32, #tpu.memory_space<vmem>> -> memref<22x16x128xf32, #tpu.memory_space<vmem>>
    tpu.enqueue_dma source(%4 : memref<22x16x128xf32, #tpu.memory_space<any>>) target(%5 : memref<22x16x128xf32, #tpu.memory_space<vmem>>) target_semaphore(%arg8 : memref<!tpu.dma_semaphore, #tpu.memory_space<semaphore_mem>>)
    %c0_i32_2 = arith.constant 0 : i32
    %6 = tpu.memref_slice %arg3[%arg0, %2, %c0_i32_2, %1] : memref<2x22x16x128xf32, #tpu.memory_space<any>> -> memref<1x22x16x128xf32, #tpu.memory_space<any>>
    %7 = tpu.memref_squeeze %6 : memref<1x22x16x128xf32, #tpu.memory_space<any>> -> memref<22x16x128xf32, #tpu.memory_space<any>>
    %c0_i32_3 = arith.constant 0 : i32
    %c8_i32_4 = arith.constant 8 : i32
    %c0_i32_5 = arith.constant 0 : i32
    %8 = tpu.memref_slice %arg7[%c0_i32_3, %c8_i32_4, %c0_i32_5] : memref<22x32x128xf32, #tpu.memory_space<vmem>> -> memref<22x16x128xf32, #tpu.memory_space<vmem>>
    tpu.wait_dma2 semaphore(%arg8 : memref<!tpu.dma_semaphore, #tpu.memory_space<semaphore_mem>>) src(%7 : memref<22x16x128xf32, #tpu.memory_space<any>>) dst(%8 : memref<22x16x128xf32, #tpu.memory_space<vmem>>)
    %c0 = arith.constant 0 : index
    %c9 = arith.constant 9 : index
    %c0_6 = arith.constant 0 : index
    %9 = vector.load %arg7[%c0, %c9, %c0_6] : memref<22x32x128xf32, #tpu.memory_space<vmem>>, vector<22x1x128xf32>
    %10 = vector.shape_cast %9 : vector<22x1x128xf32> to vector<22x128xf32>
    %c0_7 = arith.constant 0 : index
    %c7 = arith.constant 7 : index
    %c0_8 = arith.constant 0 : index
    %11 = vector.load %arg7[%c0_7, %c7, %c0_8] : memref<22x32x128xf32, #tpu.memory_space<vmem>>, vector<22x1x128xf32>
    %12 = vector.shape_cast %11 : vector<22x1x128xf32> to vector<22x128xf32>
    %13 = vector.shape_cast %10 : vector<22x128xf32> to vector<22x1x128xf32>
    tpu.vector_store %arg7[%c0_7, %c7, %c0_8], %13 {strides = array<i32>} : memref<22x32x128xf32, #tpu.memory_space<vmem>>, vector<22x1x128xf32>,
    %c0_9 = arith.constant 0 : index
    %c22 = arith.constant 22 : index
    %c0_10 = arith.constant 0 : index
    %14 = vector.load %arg7[%c0_9, %c22, %c0_10] : memref<22x32x128xf32, #tpu.memory_space<vmem>>, vector<22x1x128xf32>
    %15 = vector.shape_cast %14 : vector<22x1x128xf32> to vector<22x128xf32>
    %c0_11 = arith.constant 0 : index
    %c24 = arith.constant 24 : index
    %c0_12 = arith.constant 0 : index
    %16 = vector.load %arg7[%c0_11, %c24, %c0_12] : memref<22x32x128xf32, #tpu.memory_space<vmem>>, vector<22x1x128xf32>
    %17 = vector.shape_cast %16 : vector<22x1x128xf32> to vector<22x128xf32>
    %18 = vector.shape_cast %15 : vector<22x128xf32> to vector<22x1x128xf32>
    tpu.vector_store %arg7[%c0_11, %c24, %c0_12], %18 {strides = array<i32>} : memref<22x32x128xf32, #tpu.memory_space<vmem>>, vector<22x1x128xf32>,
    %c0_13 = arith.constant 0 : index
    %c10 = arith.constant 10 : index
    %c0_14 = arith.constant 0 : index
    %19 = vector.load %arg7[%c0_13, %c10, %c0_14] : memref<22x32x128xf32, #tpu.memory_space<vmem>>, vector<22x1x128xf32>
    %20 = vector.shape_cast %19 : vector<22x1x128xf32> to vector<22x128xf32>
    %c0_15 = arith.constant 0 : index
    %c6 = arith.constant 6 : index
    %c0_16 = arith.constant 0 : index
    %21 = vector.load %arg7[%c0_15, %c6, %c0_16] : memref<22x32x128xf32, #tpu.memory_space<vmem>>, vector<22x1x128xf32>
    %22 = vector.shape_cast %21 : vector<22x1x128xf32> to vector<22x128xf32>
    %23 = vector.shape_cast %20 : vector<22x128xf32> to vector<22x1x128xf32>
    tpu.vector_store %arg7[%c0_15, %c6, %c0_16], %23 {strides = array<i32>} : memref<22x32x128xf32, #tpu.memory_space<vmem>>, vector<22x1x128xf32>,
    %c0_17 = arith.constant 0 : index
    %c21 = arith.constant 21 : index
    %c0_18 = arith.constant 0 : index
    %24 = vector.load %arg7[%c0_17, %c21, %c0_18] : memref<22x32x128xf32, #tpu.memory_space<vmem>>, vector<22x1x128xf32>
    %25 = vector.shape_cast %24 : vector<22x1x128xf32> to vector<22x128xf32>
    %c0_19 = arith.constant 0 : index
    %c25 = arith.constant 25 : index
    %c0_20 = arith.constant 0 : index
    %26 = vector.load %arg7[%c0_19, %c25, %c0_20] : memref<22x32x128xf32, #tpu.memory_space<vmem>>, vector<22x1x128xf32>
    %27 = vector.shape_cast %26 : vector<22x1x128xf32> to vector<22x128xf32>
    %28 = vector.shape_cast %25 : vector<22x128xf32> to vector<22x1x128xf32>
    tpu.vector_store %arg7[%c0_19, %c25, %c0_20], %28 {strides = array<i32>} : memref<22x32x128xf32, #tpu.memory_space<vmem>>, vector<22x1x128xf32>,
    %c0_21 = arith.constant 0 : index
    %c11 = arith.constant 11 : index
    %c0_22 = arith.constant 0 : index
    %29 = vector.load %arg7[%c0_21, %c11, %c0_22] : memref<22x32x128xf32, #tpu.memory_space<vmem>>, vector<22x1x128xf32>
    %30 = vector.shape_cast %29 : vector<22x1x128xf32> to vector<22x128xf32>
    %c0_23 = arith.constant 0 : index
    %c5 = arith.constant 5 : index
    %c0_24 = arith.constant 0 : index
    %31 = vector.load %arg7[%c0_23, %c5, %c0_24] : memref<22x32x128xf32, #tpu.memory_space<vmem>>, vector<22x1x128xf32>
    %32 = vector.shape_cast %31 : vector<22x1x128xf32> to vector<22x128xf32>
    %33 = vector.shape_cast %30 : vector<22x128xf32> to vector<22x1x128xf32>
    tpu.vector_store %arg7[%c0_23, %c5, %c0_24], %33 {strides = array<i32>} : memref<22x32x128xf32, #tpu.memory_space<vmem>>, vector<22x1x128xf32>,
    %c0_25 = arith.constant 0 : index
    %c20 = arith.constant 20 : index
    %c0_26 = arith.constant 0 : index
    %34 = vector.load %arg7[%c0_25, %c20, %c0_26] : memref<22x32x128xf32, #tpu.memory_space<vmem>>, vector<22x1x128xf32>
    %35 = vector.shape_cast %34 : vector<22x1x128xf32> to vector<22x128xf32>
    %c0_27 = arith.constant 0 : index
    %c26 = arith.constant 26 : index
    %c0_28 = arith.constant 0 : index
    %36 = vector.load %arg7[%c0_27, %c26, %c0_28] : memref<22x32x128xf32, #tpu.memory_space<vmem>>, vector<22x1x128xf32>
    %37 = vector.shape_cast %36 : vector<22x1x128xf32> to vector<22x128xf32>
    %38 = vector.shape_cast %35 : vector<22x128xf32> to vector<22x1x128xf32>
    tpu.vector_store %arg7[%c0_27, %c26, %c0_28], %38 {strides = array<i32>} : memref<22x32x128xf32, #tpu.memory_space<vmem>>, vector<22x1x128xf32>,
    %c0_29 = arith.constant 0 : index
    %c0_30 = arith.constant 0 : index
    %39 = vector.load %arg4[%c0_29, %c0_30] : memref<49x128xf32, #tpu.memory_space<vmem>>, vector<1x128xf32>
    %40 = vector.shape_cast %39 : vector<1x128xf32> to vector<128xf32>
    %41 = vector.shape_cast %40 : vector<128xf32> to vector<1x1x128xf32>
    %c1 = arith.constant 1 : index
    %c0_31 = arith.constant 0 : index
    %42 = vector.load %arg4[%c1, %c0_31] : memref<49x128xf32, #tpu.memory_space<vmem>>, vector<1x128xf32>
    %43 = vector.shape_cast %42 : vector<1x128xf32> to vector<128xf32>
    %44 = vector.shape_cast %43 : vector<128xf32> to vector<1x1x128xf32>
    %c2 = arith.constant 2 : index
    %c0_32 = arith.constant 0 : index
    %45 = vector.load %arg4[%c2, %c0_32] : memref<49x128xf32, #tpu.memory_space<vmem>>, vector<1x128xf32>
    %46 = vector.shape_cast %45 : vector<1x128xf32> to vector<128xf32>
    %47 = vector.shape_cast %46 : vector<128xf32> to vector<1x1x128xf32>
    %c3 = arith.constant 3 : index
    %c0_33 = arith.constant 0 : index
    %48 = vector.load %arg4[%c3, %c0_33] : memref<49x128xf32, #tpu.memory_space<vmem>>, vector<1x128xf32>
    %49 = vector.shape_cast %48 : vector<1x128xf32> to vector<128xf32>
    %50 = vector.shape_cast %49 : vector<128xf32> to vector<1x1x128xf32>
    %c4 = arith.constant 4 : index
    %c0_34 = arith.constant 0 : index
    %51 = vector.load %arg4[%c4, %c0_34] : memref<49x128xf32, #tpu.memory_space<vmem>>, vector<1x128xf32>
    %52 = vector.shape_cast %51 : vector<1x128xf32> to vector<128xf32>
    %53 = vector.shape_cast %52 : vector<128xf32> to vector<1x1x128xf32>
    %c5_35 = arith.constant 5 : index
    %c0_36 = arith.constant 0 : index
    %54 = vector.load %arg4[%c5_35, %c0_36] : memref<49x128xf32, #tpu.memory_space<vmem>>, vector<1x128xf32>
    %55 = vector.shape_cast %54 : vector<1x128xf32> to vector<128xf32>
    %56 = vector.shape_cast %55 : vector<128xf32> to vector<1x1x128xf32>
    %c6_37 = arith.constant 6 : index
    %c0_38 = arith.constant 0 : index
    %57 = vector.load %arg4[%c6_37, %c0_38] : memref<49x128xf32, #tpu.memory_space<vmem>>, vector<1x128xf32>
    %58 = vector.shape_cast %57 : vector<1x128xf32> to vector<128xf32>
    %59 = vector.shape_cast %58 : vector<128xf32> to vector<1x1x128xf32>
    %c7_39 = arith.constant 7 : index
    %c0_40 = arith.constant 0 : index
    %60 = vector.load %arg4[%c7_39, %c0_40] : memref<49x128xf32, #tpu.memory_space<vmem>>, vector<1x128xf32>
    %61 = vector.shape_cast %60 : vector<1x128xf32> to vector<128xf32>
    %62 = vector.shape_cast %61 : vector<128xf32> to vector<1x1x128xf32>
    %c8 = arith.constant 8 : index
    %c0_41 = arith.constant 0 : index
    %63 = vector.load %arg4[%c8, %c0_41] : memref<49x128xf32, #tpu.memory_space<vmem>>, vector<1x128xf32>
    %64 = vector.shape_cast %63 : vector<1x128xf32> to vector<128xf32>
    %65 = vector.shape_cast %64 : vector<128xf32> to vector<1x1x128xf32>
    %c9_42 = arith.constant 9 : index
    %c0_43 = arith.constant 0 : index
    %66 = vector.load %arg4[%c9_42, %c0_43] : memref<49x128xf32, #tpu.memory_space<vmem>>, vector<1x128xf32>
    %67 = vector.shape_cast %66 : vector<1x128xf32> to vector<128xf32>
    %68 = vector.shape_cast %67 : vector<128xf32> to vector<1x1x128xf32>
    %c10_44 = arith.constant 10 : index
    %c0_45 = arith.constant 0 : index
    %69 = vector.load %arg4[%c10_44, %c0_45] : memref<49x128xf32, #tpu.memory_space<vmem>>, vector<1x128xf32>
    %70 = vector.shape_cast %69 : vector<1x128xf32> to vector<128xf32>
    %71 = vector.shape_cast %70 : vector<128xf32> to vector<1x1x128xf32>
    %c11_46 = arith.constant 11 : index
    %c0_47 = arith.constant 0 : index
    %72 = vector.load %arg4[%c11_46, %c0_47] : memref<49x128xf32, #tpu.memory_space<vmem>>, vector<1x128xf32>
    %73 = vector.shape_cast %72 : vector<1x128xf32> to vector<128xf32>
    %74 = vector.shape_cast %73 : vector<128xf32> to vector<1x1x128xf32>
    %c12 = arith.constant 12 : index
    %c0_48 = arith.constant 0 : index
    %75 = vector.load %arg4[%c12, %c0_48] : memref<49x128xf32, #tpu.memory_space<vmem>>, vector<1x128xf32>
    %76 = vector.shape_cast %75 : vector<1x128xf32> to vector<128xf32>
    %77 = vector.shape_cast %76 : vector<128xf32> to vector<1x1x128xf32>
    %c13 = arith.constant 13 : index
    %c0_49 = arith.constant 0 : index
    %78 = vector.load %arg4[%c13, %c0_49] : memref<49x128xf32, #tpu.memory_space<vmem>>, vector<1x128xf32>
    %79 = vector.shape_cast %78 : vector<1x128xf32> to vector<128xf32>
    %80 = vector.shape_cast %79 : vector<128xf32> to vector<1x1x128xf32>
    %c14 = arith.constant 14 : index
    %c0_50 = arith.constant 0 : index
    %81 = vector.load %arg4[%c14, %c0_50] : memref<49x128xf32, #tpu.memory_space<vmem>>, vector<1x128xf32>
    %82 = vector.shape_cast %81 : vector<1x128xf32> to vector<128xf32>
    %83 = vector.shape_cast %82 : vector<128xf32> to vector<1x1x128xf32>
    %c15 = arith.constant 15 : index
    %c0_51 = arith.constant 0 : index
    %84 = vector.load %arg4[%c15, %c0_51] : memref<49x128xf32, #tpu.memory_space<vmem>>, vector<1x128xf32>
    %85 = vector.shape_cast %84 : vector<1x128xf32> to vector<128xf32>
    %86 = vector.shape_cast %85 : vector<128xf32> to vector<1x1x128xf32>
    %c16 = arith.constant 16 : index
    %c0_52 = arith.constant 0 : index
    %87 = vector.load %arg4[%c16, %c0_52] : memref<49x128xf32, #tpu.memory_space<vmem>>, vector<1x128xf32>
    %88 = vector.shape_cast %87 : vector<1x128xf32> to vector<128xf32>
    %89 = vector.shape_cast %88 : vector<128xf32> to vector<1x1x128xf32>
    %c17 = arith.constant 17 : index
    %c0_53 = arith.constant 0 : index
    %90 = vector.load %arg4[%c17, %c0_53] : memref<49x128xf32, #tpu.memory_space<vmem>>, vector<1x128xf32>
    %91 = vector.shape_cast %90 : vector<1x128xf32> to vector<128xf32>
    %92 = vector.shape_cast %91 : vector<128xf32> to vector<1x1x128xf32>
    %c18 = arith.constant 18 : index
    %c0_54 = arith.constant 0 : index
    %93 = vector.load %arg4[%c18, %c0_54] : memref<49x128xf32, #tpu.memory_space<vmem>>, vector<1x128xf32>
    %94 = vector.shape_cast %93 : vector<1x128xf32> to vector<128xf32>
    %95 = vector.shape_cast %94 : vector<128xf32> to vector<1x1x128xf32>
    %c19 = arith.constant 19 : index
    %c0_55 = arith.constant 0 : index
    %96 = vector.load %arg4[%c19, %c0_55] : memref<49x128xf32, #tpu.memory_space<vmem>>, vector<1x128xf32>
    %97 = vector.shape_cast %96 : vector<1x128xf32> to vector<128xf32>
    %98 = vector.shape_cast %97 : vector<128xf32> to vector<1x1x128xf32>
    %c20_56 = arith.constant 20 : index
    %c0_57 = arith.constant 0 : index
    %99 = vector.load %arg4[%c20_56, %c0_57] : memref<49x128xf32, #tpu.memory_space<vmem>>, vector<1x128xf32>
    %100 = vector.shape_cast %99 : vector<1x128xf32> to vector<128xf32>
    %101 = vector.shape_cast %100 : vector<128xf32> to vector<1x1x128xf32>
    %c21_58 = arith.constant 21 : index
    %c0_59 = arith.constant 0 : index
    %102 = vector.load %arg4[%c21_58, %c0_59] : memref<49x128xf32, #tpu.memory_space<vmem>>, vector<1x128xf32>
    %103 = vector.shape_cast %102 : vector<1x128xf32> to vector<128xf32>
    %104 = vector.shape_cast %103 : vector<128xf32> to vector<1x1x128xf32>
    %c22_60 = arith.constant 22 : index
    %c0_61 = arith.constant 0 : index
    %105 = vector.load %arg4[%c22_60, %c0_61] : memref<49x128xf32, #tpu.memory_space<vmem>>, vector<1x128xf32>
    %106 = vector.shape_cast %105 : vector<1x128xf32> to vector<128xf32>
    %107 = vector.shape_cast %106 : vector<128xf32> to vector<1x1x128xf32>
    %c23 = arith.constant 23 : index
    %c0_62 = arith.constant 0 : index
    %108 = vector.load %arg4[%c23, %c0_62] : memref<49x128xf32, #tpu.memory_space<vmem>>, vector<1x128xf32>
    %109 = vector.shape_cast %108 : vector<1x128xf32> to vector<128xf32>
    %110 = vector.shape_cast %109 : vector<128xf32> to vector<1x1x128xf32>
    %c24_63 = arith.constant 24 : index
    %c0_64 = arith.constant 0 : index
    %111 = vector.load %arg4[%c24_63, %c0_64] : memref<49x128xf32, #tpu.memory_space<vmem>>, vector<1x128xf32>
    %112 = vector.shape_cast %111 : vector<1x128xf32> to vector<128xf32>
    %113 = vector.shape_cast %112 : vector<128xf32> to vector<1x1x128xf32>
    %c25_65 = arith.constant 25 : index
    %c0_66 = arith.constant 0 : index
    %114 = vector.load %arg4[%c25_65, %c0_66] : memref<49x128xf32, #tpu.memory_space<vmem>>, vector<1x128xf32>
    %115 = vector.shape_cast %114 : vector<1x128xf32> to vector<128xf32>
    %116 = vector.shape_cast %115 : vector<128xf32> to vector<1x1x128xf32>
    %c26_67 = arith.constant 26 : index
    %c0_68 = arith.constant 0 : index
    %117 = vector.load %arg4[%c26_67, %c0_68] : memref<49x128xf32, #tpu.memory_space<vmem>>, vector<1x128xf32>
    %118 = vector.shape_cast %117 : vector<1x128xf32> to vector<128xf32>
    %119 = vector.shape_cast %118 : vector<128xf32> to vector<1x1x128xf32>
    %c27 = arith.constant 27 : index
    %c0_69 = arith.constant 0 : index
    %120 = vector.load %arg4[%c27, %c0_69] : memref<49x128xf32, #tpu.memory_space<vmem>>, vector<1x128xf32>
    %121 = vector.shape_cast %120 : vector<1x128xf32> to vector<128xf32>
    %122 = vector.shape_cast %121 : vector<128xf32> to vector<1x1x128xf32>
    %c28 = arith.constant 28 : index
    %c0_70 = arith.constant 0 : index
    %123 = vector.load %arg4[%c28, %c0_70] : memref<49x128xf32, #tpu.memory_space<vmem>>, vector<1x128xf32>
    %124 = vector.shape_cast %123 : vector<1x128xf32> to vector<128xf32>
    %125 = vector.shape_cast %124 : vector<128xf32> to vector<1x1x128xf32>
    %c29 = arith.constant 29 : index
    %c0_71 = arith.constant 0 : index
    %126 = vector.load %arg4[%c29, %c0_71] : memref<49x128xf32, #tpu.memory_space<vmem>>, vector<1x128xf32>
    %127 = vector.shape_cast %126 : vector<1x128xf32> to vector<128xf32>
    %128 = vector.shape_cast %127 : vector<128xf32> to vector<1x1x128xf32>
    %c30 = arith.constant 30 : index
    %c0_72 = arith.constant 0 : index
    %129 = vector.load %arg4[%c30, %c0_72] : memref<49x128xf32, #tpu.memory_space<vmem>>, vector<1x128xf32>
    %130 = vector.shape_cast %129 : vector<1x128xf32> to vector<128xf32>
    %131 = vector.shape_cast %130 : vector<128xf32> to vector<1x1x128xf32>
    %c31 = arith.constant 31 : index
    %c0_73 = arith.constant 0 : index
    %132 = vector.load %arg4[%c31, %c0_73] : memref<49x128xf32, #tpu.memory_space<vmem>>, vector<1x128xf32>
    %133 = vector.shape_cast %132 : vector<1x128xf32> to vector<128xf32>
    %134 = vector.shape_cast %133 : vector<128xf32> to vector<1x1x128xf32>
    %c32 = arith.constant 32 : index
    %c0_74 = arith.constant 0 : index
    %135 = vector.load %arg4[%c32, %c0_74] : memref<49x128xf32, #tpu.memory_space<vmem>>, vector<1x128xf32>
    %136 = vector.shape_cast %135 : vector<1x128xf32> to vector<128xf32>
    %137 = vector.shape_cast %136 : vector<128xf32> to vector<1x1x128xf32>
    %c33 = arith.constant 33 : index
    %c0_75 = arith.constant 0 : index
    %138 = vector.load %arg4[%c33, %c0_75] : memref<49x128xf32, #tpu.memory_space<vmem>>, vector<1x128xf32>
    %139 = vector.shape_cast %138 : vector<1x128xf32> to vector<128xf32>
    %140 = vector.shape_cast %139 : vector<128xf32> to vector<1x1x128xf32>
    %c34 = arith.constant 34 : index
    %c0_76 = arith.constant 0 : index
    %141 = vector.load %arg4[%c34, %c0_76] : memref<49x128xf32, #tpu.memory_space<vmem>>, vector<1x128xf32>
    %142 = vector.shape_cast %141 : vector<1x128xf32> to vector<128xf32>
    %143 = vector.shape_cast %142 : vector<128xf32> to vector<1x1x128xf32>
    %c35 = arith.constant 35 : index
    %c0_77 = arith.constant 0 : index
    %144 = vector.load %arg4[%c35, %c0_77] : memref<49x128xf32, #tpu.memory_space<vmem>>, vector<1x128xf32>
    %145 = vector.shape_cast %144 : vector<1x128xf32> to vector<128xf32>
    %146 = vector.shape_cast %145 : vector<128xf32> to vector<1x1x128xf32>
    %c36 = arith.constant 36 : index
    %c0_78 = arith.constant 0 : index
    %147 = vector.load %arg4[%c36, %c0_78] : memref<49x128xf32, #tpu.memory_space<vmem>>, vector<1x128xf32>
    %148 = vector.shape_cast %147 : vector<1x128xf32> to vector<128xf32>
    %149 = vector.shape_cast %148 : vector<128xf32> to vector<1x1x128xf32>
    %c37 = arith.constant 37 : index
    %c0_79 = arith.constant 0 : index
    %150 = vector.load %arg4[%c37, %c0_79] : memref<49x128xf32, #tpu.memory_space<vmem>>, vector<1x128xf32>
    %151 = vector.shape_cast %150 : vector<1x128xf32> to vector<128xf32>
    %152 = vector.shape_cast %151 : vector<128xf32> to vector<1x1x128xf32>
    %c38 = arith.constant 38 : index
    %c0_80 = arith.constant 0 : index
    %153 = vector.load %arg4[%c38, %c0_80] : memref<49x128xf32, #tpu.memory_space<vmem>>, vector<1x128xf32>
    %154 = vector.shape_cast %153 : vector<1x128xf32> to vector<128xf32>
    %155 = vector.shape_cast %154 : vector<128xf32> to vector<1x1x128xf32>
    %c39 = arith.constant 39 : index
    %c0_81 = arith.constant 0 : index
    %156 = vector.load %arg4[%c39, %c0_81] : memref<49x128xf32, #tpu.memory_space<vmem>>, vector<1x128xf32>
    %157 = vector.shape_cast %156 : vector<1x128xf32> to vector<128xf32>
    %158 = vector.shape_cast %157 : vector<128xf32> to vector<1x1x128xf32>
    %c40 = arith.constant 40 : index
    %c0_82 = arith.constant 0 : index
    %159 = vector.load %arg4[%c40, %c0_82] : memref<49x128xf32, #tpu.memory_space<vmem>>, vector<1x128xf32>
    %160 = vector.shape_cast %159 : vector<1x128xf32> to vector<128xf32>
    %161 = vector.shape_cast %160 : vector<128xf32> to vector<1x1x128xf32>
    %c41 = arith.constant 41 : index
    %c0_83 = arith.constant 0 : index
    %162 = vector.load %arg4[%c41, %c0_83] : memref<49x128xf32, #tpu.memory_space<vmem>>, vector<1x128xf32>
    %163 = vector.shape_cast %162 : vector<1x128xf32> to vector<128xf32>
    %164 = vector.shape_cast %163 : vector<128xf32> to vector<1x1x128xf32>
    %c42 = arith.constant 42 : index
    %c0_84 = arith.constant 0 : index
    %165 = vector.load %arg4[%c42, %c0_84] : memref<49x128xf32, #tpu.memory_space<vmem>>, vector<1x128xf32>
    %166 = vector.shape_cast %165 : vector<1x128xf32> to vector<128xf32>
    %167 = vector.shape_cast %166 : vector<128xf32> to vector<1x1x128xf32>
    %c43 = arith.constant 43 : index
    %c0_85 = arith.constant 0 : index
    %168 = vector.load %arg4[%c43, %c0_85] : memref<49x128xf32, #tpu.memory_space<vmem>>, vector<1x128xf32>
    %169 = vector.shape_cast %168 : vector<1x128xf32> to vector<128xf32>
    %170 = vector.shape_cast %169 : vector<128xf32> to vector<1x1x128xf32>
    %c44 = arith.constant 44 : index
    %c0_86 = arith.constant 0 : index
    %171 = vector.load %arg4[%c44, %c0_86] : memref<49x128xf32, #tpu.memory_space<vmem>>, vector<1x128xf32>
    %172 = vector.shape_cast %171 : vector<1x128xf32> to vector<128xf32>
    %173 = vector.shape_cast %172 : vector<128xf32> to vector<1x1x128xf32>
    %c45 = arith.constant 45 : index
    %c0_87 = arith.constant 0 : index
    %174 = vector.load %arg4[%c45, %c0_87] : memref<49x128xf32, #tpu.memory_space<vmem>>, vector<1x128xf32>
    %175 = vector.shape_cast %174 : vector<1x128xf32> to vector<128xf32>
    %176 = vector.shape_cast %175 : vector<128xf32> to vector<1x1x128xf32>
    %c46 = arith.constant 46 : index
    %c0_88 = arith.constant 0 : index
    %177 = vector.load %arg4[%c46, %c0_88] : memref<49x128xf32, #tpu.memory_space<vmem>>, vector<1x128xf32>
    %178 = vector.shape_cast %177 : vector<1x128xf32> to vector<128xf32>
    %179 = vector.shape_cast %178 : vector<128xf32> to vector<1x1x128xf32>
    %c47 = arith.constant 47 : index
    %c0_89 = arith.constant 0 : index
    %180 = vector.load %arg4[%c47, %c0_89] : memref<49x128xf32, #tpu.memory_space<vmem>>, vector<1x128xf32>
    %181 = vector.shape_cast %180 : vector<1x128xf32> to vector<128xf32>
    %182 = vector.shape_cast %181 : vector<128xf32> to vector<1x1x128xf32>
    %c48 = arith.constant 48 : index
    %c0_90 = arith.constant 0 : index
    %183 = vector.load %arg4[%c48, %c0_90] : memref<49x128xf32, #tpu.memory_space<vmem>>, vector<1x128xf32>
    %184 = vector.shape_cast %183 : vector<1x128xf32> to vector<128xf32>
    %185 = vector.shape_cast %184 : vector<128xf32> to vector<1x1x128xf32>
    %c0_91 = arith.constant 0 : index
    %c0_92 = arith.constant 0 : index
    %186 = vector.load %arg5[%c0_91, %c0_92] : memref<1x128xf32, #tpu.memory_space<vmem>>, vector<1x128xf32>
    %187 = vector.shape_cast %186 : vector<1x128xf32> to vector<1x1x128xf32>
    %c0_93 = arith.constant 0 : index
    %c5_94 = arith.constant 5 : index
    %c0_95 = arith.constant 0 : index
    %188 = vector.load %arg7[%c0_93, %c5_94, %c0_95] : memref<22x32x128xf32, #tpu.memory_space<vmem>>, vector<8x16x128xf32>
    %189 = vector.broadcast %41 : vector<1x1x128xf32> to vector<8x16x128xf32>
    %190 = arith.mulf %188, %189 : vector<8x16x128xf32>
    %c0_96 = arith.constant 0 : index
    %c6_97 = arith.constant 6 : index
    %c0_98 = arith.constant 0 : index
    %191 = vector.load %arg7[%c0_96, %c6_97, %c0_98] : memref<22x32x128xf32, #tpu.memory_space<vmem>>, vector<8x16x128xf32>
    %192 = vector.broadcast %44 : vector<1x1x128xf32> to vector<8x16x128xf32>
    %193 = arith.mulf %191, %192 : vector<8x16x128xf32>
    %194 = arith.addf %190, %193 : vector<8x16x128xf32>
    %c0_99 = arith.constant 0 : index
    %c7_100 = arith.constant 7 : index
    %c0_101 = arith.constant 0 : index
    %195 = vector.load %arg7[%c0_99, %c7_100, %c0_101] : memref<22x32x128xf32, #tpu.memory_space<vmem>>, vector<8x16x128xf32>
    %196 = vector.broadcast %47 : vector<1x1x128xf32> to vector<8x16x128xf32>
    %197 = arith.mulf %195, %196 : vector<8x16x128xf32>
    %198 = arith.addf %194, %197 : vector<8x16x128xf32>
    %c0_102 = arith.constant 0 : index
    %c8_103 = arith.constant 8 : index
    %c0_104 = arith.constant 0 : index
    %199 = vector.load %arg7[%c0_102, %c8_103, %c0_104] : memref<22x32x128xf32, #tpu.memory_space<vmem>>, vector<8x16x128xf32>
    %200 = vector.broadcast %50 : vector<1x1x128xf32> to vector<8x16x128xf32>
    %201 = arith.mulf %199, %200 : vector<8x16x128xf32>
    %202 = arith.addf %198, %201 : vector<8x16x128xf32>
    %c0_105 = arith.constant 0 : index
    %c9_106 = arith.constant 9 : index
    %c0_107 = arith.constant 0 : index
    %203 = vector.load %arg7[%c0_105, %c9_106, %c0_107] : memref<22x32x128xf32, #tpu.memory_space<vmem>>, vector<8x16x128xf32>
    %204 = vector.broadcast %53 : vector<1x1x128xf32> to vector<8x16x128xf32>
    %205 = arith.mulf %203, %204 : vector<8x16x128xf32>
    %206 = arith.addf %202, %205 : vector<8x16x128xf32>
    %c0_108 = arith.constant 0 : index
    %c10_109 = arith.constant 10 : index
    %c0_110 = arith.constant 0 : index
    %207 = vector.load %arg7[%c0_108, %c10_109, %c0_110] : memref<22x32x128xf32, #tpu.memory_space<vmem>>, vector<8x16x128xf32>
    %208 = vector.broadcast %56 : vector<1x1x128xf32> to vector<8x16x128xf32>
    %209 = arith.mulf %207, %208 : vector<8x16x128xf32>
    %210 = arith.addf %206, %209 : vector<8x16x128xf32>
    %c0_111 = arith.constant 0 : index
    %c11_112 = arith.constant 11 : index
    %c0_113 = arith.constant 0 : index
    %211 = vector.load %arg7[%c0_111, %c11_112, %c0_113] : memref<22x32x128xf32, #tpu.memory_space<vmem>>, vector<8x16x128xf32>
    %212 = vector.broadcast %59 : vector<1x1x128xf32> to vector<8x16x128xf32>
    %213 = arith.mulf %211, %212 : vector<8x16x128xf32>
    %214 = arith.addf %210, %213 : vector<8x16x128xf32>
    %c1_114 = arith.constant 1 : index
    %c5_115 = arith.constant 5 : index
    %c0_116 = arith.constant 0 : index
    %215 = vector.load %arg7[%c1_114, %c5_115, %c0_116] : memref<22x32x128xf32, #tpu.memory_space<vmem>>, vector<8x16x128xf32>
    %216 = vector.broadcast %62 : vector<1x1x128xf32> to vector<8x16x128xf32>
    %217 = arith.mulf %215, %216 : vector<8x16x128xf32>
    %218 = arith.addf %214, %217 : vector<8x16x128xf32>
    %c1_117 = arith.constant 1 : index
    %c6_118 = arith.constant 6 : index
    %c0_119 = arith.constant 0 : index
    %219 = vector.load %arg7[%c1_117, %c6_118, %c0_119] : memref<22x32x128xf32, #tpu.memory_space<vmem>>, vector<8x16x128xf32>
    %220 = vector.broadcast %65 : vector<1x1x128xf32> to vector<8x16x128xf32>
    %221 = arith.mulf %219, %220 : vector<8x16x128xf32>
    %222 = arith.addf %218, %221 : vector<8x16x128xf32>
    %c1_120 = arith.constant 1 : index
    %c7_121 = arith.constant 7 : index
    %c0_122 = arith.constant 0 : index
    %223 = vector.load %arg7[%c1_120, %c7_121, %c0_122] : memref<22x32x128xf32, #tpu.memory_space<vmem>>, vector<8x16x128xf32>
    %224 = vector.broadcast %68 : vector<1x1x128xf32> to vector<8x16x128xf32>
    %225 = arith.mulf %223, %224 : vector<8x16x128xf32>
    %226 = arith.addf %222, %225 : vector<8x16x128xf32>
    %c1_123 = arith.constant 1 : index
    %c8_124 = arith.constant 8 : index
    %c0_125 = arith.constant 0 : index
    %227 = vector.load %arg7[%c1_123, %c8_124, %c0_125] : memref<22x32x128xf32, #tpu.memory_space<vmem>>, vector<8x16x128xf32>
    %228 = vector.broadcast %71 : vector<1x1x128xf32> to vector<8x16x128xf32>
    %229 = arith.mulf %227, %228 : vector<8x16x128xf32>
    %230 = arith.addf %226, %229 : vector<8x16x128xf32>
    %c1_126 = arith.constant 1 : index
    %c9_127 = arith.constant 9 : index
    %c0_128 = arith.constant 0 : index
    %231 = vector.load %arg7[%c1_126, %c9_127, %c0_128] : memref<22x32x128xf32, #tpu.memory_space<vmem>>, vector<8x16x128xf32>
    %232 = vector.broadcast %74 : vector<1x1x128xf32> to vector<8x16x128xf32>
    %233 = arith.mulf %231, %232 : vector<8x16x128xf32>
    %234 = arith.addf %230, %233 : vector<8x16x128xf32>
    %c1_129 = arith.constant 1 : index
    %c10_130 = arith.constant 10 : index
    %c0_131 = arith.constant 0 : index
    %235 = vector.load %arg7[%c1_129, %c10_130, %c0_131] : memref<22x32x128xf32, #tpu.memory_space<vmem>>, vector<8x16x128xf32>
    %236 = vector.broadcast %77 : vector<1x1x128xf32> to vector<8x16x128xf32>
    %237 = arith.mulf %235, %236 : vector<8x16x128xf32>
    %238 = arith.addf %234, %237 : vector<8x16x128xf32>
    %c1_132 = arith.constant 1 : index
    %c11_133 = arith.constant 11 : index
    %c0_134 = arith.constant 0 : index
    %239 = vector.load %arg7[%c1_132, %c11_133, %c0_134] : memref<22x32x128xf32, #tpu.memory_space<vmem>>, vector<8x16x128xf32>
    %240 = vector.broadcast %80 : vector<1x1x128xf32> to vector<8x16x128xf32>
    %241 = arith.mulf %239, %240 : vector<8x16x128xf32>
    %242 = arith.addf %238, %241 : vector<8x16x128xf32>
    %c2_135 = arith.constant 2 : index
    %c5_136 = arith.constant 5 : index
    %c0_137 = arith.constant 0 : index
    %243 = vector.load %arg7[%c2_135, %c5_136, %c0_137] : memref<22x32x128xf32, #tpu.memory_space<vmem>>, vector<8x16x128xf32>
    %244 = vector.broadcast %83 : vector<1x1x128xf32> to vector<8x16x128xf32>
    %245 = arith.mulf %243, %244 : vector<8x16x128xf32>
    %246 = arith.addf %242, %245 : vector<8x16x128xf32>
    %c2_138 = arith.constant 2 : index
    %c6_139 = arith.constant 6 : index
    %c0_140 = arith.constant 0 : index
    %247 = vector.load %arg7[%c2_138, %c6_139, %c0_140] : memref<22x32x128xf32, #tpu.memory_space<vmem>>, vector<8x16x128xf32>
    %248 = vector.broadcast %86 : vector<1x1x128xf32> to vector<8x16x128xf32>
    %249 = arith.mulf %247, %248 : vector<8x16x128xf32>
    %250 = arith.addf %246, %249 : vector<8x16x128xf32>
    %c2_141 = arith.constant 2 : index
    %c7_142 = arith.constant 7 : index
    %c0_143 = arith.constant 0 : index
    %251 = vector.load %arg7[%c2_141, %c7_142, %c0_143] : memref<22x32x128xf32, #tpu.memory_space<vmem>>, vector<8x16x128xf32>
    %252 = vector.broadcast %89 : vector<1x1x128xf32> to vector<8x16x128xf32>
    %253 = arith.mulf %251, %252 : vector<8x16x128xf32>
    %254 = arith.addf %250, %253 : vector<8x16x128xf32>
    %c2_144 = arith.constant 2 : index
    %c8_145 = arith.constant 8 : index
    %c0_146 = arith.constant 0 : index
    %255 = vector.load %arg7[%c2_144, %c8_145, %c0_146] : memref<22x32x128xf32, #tpu.memory_space<vmem>>, vector<8x16x128xf32>
    %256 = vector.broadcast %92 : vector<1x1x128xf32> to vector<8x16x128xf32>
    %257 = arith.mulf %255, %256 : vector<8x16x128xf32>
    %258 = arith.addf %254, %257 : vector<8x16x128xf32>
    %c2_147 = arith.constant 2 : index
    %c9_148 = arith.constant 9 : index
    %c0_149 = arith.constant 0 : index
    %259 = vector.load %arg7[%c2_147, %c9_148, %c0_149] : memref<22x32x128xf32, #tpu.memory_space<vmem>>, vector<8x16x128xf32>
    %260 = vector.broadcast %95 : vector<1x1x128xf32> to vector<8x16x128xf32>
    %261 = arith.mulf %259, %260 : vector<8x16x128xf32>
    %262 = arith.addf %258, %261 : vector<8x16x128xf32>
    %c2_150 = arith.constant 2 : index
    %c10_151 = arith.constant 10 : index
    %c0_152 = arith.constant 0 : index
    %263 = vector.load %arg7[%c2_150, %c10_151, %c0_152] : memref<22x32x128xf32, #tpu.memory_space<vmem>>, vector<8x16x128xf32>
    %264 = vector.broadcast %98 : vector<1x1x128xf32> to vector<8x16x128xf32>
    %265 = arith.mulf %263, %264 : vector<8x16x128xf32>
    %266 = arith.addf %262, %265 : vector<8x16x128xf32>
    %c2_153 = arith.constant 2 : index
    %c11_154 = arith.constant 11 : index
    %c0_155 = arith.constant 0 : index
    %267 = vector.load %arg7[%c2_153, %c11_154, %c0_155] : memref<22x32x128xf32, #tpu.memory_space<vmem>>, vector<8x16x128xf32>
    %268 = vector.broadcast %101 : vector<1x1x128xf32> to vector<8x16x128xf32>
    %269 = arith.mulf %267, %268 : vector<8x16x128xf32>
    %270 = arith.addf %266, %269 : vector<8x16x128xf32>
    %c3_156 = arith.constant 3 : index
    %c5_157 = arith.constant 5 : index
    %c0_158 = arith.constant 0 : index
    %271 = vector.load %arg7[%c3_156, %c5_157, %c0_158] : memref<22x32x128xf32, #tpu.memory_space<vmem>>, vector<8x16x128xf32>
    %272 = vector.broadcast %104 : vector<1x1x128xf32> to vector<8x16x128xf32>
    %273 = arith.mulf %271, %272 : vector<8x16x128xf32>
    %274 = arith.addf %270, %273 : vector<8x16x128xf32>
    %c3_159 = arith.constant 3 : index
    %c6_160 = arith.constant 6 : index
    %c0_161 = arith.constant 0 : index
    %275 = vector.load %arg7[%c3_159, %c6_160, %c0_161] : memref<22x32x128xf32, #tpu.memory_space<vmem>>, vector<8x16x128xf32>
    %276 = vector.broadcast %107 : vector<1x1x128xf32> to vector<8x16x128xf32>
    %277 = arith.mulf %275, %276 : vector<8x16x128xf32>
    %278 = arith.addf %274, %277 : vector<8x16x128xf32>
    %c3_162 = arith.constant 3 : index
    %c7_163 = arith.constant 7 : index
    %c0_164 = arith.constant 0 : index
    %279 = vector.load %arg7[%c3_162, %c7_163, %c0_164] : memref<22x32x128xf32, #tpu.memory_space<vmem>>, vector<8x16x128xf32>
    %280 = vector.broadcast %110 : vector<1x1x128xf32> to vector<8x16x128xf32>
    %281 = arith.mulf %279, %280 : vector<8x16x128xf32>
    %282 = arith.addf %278, %281 : vector<8x16x128xf32>
    %c3_165 = arith.constant 3 : index
    %c8_166 = arith.constant 8 : index
    %c0_167 = arith.constant 0 : index
    %283 = vector.load %arg7[%c3_165, %c8_166, %c0_167] : memref<22x32x128xf32, #tpu.memory_space<vmem>>, vector<8x16x128xf32>
    %284 = vector.broadcast %113 : vector<1x1x128xf32> to vector<8x16x128xf32>
    %285 = arith.mulf %283, %284 : vector<8x16x128xf32>
    %286 = arith.addf %282, %285 : vector<8x16x128xf32>
    %c3_168 = arith.constant 3 : index
    %c9_169 = arith.constant 9 : index
    %c0_170 = arith.constant 0 : index
    %287 = vector.load %arg7[%c3_168, %c9_169, %c0_170] : memref<22x32x128xf32, #tpu.memory_space<vmem>>, vector<8x16x128xf32>
    %288 = vector.broadcast %116 : vector<1x1x128xf32> to vector<8x16x128xf32>
    %289 = arith.mulf %287, %288 : vector<8x16x128xf32>
    %290 = arith.addf %286, %289 : vector<8x16x128xf32>
    %c3_171 = arith.constant 3 : index
    %c10_172 = arith.constant 10 : index
    %c0_173 = arith.constant 0 : index
    %291 = vector.load %arg7[%c3_171, %c10_172, %c0_173] : memref<22x32x128xf32, #tpu.memory_space<vmem>>, vector<8x16x128xf32>
    %292 = vector.broadcast %119 : vector<1x1x128xf32> to vector<8x16x128xf32>
    %293 = arith.mulf %291, %292 : vector<8x16x128xf32>
    %294 = arith.addf %290, %293 : vector<8x16x128xf32>
    %c3_174 = arith.constant 3 : index
    %c11_175 = arith.constant 11 : index
    %c0_176 = arith.constant 0 : index
    %295 = vector.load %arg7[%c3_174, %c11_175, %c0_176] : memref<22x32x128xf32, #tpu.memory_space<vmem>>, vector<8x16x128xf32>
    %296 = vector.broadcast %122 : vector<1x1x128xf32> to vector<8x16x128xf32>
    %297 = arith.mulf %295, %296 : vector<8x16x128xf32>
    %298 = arith.addf %294, %297 : vector<8x16x128xf32>
    %c4_177 = arith.constant 4 : index
    %c5_178 = arith.constant 5 : index
    %c0_179 = arith.constant 0 : index
    %299 = vector.load %arg7[%c4_177, %c5_178, %c0_179] : memref<22x32x128xf32, #tpu.memory_space<vmem>>, vector<8x16x128xf32>
    %300 = vector.broadcast %125 : vector<1x1x128xf32> to vector<8x16x128xf32>
    %301 = arith.mulf %299, %300 : vector<8x16x128xf32>
    %302 = arith.addf %298, %301 : vector<8x16x128xf32>
    %c4_180 = arith.constant 4 : index
    %c6_181 = arith.constant 6 : index
    %c0_182 = arith.constant 0 : index
    %303 = vector.load %arg7[%c4_180, %c6_181, %c0_182] : memref<22x32x128xf32, #tpu.memory_space<vmem>>, vector<8x16x128xf32>
    %304 = vector.broadcast %128 : vector<1x1x128xf32> to vector<8x16x128xf32>
    %305 = arith.mulf %303, %304 : vector<8x16x128xf32>
    %306 = arith.addf %302, %305 : vector<8x16x128xf32>
    %c4_183 = arith.constant 4 : index
    %c7_184 = arith.constant 7 : index
    %c0_185 = arith.constant 0 : index
    %307 = vector.load %arg7[%c4_183, %c7_184, %c0_185] : memref<22x32x128xf32, #tpu.memory_space<vmem>>, vector<8x16x128xf32>
    %308 = vector.broadcast %131 : vector<1x1x128xf32> to vector<8x16x128xf32>
    %309 = arith.mulf %307, %308 : vector<8x16x128xf32>
    %310 = arith.addf %306, %309 : vector<8x16x128xf32>
    %c4_186 = arith.constant 4 : index
    %c8_187 = arith.constant 8 : index
    %c0_188 = arith.constant 0 : index
    %311 = vector.load %arg7[%c4_186, %c8_187, %c0_188] : memref<22x32x128xf32, #tpu.memory_space<vmem>>, vector<8x16x128xf32>
    %312 = vector.broadcast %134 : vector<1x1x128xf32> to vector<8x16x128xf32>
    %313 = arith.mulf %311, %312 : vector<8x16x128xf32>
    %314 = arith.addf %310, %313 : vector<8x16x128xf32>
    %c4_189 = arith.constant 4 : index
    %c9_190 = arith.constant 9 : index
    %c0_191 = arith.constant 0 : index
    %315 = vector.load %arg7[%c4_189, %c9_190, %c0_191] : memref<22x32x128xf32, #tpu.memory_space<vmem>>, vector<8x16x128xf32>
    %316 = vector.broadcast %137 : vector<1x1x128xf32> to vector<8x16x128xf32>
    %317 = arith.mulf %315, %316 : vector<8x16x128xf32>
    %318 = arith.addf %314, %317 : vector<8x16x128xf32>
    %c4_192 = arith.constant 4 : index
    %c10_193 = arith.constant 10 : index
    %c0_194 = arith.constant 0 : index
    %319 = vector.load %arg7[%c4_192, %c10_193, %c0_194] : memref<22x32x128xf32, #tpu.memory_space<vmem>>, vector<8x16x128xf32>
    %320 = vector.broadcast %140 : vector<1x1x128xf32> to vector<8x16x128xf32>
    %321 = arith.mulf %319, %320 : vector<8x16x128xf32>
    %322 = arith.addf %318, %321 : vector<8x16x128xf32>
    %c4_195 = arith.constant 4 : index
    %c11_196 = arith.constant 11 : index
    %c0_197 = arith.constant 0 : index
    %323 = vector.load %arg7[%c4_195, %c11_196, %c0_197] : memref<22x32x128xf32, #tpu.memory_space<vmem>>, vector<8x16x128xf32>
    %324 = vector.broadcast %143 : vector<1x1x128xf32> to vector<8x16x128xf32>
    %325 = arith.mulf %323, %324 : vector<8x16x128xf32>
    %326 = arith.addf %322, %325 : vector<8x16x128xf32>
    %c5_198 = arith.constant 5 : index
    %c5_199 = arith.constant 5 : index
    %c0_200 = arith.constant 0 : index
    %327 = vector.load %arg7[%c5_198, %c5_199, %c0_200] : memref<22x32x128xf32, #tpu.memory_space<vmem>>, vector<8x16x128xf32>
    %328 = vector.broadcast %146 : vector<1x1x128xf32> to vector<8x16x128xf32>
    %329 = arith.mulf %327, %328 : vector<8x16x128xf32>
    %330 = arith.addf %326, %329 : vector<8x16x128xf32>
    %c5_201 = arith.constant 5 : index
    %c6_202 = arith.constant 6 : index
    %c0_203 = arith.constant 0 : index
    %331 = vector.load %arg7[%c5_201, %c6_202, %c0_203] : memref<22x32x128xf32, #tpu.memory_space<vmem>>, vector<8x16x128xf32>
    %332 = vector.broadcast %149 : vector<1x1x128xf32> to vector<8x16x128xf32>
    %333 = arith.mulf %331, %332 : vector<8x16x128xf32>
    %334 = arith.addf %330, %333 : vector<8x16x128xf32>
    %c5_204 = arith.constant 5 : index
    %c7_205 = arith.constant 7 : index
    %c0_206 = arith.constant 0 : index
    %335 = vector.load %arg7[%c5_204, %c7_205, %c0_206] : memref<22x32x128xf32, #tpu.memory_space<vmem>>, vector<8x16x128xf32>
    %336 = vector.broadcast %152 : vector<1x1x128xf32> to vector<8x16x128xf32>
    %337 = arith.mulf %335, %336 : vector<8x16x128xf32>
    %338 = arith.addf %334, %337 : vector<8x16x128xf32>
    %c5_207 = arith.constant 5 : index
    %c8_208 = arith.constant 8 : index
    %c0_209 = arith.constant 0 : index
    %339 = vector.load %arg7[%c5_207, %c8_208, %c0_209] : memref<22x32x128xf32, #tpu.memory_space<vmem>>, vector<8x16x128xf32>
    %340 = vector.broadcast %155 : vector<1x1x128xf32> to vector<8x16x128xf32>
    %341 = arith.mulf %339, %340 : vector<8x16x128xf32>
    %342 = arith.addf %338, %341 : vector<8x16x128xf32>
    %c5_210 = arith.constant 5 : index
    %c9_211 = arith.constant 9 : index
    %c0_212 = arith.constant 0 : index
    %343 = vector.load %arg7[%c5_210, %c9_211, %c0_212] : memref<22x32x128xf32, #tpu.memory_space<vmem>>, vector<8x16x128xf32>
    %344 = vector.broadcast %158 : vector<1x1x128xf32> to vector<8x16x128xf32>
    %345 = arith.mulf %343, %344 : vector<8x16x128xf32>
    %346 = arith.addf %342, %345 : vector<8x16x128xf32>
    %c5_213 = arith.constant 5 : index
    %c10_214 = arith.constant 10 : index
    %c0_215 = arith.constant 0 : index
    %347 = vector.load %arg7[%c5_213, %c10_214, %c0_215] : memref<22x32x128xf32, #tpu.memory_space<vmem>>, vector<8x16x128xf32>
    %348 = vector.broadcast %161 : vector<1x1x128xf32> to vector<8x16x128xf32>
    %349 = arith.mulf %347, %348 : vector<8x16x128xf32>
    %350 = arith.addf %346, %349 : vector<8x16x128xf32>
    %c5_216 = arith.constant 5 : index
    %c11_217 = arith.constant 11 : index
    %c0_218 = arith.constant 0 : index
    %351 = vector.load %arg7[%c5_216, %c11_217, %c0_218] : memref<22x32x128xf32, #tpu.memory_space<vmem>>, vector<8x16x128xf32>
    %352 = vector.broadcast %164 : vector<1x1x128xf32> to vector<8x16x128xf32>
    %353 = arith.mulf %351, %352 : vector<8x16x128xf32>
    %354 = arith.addf %350, %353 : vector<8x16x128xf32>
    %c6_219 = arith.constant 6 : index
    %c5_220 = arith.constant 5 : index
    %c0_221 = arith.constant 0 : index
    %355 = vector.load %arg7[%c6_219, %c5_220, %c0_221] : memref<22x32x128xf32, #tpu.memory_space<vmem>>, vector<8x16x128xf32>
    %356 = vector.broadcast %167 : vector<1x1x128xf32> to vector<8x16x128xf32>
    %357 = arith.mulf %355, %356 : vector<8x16x128xf32>
    %358 = arith.addf %354, %357 : vector<8x16x128xf32>
    %c6_222 = arith.constant 6 : index
    %c6_223 = arith.constant 6 : index
    %c0_224 = arith.constant 0 : index
    %359 = vector.load %arg7[%c6_222, %c6_223, %c0_224] : memref<22x32x128xf32, #tpu.memory_space<vmem>>, vector<8x16x128xf32>
    %360 = vector.broadcast %170 : vector<1x1x128xf32> to vector<8x16x128xf32>
    %361 = arith.mulf %359, %360 : vector<8x16x128xf32>
    %362 = arith.addf %358, %361 : vector<8x16x128xf32>
    %c6_225 = arith.constant 6 : index
    %c7_226 = arith.constant 7 : index
    %c0_227 = arith.constant 0 : index
    %363 = vector.load %arg7[%c6_225, %c7_226, %c0_227] : memref<22x32x128xf32, #tpu.memory_space<vmem>>, vector<8x16x128xf32>
    %364 = vector.broadcast %173 : vector<1x1x128xf32> to vector<8x16x128xf32>
    %365 = arith.mulf %363, %364 : vector<8x16x128xf32>
    %366 = arith.addf %362, %365 : vector<8x16x128xf32>
    %c6_228 = arith.constant 6 : index
    %c8_229 = arith.constant 8 : index
    %c0_230 = arith.constant 0 : index
    %367 = vector.load %arg7[%c6_228, %c8_229, %c0_230] : memref<22x32x128xf32, #tpu.memory_space<vmem>>, vector<8x16x128xf32>
    %368 = vector.broadcast %176 : vector<1x1x128xf32> to vector<8x16x128xf32>
    %369 = arith.mulf %367, %368 : vector<8x16x128xf32>
    %370 = arith.addf %366, %369 : vector<8x16x128xf32>
    %c6_231 = arith.constant 6 : index
    %c9_232 = arith.constant 9 : index
    %c0_233 = arith.constant 0 : index
    %371 = vector.load %arg7[%c6_231, %c9_232, %c0_233] : memref<22x32x128xf32, #tpu.memory_space<vmem>>, vector<8x16x128xf32>
    %372 = vector.broadcast %179 : vector<1x1x128xf32> to vector<8x16x128xf32>
    %373 = arith.mulf %371, %372 : vector<8x16x128xf32>
    %374 = arith.addf %370, %373 : vector<8x16x128xf32>
    %c6_234 = arith.constant 6 : index
    %c10_235 = arith.constant 10 : index
    %c0_236 = arith.constant 0 : index
    %375 = vector.load %arg7[%c6_234, %c10_235, %c0_236] : memref<22x32x128xf32, #tpu.memory_space<vmem>>, vector<8x16x128xf32>
    %376 = vector.broadcast %182 : vector<1x1x128xf32> to vector<8x16x128xf32>
    %377 = arith.mulf %375, %376 : vector<8x16x128xf32>
    %378 = arith.addf %374, %377 : vector<8x16x128xf32>
    %c6_237 = arith.constant 6 : index
    %c11_238 = arith.constant 11 : index
    %c0_239 = arith.constant 0 : index
    %379 = vector.load %arg7[%c6_237, %c11_238, %c0_239] : memref<22x32x128xf32, #tpu.memory_space<vmem>>, vector<8x16x128xf32>
    %380 = vector.broadcast %185 : vector<1x1x128xf32> to vector<8x16x128xf32>
    %381 = arith.mulf %379, %380 : vector<8x16x128xf32>
    %382 = arith.addf %378, %381 : vector<8x16x128xf32>
    %c64_i32 = arith.constant 64 : i32
    %383 = tpu.dynamic_rotate %382 by %c64_i32 dim 2 : vector<8x16x128xf32>, i32 -> vector<8x16x128xf32>
    %384 = arith.addf %382, %383 : vector<8x16x128xf32>
    %385 = vector.broadcast %187 : vector<1x1x128xf32> to vector<8x16x128xf32>
    %386 = arith.addf %384, %385 : vector<8x16x128xf32>
    %cst = arith.constant 0.000000e+00 : f32
    %387 = vector.broadcast %cst : f32 to vector<8x16x128xf32>
    %388 = arith.subf %387, %386 : vector<8x16x128xf32>
    %389 = math.exp %388 : vector<8x16x128xf32>
    %cst_240 = arith.constant 1.000000e+00 : f32
    %390 = vector.broadcast %cst_240 : f32 to vector<8x16x128xf32>
    %391 = arith.addf %390, %389 : vector<8x16x128xf32>
    %392 = tpu.reciprocal %391 {approx = true} : vector<8x16x128xf32> -> vector<8x16x128xf32>
    %c0_241 = arith.constant 0 : index
    %c0_242 = arith.constant 0 : index
    %c0_243 = arith.constant 0 : index
    %c0_244 = arith.constant 0 : index
    %393 = vector.load %arg6[%c0_241, %c0_242, %c0_243, %c0_244] : memref<1x16x16x128xf32, #tpu.memory_space<vmem>>, vector<1x8x16x128xf32>
    %394 = vector.shape_cast %393 : vector<1x8x16x128xf32> to vector<8x16x128xf32>
    %395 = vector.shape_cast %392 : vector<8x16x128xf32> to vector<1x8x16x128xf32>
    tpu.vector_store %arg6[%c0_241, %c0_242, %c0_243, %c0_244], %395 {strides = array<i32>} : memref<1x16x16x128xf32, #tpu.memory_space<vmem>>, vector<1x8x16x128xf32>,
    %c8_245 = arith.constant 8 : index
    %c5_246 = arith.constant 5 : index
    %c0_247 = arith.constant 0 : index
    %396 = vector.load %arg7[%c8_245, %c5_246, %c0_247] : memref<22x32x128xf32, #tpu.memory_space<vmem>>, vector<8x16x128xf32>
    %397 = vector.broadcast %41 : vector<1x1x128xf32> to vector<8x16x128xf32>
    %398 = arith.mulf %396, %397 : vector<8x16x128xf32>
    %c8_248 = arith.constant 8 : index
    %c6_249 = arith.constant 6 : index
    %c0_250 = arith.constant 0 : index
    %399 = vector.load %arg7[%c8_248, %c6_249, %c0_250] : memref<22x32x128xf32, #tpu.memory_space<vmem>>, vector<8x16x128xf32>
    %400 = vector.broadcast %44 : vector<1x1x128xf32> to vector<8x16x128xf32>
    %401 = arith.mulf %399, %400 : vector<8x16x128xf32>
    %402 = arith.addf %398, %401 : vector<8x16x128xf32>
    %c8_251 = arith.constant 8 : index
    %c7_252 = arith.constant 7 : index
    %c0_253 = arith.constant 0 : index
    %403 = vector.load %arg7[%c8_251, %c7_252, %c0_253] : memref<22x32x128xf32, #tpu.memory_space<vmem>>, vector<8x16x128xf32>
    %404 = vector.broadcast %47 : vector<1x1x128xf32> to vector<8x16x128xf32>
    %405 = arith.mulf %403, %404 : vector<8x16x128xf32>
    %406 = arith.addf %402, %405 : vector<8x16x128xf32>
    %c8_254 = arith.constant 8 : index
    %c8_255 = arith.constant 8 : index
    %c0_256 = arith.constant 0 : index
    %407 = vector.load %arg7[%c8_254, %c8_255, %c0_256] : memref<22x32x128xf32, #tpu.memory_space<vmem>>, vector<8x16x128xf32>
    %408 = vector.broadcast %50 : vector<1x1x128xf32> to vector<8x16x128xf32>
    %409 = arith.mulf %407, %408 : vector<8x16x128xf32>
    %410 = arith.addf %406, %409 : vector<8x16x128xf32>
    %c8_257 = arith.constant 8 : index
    %c9_258 = arith.constant 9 : index
    %c0_259 = arith.constant 0 : index
    %411 = vector.load %arg7[%c8_257, %c9_258, %c0_259] : memref<22x32x128xf32, #tpu.memory_space<vmem>>, vector<8x16x128xf32>
    %412 = vector.broadcast %53 : vector<1x1x128xf32> to vector<8x16x128xf32>
    %413 = arith.mulf %411, %412 : vector<8x16x128xf32>
    %414 = arith.addf %410, %413 : vector<8x16x128xf32>
    %c8_260 = arith.constant 8 : index
    %c10_261 = arith.constant 10 : index
    %c0_262 = arith.constant 0 : index
    %415 = vector.load %arg7[%c8_260, %c10_261, %c0_262] : memref<22x32x128xf32, #tpu.memory_space<vmem>>, vector<8x16x128xf32>
    %416 = vector.broadcast %56 : vector<1x1x128xf32> to vector<8x16x128xf32>
    %417 = arith.mulf %415, %416 : vector<8x16x128xf32>
    %418 = arith.addf %414, %417 : vector<8x16x128xf32>
    %c8_263 = arith.constant 8 : index
    %c11_264 = arith.constant 11 : index
    %c0_265 = arith.constant 0 : index
    %419 = vector.load %arg7[%c8_263, %c11_264, %c0_265] : memref<22x32x128xf32, #tpu.memory_space<vmem>>, vector<8x16x128xf32>
    %420 = vector.broadcast %59 : vector<1x1x128xf32> to vector<8x16x128xf32>
    %421 = arith.mulf %419, %420 : vector<8x16x128xf32>
    %422 = arith.addf %418, %421 : vector<8x16x128xf32>
    %c9_266 = arith.constant 9 : index
    %c5_267 = arith.constant 5 : index
    %c0_268 = arith.constant 0 : index
    %423 = vector.load %arg7[%c9_266, %c5_267, %c0_268] : memref<22x32x128xf32, #tpu.memory_space<vmem>>, vector<8x16x128xf32>
    %424 = vector.broadcast %62 : vector<1x1x128xf32> to vector<8x16x128xf32>
    %425 = arith.mulf %423, %424 : vector<8x16x128xf32>
    %426 = arith.addf %422, %425 : vector<8x16x128xf32>
    %c9_269 = arith.constant 9 : index
    %c6_270 = arith.constant 6 : index
    %c0_271 = arith.constant 0 : index
    %427 = vector.load %arg7[%c9_269, %c6_270, %c0_271] : memref<22x32x128xf32, #tpu.memory_space<vmem>>, vector<8x16x128xf32>
    %428 = vector.broadcast %65 : vector<1x1x128xf32> to vector<8x16x128xf32>
    %429 = arith.mulf %427, %428 : vector<8x16x128xf32>
    %430 = arith.addf %426, %429 : vector<8x16x128xf32>
    %c9_272 = arith.constant 9 : index
    %c7_273 = arith.constant 7 : index
    %c0_274 = arith.constant 0 : index
    %431 = vector.load %arg7[%c9_272, %c7_273, %c0_274] : memref<22x32x128xf32, #tpu.memory_space<vmem>>, vector<8x16x128xf32>
    %432 = vector.broadcast %68 : vector<1x1x128xf32> to vector<8x16x128xf32>
    %433 = arith.mulf %431, %432 : vector<8x16x128xf32>
    %434 = arith.addf %430, %433 : vector<8x16x128xf32>
    %c9_275 = arith.constant 9 : index
    %c8_276 = arith.constant 8 : index
    %c0_277 = arith.constant 0 : index
    %435 = vector.load %arg7[%c9_275, %c8_276, %c0_277] : memref<22x32x128xf32, #tpu.memory_space<vmem>>, vector<8x16x128xf32>
    %436 = vector.broadcast %71 : vector<1x1x128xf32> to vector<8x16x128xf32>
    %437 = arith.mulf %435, %436 : vector<8x16x128xf32>
    %438 = arith.addf %434, %437 : vector<8x16x128xf32>
    %c9_278 = arith.constant 9 : index
    %c9_279 = arith.constant 9 : index
    %c0_280 = arith.constant 0 : index
    %439 = vector.load %arg7[%c9_278, %c9_279, %c0_280] : memref<22x32x128xf32, #tpu.memory_space<vmem>>, vector<8x16x128xf32>
    %440 = vector.broadcast %74 : vector<1x1x128xf32> to vector<8x16x128xf32>
    %441 = arith.mulf %439, %440 : vector<8x16x128xf32>
    %442 = arith.addf %438, %441 : vector<8x16x128xf32>
    %c9_281 = arith.constant 9 : index
    %c10_282 = arith.constant 10 : index
    %c0_283 = arith.constant 0 : index
    %443 = vector.load %arg7[%c9_281, %c10_282, %c0_283] : memref<22x32x128xf32, #tpu.memory_space<vmem>>, vector<8x16x128xf32>
    %444 = vector.broadcast %77 : vector<1x1x128xf32> to vector<8x16x128xf32>
    %445 = arith.mulf %443, %444 : vector<8x16x128xf32>
    %446 = arith.addf %442, %445 : vector<8x16x128xf32>
    %c9_284 = arith.constant 9 : index
    %c11_285 = arith.constant 11 : index
    %c0_286 = arith.constant 0 : index
    %447 = vector.load %arg7[%c9_284, %c11_285, %c0_286] : memref<22x32x128xf32, #tpu.memory_space<vmem>>, vector<8x16x128xf32>
    %448 = vector.broadcast %80 : vector<1x1x128xf32> to vector<8x16x128xf32>
    %449 = arith.mulf %447, %448 : vector<8x16x128xf32>
    %450 = arith.addf %446, %449 : vector<8x16x128xf32>
    %c10_287 = arith.constant 10 : index
    %c5_288 = arith.constant 5 : index
    %c0_289 = arith.constant 0 : index
    %451 = vector.load %arg7[%c10_287, %c5_288, %c0_289] : memref<22x32x128xf32, #tpu.memory_space<vmem>>, vector<8x16x128xf32>
    %452 = vector.broadcast %83 : vector<1x1x128xf32> to vector<8x16x128xf32>
    %453 = arith.mulf %451, %452 : vector<8x16x128xf32>
    %454 = arith.addf %450, %453 : vector<8x16x128xf32>
    %c10_290 = arith.constant 10 : index
    %c6_291 = arith.constant 6 : index
    %c0_292 = arith.constant 0 : index
    %455 = vector.load %arg7[%c10_290, %c6_291, %c0_292] : memref<22x32x128xf32, #tpu.memory_space<vmem>>, vector<8x16x128xf32>
    %456 = vector.broadcast %86 : vector<1x1x128xf32> to vector<8x16x128xf32>
    %457 = arith.mulf %455, %456 : vector<8x16x128xf32>
    %458 = arith.addf %454, %457 : vector<8x16x128xf32>
    %c10_293 = arith.constant 10 : index
    %c7_294 = arith.constant 7 : index
    %c0_295 = arith.constant 0 : index
    %459 = vector.load %arg7[%c10_293, %c7_294, %c0_295] : memref<22x32x128xf32, #tpu.memory_space<vmem>>, vector<8x16x128xf32>
    %460 = vector.broadcast %89 : vector<1x1x128xf32> to vector<8x16x128xf32>
    %461 = arith.mulf %459, %460 : vector<8x16x128xf32>
    %462 = arith.addf %458, %461 : vector<8x16x128xf32>
    %c10_296 = arith.constant 10 : index
    %c8_297 = arith.constant 8 : index
    %c0_298 = arith.constant 0 : index
    %463 = vector.load %arg7[%c10_296, %c8_297, %c0_298] : memref<22x32x128xf32, #tpu.memory_space<vmem>>, vector<8x16x128xf32>
    %464 = vector.broadcast %92 : vector<1x1x128xf32> to vector<8x16x128xf32>
    %465 = arith.mulf %463, %464 : vector<8x16x128xf32>
    %466 = arith.addf %462, %465 : vector<8x16x128xf32>
    %c10_299 = arith.constant 10 : index
    %c9_300 = arith.constant 9 : index
    %c0_301 = arith.constant 0 : index
    %467 = vector.load %arg7[%c10_299, %c9_300, %c0_301] : memref<22x32x128xf32, #tpu.memory_space<vmem>>, vector<8x16x128xf32>
    %468 = vector.broadcast %95 : vector<1x1x128xf32> to vector<8x16x128xf32>
    %469 = arith.mulf %467, %468 : vector<8x16x128xf32>
    %470 = arith.addf %466, %469 : vector<8x16x128xf32>
    %c10_302 = arith.constant 10 : index
    %c10_303 = arith.constant 10 : index
    %c0_304 = arith.constant 0 : index
    %471 = vector.load %arg7[%c10_302, %c10_303, %c0_304] : memref<22x32x128xf32, #tpu.memory_space<vmem>>, vector<8x16x128xf32>
    %472 = vector.broadcast %98 : vector<1x1x128xf32> to vector<8x16x128xf32>
    %473 = arith.mulf %471, %472 : vector<8x16x128xf32>
    %474 = arith.addf %470, %473 : vector<8x16x128xf32>
    %c10_305 = arith.constant 10 : index
    %c11_306 = arith.constant 11 : index
    %c0_307 = arith.constant 0 : index
    %475 = vector.load %arg7[%c10_305, %c11_306, %c0_307] : memref<22x32x128xf32, #tpu.memory_space<vmem>>, vector<8x16x128xf32>
    %476 = vector.broadcast %101 : vector<1x1x128xf32> to vector<8x16x128xf32>
    %477 = arith.mulf %475, %476 : vector<8x16x128xf32>
    %478 = arith.addf %474, %477 : vector<8x16x128xf32>
    %c11_308 = arith.constant 11 : index
    %c5_309 = arith.constant 5 : index
    %c0_310 = arith.constant 0 : index
    %479 = vector.load %arg7[%c11_308, %c5_309, %c0_310] : memref<22x32x128xf32, #tpu.memory_space<vmem>>, vector<8x16x128xf32>
    %480 = vector.broadcast %104 : vector<1x1x128xf32> to vector<8x16x128xf32>
    %481 = arith.mulf %479, %480 : vector<8x16x128xf32>
    %482 = arith.addf %478, %481 : vector<8x16x128xf32>
    %c11_311 = arith.constant 11 : index
    %c6_312 = arith.constant 6 : index
    %c0_313 = arith.constant 0 : index
    %483 = vector.load %arg7[%c11_311, %c6_312, %c0_313] : memref<22x32x128xf32, #tpu.memory_space<vmem>>, vector<8x16x128xf32>
    %484 = vector.broadcast %107 : vector<1x1x128xf32> to vector<8x16x128xf32>
    %485 = arith.mulf %483, %484 : vector<8x16x128xf32>
    %486 = arith.addf %482, %485 : vector<8x16x128xf32>
    %c11_314 = arith.constant 11 : index
    %c7_315 = arith.constant 7 : index
    %c0_316 = arith.constant 0 : index
    %487 = vector.load %arg7[%c11_314, %c7_315, %c0_316] : memref<22x32x128xf32, #tpu.memory_space<vmem>>, vector<8x16x128xf32>
    %488 = vector.broadcast %110 : vector<1x1x128xf32> to vector<8x16x128xf32>
    %489 = arith.mulf %487, %488 : vector<8x16x128xf32>
    %490 = arith.addf %486, %489 : vector<8x16x128xf32>
    %c11_317 = arith.constant 11 : index
    %c8_318 = arith.constant 8 : index
    %c0_319 = arith.constant 0 : index
    %491 = vector.load %arg7[%c11_317, %c8_318, %c0_319] : memref<22x32x128xf32, #tpu.memory_space<vmem>>, vector<8x16x128xf32>
    %492 = vector.broadcast %113 : vector<1x1x128xf32> to vector<8x16x128xf32>
    %493 = arith.mulf %491, %492 : vector<8x16x128xf32>
    %494 = arith.addf %490, %493 : vector<8x16x128xf32>
    %c11_320 = arith.constant 11 : index
    %c9_321 = arith.constant 9 : index
    %c0_322 = arith.constant 0 : index
    %495 = vector.load %arg7[%c11_320, %c9_321, %c0_322] : memref<22x32x128xf32, #tpu.memory_space<vmem>>, vector<8x16x128xf32>
    %496 = vector.broadcast %116 : vector<1x1x128xf32> to vector<8x16x128xf32>
    %497 = arith.mulf %495, %496 : vector<8x16x128xf32>
    %498 = arith.addf %494, %497 : vector<8x16x128xf32>
    %c11_323 = arith.constant 11 : index
    %c10_324 = arith.constant 10 : index
    %c0_325 = arith.constant 0 : index
    %499 = vector.load %arg7[%c11_323, %c10_324, %c0_325] : memref<22x32x128xf32, #tpu.memory_space<vmem>>, vector<8x16x128xf32>
    %500 = vector.broadcast %119 : vector<1x1x128xf32> to vector<8x16x128xf32>
    %501 = arith.mulf %499, %500 : vector<8x16x128xf32>
    %502 = arith.addf %498, %501 : vector<8x16x128xf32>
    %c11_326 = arith.constant 11 : index
    %c11_327 = arith.constant 11 : index
    %c0_328 = arith.constant 0 : index
    %503 = vector.load %arg7[%c11_326, %c11_327, %c0_328] : memref<22x32x128xf32, #tpu.memory_space<vmem>>, vector<8x16x128xf32>
    %504 = vector.broadcast %122 : vector<1x1x128xf32> to vector<8x16x128xf32>
    %505 = arith.mulf %503, %504 : vector<8x16x128xf32>
    %506 = arith.addf %502, %505 : vector<8x16x128xf32>
    %c12_329 = arith.constant 12 : index
    %c5_330 = arith.constant 5 : index
    %c0_331 = arith.constant 0 : index
    %507 = vector.load %arg7[%c12_329, %c5_330, %c0_331] : memref<22x32x128xf32, #tpu.memory_space<vmem>>, vector<8x16x128xf32>
    %508 = vector.broadcast %125 : vector<1x1x128xf32> to vector<8x16x128xf32>
    %509 = arith.mulf %507, %508 : vector<8x16x128xf32>
    %510 = arith.addf %506, %509 : vector<8x16x128xf32>
    %c12_332 = arith.constant 12 : index
    %c6_333 = arith.constant 6 : index
    %c0_334 = arith.constant 0 : index
    %511 = vector.load %arg7[%c12_332, %c6_333, %c0_334] : memref<22x32x128xf32, #tpu.memory_space<vmem>>, vector<8x16x128xf32>
    %512 = vector.broadcast %128 : vector<1x1x128xf32> to vector<8x16x128xf32>
    %513 = arith.mulf %511, %512 : vector<8x16x128xf32>
    %514 = arith.addf %510, %513 : vector<8x16x128xf32>
    %c12_335 = arith.constant 12 : index
    %c7_336 = arith.constant 7 : index
    %c0_337 = arith.constant 0 : index
    %515 = vector.load %arg7[%c12_335, %c7_336, %c0_337] : memref<22x32x128xf32, #tpu.memory_space<vmem>>, vector<8x16x128xf32>
    %516 = vector.broadcast %131 : vector<1x1x128xf32> to vector<8x16x128xf32>
    %517 = arith.mulf %515, %516 : vector<8x16x128xf32>
    %518 = arith.addf %514, %517 : vector<8x16x128xf32>
    %c12_338 = arith.constant 12 : index
    %c8_339 = arith.constant 8 : index
    %c0_340 = arith.constant 0 : index
    %519 = vector.load %arg7[%c12_338, %c8_339, %c0_340] : memref<22x32x128xf32, #tpu.memory_space<vmem>>, vector<8x16x128xf32>
    %520 = vector.broadcast %134 : vector<1x1x128xf32> to vector<8x16x128xf32>
    %521 = arith.mulf %519, %520 : vector<8x16x128xf32>
    %522 = arith.addf %518, %521 : vector<8x16x128xf32>
    %c12_341 = arith.constant 12 : index
    %c9_342 = arith.constant 9 : index
    %c0_343 = arith.constant 0 : index
    %523 = vector.load %arg7[%c12_341, %c9_342, %c0_343] : memref<22x32x128xf32, #tpu.memory_space<vmem>>, vector<8x16x128xf32>
    %524 = vector.broadcast %137 : vector<1x1x128xf32> to vector<8x16x128xf32>
    %525 = arith.mulf %523, %524 : vector<8x16x128xf32>
    %526 = arith.addf %522, %525 : vector<8x16x128xf32>
    %c12_344 = arith.constant 12 : index
    %c10_345 = arith.constant 10 : index
    %c0_346 = arith.constant 0 : index
    %527 = vector.load %arg7[%c12_344, %c10_345, %c0_346] : memref<22x32x128xf32, #tpu.memory_space<vmem>>, vector<8x16x128xf32>
    %528 = vector.broadcast %140 : vector<1x1x128xf32> to vector<8x16x128xf32>
    %529 = arith.mulf %527, %528 : vector<8x16x128xf32>
    %530 = arith.addf %526, %529 : vector<8x16x128xf32>
    %c12_347 = arith.constant 12 : index
    %c11_348 = arith.constant 11 : index
    %c0_349 = arith.constant 0 : index
    %531 = vector.load %arg7[%c12_347, %c11_348, %c0_349] : memref<22x32x128xf32, #tpu.memory_space<vmem>>, vector<8x16x128xf32>
    %532 = vector.broadcast %143 : vector<1x1x128xf32> to vector<8x16x128xf32>
    %533 = arith.mulf %531, %532 : vector<8x16x128xf32>
    %534 = arith.addf %530, %533 : vector<8x16x128xf32>
    %c13_350 = arith.constant 13 : index
    %c5_351 = arith.constant 5 : index
    %c0_352 = arith.constant 0 : index
    %535 = vector.load %arg7[%c13_350, %c5_351, %c0_352] : memref<22x32x128xf32, #tpu.memory_space<vmem>>, vector<8x16x128xf32>
    %536 = vector.broadcast %146 : vector<1x1x128xf32> to vector<8x16x128xf32>
    %537 = arith.mulf %535, %536 : vector<8x16x128xf32>
    %538 = arith.addf %534, %537 : vector<8x16x128xf32>
    %c13_353 = arith.constant 13 : index
    %c6_354 = arith.constant 6 : index
    %c0_355 = arith.constant 0 : index
    %539 = vector.load %arg7[%c13_353, %c6_354, %c0_355] : memref<22x32x128xf32, #tpu.memory_space<vmem>>, vector<8x16x128xf32>
    %540 = vector.broadcast %149 : vector<1x1x128xf32> to vector<8x16x128xf32>
    %541 = arith.mulf %539, %540 : vector<8x16x128xf32>
    %542 = arith.addf %538, %541 : vector<8x16x128xf32>
    %c13_356 = arith.constant 13 : index
    %c7_357 = arith.constant 7 : index
    %c0_358 = arith.constant 0 : index
    %543 = vector.load %arg7[%c13_356, %c7_357, %c0_358] : memref<22x32x128xf32, #tpu.memory_space<vmem>>, vector<8x16x128xf32>
    %544 = vector.broadcast %152 : vector<1x1x128xf32> to vector<8x16x128xf32>
    %545 = arith.mulf %543, %544 : vector<8x16x128xf32>
    %546 = arith.addf %542, %545 : vector<8x16x128xf32>
    %c13_359 = arith.constant 13 : index
    %c8_360 = arith.constant 8 : index
    %c0_361 = arith.constant 0 : index
    %547 = vector.load %arg7[%c13_359, %c8_360, %c0_361] : memref<22x32x128xf32, #tpu.memory_space<vmem>>, vector<8x16x128xf32>
    %548 = vector.broadcast %155 : vector<1x1x128xf32> to vector<8x16x128xf32>
    %549 = arith.mulf %547, %548 : vector<8x16x128xf32>
    %550 = arith.addf %546, %549 : vector<8x16x128xf32>
    %c13_362 = arith.constant 13 : index
    %c9_363 = arith.constant 9 : index
    %c0_364 = arith.constant 0 : index
    %551 = vector.load %arg7[%c13_362, %c9_363, %c0_364] : memref<22x32x128xf32, #tpu.memory_space<vmem>>, vector<8x16x128xf32>
    %552 = vector.broadcast %158 : vector<1x1x128xf32> to vector<8x16x128xf32>
    %553 = arith.mulf %551, %552 : vector<8x16x128xf32>
    %554 = arith.addf %550, %553 : vector<8x16x128xf32>
    %c13_365 = arith.constant 13 : index
    %c10_366 = arith.constant 10 : index
    %c0_367 = arith.constant 0 : index
    %555 = vector.load %arg7[%c13_365, %c10_366, %c0_367] : memref<22x32x128xf32, #tpu.memory_space<vmem>>, vector<8x16x128xf32>
    %556 = vector.broadcast %161 : vector<1x1x128xf32> to vector<8x16x128xf32>
    %557 = arith.mulf %555, %556 : vector<8x16x128xf32>
    %558 = arith.addf %554, %557 : vector<8x16x128xf32>
    %c13_368 = arith.constant 13 : index
    %c11_369 = arith.constant 11 : index
    %c0_370 = arith.constant 0 : index
    %559 = vector.load %arg7[%c13_368, %c11_369, %c0_370] : memref<22x32x128xf32, #tpu.memory_space<vmem>>, vector<8x16x128xf32>
    %560 = vector.broadcast %164 : vector<1x1x128xf32> to vector<8x16x128xf32>
    %561 = arith.mulf %559, %560 : vector<8x16x128xf32>
    %562 = arith.addf %558, %561 : vector<8x16x128xf32>
    %c14_371 = arith.constant 14 : index
    %c5_372 = arith.constant 5 : index
    %c0_373 = arith.constant 0 : index
    %563 = vector.load %arg7[%c14_371, %c5_372, %c0_373] : memref<22x32x128xf32, #tpu.memory_space<vmem>>, vector<8x16x128xf32>
    %564 = vector.broadcast %167 : vector<1x1x128xf32> to vector<8x16x128xf32>
    %565 = arith.mulf %563, %564 : vector<8x16x128xf32>
    %566 = arith.addf %562, %565 : vector<8x16x128xf32>
    %c14_374 = arith.constant 14 : index
    %c6_375 = arith.constant 6 : index
    %c0_376 = arith.constant 0 : index
    %567 = vector.load %arg7[%c14_374, %c6_375, %c0_376] : memref<22x32x128xf32, #tpu.memory_space<vmem>>, vector<8x16x128xf32>
    %568 = vector.broadcast %170 : vector<1x1x128xf32> to vector<8x16x128xf32>
    %569 = arith.mulf %567, %568 : vector<8x16x128xf32>
    %570 = arith.addf %566, %569 : vector<8x16x128xf32>
    %c14_377 = arith.constant 14 : index
    %c7_378 = arith.constant 7 : index
    %c0_379 = arith.constant 0 : index
    %571 = vector.load %arg7[%c14_377, %c7_378, %c0_379] : memref<22x32x128xf32, #tpu.memory_space<vmem>>, vector<8x16x128xf32>
    %572 = vector.broadcast %173 : vector<1x1x128xf32> to vector<8x16x128xf32>
    %573 = arith.mulf %571, %572 : vector<8x16x128xf32>
    %574 = arith.addf %570, %573 : vector<8x16x128xf32>
    %c14_380 = arith.constant 14 : index
    %c8_381 = arith.constant 8 : index
    %c0_382 = arith.constant 0 : index
    %575 = vector.load %arg7[%c14_380, %c8_381, %c0_382] : memref<22x32x128xf32, #tpu.memory_space<vmem>>, vector<8x16x128xf32>
    %576 = vector.broadcast %176 : vector<1x1x128xf32> to vector<8x16x128xf32>
    %577 = arith.mulf %575, %576 : vector<8x16x128xf32>
    %578 = arith.addf %574, %577 : vector<8x16x128xf32>
    %c14_383 = arith.constant 14 : index
    %c9_384 = arith.constant 9 : index
    %c0_385 = arith.constant 0 : index
    %579 = vector.load %arg7[%c14_383, %c9_384, %c0_385] : memref<22x32x128xf32, #tpu.memory_space<vmem>>, vector<8x16x128xf32>
    %580 = vector.broadcast %179 : vector<1x1x128xf32> to vector<8x16x128xf32>
    %581 = arith.mulf %579, %580 : vector<8x16x128xf32>
    %582 = arith.addf %578, %581 : vector<8x16x128xf32>
    %c14_386 = arith.constant 14 : index
    %c10_387 = arith.constant 10 : index
    %c0_388 = arith.constant 0 : index
    %583 = vector.load %arg7[%c14_386, %c10_387, %c0_388] : memref<22x32x128xf32, #tpu.memory_space<vmem>>, vector<8x16x128xf32>
    %584 = vector.broadcast %182 : vector<1x1x128xf32> to vector<8x16x128xf32>
    %585 = arith.mulf %583, %584 : vector<8x16x128xf32>
    %586 = arith.addf %582, %585 : vector<8x16x128xf32>
    %c14_389 = arith.constant 14 : index
    %c11_390 = arith.constant 11 : index
    %c0_391 = arith.constant 0 : index
    %587 = vector.load %arg7[%c14_389, %c11_390, %c0_391] : memref<22x32x128xf32, #tpu.memory_space<vmem>>, vector<8x16x128xf32>
    %588 = vector.broadcast %185 : vector<1x1x128xf32> to vector<8x16x128xf32>
    %589 = arith.mulf %587, %588 : vector<8x16x128xf32>
    %590 = arith.addf %586, %589 : vector<8x16x128xf32>
    %c64_i32_392 = arith.constant 64 : i32
    %591 = tpu.dynamic_rotate %590 by %c64_i32_392 dim 2 : vector<8x16x128xf32>, i32 -> vector<8x16x128xf32>
    %592 = arith.addf %590, %591 : vector<8x16x128xf32>
    %593 = vector.broadcast %187 : vector<1x1x128xf32> to vector<8x16x128xf32>
    %594 = arith.addf %592, %593 : vector<8x16x128xf32>
    %cst_393 = arith.constant 0.000000e+00 : f32
    %595 = vector.broadcast %cst_393 : f32 to vector<8x16x128xf32>
    %596 = arith.subf %595, %594 : vector<8x16x128xf32>
    %597 = math.exp %596 : vector<8x16x128xf32>
    %cst_394 = arith.constant 1.000000e+00 : f32
    %598 = vector.broadcast %cst_394 : f32 to vector<8x16x128xf32>
    %599 = arith.addf %598, %597 : vector<8x16x128xf32>
    %600 = tpu.reciprocal %599 {approx = true} : vector<8x16x128xf32> -> vector<8x16x128xf32>
    %c0_395 = arith.constant 0 : index
    %c8_396 = arith.constant 8 : index
    %c0_397 = arith.constant 0 : index
    %c0_398 = arith.constant 0 : index
    %601 = vector.load %arg6[%c0_395, %c8_396, %c0_397, %c0_398] : memref<1x16x16x128xf32, #tpu.memory_space<vmem>>, vector<1x8x16x128xf32>
    %602 = vector.shape_cast %601 : vector<1x8x16x128xf32> to vector<8x16x128xf32>
    %603 = vector.shape_cast %600 : vector<8x16x128xf32> to vector<1x8x16x128xf32>
    tpu.vector_store %arg6[%c0_395, %c8_396, %c0_397, %c0_398], %603 {strides = array<i32>} : memref<1x16x16x128xf32, #tpu.memory_space<vmem>>, vector<1x8x16x128xf32>,
    return
  }
  func.func @transform_1(%arg0: i32, %arg1: i32, %arg2: i32) -> (i32, i32) {
    %c0_i32 = arith.constant 0 : i32
    %c0_i32_0 = arith.constant 0 : i32
    return %c0_i32, %arg1 : i32, i32
  }
  func.func @transform_2(%arg0: i32, %arg1: i32, %arg2: i32) -> (i32, i32) {
    %c0_i32 = arith.constant 0 : i32
    %c0_i32_0 = arith.constant 0 : i32
    return %c0_i32, %arg1 : i32, i32
  }
  func.func @transform_3(%arg0: i32, %arg1: i32, %arg2: i32) -> (i32, i32, i32, i32) {
    %c0_i32 = arith.constant 0 : i32
    %c0_i32_0 = arith.constant 0 : i32
    return %arg0, %arg2, %c0_i32, %arg1 : i32, i32, i32, i32
  }
}

</mosaic_0001>

<llo_original>
// kernel: tpu_custom_call.1
$region0: #{tpu_custom_call.1}
  #allocation0 [shape = 'u32[]', space=smem, size = 0x4, offset = 0x4, fixed_abs, tag = 'smem constant byte address 0x4 - core index']
  #allocation1 [shape = 'u32[144,128]{1,0:T(1,128)}', space=vmem, size = 0x12000, scoped, tag = 'internal scratch']
  #allocation2 [shape = 'f32[22,32,128]{2,1,0:T(8,128)}', space=vmem, size = 0x58000, scoped, tag = 'scratch operand']
  #allocation3 [shape = 's32[1]{0}', space=sflag, size = 0x4, scoped, tag = 'scratch operand']
  #allocation8 [shape = 's32[]', space=sflag, size = 0x4, offset = 0, fixed_abs, tag = 'sflag constant byte address 0x0 - dummy sync flag']
  %s0 = inlined_call_operand.hbm [shape: f32[2,22,16,128], index: 0, kind: input, shape index: {}]
  %s1 = inlined_call_operand.hbm [shape: f32[49,128], index: 1, kind: input, shape index: {}]
  %s2 = inlined_call_operand.vmem [shape: f32[1,128], index: 2, kind: input, shape index: {}]
  %s3 = inlined_call_operand.hbm [shape: f32[2,16,16,128], index: 3, kind: output, shape index: {}]
  %s4 = sld [smem:[#allocation0]]
  $region45: #{tpu_custom_call.1} parent=0
    _
  %s6 = ssub.s32 1, %s4
  %s7 = scalar_select 0, %s6, %s4
  $region1: #{tpu_custom_call.1} parent=0
    #allocation4 [shape = 'u8[28672]{0}', space=vmem, size = 0x7000, scoped, tag = 'input window, operand 1, single buffered']
    #allocation5 [shape = 's32[2]{0}', space=sflag, size = 0x8, scoped, tag = 'scoped memory for tpu_custom_call.1']
    #allocation6 [shape = 's32[2]{0}', space=sflag, size = 0x8, scoped, tag = 'scoped memory for tpu_custom_call.1']
    #allocation7 [shape = 'u8[262144]{0}', space=vmem, size = 0x40000, scoped, tag = 'output window, operand 0']
    %8 = vsyncpa [#allocation5], 0
    %9 = vsyncpa [#allocation6], 0
    %s10 = scalar_lea.sflag [#allocation6], 1
    %11 = vsyncpa %s10, 0
    loop: start=0, step=1, limit=4
    $region2: #{tpu_custom_call.1} parent=1 // loop_pre_header
      _
    $region3: #{tpu_custom_call.1} parent=1 // loop_header
      %s13 = sphi 0, %s17
      %p14 = scmp.ge.s32.totalorder %s13, 4
      %s20 = sphi 0, %s39
      %s21 = sphi 0, %s35
      %s22 = sphi 0, %s31
      %s23 = sphi 0, %s20
      %s24 = sphi 0, %s21
      %s25 = sphi 0, %s22
      %s26 = sphi 0, %s23
      %s27 = sphi 0, %s24
      %s28 = sphi 0, %s25
      %s42 = sphi 0, %s44
      %s45 = sphi 0, %s42
      %s46 = sphi 0, %s45
      %s62 = sphi 0, %s46
      %s68 = sphi 0, %s70
      %s71 = sphi 0, %s68
      %s72 = sphi 0, %s71
      %s88 = sphi 0, %s72
      %s98 = sphi 0, %s100
      %s101 = sphi 0, %s98
      %s102 = sphi 0, %s101
      %s118 = sphi 0, %s102
    $region4: #{tpu_custom_call.1} parent=1 // loop_header_branch
      %16 = sbr.rel (%p14) target = $region8
    $region5: #{tpu_custom_call.1} parent=1 // loop_body
      %s18 = ssub.s32 %s13, 1
      %s19 = ssub.s32 %s13, 2
      %s29 = sadd.s32 1, %s22
      %p30 = scmp.ge.s32.totalorder %s29, 1
      %s31 = scalar_select %p30, 0, %s29
      %s32 = sadd.s32 1, %s21
      %s33 = scalar_select %p30, %s32, %s21
      %p34 = scmp.ge.s32.totalorder %s33, 1
      %s35 = scalar_select %p34, 0, %s33
      %s36 = sadd.s32 1, %s20
      %s37 = scalar_select %p34, %s36, %s20
      %p38 = scmp.ge.s32.totalorder %s37, 2
      %s39 = scalar_select %p38, 0, %s37
      %s40 = ssub.s32 %s21, %s35
      %p41 = scmp.eq.s32.totalorder %s40, 0
      %s43 = sadd.s32 %s42, 1
      %s44 = scalar_select %p41, %s42, %s43
      %p47 = pneg %p41
      %p48 = scmp.eq.s32.totalorder %s13, 1
      %p49 = por %p47, %p48
      %p50 = scmp.ne.s32.totalorder %s42, %s45
      %p51 = scmp.eq.s32.totalorder %s13, 0
      %p52 = por %p50, %p51
      %p53 = scmp.ne.s32.totalorder %s42, %s45
      %p54 = scmp.eq.s32.totalorder %s18, 1
      %p55 = por %p53, %p54
      %p56 = scmp.ne.s32.totalorder %s45, %s46
      %p57 = scmp.eq.s32.totalorder %s18, 0
      %p58 = por %p56, %p57
      %p59 = scmp.ne.s32.totalorder %s45, %s46
      %p60 = scmp.eq.s32.totalorder %s19, 1
      %p61 = por %p59, %p60
      %p63 = scmp.ne.s32.totalorder %s46, %s62
      %p64 = scmp.eq.s32.totalorder %s19, 0
      %p65 = por %p63, %p64
      %s66 = ssub.s32 %s21, %s35
      %p67 = scmp.eq.s32.totalorder %s66, 0
      %s69 = sadd.s32 %s68, 1
      %s70 = scalar_select %p67, %s68, %s69
      %p73 = pneg %p67
      %p74 = scmp.eq.s32.totalorder %s13, 1
      %p75 = por %p73, %p74
      %p76 = scmp.ne.s32.totalorder %s68, %s71
      %p77 = scmp.eq.s32.totalorder %s13, 0
      %p78 = por %p76, %p77
      %p79 = scmp.ne.s32.totalorder %s68, %s71
      %p80 = scmp.eq.s32.totalorder %s18, 1
      %p81 = por %p79, %p80
      %p82 = scmp.ne.s32.totalorder %s71, %s72
      %p83 = scmp.eq.s32.totalorder %s18, 0
      %p84 = por %p82, %p83
      %p85 = scmp.ne.s32.totalorder %s71, %s72
      %p86 = scmp.eq.s32.totalorder %s19, 1
      %p87 = por %p85, %p86
      %p89 = scmp.ne.s32.totalorder %s72, %s88
      %p90 = scmp.eq.s32.totalorder %s19, 0
      %p91 = por %p89, %p90
      %s92 = ssub.s32 %s20, %s39
      %s93 = ssub.s32 %s22, %s31
      %s94 = sor.u32 %s92, %s93
      %s95 = ssub.s32 %s21, %s35
      %s96 = sor.u32 %s94, %s95
      %p97 = scmp.eq.s32.totalorder %s96, 0
      %s99 = sadd.s32 %s98, 1
      %s100 = scalar_select %p97, %s98, %s99
      %p103 = pneg %p97
      %p104 = scmp.eq.s32.totalorder %s13, 1
      %p105 = por %p103, %p104
      %p106 = scmp.ne.s32.totalorder %s98, %s101
      %p107 = scmp.eq.s32.totalorder %s13, 0
      %p108 = por %p106, %p107
      %p109 = scmp.ne.s32.totalorder %s98, %s101
      %p110 = scmp.eq.s32.totalorder %s18, 1
      %p111 = por %p109, %p110
      %p112 = scmp.ne.s32.totalorder %s101, %s102
      %p113 = scmp.eq.s32.totalorder %s18, 0
      %p114 = por %p112, %p113
      %p115 = scmp.ne.s32.totalorder %s101, %s102
      %p116 = scmp.eq.s32.totalorder %s19, 1
      %p117 = por %p115, %p116
      %p119 = scmp.ne.s32.totalorder %s102, %s118
      %p120 = scmp.eq.s32.totalorder %s19, 0
      %p121 = por %p119, %p120
      %p122 = scmp.le.s32.totalorder 1, %s13
      %p123 = scmp.lt.s32.totalorder %s13, 3
      %p124 = pnand %p122, %p123
      %p125 = pneg %p124
      // Predicated region
      $region9: #{tpu_custom_call.1} parent=5 // pred_check
        _
      $region10: #{tpu_custom_call.1} parent=5 // pred_check_branch
        %127 = sbr.rel (%p124) target = $region12
      $region11: #{tpu_custom_call.1} parent=5 // pred_region
        %s128 = ssub.s32 %s13, 1
        // Predicated region
        $region13: #{tpu_custom_call.1} parent=11 // pred_check
          %p129 = pneg %p58
        $region14: #{tpu_custom_call.1} parent=11 // pred_check_branch
          %131 = sbr.rel (%p129) target = $region16
        $region15: #{tpu_custom_call.1} parent=11 // pred_region
          %s133 = ssub.s32 896, 896
          %134 = vsyncadd [#allocation5], %s133
          %s135 = smul.addr %s24, 128
          %s136 = scalar_lea.hbm %s1, %s135
          %s137 = sshll.u32 [#allocation4], 4
          %s138 = int_to_ptr.vmem [resolvable:$true] %s137
          %143 = dma.hbm_to_vmem [thread:$0]  %s136, 896, %s138, [#allocation5], 128, 128, 8
        $region16: #{tpu_custom_call.1} parent=11 // pred_fallthru
          _
        // Predicated region
        $region17: #{tpu_custom_call.1} parent=11 // pred_check
          %p144 = pneg %p84
        $region18: #{tpu_custom_call.1} parent=11 // pred_check_branch
          %146 = sbr.rel (%p144) target = $region20
        $region19: #{tpu_custom_call.1} parent=11 // pred_region
          %p147 = scmp.lt.s32.totalorder %s24, 0
          %s148 = scalar_select %p147, %s24, 0
          %s149 = scalar_lea.vmem %s2, %s148
        $region20: #{tpu_custom_call.1} parent=11 // pred_fallthru
          _
      $region12: #{tpu_custom_call.1} parent=5 // pred_fallthru
        _
      %p150 = scmp.lt.s32.totalorder %s13, 2
      // Predicated region
      $region21: #{tpu_custom_call.1} parent=5 // pred_check
        %p151 = pneg %p150
      $region22: #{tpu_custom_call.1} parent=5 // pred_check_branch
        %153 = sbr.rel (%p151) target = $region24
      $region23: #{tpu_custom_call.1} parent=5 // pred_region
        _
      $region24: #{tpu_custom_call.1} parent=5 // pred_fallthru
        _
      %p154 = scmp.le.s32.totalorder 1, %s13
      %p155 = scmp.lt.s32.totalorder %s13, 3
      %p156 = pnand %p154, %p155
      %p157 = pneg %p156
      // Predicated region
      $region25: #{tpu_custom_call.1} parent=5 // pred_check
        _
      $region26: #{tpu_custom_call.1} parent=5 // pred_check_branch
        %159 = sbr.rel (%p156) target = $region28
      $region27: #{tpu_custom_call.1} parent=5 // pred_region
        %s160 = ssub.s32 %s13, 1
        // Predicated region
        $region29: #{tpu_custom_call.1} parent=27 // pred_check
          %p161 = pneg %p58
        $region30: #{tpu_custom_call.1} parent=27 // pred_check_branch
          %163 = sbr.rel (%p161) target = $region32
        $region31: #{tpu_custom_call.1} parent=27 // pred_region
          %164 = dma.done [#allocation5], 896
        $region32: #{tpu_custom_call.1} parent=27 // pred_fallthru
          _
        %p165 = pneg %p58
        %p166 = pneg %p55
        %p167 = scmp.lt.s32.totalorder %s24, 0
        %s168 = scalar_select %p167, %s24, 0
        %s169 = scalar_lea.vmem %s2, %s168
        %p170 = pneg %p84
        %p171 = pneg %p81
        %p172 = pneg %p114
        %p173 = pneg %p111
        %s174 = sand.u32 %s101, 1
        %s175 = scalar_lea.sflag [#allocation6], %s174
        %s176 = sand.u32 %s101, 1
        %s177 = smul.addr %s176, 256
        %s178 = scalar_lea.vmem [#allocation7], %s177
        %p179 = scmp.lt.s32.totalorder %s24, 0
        %s180 = scalar_select %p179, %s24, 0
        %s181 = scalar_lea.vmem %s2, %s180
        %s182 = smul.u32 16, %s25
        %s183 = smul.u32 %s24, 128
        %s184 = smul.u32 %s25, 16
        %s185 = sshra.s32 %s183, 7
        %s186 = sand.u32 %s183, 127
        %s187 = smul.u32 %s184, 16
        %s188 = sadd.s32 %s185, %s187
        %s189 = smul.u32 %s23, 352
        %s190 = sadd.s32 %s188, %s189
        %s191 = smul.addr %s190, 16
        %s192 = scalar_lea.hbm %s0, %s191
        %s193 = scalar_lea.vmem [#allocation2], 8
        %s195 = sshll.u32 %s193, 4
        %s196 = int_to_ptr.vmem [resolvable:$true] %s195
        %198 = dma.hbm_to_vmem [thread:$0]  %s192, 5632, %s196, [#allocation3], 256, 512, 16
        %s199 = smul.u32 22, 16
        %s200 = smul.u32 %s199, 1
        %s201 = sshll.u32 %s200, 4
        %202 = dma.done [#allocation3], %s201
        %v203 = vld [vmem:[#allocation2 + $0x9] sm:$0x1]
        %v204 = vld [vmem:[#allocation2 + $0x29] sm:$0x1]
        %v205 = vld [vmem:[#allocation2 + $0x49] sm:$0x1]
        %v206 = vld [vmem:[#allocation2 + $0x69] sm:$0x1]
        %v207 = vld [vmem:[#allocation2 + $0x89] sm:$0x1]
        %v208 = vld [vmem:[#allocation2 + $0xa9] sm:$0x1]
        %v209 = vld [vmem:[#allocation2 + $0xc9] sm:$0x1]
        %v210 = vld [vmem:[#allocation2 + $0xe9] sm:$0x1]
        %v211 = vld [vmem:[#allocation2 + $0x109] sm:$0x1]
        %v212 = vld [vmem:[#allocation2 + $0x129] sm:$0x1]
        %v213 = vld [vmem:[#allocation2 + $0x149] sm:$0x1]
        %v214 = vld [vmem:[#allocation2 + $0x169] sm:$0x1]
        %v215 = vld [vmem:[#allocation2 + $0x189] sm:$0x1]
        %v216 = vld [vmem:[#allocation2 + $0x1a9] sm:$0x1]
        %v217 = vld [vmem:[#allocation2 + $0x1c9] sm:$0x1]
        %v218 = vld [vmem:[#allocation2 + $0x1e9] sm:$0x1]
        %v219 = vld [vmem:[#allocation2 + $0x209] sm:$0x1]
        %v220 = vld [vmem:[#allocation2 + $0x229] sm:$0x1]
        %v221 = vld [vmem:[#allocation2 + $0x249] sm:$0x1]
        %v222 = vld [vmem:[#allocation2 + $0x269] sm:$0x1]
        %v223 = vld [vmem:[#allocation2 + $0x289] sm:$0x1]
        %v224 = vld [vmem:[#allocation2 + $0x2a9] sm:$0x1]
        %225 = vst [vmem:[#allocation2 + $0x7] sm:$0x1] %v203
        %226 = vst [vmem:[#allocation2 + $0x27] sm:$0x1] %v204
        %227 = vst [vmem:[#allocation2 + $0x47] sm:$0x1] %v205
        %228 = vst [vmem:[#allocation2 + $0x67] sm:$0x1] %v206
        %229 = vst [vmem:[#allocation2 + $0x87] sm:$0x1] %v207
        %230 = vst [vmem:[#allocation2 + $0xa7] sm:$0x1] %v208
        %231 = vst [vmem:[#allocation2 + $0xc7] sm:$0x1] %v209
        %232 = vst [vmem:[#allocation2 + $0xe7] sm:$0x1] %v210
        %233 = vst [vmem:[#allocation2 + $0x107] sm:$0x1] %v211
        %234 = vst [vmem:[#allocation2 + $0x127] sm:$0x1] %v212
        %235 = vst [vmem:[#allocation2 + $0x147] sm:$0x1] %v213
        %236 = vst [vmem:[#allocation2 + $0x167] sm:$0x1] %v214
        %237 = vst [vmem:[#allocation2 + $0x187] sm:$0x1] %v215
        %238 = vst [vmem:[#allocation2 + $0x1a7] sm:$0x1] %v216
        %239 = vst [vmem:[#allocation2 + $0x1c7] sm:$0x1] %v217
        %240 = vst [vmem:[#allocation2 + $0x1e7] sm:$0x1] %v218
        %241 = vst [vmem:[#allocation2 + $0x207] sm:$0x1] %v219
        %242 = vst [vmem:[#allocation2 + $0x227] sm:$0x1] %v220
        %243 = vst [vmem:[#allocation2 + $0x247] sm:$0x1] %v221
        %244 = vst [vmem:[#allocation2 + $0x267] sm:$0x1] %v222
        %245 = vst [vmem:[#allocation2 + $0x287] sm:$0x1] %v223
        %246 = vst [vmem:[#allocation2 + $0x2a7] sm:$0x1] %v224
        %v247 = vld [vmem:[#allocation2 + $0x16] sm:$0x1]
        %v248 = vld [vmem:[#allocation2 + $0x36] sm:$0x1]
        %v249 = vld [vmem:[#allocation2 + $0x56] sm:$0x1]
        %v250 = vld [vmem:[#allocation2 + $0x76] sm:$0x1]
        %v251 = vld [vmem:[#allocation2 + $0x96] sm:$0x1]
        %v252 = vld [vmem:[#allocation2 + $0xb6] sm:$0x1]
        %v253 = vld [vmem:[#allocation2 + $0xd6] sm:$0x1]
        %v254 = vld [vmem:[#allocation2 + $0xf6] sm:$0x1]
        %v255 = vld [vmem:[#allocation2 + $0x116] sm:$0x1]
        %v256 = vld [vmem:[#allocation2 + $0x136] sm:$0x1]
        %v257 = vld [vmem:[#allocation2 + $0x156] sm:$0x1]
        %v258 = vld [vmem:[#allocation2 + $0x176] sm:$0x1]
        %v259 = vld [vmem:[#allocation2 + $0x196] sm:$0x1]
        %v260 = vld [vmem:[#allocation2 + $0x1b6] sm:$0x1]
        %v261 = vld [vmem:[#allocation2 + $0x1d6] sm:$0x1]
        %v262 = vld [vmem:[#allocation2 + $0x1f6] sm:$0x1]
        %v263 = vld [vmem:[#allocation2 + $0x216] sm:$0x1]
        %v264 = vld [vmem:[#allocation2 + $0x236] sm:$0x1]
        %v265 = vld [vmem:[#allocation2 + $0x256] sm:$0x1]
        %v266 = vld [vmem:[#allocation2 + $0x276] sm:$0x1]
        %v267 = vld [vmem:[#allocation2 + $0x296] sm:$0x1]
        %v268 = vld [vmem:[#allocation2 + $0x2b6] sm:$0x1]
        %269 = vst [vmem:[#allocation2 + $0x18] sm:$0x1] %v247
        %270 = vst [vmem:[#allocation2 + $0x38] sm:$0x1] %v248
        %271 = vst [vmem:[#allocation2 + $0x58] sm:$0x1] %v249
        %272 = vst [vmem:[#allocation2 + $0x78] sm:$0x1] %v250
        %273 = vst [vmem:[#allocation2 + $0x98] sm:$0x1] %v251
        %274 = vst [vmem:[#allocation2 + $0xb8] sm:$0x1] %v252
        %275 = vst [vmem:[#allocation2 + $0xd8] sm:$0x1] %v253
        %276 = vst [vmem:[#allocation2 + $0xf8] sm:$0x1] %v254
        %277 = vst [vmem:[#allocation2 + $0x118] sm:$0x1] %v255
        %278 = vst [vmem:[#allocation2 + $0x138] sm:$0x1] %v256
        %279 = vst [vmem:[#allocation2 + $0x158] sm:$0x1] %v257
        %280 = vst [vmem:[#allocation2 + $0x178] sm:$0x1] %v258
        %281 = vst [vmem:[#allocation2 + $0x198] sm:$0x1] %v259
        %282 = vst [vmem:[#allocation2 + $0x1b8] sm:$0x1] %v260
        %283 = vst [vmem:[#allocation2 + $0x1d8] sm:$0x1] %v261
        %284 = vst [vmem:[#allocation2 + $0x1f8] sm:$0x1] %v262
        %285 = vst [vmem:[#allocation2 + $0x218] sm:$0x1] %v263
        %286 = vst [vmem:[#allocation2 + $0x238] sm:$0x1] %v264
        %287 = vst [vmem:[#allocation2 + $0x258] sm:$0x1] %v265
        %288 = vst [vmem:[#allocation2 + $0x278] sm:$0x1] %v266
        %289 = vst [vmem:[#allocation2 + $0x298] sm:$0x1] %v267
        %290 = vst [vmem:[#allocation2 + $0x2b8] sm:$0x1] %v268
        %v291 = vld [vmem:[#allocation2 + $0xa] sm:$0x1]
        %v292 = vld [vmem:[#allocation2 + $0x2a] sm:$0x1]
        %v293 = vld [vmem:[#allocation2 + $0x4a] sm:$0x1]
        %v294 = vld [vmem:[#allocation2 + $0x6a] sm:$0x1]
        %v295 = vld [vmem:[#allocation2 + $0x8a] sm:$0x1]
        %v296 = vld [vmem:[#allocation2 + $0xaa] sm:$0x1]
        %v297 = vld [vmem:[#allocation2 + $0xca] sm:$0x1]
        %v298 = vld [vmem:[#allocation2 + $0xea] sm:$0x1]
        %v299 = vld [vmem:[#allocation2 + $0x10a] sm:$0x1]
        %v300 = vld [vmem:[#allocation2 + $0x12a] sm:$0x1]
        %v301 = vld [vmem:[#allocation2 + $0x14a] sm:$0x1]
        %v302 = vld [vmem:[#allocation2 + $0x16a] sm:$0x1]
        %v303 = vld [vmem:[#allocation2 + $0x18a] sm:$0x1]
        %v304 = vld [vmem:[#allocation2 + $0x1aa] sm:$0x1]
        %v305 = vld [vmem:[#allocation2 + $0x1ca] sm:$0x1]
        %v306 = vld [vmem:[#allocation2 + $0x1ea] sm:$0x1]
        %v307 = vld [vmem:[#allocation2 + $0x20a] sm:$0x1]
        %v308 = vld [vmem:[#allocation2 + $0x22a] sm:$0x1]
        %v309 = vld [vmem:[#allocation2 + $0x24a] sm:$0x1]
        %v310 = vld [vmem:[#allocation2 + $0x26a] sm:$0x1]
        %v311 = vld [vmem:[#allocation2 + $0x28a] sm:$0x1]
        %v312 = vld [vmem:[#allocation2 + $0x2aa] sm:$0x1]
        %313 = vst [vmem:[#allocation2 + $0x6] sm:$0x1] %v291
        %314 = vst [vmem:[#allocation2 + $0x26] sm:$0x1] %v292
        %315 = vst [vmem:[#allocation2 + $0x46] sm:$0x1] %v293
        %316 = vst [vmem:[#allocation2 + $0x66] sm:$0x1] %v294
        %317 = vst [vmem:[#allocation2 + $0x86] sm:$0x1] %v295
        %318 = vst [vmem:[#allocation2 + $0xa6] sm:$0x1] %v296
        %319 = vst [vmem:[#allocation2 + $0xc6] sm:$0x1] %v297
        %320 = vst [vmem:[#allocation2 + $0xe6] sm:$0x1] %v298
        %321 = vst [vmem:[#allocation2 + $0x106] sm:$0x1] %v299
        %322 = vst [vmem:[#allocation2 + $0x126] sm:$0x1] %v300
        %323 = vst [vmem:[#allocation2 + $0x146] sm:$0x1] %v301
        %324 = vst [vmem:[#allocation2 + $0x166] sm:$0x1] %v302
        %325 = vst [vmem:[#allocation2 + $0x186] sm:$0x1] %v303
        %326 = vst [vmem:[#allocation2 + $0x1a6] sm:$0x1] %v304
        %327 = vst [vmem:[#allocation2 + $0x1c6] sm:$0x1] %v305
        %328 = vst [vmem:[#allocation2 + $0x1e6] sm:$0x1] %v306
        %329 = vst [vmem:[#allocation2 + $0x206] sm:$0x1] %v307
        %330 = vst [vmem:[#allocation2 + $0x226] sm:$0x1] %v308
        %331 = vst [vmem:[#allocation2 + $0x246] sm:$0x1] %v309
        %332 = vst [vmem:[#allocation2 + $0x266] sm:$0x1] %v310
        %333 = vst [vmem:[#allocation2 + $0x286] sm:$0x1] %v311
        %334 = vst [vmem:[#allocation2 + $0x2a6] sm:$0x1] %v312
        %v335 = vld [vmem:[#allocation2 + $0x15] sm:$0x1]
        %v336 = vld [vmem:[#allocation2 + $0x35] sm:$0x1]
        %v337 = vld [vmem:[#allocation2 + $0x55] sm:$0x1]
        %v338 = vld [vmem:[#allocation2 + $0x75] sm:$0x1]
        %v339 = vld [vmem:[#allocation2 + $0x95] sm:$0x1]
        %v340 = vld [vmem:[#allocation2 + $0xb5] sm:$0x1]
        %v341 = vld [vmem:[#allocation2 + $0xd5] sm:$0x1]
        %v342 = vld [vmem:[#allocation2 + $0xf5] sm:$0x1]
        %v343 = vld [vmem:[#allocation2 + $0x115] sm:$0x1]
        %v344 = vld [vmem:[#allocation2 + $0x135] sm:$0x1]
        %v345 = vld [vmem:[#allocation2 + $0x155] sm:$0x1]
        %v346 = vld [vmem:[#allocation2 + $0x175] sm:$0x1]
        %v347 = vld [vmem:[#allocation2 + $0x195] sm:$0x1]
        %v348 = vld [vmem:[#allocation2 + $0x1b5] sm:$0x1]
        %v349 = vld [vmem:[#allocation2 + $0x1d5] sm:$0x1]
        %v350 = vld [vmem:[#allocation2 + $0x1f5] sm:$0x1]
        %v351 = vld [vmem:[#allocation2 + $0x215] sm:$0x1]
        %v352 = vld [vmem:[#allocation2 + $0x235] sm:$0x1]
        %v353 = vld [vmem:[#allocation2 + $0x255] sm:$0x1]
        %v354 = vld [vmem:[#allocation2 + $0x275] sm:$0x1]
        %v355 = vld [vmem:[#allocation2 + $0x295] sm:$0x1]
        %v356 = vld [vmem:[#allocation2 + $0x2b5] sm:$0x1]
        %357 = vst [vmem:[#allocation2 + $0x19] sm:$0x1] %v335
        %358 = vst [vmem:[#allocation2 + $0x39] sm:$0x1] %v336
        %359 = vst [vmem:[#allocation2 + $0x59] sm:$0x1] %v337
        %360 = vst [vmem:[#allocation2 + $0x79] sm:$0x1] %v338
        %361 = vst [vmem:[#allocation2 + $0x99] sm:$0x1] %v339
        %362 = vst [vmem:[#allocation2 + $0xb9] sm:$0x1] %v340
        %363 = vst [vmem:[#allocation2 + $0xd9] sm:$0x1] %v341
        %364 = vst [vmem:[#allocation2 + $0xf9] sm:$0x1] %v342
        %365 = vst [vmem:[#allocation2 + $0x119] sm:$0x1] %v343
        %366 = vst [vmem:[#allocation2 + $0x139] sm:$0x1] %v344
        %367 = vst [vmem:[#allocation2 + $0x159] sm:$0x1] %v345
        %368 = vst [vmem:[#allocation2 + $0x179] sm:$0x1] %v346
        %369 = vst [vmem:[#allocation2 + $0x199] sm:$0x1] %v347
        %370 = vst [vmem:[#allocation2 + $0x1b9] sm:$0x1] %v348
        %371 = vst [vmem:[#allocation2 + $0x1d9] sm:$0x1] %v349
        %372 = vst [vmem:[#allocation2 + $0x1f9] sm:$0x1] %v350
        %373 = vst [vmem:[#allocation2 + $0x219] sm:$0x1] %v351
        %374 = vst [vmem:[#allocation2 + $0x239] sm:$0x1] %v352
        %375 = vst [vmem:[#allocation2 + $0x259] sm:$0x1] %v353
        %376 = vst [vmem:[#allocation2 + $0x279] sm:$0x1] %v354
        %377 = vst [vmem:[#allocation2 + $0x299] sm:$0x1] %v355
        %378 = vst [vmem:[#allocation2 + $0x2b9] sm:$0x1] %v356
        %v379 = vld [vmem:[#allocation2 + $0xb] sm:$0x1]
        %v380 = vld [vmem:[#allocation2 + $0x2b] sm:$0x1]
        %v381 = vld [vmem:[#allocation2 + $0x4b] sm:$0x1]
        %v382 = vld [vmem:[#allocation2 + $0x6b] sm:$0x1]
        %v383 = vld [vmem:[#allocation2 + $0x8b] sm:$0x1]
        %v384 = vld [vmem:[#allocation2 + $0xab] sm:$0x1]
        %v385 = vld [vmem:[#allocation2 + $0xcb] sm:$0x1]
        %v386 = vld [vmem:[#allocation2 + $0xeb] sm:$0x1]
        %v387 = vld [vmem:[#allocation2 + $0x10b] sm:$0x1]
        %v388 = vld [vmem:[#allocation2 + $0x12b] sm:$0x1]
        %v389 = vld [vmem:[#allocation2 + $0x14b] sm:$0x1]
        %v390 = vld [vmem:[#allocation2 + $0x16b] sm:$0x1]
        %v391 = vld [vmem:[#allocation2 + $0x18b] sm:$0x1]
        %v392 = vld [vmem:[#allocation2 + $0x1ab] sm:$0x1]
        %v393 = vld [vmem:[#allocation2 + $0x1cb] sm:$0x1]
        %v394 = vld [vmem:[#allocation2 + $0x1eb] sm:$0x1]
        %v395 = vld [vmem:[#allocation2 + $0x20b] sm:$0x1]
        %v396 = vld [vmem:[#allocation2 + $0x22b] sm:$0x1]
        %v397 = vld [vmem:[#allocation2 + $0x24b] sm:$0x1]
        %v398 = vld [vmem:[#allocation2 + $0x26b] sm:$0x1]
        %v399 = vld [vmem:[#allocation2 + $0x28b] sm:$0x1]
        %v400 = vld [vmem:[#allocation2 + $0x2ab] sm:$0x1]
        %401 = vst [vmem:[#allocation2 + $0x5] sm:$0x1] %v379
        %402 = vst [vmem:[#allocation2 + $0x25] sm:$0x1] %v380
        %403 = vst [vmem:[#allocation2 + $0x45] sm:$0x1] %v381
        %404 = vst [vmem:[#allocation2 + $0x65] sm:$0x1] %v382
        %405 = vst [vmem:[#allocation2 + $0x85] sm:$0x1] %v383
        %406 = vst [vmem:[#allocation2 + $0xa5] sm:$0x1] %v384
        %407 = vst [vmem:[#allocation2 + $0xc5] sm:$0x1] %v385
        %408 = vst [vmem:[#allocation2 + $0xe5] sm:$0x1] %v386
        %409 = vst [vmem:[#allocation2 + $0x105] sm:$0x1] %v387
        %410 = vst [vmem:[#allocation2 + $0x125] sm:$0x1] %v388
        %411 = vst [vmem:[#allocation2 + $0x145] sm:$0x1] %v389
        %412 = vst [vmem:[#allocation2 + $0x165] sm:$0x1] %v390
        %413 = vst [vmem:[#allocation2 + $0x185] sm:$0x1] %v391
        %414 = vst [vmem:[#allocation2 + $0x1a5] sm:$0x1] %v392
        %415 = vst [vmem:[#allocation2 + $0x1c5] sm:$0x1] %v393
        %416 = vst [vmem:[#allocation2 + $0x1e5] sm:$0x1] %v394
        %417 = vst [vmem:[#allocation2 + $0x205] sm:$0x1] %v395
        %418 = vst [vmem:[#allocation2 + $0x225] sm:$0x1] %v396
        %419 = vst [vmem:[#allocation2 + $0x245] sm:$0x1] %v397
        %420 = vst [vmem:[#allocation2 + $0x265] sm:$0x1] %v398
        %421 = vst [vmem:[#allocation2 + $0x285] sm:$0x1] %v399
        %422 = vst [vmem:[#allocation2 + $0x2a5] sm:$0x1] %v400
        %v423 = vld [vmem:[#allocation2 + $0x14] sm:$0x1]
        %v424 = vld [vmem:[#allocation2 + $0x34] sm:$0x1]
        %v425 = vld [vmem:[#allocation2 + $0x54] sm:$0x1]
        %v426 = vld [vmem:[#allocation2 + $0x74] sm:$0x1]
        %v427 = vld [vmem:[#allocation2 + $0x94] sm:$0x1]
        %v428 = vld [vmem:[#allocation2 + $0xb4] sm:$0x1]
        %v429 = vld [vmem:[#allocation2 + $0xd4] sm:$0x1]
        %v430 = vld [vmem:[#allocation2 + $0xf4] sm:$0x1]
        %v431 = vld [vmem:[#allocation2 + $0x114] sm:$0x1]
        %v432 = vld [vmem:[#allocation2 + $0x134] sm:$0x1]
        %v433 = vld [vmem:[#allocation2 + $0x154] sm:$0x1]
        %v434 = vld [vmem:[#allocation2 + $0x174] sm:$0x1]
        %v435 = vld [vmem:[#allocation2 + $0x194] sm:$0x1]
        %v436 = vld [vmem:[#allocation2 + $0x1b4] sm:$0x1]
        %v437 = vld [vmem:[#allocation2 + $0x1d4] sm:$0x1]
        %v438 = vld [vmem:[#allocation2 + $0x1f4] sm:$0x1]
        %v439 = vld [vmem:[#allocation2 + $0x214] sm:$0x1]
        %v440 = vld [vmem:[#allocation2 + $0x234] sm:$0x1]
        %v441 = vld [vmem:[#allocation2 + $0x254] sm:$0x1]
        %v442 = vld [vmem:[#allocation2 + $0x274] sm:$0x1]
        %v443 = vld [vmem:[#allocation2 + $0x294] sm:$0x1]
        %v444 = vld [vmem:[#allocation2 + $0x2b4] sm:$0x1]
        %445 = vst [vmem:[#allocation2 + $0x1a] sm:$0x1] %v423
        %446 = vst [vmem:[#allocation2 + $0x3a] sm:$0x1] %v424
        %447 = vst [vmem:[#allocation2 + $0x5a] sm:$0x1] %v425
        %448 = vst [vmem:[#allocation2 + $0x7a] sm:$0x1] %v426
        %449 = vst [vmem:[#allocation2 + $0x9a] sm:$0x1] %v427
        %450 = vst [vmem:[#allocation2 + $0xba] sm:$0x1] %v428
        %451 = vst [vmem:[#allocation2 + $0xda] sm:$0x1] %v429
        %452 = vst [vmem:[#allocation2 + $0xfa] sm:$0x1] %v430
        %453 = vst [vmem:[#allocation2 + $0x11a] sm:$0x1] %v431
        %454 = vst [vmem:[#allocation2 + $0x13a] sm:$0x1] %v432
        %455 = vst [vmem:[#allocation2 + $0x15a] sm:$0x1] %v433
        %456 = vst [vmem:[#allocation2 + $0x17a] sm:$0x1] %v434
        %457 = vst [vmem:[#allocation2 + $0x19a] sm:$0x1] %v435
        %458 = vst [vmem:[#allocation2 + $0x1ba] sm:$0x1] %v436
        %459 = vst [vmem:[#allocation2 + $0x1da] sm:$0x1] %v437
        %460 = vst [vmem:[#allocation2 + $0x1fa] sm:$0x1] %v438
        %461 = vst [vmem:[#allocation2 + $0x21a] sm:$0x1] %v439
        %462 = vst [vmem:[#allocation2 + $0x23a] sm:$0x1] %v440
        %463 = vst [vmem:[#allocation2 + $0x25a] sm:$0x1] %v441
        %464 = vst [vmem:[#allocation2 + $0x27a] sm:$0x1] %v442
        %465 = vst [vmem:[#allocation2 + $0x29a] sm:$0x1] %v443
        %466 = vst [vmem:[#allocation2 + $0x2ba] sm:$0x1] %v444
        %v467 = vld [vmem:[#allocation4] sm:$0x1]
        %v468 = vld [vmem:[#allocation4 + $0x1] sm:$0x1]
        %v469 = vld [vmem:[#allocation4 + $0x2] sm:$0x1]
        %v470 = vld [vmem:[#allocation4 + $0x3] sm:$0x1]
        %v471 = vld [vmem:[#allocation4 + $0x4] sm:$0x1]
        %v472 = vld [vmem:[#allocation4 + $0x5] sm:$0x1]
        %v473 = vld [vmem:[#allocation4 + $0x6] sm:$0x1]
        %v474 = vld [vmem:[#allocation4 + $0x7] sm:$0x1]
        %v475 = vld [vmem:[#allocation4 + $0x8] sm:$0x1]
        %v476 = vld [vmem:[#allocation4 + $0x9] sm:$0x1]
        %v477 = vld [vmem:[#allocation4 + $0xa] sm:$0x1]
        %v478 = vld [vmem:[#allocation4 + $0xb] sm:$0x1]
        %v479 = vld [vmem:[#allocation4 + $0xc] sm:$0x1]
        %v480 = vld [vmem:[#allocation4 + $0xd] sm:$0x1]
        %v481 = vld [vmem:[#allocation4 + $0xe] sm:$0x1]
        %v482 = vld [vmem:[#allocation4 + $0xf] sm:$0x1]
        %v483 = vld [vmem:[#allocation4 + $0x10] sm:$0x1]
        %v484 = vld [vmem:[#allocation4 + $0x11] sm:$0x1]
        %v485 = vld [vmem:[#allocation4 + $0x12] sm:$0x1]
        %v486 = vld [vmem:[#allocation4 + $0x13] sm:$0x1]
        %v487 = vld [vmem:[#allocation4 + $0x14] sm:$0x1]
        %v488 = vld [vmem:[#allocation4 + $0x15] sm:$0x1]
        %v489 = vld [vmem:[#allocation4 + $0x16] sm:$0x1]
        %v490 = vld [vmem:[#allocation4 + $0x17] sm:$0x1]
        %v491 = vld [vmem:[#allocation4 + $0x18] sm:$0x1]
        %v492 = vld [vmem:[#allocation4 + $0x19] sm:$0x1]
        %v493 = vld [vmem:[#allocation4 + $0x1a] sm:$0x1]
        %v494 = vld [vmem:[#allocation4 + $0x1b] sm:$0x1]
        %v495 = vld [vmem:[#allocation4 + $0x1c] sm:$0x1]
        %v496 = vld [vmem:[#allocation4 + $0x1d] sm:$0x1]
        %v497 = vld [vmem:[#allocation4 + $0x1e] sm:$0x1]
        %v498 = vld [vmem:[#allocation4 + $0x1f] sm:$0x1]
        %v499 = vld [vmem:[#allocation4 + $0x20] sm:$0x1]
        %v500 = vld [vmem:[#allocation4 + $0x21] sm:$0x1]
        %v501 = vld [vmem:[#allocation4 + $0x22] sm:$0x1]
        %v502 = vld [vmem:[#allocation4 + $0x23] sm:$0x1]
        %v503 = vld [vmem:[#allocation4 + $0x24] sm:$0x1]
        %v504 = vld [vmem:[#allocation4 + $0x25] sm:$0x1]
        %v505 = vld [vmem:[#allocation4 + $0x26] sm:$0x1]
        %v506 = vld [vmem:[#allocation4 + $0x27] sm:$0x1]
        %v507 = vld [vmem:[#allocation4 + $0x28] sm:$0x1]
        %v508 = vld [vmem:[#allocation4 + $0x29] sm:$0x1]
        %v509 = vld [vmem:[#allocation4 + $0x2a] sm:$0x1]
        %v510 = vld [vmem:[#allocation4 + $0x2b] sm:$0x1]
        %v511 = vld [vmem:[#allocation4 + $0x2c] sm:$0x1]
        %v512 = vld [vmem:[#allocation4 + $0x2d] sm:$0x1]
        %v513 = vld [vmem:[#allocation4 + $0x2e] sm:$0x1]
        %v514 = vld [vmem:[#allocation4 + $0x2f] sm:$0x1]
        %v515 = vld [vmem:[#allocation4 + $0x30] sm:$0x1]
        %v516 = vld [vmem:[%s181] sm:$0x1]
        %v517 = vld [vmem:[#allocation2 + $0x5] sm:$0xff]
        %v518 = vld [vmem:[#allocation2 + $0xd] sm:$0xff]
        %v519 = vld [vmem:[#allocation2 + $0x25] sm:$0xff]
        %v520 = vld [vmem:[#allocation2 + $0x2d] sm:$0xff]
        %v521 = vld [vmem:[#allocation2 + $0x45] sm:$0xff]
        %v522 = vld [vmem:[#allocation2 + $0x4d] sm:$0xff]
        %v523 = vld [vmem:[#allocation2 + $0x65] sm:$0xff]
        %v524 = vld [vmem:[#allocation2 + $0x6d] sm:$0xff]
        %v525 = vld [vmem:[#allocation2 + $0x85] sm:$0xff]
        %v526 = vld [vmem:[#allocation2 + $0x8d] sm:$0xff]
        %v527 = vld [vmem:[#allocation2 + $0xa5] sm:$0xff]
        %v528 = vld [vmem:[#allocation2 + $0xad] sm:$0xff]
        %v529 = vld [vmem:[#allocation2 + $0xc5] sm:$0xff]
        %v530 = vld [vmem:[#allocation2 + $0xcd] sm:$0xff]
        %v531 = vld [vmem:[#allocation2 + $0xe5] sm:$0xff]
        %v532 = vld [vmem:[#allocation2 + $0xed] sm:$0xff]
        %v533 = vlaneseq
        %v534 = vshrl.u32 %v533, 7
        %v535 = vsub.s32 0, %v534
        %v536 = vrot.slane %v467, %v535
        %v537 = vmul.f32 %v517, %v536
        %v538 = vmul.f32 %v518, %v536
        %v539 = vmul.f32 %v519, %v536
        %v540 = vmul.f32 %v520, %v536
        %v541 = vmul.f32 %v521, %v536
        %v542 = vmul.f32 %v522, %v536
        %v543 = vmul.f32 %v523, %v536
        %v544 = vmul.f32 %v524, %v536
        %v545 = vmul.f32 %v525, %v536
        %v546 = vmul.f32 %v526, %v536
        %v547 = vmul.f32 %v527, %v536
        %v548 = vmul.f32 %v528, %v536
        %v549 = vmul.f32 %v529, %v536
        %v550 = vmul.f32 %v530, %v536
        %v551 = vmul.f32 %v531, %v536
        %v552 = vmul.f32 %v532, %v536
        %v553 = vld [vmem:[#allocation2 + $0x6] sm:$0xff]
        %v554 = vld [vmem:[#allocation2 + $0xe] sm:$0xff]
        %v555 = vld [vmem:[#allocation2 + $0x26] sm:$0xff]
        %v556 = vld [vmem:[#allocation2 + $0x2e] sm:$0xff]
        %v557 = vld [vmem:[#allocation2 + $0x46] sm:$0xff]
        %v558 = vld [vmem:[#allocation2 + $0x4e] sm:$0xff]
        %v559 = vld [vmem:[#allocation2 + $0x66] sm:$0xff]
        %v560 = vld [vmem:[#allocation2 + $0x6e] sm:$0xff]
        %v561 = vld [vmem:[#allocation2 + $0x86] sm:$0xff]
        %v562 = vld [vmem:[#allocation2 + $0x8e] sm:$0xff]
        %v563 = vld [vmem:[#allocation2 + $0xa6] sm:$0xff]
        %v564 = vld [vmem:[#allocation2 + $0xae] sm:$0xff]
        %v565 = vld [vmem:[#allocation2 + $0xc6] sm:$0xff]
        %v566 = vld [vmem:[#allocation2 + $0xce] sm:$0xff]
        %v567 = vld [vmem:[#allocation2 + $0xe6] sm:$0xff]
        %v568 = vld [vmem:[#allocation2 + $0xee] sm:$0xff]
        %v569 = vlaneseq
        %v570 = vshrl.u32 %v569, 7
        %v571 = vsub.s32 0, %v570
        %v572 = vrot.slane %v468, %v571
        %v573 = vmul.f32 %v553, %v572
        %v574 = vmul.f32 %v554, %v572
        %v575 = vmul.f32 %v555, %v572
        %v576 = vmul.f32 %v556, %v572
        %v577 = vmul.f32 %v557, %v572
        %v578 = vmul.f32 %v558, %v572
        %v579 = vmul.f32 %v559, %v572
        %v580 = vmul.f32 %v560, %v572
        %v581 = vmul.f32 %v561, %v572
        %v582 = vmul.f32 %v562, %v572
        %v583 = vmul.f32 %v563, %v572
        %v584 = vmul.f32 %v564, %v572
        %v585 = vmul.f32 %v565, %v572
        %v586 = vmul.f32 %v566, %v572
        %v587 = vmul.f32 %v567, %v572
        %v588 = vmul.f32 %v568, %v572
        %v589 = vadd.f32 %v537, %v573
        %v590 = vadd.f32 %v538, %v574
        %v591 = vadd.f32 %v539, %v575
        %v592 = vadd.f32 %v540, %v576
        %v593 = vadd.f32 %v541, %v577
        %v594 = vadd.f32 %v542, %v578
        %v595 = vadd.f32 %v543, %v579
        %v596 = vadd.f32 %v544, %v580
        %v597 = vadd.f32 %v545, %v581
        %v598 = vadd.f32 %v546, %v582
        %v599 = vadd.f32 %v547, %v583
        %v600 = vadd.f32 %v548, %v584
        %v601 = vadd.f32 %v549, %v585
        %v602 = vadd.f32 %v550, %v586
        %v603 = vadd.f32 %v551, %v587
        %v604 = vadd.f32 %v552, %v588
        %v605 = vld [vmem:[#allocation2 + $0x7] sm:$0xff]
        %v606 = vld [vmem:[#allocation2 + $0xf] sm:$0xff]
        %v607 = vld [vmem:[#allocation2 + $0x27] sm:$0xff]
        %v608 = vld [vmem:[#allocation2 + $0x2f] sm:$0xff]
        %v609 = vld [vmem:[#allocation2 + $0x47] sm:$0xff]
        %v610 = vld [vmem:[#allocation2 + $0x4f] sm:$0xff]
        %v611 = vld [vmem:[#allocation2 + $0x67] sm:$0xff]
        %v612 = vld [vmem:[#allocation2 + $0x6f] sm:$0xff]
        %v613 = vld [vmem:[#allocation2 + $0x87] sm:$0xff]
        %v614 = vld [vmem:[#allocation2 + $0x8f] sm:$0xff]
        %v615 = vld [vmem:[#allocation2 + $0xa7] sm:$0xff]
        %v616 = vld [vmem:[#allocation2 + $0xaf] sm:$0xff]
        %v617 = vld [vmem:[#allocation2 + $0xc7] sm:$0xff]
        %v618 = vld [vmem:[#allocation2 + $0xcf] sm:$0xff]
        %v619 = vld [vmem:[#allocation2 + $0xe7] sm:$0xff]
        %v620 = vld [vmem:[#allocation2 + $0xef] sm:$0xff]
        %v621 = vlaneseq
        %v622 = vshrl.u32 %v621, 7
        %v623 = vsub.s32 0, %v622
        %v624 = vrot.slane %v469, %v623
        %v625 = vmul.f32 %v605, %v624
        %v626 = vmul.f32 %v606, %v624
        %v627 = vmul.f32 %v607, %v624
        %v628 = vmul.f32 %v608, %v624
        %v629 = vmul.f32 %v609, %v624
        %v630 = vmul.f32 %v610, %v624
        %v631 = vmul.f32 %v611, %v624
        %v632 = vmul.f32 %v612, %v624
        %v633 = vmul.f32 %v613, %v624
        %v634 = vmul.f32 %v614, %v624
        %v635 = vmul.f32 %v615, %v624
        %v636 = vmul.f32 %v616, %v624
        %v637 = vmul.f32 %v617, %v624
        %v638 = vmul.f32 %v618, %v624
        %v639 = vmul.f32 %v619, %v624
        %v640 = vmul.f32 %v620, %v624
        %v641 = vadd.f32 %v589, %v625
        %v642 = vadd.f32 %v590, %v626
        %v643 = vadd.f32 %v591, %v627
        %v644 = vadd.f32 %v592, %v628
        %v645 = vadd.f32 %v593, %v629
        %v646 = vadd.f32 %v594, %v630
        %v647 = vadd.f32 %v595, %v631
        %v648 = vadd.f32 %v596, %v632
        %v649 = vadd.f32 %v597, %v633
        %v650 = vadd.f32 %v598, %v634
        %v651 = vadd.f32 %v599, %v635
        %v652 = vadd.f32 %v600, %v636
        %v653 = vadd.f32 %v601, %v637
        %v654 = vadd.f32 %v602, %v638
        %v655 = vadd.f32 %v603, %v639
        %v656 = vadd.f32 %v604, %v640
        %v657 = vld [vmem:[#allocation2 + $0x8] sm:$0xff]
        %v658 = vld [vmem:[#allocation2 + $0x10] sm:$0xff]
        %v659 = vld [vmem:[#allocation2 + $0x28] sm:$0xff]
        %v660 = vld [vmem:[#allocation2 + $0x30] sm:$0xff]
        %v661 = vld [vmem:[#allocation2 + $0x48] sm:$0xff]
        %v662 = vld [vmem:[#allocation2 + $0x50] sm:$0xff]
        %v663 = vld [vmem:[#allocation2 + $0x68] sm:$0xff]
        %v664 = vld [vmem:[#allocation2 + $0x70] sm:$0xff]
        %v665 = vld [vmem:[#allocation2 + $0x88] sm:$0xff]
        %v666 = vld [vmem:[#allocation2 + $0x90] sm:$0xff]
        %v667 = vld [vmem:[#allocation2 + $0xa8] sm:$0xff]
        %v668 = vld [vmem:[#allocation2 + $0xb0] sm:$0xff]
        %v669 = vld [vmem:[#allocation2 + $0xc8] sm:$0xff]
        %v670 = vld [vmem:[#allocation2 + $0xd0] sm:$0xff]
        %v671 = vld [vmem:[#allocation2 + $0xe8] sm:$0xff]
        %v672 = vld [vmem:[#allocation2 + $0xf0] sm:$0xff]
        %v673 = vlaneseq
        %v674 = vshrl.u32 %v673, 7
        %v675 = vsub.s32 0, %v674
        %v676 = vrot.slane %v470, %v675
        %v677 = vmul.f32 %v657, %v676
        %v678 = vmul.f32 %v658, %v676
        %v679 = vmul.f32 %v659, %v676
        %v680 = vmul.f32 %v660, %v676
        %v681 = vmul.f32 %v661, %v676
        %v682 = vmul.f32 %v662, %v676
        %v683 = vmul.f32 %v663, %v676
        %v684 = vmul.f32 %v664, %v676
        %v685 = vmul.f32 %v665, %v676
        %v686 = vmul.f32 %v666, %v676
        %v687 = vmul.f32 %v667, %v676
        %v688 = vmul.f32 %v668, %v676
        %v689 = vmul.f32 %v669, %v676
        %v690 = vmul.f32 %v670, %v676
        %v691 = vmul.f32 %v671, %v676
        %v692 = vmul.f32 %v672, %v676
        %v693 = vadd.f32 %v641, %v677
        %v694 = vadd.f32 %v642, %v678
        %v695 = vadd.f32 %v643, %v679
        %v696 = vadd.f32 %v644, %v680
        %v697 = vadd.f32 %v645, %v681
        %v698 = vadd.f32 %v646, %v682
        %v699 = vadd.f32 %v647, %v683
        %v700 = vadd.f32 %v648, %v684
        %v701 = vadd.f32 %v649, %v685
        %v702 = vadd.f32 %v650, %v686
        %v703 = vadd.f32 %v651, %v687
        %v704 = vadd.f32 %v652, %v688
        %v705 = vadd.f32 %v653, %v689
        %v706 = vadd.f32 %v654, %v690
        %v707 = vadd.f32 %v655, %v691
        %v708 = vadd.f32 %v656, %v692
        %v709 = vld [vmem:[#allocation2 + $0x9] sm:$0xff]
        %v710 = vld [vmem:[#allocation2 + $0x11] sm:$0xff]
        %v711 = vld [vmem:[#allocation2 + $0x29] sm:$0xff]
        %v712 = vld [vmem:[#allocation2 + $0x31] sm:$0xff]
        %v713 = vld [vmem:[#allocation2 + $0x49] sm:$0xff]
        %v714 = vld [vmem:[#allocation2 + $0x51] sm:$0xff]
        %v715 = vld [vmem:[#allocation2 + $0x69] sm:$0xff]
        %v716 = vld [vmem:[#allocation2 + $0x71] sm:$0xff]
        %v717 = vld [vmem:[#allocation2 + $0x89] sm:$0xff]
        %v718 = vld [vmem:[#allocation2 + $0x91] sm:$0xff]
        %v719 = vld [vmem:[#allocation2 + $0xa9] sm:$0xff]
        %v720 = vld [vmem:[#allocation2 + $0xb1] sm:$0xff]
        %v721 = vld [vmem:[#allocation2 + $0xc9] sm:$0xff]
        %v722 = vld [vmem:[#allocation2 + $0xd1] sm:$0xff]
        %v723 = vld [vmem:[#allocation2 + $0xe9] sm:$0xff]
        %v724 = vld [vmem:[#allocation2 + $0xf1] sm:$0xff]
        %v725 = vlaneseq
        %v726 = vshrl.u32 %v725, 7
        %v727 = vsub.s32 0, %v726
        %v728 = vrot.slane %v471, %v727
        %v729 = vmul.f32 %v709, %v728
        %v730 = vmul.f32 %v710, %v728
        %v731 = vmul.f32 %v711, %v728
        %v732 = vmul.f32 %v712, %v728
        %v733 = vmul.f32 %v713, %v728
        %v734 = vmul.f32 %v714, %v728
        %v735 = vmul.f32 %v715, %v728
        %v736 = vmul.f32 %v716, %v728
        %v737 = vmul.f32 %v717, %v728
        %v738 = vmul.f32 %v718, %v728
        %v739 = vmul.f32 %v719, %v728
        %v740 = vmul.f32 %v720, %v728
        %v741 = vmul.f32 %v721, %v728
        %v742 = vmul.f32 %v722, %v728
        %v743 = vmul.f32 %v723, %v728
        %v744 = vmul.f32 %v724, %v728
        %v745 = vadd.f32 %v693, %v729
        %v746 = vadd.f32 %v694, %v730
        %v747 = vadd.f32 %v695, %v731
        %v748 = vadd.f32 %v696, %v732
        %v749 = vadd.f32 %v697, %v733
        %v750 = vadd.f32 %v698, %v734
        %v751 = vadd.f32 %v699, %v735
        %v752 = vadd.f32 %v700, %v736
        %v753 = vadd.f32 %v701, %v737
        %v754 = vadd.f32 %v702, %v738
        %v755 = vadd.f32 %v703, %v739
        %v756 = vadd.f32 %v704, %v740
        %v757 = vadd.f32 %v705, %v741
        %v758 = vadd.f32 %v706, %v742
        %v759 = vadd.f32 %v707, %v743
        %v760 = vadd.f32 %v708, %v744
        %v761 = vld [vmem:[#allocation2 + $0xa] sm:$0xff]
        %v762 = vld [vmem:[#allocation2 + $0x12] sm:$0xff]
        %v763 = vld [vmem:[#allocation2 + $0x2a] sm:$0xff]
        %v764 = vld [vmem:[#allocation2 + $0x32] sm:$0xff]
        %v765 = vld [vmem:[#allocation2 + $0x4a] sm:$0xff]
        %v766 = vld [vmem:[#allocation2 + $0x52] sm:$0xff]
        %v767 = vld [vmem:[#allocation2 + $0x6a] sm:$0xff]
        %v768 = vld [vmem:[#allocation2 + $0x72] sm:$0xff]
        %v769 = vld [vmem:[#allocation2 + $0x8a] sm:$0xff]
        %v770 = vld [vmem:[#allocation2 + $0x92] sm:$0xff]
        %v771 = vld [vmem:[#allocation2 + $0xaa] sm:$0xff]
        %v772 = vld [vmem:[#allocation2 + $0xb2] sm:$0xff]
        %v773 = vld [vmem:[#allocation2 + $0xca] sm:$0xff]
        %v774 = vld [vmem:[#allocation2 + $0xd2] sm:$0xff]
        %v775 = vld [vmem:[#allocation2 + $0xea] sm:$0xff]
        %v776 = vld [vmem:[#allocation2 + $0xf2] sm:$0xff]
        %v777 = vlaneseq
        %v778 = vshrl.u32 %v777, 7
        %v779 = vsub.s32 0, %v778
        %v780 = vrot.slane %v472, %v779
        %v781 = vmul.f32 %v761, %v780
        %v782 = vmul.f32 %v762, %v780
        %v783 = vmul.f32 %v763, %v780
        %v784 = vmul.f32 %v764, %v780
        %v785 = vmul.f32 %v765, %v780
        %v786 = vmul.f32 %v766, %v780
        %v787 = vmul.f32 %v767, %v780
        %v788 = vmul.f32 %v768, %v780
        %v789 = vmul.f32 %v769, %v780
        %v790 = vmul.f32 %v770, %v780
        %v791 = vmul.f32 %v771, %v780
        %v792 = vmul.f32 %v772, %v780
        %v793 = vmul.f32 %v773, %v780
        %v794 = vmul.f32 %v774, %v780
        %v795 = vmul.f32 %v775, %v780
        %v796 = vmul.f32 %v776, %v780
        %v797 = vadd.f32 %v745, %v781
        %v798 = vadd.f32 %v746, %v782
        %v799 = vadd.f32 %v747, %v783
        %v800 = vadd.f32 %v748, %v784
        %v801 = vadd.f32 %v749, %v785
        %v802 = vadd.f32 %v750, %v786
        %v803 = vadd.f32 %v751, %v787
        %v804 = vadd.f32 %v752, %v788
        %v805 = vadd.f32 %v753, %v789
        %v806 = vadd.f32 %v754, %v790
        %v807 = vadd.f32 %v755, %v791
        %v808 = vadd.f32 %v756, %v792
        %v809 = vadd.f32 %v757, %v793
        %v810 = vadd.f32 %v758, %v794
        %v811 = vadd.f32 %v759, %v795
        %v812 = vadd.f32 %v760, %v796
        %v813 = vld [vmem:[#allocation2 + $0xb] sm:$0xff]
        %v814 = vld [vmem:[#allocation2 + $0x13] sm:$0xff]
        %v815 = vld [vmem:[#allocation2 + $0x2b] sm:$0xff]
        %v816 = vld [vmem:[#allocation2 + $0x33] sm:$0xff]
        %v817 = vld [vmem:[#allocation2 + $0x4b] sm:$0xff]
        %v818 = vld [vmem:[#allocation2 + $0x53] sm:$0xff]
        %v819 = vld [vmem:[#allocation2 + $0x6b] sm:$0xff]
        %v820 = vld [vmem:[#allocation2 + $0x73] sm:$0xff]
        %v821 = vld [vmem:[#allocation2 + $0x8b] sm:$0xff]
        %v822 = vld [vmem:[#allocation2 + $0x93] sm:$0xff]
        %v823 = vld [vmem:[#allocation2 + $0xab] sm:$0xff]
        %v824 = vld [vmem:[#allocation2 + $0xb3] sm:$0xff]
        %v825 = vld [vmem:[#allocation2 + $0xcb] sm:$0xff]
        %v826 = vld [vmem:[#allocation2 + $0xd3] sm:$0xff]
        %v827 = vld [vmem:[#allocation2 + $0xeb] sm:$0xff]
        %v828 = vld [vmem:[#allocation2 + $0xf3] sm:$0xff]
        %v829 = vlaneseq
        %v830 = vshrl.u32 %v829, 7
        %v831 = vsub.s32 0, %v830
        %v832 = vrot.slane %v473, %v831
        %v833 = vmul.f32 %v813, %v832
        %v834 = vmul.f32 %v814, %v832
        %v835 = vmul.f32 %v815, %v832
        %v836 = vmul.f32 %v816, %v832
        %v837 = vmul.f32 %v817, %v832
        %v838 = vmul.f32 %v818, %v832
        %v839 = vmul.f32 %v819, %v832
        %v840 = vmul.f32 %v820, %v832
        %v841 = vmul.f32 %v821, %v832
        %v842 = vmul.f32 %v822, %v832
        %v843 = vmul.f32 %v823, %v832
        %v844 = vmul.f32 %v824, %v832
        %v845 = vmul.f32 %v825, %v832
        %v846 = vmul.f32 %v826, %v832
        %v847 = vmul.f32 %v827, %v832
        %v848 = vmul.f32 %v828, %v832
        %v849 = vadd.f32 %v797, %v833
        %v850 = vadd.f32 %v798, %v834
        %v851 = vadd.f32 %v799, %v835
        %v852 = vadd.f32 %v800, %v836
        %v853 = vadd.f32 %v801, %v837
        %v854 = vadd.f32 %v802, %v838
        %v855 = vadd.f32 %v803, %v839
        %v856 = vadd.f32 %v804, %v840
        %v857 = vadd.f32 %v805, %v841
        %v858 = vadd.f32 %v806, %v842
        %v859 = vadd.f32 %v807, %v843
        %v860 = vadd.f32 %v808, %v844
        %v861 = vadd.f32 %v809, %v845
        %v862 = vadd.f32 %v810, %v846
        %v863 = vadd.f32 %v811, %v847
        %v864 = vadd.f32 %v812, %v848
        %s865 = scalar_lea.vmem [#allocation2], 32
        %v866 = vld [vmem:[%s865 + $0x5] sm:$0xff]
        %v867 = vld [vmem:[%s865 + $0xd] sm:$0xff]
        %v868 = vld [vmem:[%s865 + $0x25] sm:$0xff]
        %v869 = vld [vmem:[%s865 + $0x2d] sm:$0xff]
        %v870 = vld [vmem:[%s865 + $0x45] sm:$0xff]
        %v871 = vld [vmem:[%s865 + $0x4d] sm:$0xff]
        %v872 = vld [vmem:[%s865 + $0x65] sm:$0xff]
        %v873 = vld [vmem:[%s865 + $0x6d] sm:$0xff]
        %v874 = vld [vmem:[%s865 + $0x85] sm:$0xff]
        %v875 = vld [vmem:[%s865 + $0x8d] sm:$0xff]
        %v876 = vld [vmem:[%s865 + $0xa5] sm:$0xff]
        %v877 = vld [vmem:[%s865 + $0xad] sm:$0xff]
        %v878 = vld [vmem:[%s865 + $0xc5] sm:$0xff]
        %v879 = vld [vmem:[%s865 + $0xcd] sm:$0xff]
        %v880 = vld [vmem:[%s865 + $0xe5] sm:$0xff]
        %v881 = vld [vmem:[%s865 + $0xed] sm:$0xff]
        %v882 = vlaneseq
        %v883 = vshrl.u32 %v882, 7
        %v884 = vsub.s32 0, %v883
        %v885 = vrot.slane %v474, %v884
        %v886 = vmul.f32 %v866, %v885
        %v887 = vmul.f32 %v867, %v885
        %v888 = vmul.f32 %v868, %v885
        %v889 = vmul.f32 %v869, %v885
        %v890 = vmul.f32 %v870, %v885
        %v891 = vmul.f32 %v871, %v885
        %v892 = vmul.f32 %v872, %v885
        %v893 = vmul.f32 %v873, %v885
        %v894 = vmul.f32 %v874, %v885
        %v895 = vmul.f32 %v875, %v885
        %v896 = vmul.f32 %v876, %v885
        %v897 = vmul.f32 %v877, %v885
        %v898 = vmul.f32 %v878, %v885
        %v899 = vmul.f32 %v879, %v885
        %v900 = vmul.f32 %v880, %v885
        %v901 = vmul.f32 %v881, %v885
        %v902 = vadd.f32 %v849, %v886
        %v903 = vadd.f32 %v850, %v887
        %v904 = vadd.f32 %v851, %v888
        %v905 = vadd.f32 %v852, %v889
        %v906 = vadd.f32 %v853, %v890
        %v907 = vadd.f32 %v854, %v891
        %v908 = vadd.f32 %v855, %v892
        %v909 = vadd.f32 %v856, %v893
        %v910 = vadd.f32 %v857, %v894
        %v911 = vadd.f32 %v858, %v895
        %v912 = vadd.f32 %v859, %v896
        %v913 = vadd.f32 %v860, %v897
        %v914 = vadd.f32 %v861, %v898
        %v915 = vadd.f32 %v862, %v899
        %v916 = vadd.f32 %v863, %v900
        %v917 = vadd.f32 %v864, %v901
        %v918 = vld [vmem:[%s865 + $0x6] sm:$0xff]
        %v919 = vld [vmem:[%s865 + $0xe] sm:$0xff]
        %v920 = vld [vmem:[%s865 + $0x26] sm:$0xff]
        %v921 = vld [vmem:[%s865 + $0x2e] sm:$0xff]
        %v922 = vld [vmem:[%s865 + $0x46] sm:$0xff]
        %v923 = vld [vmem:[%s865 + $0x4e] sm:$0xff]
        %v924 = vld [vmem:[%s865 + $0x66] sm:$0xff]
        %v925 = vld [vmem:[%s865 + $0x6e] sm:$0xff]
        %v926 = vld [vmem:[%s865 + $0x86] sm:$0xff]
        %v927 = vld [vmem:[%s865 + $0x8e] sm:$0xff]
        %v928 = vld [vmem:[%s865 + $0xa6] sm:$0xff]
        %v929 = vld [vmem:[%s865 + $0xae] sm:$0xff]
        %v930 = vld [vmem:[%s865 + $0xc6] sm:$0xff]
        %v931 = vld [vmem:[%s865 + $0xce] sm:$0xff]
        %v932 = vld [vmem:[%s865 + $0xe6] sm:$0xff]
        %v933 = vld [vmem:[%s865 + $0xee] sm:$0xff]
        %v934 = vlaneseq
        %v935 = vshrl.u32 %v934, 7
        %v936 = vsub.s32 0, %v935
        %v937 = vrot.slane %v475, %v936
        %v938 = vmul.f32 %v918, %v937
        %v939 = vmul.f32 %v919, %v937
        %v940 = vmul.f32 %v920, %v937
        %v941 = vmul.f32 %v921, %v937
        %v942 = vmul.f32 %v922, %v937
        %v943 = vmul.f32 %v923, %v937
        %v944 = vmul.f32 %v924, %v937
        %v945 = vmul.f32 %v925, %v937
        %v946 = vmul.f32 %v926, %v937
        %v947 = vmul.f32 %v927, %v937
        %v948 = vmul.f32 %v928, %v937
        %v949 = vmul.f32 %v929, %v937
        %v950 = vmul.f32 %v930, %v937
        %v951 = vmul.f32 %v931, %v937
        %v952 = vmul.f32 %v932, %v937
        %v953 = vmul.f32 %v933, %v937
        %v954 = vadd.f32 %v902, %v938
        %v955 = vadd.f32 %v903, %v939
        %v956 = vadd.f32 %v904, %v940
        %v957 = vadd.f32 %v905, %v941
        %v958 = vadd.f32 %v906, %v942
        %v959 = vadd.f32 %v907, %v943
        %v960 = vadd.f32 %v908, %v944
        %v961 = vadd.f32 %v909, %v945
        %v962 = vadd.f32 %v910, %v946
        %v963 = vadd.f32 %v911, %v947
        %v964 = vadd.f32 %v912, %v948
        %v965 = vadd.f32 %v913, %v949
        %v966 = vadd.f32 %v914, %v950
        %v967 = vadd.f32 %v915, %v951
        %v968 = vadd.f32 %v916, %v952
        %v969 = vadd.f32 %v917, %v953
        %v970 = vld [vmem:[%s865 + $0x7] sm:$0xff]
        %v971 = vld [vmem:[%s865 + $0xf] sm:$0xff]
        %v972 = vld [vmem:[%s865 + $0x27] sm:$0xff]
        %v973 = vld [vmem:[%s865 + $0x2f] sm:$0xff]
        %v974 = vld [vmem:[%s865 + $0x47] sm:$0xff]
        %v975 = vld [vmem:[%s865 + $0x4f] sm:$0xff]
        %v976 = vld [vmem:[%s865 + $0x67] sm:$0xff]
        %v977 = vld [vmem:[%s865 + $0x6f] sm:$0xff]
        %v978 = vld [vmem:[%s865 + $0x87] sm:$0xff]
        %v979 = vld [vmem:[%s865 + $0x8f] sm:$0xff]
        %v980 = vld [vmem:[%s865 + $0xa7] sm:$0xff]
        %v981 = vld [vmem:[%s865 + $0xaf] sm:$0xff]
        %v982 = vld [vmem:[%s865 + $0xc7] sm:$0xff]
        %v983 = vld [vmem:[%s865 + $0xcf] sm:$0xff]
        %v984 = vld [vmem:[%s865 + $0xe7] sm:$0xff]
        %v985 = vld [vmem:[%s865 + $0xef] sm:$0xff]
        %v986 = vlaneseq
        %v987 = vshrl.u32 %v986, 7
        %v988 = vsub.s32 0, %v987
        %v989 = vrot.slane %v476, %v988
        %v990 = vmul.f32 %v970, %v989
        %v991 = vmul.f32 %v971, %v989
        %v992 = vmul.f32 %v972, %v989
        %v993 = vmul.f32 %v973, %v989
        %v994 = vmul.f32 %v974, %v989
        %v995 = vmul.f32 %v975, %v989
        %v996 = vmul.f32 %v976, %v989
        %v997 = vmul.f32 %v977, %v989
        %v998 = vmul.f32 %v978, %v989
        %v999 = vmul.f32 %v979, %v989
        %v1000 = vmul.f32 %v980, %v989
        %v1001 = vmul.f32 %v981, %v989
        %v1002 = vmul.f32 %v982, %v989
        %v1003 = vmul.f32 %v983, %v989
        %v1004 = vmul.f32 %v984, %v989
        %v1005 = vmul.f32 %v985, %v989
        %v1006 = vadd.f32 %v954, %v990
        %v1007 = vadd.f32 %v955, %v991
        %v1008 = vadd.f32 %v956, %v992
        %v1009 = vadd.f32 %v957, %v993
        %v1010 = vadd.f32 %v958, %v994
        %v1011 = vadd.f32 %v959, %v995
        %v1012 = vadd.f32 %v960, %v996
        %v1013 = vadd.f32 %v961, %v997
        %v1014 = vadd.f32 %v962, %v998
        %v1015 = vadd.f32 %v963, %v999
        %v1016 = vadd.f32 %v964, %v1000
        %v1017 = vadd.f32 %v965, %v1001
        %v1018 = vadd.f32 %v966, %v1002
        %v1019 = vadd.f32 %v967, %v1003
        %v1020 = vadd.f32 %v968, %v1004
        %v1021 = vadd.f32 %v969, %v1005
        %v1022 = vld [vmem:[%s865 + $0x8] sm:$0xff]
        %v1023 = vld [vmem:[%s865 + $0x10] sm:$0xff]
        %v1024 = vld [vmem:[%s865 + $0x28] sm:$0xff]
        %v1025 = vld [vmem:[%s865 + $0x30] sm:$0xff]
        %v1026 = vld [vmem:[%s865 + $0x48] sm:$0xff]
        %v1027 = vld [vmem:[%s865 + $0x50] sm:$0xff]
        %v1028 = vld [vmem:[%s865 + $0x68] sm:$0xff]
        %v1029 = vld [vmem:[%s865 + $0x70] sm:$0xff]
        %v1030 = vld [vmem:[%s865 + $0x88] sm:$0xff]
        %v1031 = vld [vmem:[%s865 + $0x90] sm:$0xff]
        %v1032 = vld [vmem:[%s865 + $0xa8] sm:$0xff]
        %v1033 = vld [vmem:[%s865 + $0xb0] sm:$0xff]
        %v1034 = vld [vmem:[%s865 + $0xc8] sm:$0xff]
        %v1035 = vld [vmem:[%s865 + $0xd0] sm:$0xff]
        %v1036 = vld [vmem:[%s865 + $0xe8] sm:$0xff]
        %v1037 = vld [vmem:[%s865 + $0xf0] sm:$0xff]
        %v1038 = vlaneseq
        %v1039 = vshrl.u32 %v1038, 7
        %v1040 = vsub.s32 0, %v1039
        %v1041 = vrot.slane %v477, %v1040
        %v1042 = vmul.f32 %v1022, %v1041
        %v1043 = vmul.f32 %v1023, %v1041
        %v1044 = vmul.f32 %v1024, %v1041
        %v1045 = vmul.f32 %v1025, %v1041
        %v1046 = vmul.f32 %v1026, %v1041
        %v1047 = vmul.f32 %v1027, %v1041
        %v1048 = vmul.f32 %v1028, %v1041
        %v1049 = vmul.f32 %v1029, %v1041
        %v1050 = vmul.f32 %v1030, %v1041
        %v1051 = vmul.f32 %v1031, %v1041
        %v1052 = vmul.f32 %v1032, %v1041
        %v1053 = vmul.f32 %v1033, %v1041
        %v1054 = vmul.f32 %v1034, %v1041
        %v1055 = vmul.f32 %v1035, %v1041
        %v1056 = vmul.f32 %v1036, %v1041
        %v1057 = vmul.f32 %v1037, %v1041
        %v1058 = vadd.f32 %v1006, %v1042
        %v1059 = vadd.f32 %v1007, %v1043
        %v1060 = vadd.f32 %v1008, %v1044
        %v1061 = vadd.f32 %v1009, %v1045
        %v1062 = vadd.f32 %v1010, %v1046
        %v1063 = vadd.f32 %v1011, %v1047
        %v1064 = vadd.f32 %v1012, %v1048
        %v1065 = vadd.f32 %v1013, %v1049
        %v1066 = vadd.f32 %v1014, %v1050
        %v1067 = vadd.f32 %v1015, %v1051
        %v1068 = vadd.f32 %v1016, %v1052
        %v1069 = vadd.f32 %v1017, %v1053
        %v1070 = vadd.f32 %v1018, %v1054
        %v1071 = vadd.f32 %v1019, %v1055
        %v1072 = vadd.f32 %v1020, %v1056
        %v1073 = vadd.f32 %v1021, %v1057
        %v1074 = vld [vmem:[%s865 + $0x9] sm:$0xff]
        %v1075 = vld [vmem:[%s865 + $0x11] sm:$0xff]
        %v1076 = vld [vmem:[%s865 + $0x29] sm:$0xff]
        %v1077 = vld [vmem:[%s865 + $0x31] sm:$0xff]
        %v1078 = vld [vmem:[%s865 + $0x49] sm:$0xff]
        %v1079 = vld [vmem:[%s865 + $0x51] sm:$0xff]
        %v1080 = vld [vmem:[%s865 + $0x69] sm:$0xff]
        %v1081 = vld [vmem:[%s865 + $0x71] sm:$0xff]
        %v1082 = vld [vmem:[%s865 + $0x89] sm:$0xff]
        %v1083 = vld [vmem:[%s865 + $0x91] sm:$0xff]
        %v1084 = vld [vmem:[%s865 + $0xa9] sm:$0xff]
        %v1085 = vld [vmem:[%s865 + $0xb1] sm:$0xff]
        %v1086 = vld [vmem:[%s865 + $0xc9] sm:$0xff]
        %v1087 = vld [vmem:[%s865 + $0xd1] sm:$0xff]
        %v1088 = vld [vmem:[%s865 + $0xe9] sm:$0xff]
        %v1089 = vld [vmem:[%s865 + $0xf1] sm:$0xff]
        %v1090 = vlaneseq
        %v1091 = vshrl.u32 %v1090, 7
        %v1092 = vsub.s32 0, %v1091
        %v1093 = vrot.slane %v478, %v1092
        %v1094 = vmul.f32 %v1074, %v1093
        %v1095 = vmul.f32 %v1075, %v1093
        %v1096 = vmul.f32 %v1076, %v1093
        %v1097 = vmul.f32 %v1077, %v1093
        %v1098 = vmul.f32 %v1078, %v1093
        %v1099 = vmul.f32 %v1079, %v1093
        %v1100 = vmul.f32 %v1080, %v1093
        %v1101 = vmul.f32 %v1081, %v1093
        %v1102 = vmul.f32 %v1082, %v1093
        %v1103 = vmul.f32 %v1083, %v1093
        %v1104 = vmul.f32 %v1084, %v1093
        %v1105 = vmul.f32 %v1085, %v1093
        %v1106 = vmul.f32 %v1086, %v1093
        %v1107 = vmul.f32 %v1087, %v1093
        %v1108 = vmul.f32 %v1088, %v1093
        %v1109 = vmul.f32 %v1089, %v1093
        %v1110 = vadd.f32 %v1058, %v1094
        %v1111 = vadd.f32 %v1059, %v1095
        %v1112 = vadd.f32 %v1060, %v1096
        %v1113 = vadd.f32 %v1061, %v1097
        %v1114 = vadd.f32 %v1062, %v1098
        %v1115 = vadd.f32 %v1063, %v1099
        %v1116 = vadd.f32 %v1064, %v1100
        %v1117 = vadd.f32 %v1065, %v1101
        %v1118 = vadd.f32 %v1066, %v1102
        %v1119 = vadd.f32 %v1067, %v1103
        %v1120 = vadd.f32 %v1068, %v1104
        %v1121 = vadd.f32 %v1069, %v1105
        %v1122 = vadd.f32 %v1070, %v1106
        %v1123 = vadd.f32 %v1071, %v1107
        %v1124 = vadd.f32 %v1072, %v1108
        %v1125 = vadd.f32 %v1073, %v1109
        %v1126 = vld [vmem:[%s865 + $0xa] sm:$0xff]
        %v1127 = vld [vmem:[%s865 + $0x12] sm:$0xff]
        %v1128 = vld [vmem:[%s865 + $0x2a] sm:$0xff]
        %v1129 = vld [vmem:[%s865 + $0x32] sm:$0xff]
        %v1130 = vld [vmem:[%s865 + $0x4a] sm:$0xff]
        %v1131 = vld [vmem:[%s865 + $0x52] sm:$0xff]
        %v1132 = vld [vmem:[%s865 + $0x6a] sm:$0xff]
        %v1133 = vld [vmem:[%s865 + $0x72] sm:$0xff]
        %v1134 = vld [vmem:[%s865 + $0x8a] sm:$0xff]
        %v1135 = vld [vmem:[%s865 + $0x92] sm:$0xff]
        %v1136 = vld [vmem:[%s865 + $0xaa] sm:$0xff]
        %v1137 = vld [vmem:[%s865 + $0xb2] sm:$0xff]
        %v1138 = vld [vmem:[%s865 + $0xca] sm:$0xff]
        %v1139 = vld [vmem:[%s865 + $0xd2] sm:$0xff]
        %v1140 = vld [vmem:[%s865 + $0xea] sm:$0xff]
        %v1141 = vld [vmem:[%s865 + $0xf2] sm:$0xff]
        %v1142 = vlaneseq
        %v1143 = vshrl.u32 %v1142, 7
        %v1144 = vsub.s32 0, %v1143
        %v1145 = vrot.slane %v479, %v1144
        %v1146 = vmul.f32 %v1126, %v1145
        %v1147 = vmul.f32 %v1127, %v1145
        %v1148 = vmul.f32 %v1128, %v1145
        %v1149 = vmul.f32 %v1129, %v1145
        %v1150 = vmul.f32 %v1130, %v1145
        %v1151 = vmul.f32 %v1131, %v1145
        %v1152 = vmul.f32 %v1132, %v1145
        %v1153 = vmul.f32 %v1133, %v1145
        %v1154 = vmul.f32 %v1134, %v1145
        %v1155 = vmul.f32 %v1135, %v1145
        %v1156 = vmul.f32 %v1136, %v1145
        %v1157 = vmul.f32 %v1137, %v1145
        %v1158 = vmul.f32 %v1138, %v1145
        %v1159 = vmul.f32 %v1139, %v1145
        %v1160 = vmul.f32 %v1140, %v1145
        %v1161 = vmul.f32 %v1141, %v1145
        %v1162 = vadd.f32 %v1110, %v1146
        %v1163 = vadd.f32 %v1111, %v1147
        %v1164 = vadd.f32 %v1112, %v1148
        %v1165 = vadd.f32 %v1113, %v1149
        %v1166 = vadd.f32 %v1114, %v1150
        %v1167 = vadd.f32 %v1115, %v1151
        %v1168 = vadd.f32 %v1116, %v1152
        %v1169 = vadd.f32 %v1117, %v1153
        %v1170 = vadd.f32 %v1118, %v1154
        %v1171 = vadd.f32 %v1119, %v1155
        %v1172 = vadd.f32 %v1120, %v1156
        %v1173 = vadd.f32 %v1121, %v1157
        %v1174 = vadd.f32 %v1122, %v1158
        %v1175 = vadd.f32 %v1123, %v1159
        %v1176 = vadd.f32 %v1124, %v1160
        %v1177 = vadd.f32 %v1125, %v1161
        %v1178 = vld [vmem:[%s865 + $0xb] sm:$0xff]
        %v1179 = vld [vmem:[%s865 + $0x13] sm:$0xff]
        %v1180 = vld [vmem:[%s865 + $0x2b] sm:$0xff]
        %v1181 = vld [vmem:[%s865 + $0x33] sm:$0xff]
        %v1182 = vld [vmem:[%s865 + $0x4b] sm:$0xff]
        %v1183 = vld [vmem:[%s865 + $0x53] sm:$0xff]
        %v1184 = vld [vmem:[%s865 + $0x6b] sm:$0xff]
        %v1185 = vld [vmem:[%s865 + $0x73] sm:$0xff]
        %v1186 = vld [vmem:[%s865 + $0x8b] sm:$0xff]
        %v1187 = vld [vmem:[%s865 + $0x93] sm:$0xff]
        %v1188 = vld [vmem:[%s865 + $0xab] sm:$0xff]
        %v1189 = vld [vmem:[%s865 + $0xb3] sm:$0xff]
        %v1190 = vld [vmem:[%s865 + $0xcb] sm:$0xff]
        %v1191 = vld [vmem:[%s865 + $0xd3] sm:$0xff]
        %v1192 = vld [vmem:[%s865 + $0xeb] sm:$0xff]
        %v1193 = vld [vmem:[%s865 + $0xf3] sm:$0xff]
        %v1194 = vlaneseq
        %v1195 = vshrl.u32 %v1194, 7
        %v1196 = vsub.s32 0, %v1195
        %v1197 = vrot.slane %v480, %v1196
        %v1198 = vmul.f32 %v1178, %v1197
        %v1199 = vmul.f32 %v1179, %v1197
        %v1200 = vmul.f32 %v1180, %v1197
        %v1201 = vmul.f32 %v1181, %v1197
        %v1202 = vmul.f32 %v1182, %v1197
        %v1203 = vmul.f32 %v1183, %v1197
        %v1204 = vmul.f32 %v1184, %v1197
        %v1205 = vmul.f32 %v1185, %v1197
        %v1206 = vmul.f32 %v1186, %v1197
        %v1207 = vmul.f32 %v1187, %v1197
        %v1208 = vmul.f32 %v1188, %v1197
        %v1209 = vmul.f32 %v1189, %v1197
        %v1210 = vmul.f32 %v1190, %v1197
        %v1211 = vmul.f32 %v1191, %v1197
        %v1212 = vmul.f32 %v1192, %v1197
        %v1213 = vmul.f32 %v1193, %v1197
        %v1214 = vadd.f32 %v1162, %v1198
        %v1215 = vadd.f32 %v1163, %v1199
        %v1216 = vadd.f32 %v1164, %v1200
        %v1217 = vadd.f32 %v1165, %v1201
        %v1218 = vadd.f32 %v1166, %v1202
        %v1219 = vadd.f32 %v1167, %v1203
        %v1220 = vadd.f32 %v1168, %v1204
        %v1221 = vadd.f32 %v1169, %v1205
        %v1222 = vadd.f32 %v1170, %v1206
        %v1223 = vadd.f32 %v1171, %v1207
        %v1224 = vadd.f32 %v1172, %v1208
        %v1225 = vadd.f32 %v1173, %v1209
        %v1226 = vadd.f32 %v1174, %v1210
        %v1227 = vadd.f32 %v1175, %v1211
        %v1228 = vadd.f32 %v1176, %v1212
        %v1229 = vadd.f32 %v1177, %v1213
        %s1230 = scalar_lea.vmem [#allocation2], 64
        %v1231 = vld [vmem:[%s1230 + $0x5] sm:$0xff]
        %v1232 = vld [vmem:[%s1230 + $0xd] sm:$0xff]
        %v1233 = vld [vmem:[%s1230 + $0x25] sm:$0xff]
        %v1234 = vld [vmem:[%s1230 + $0x2d] sm:$0xff]
        %v1235 = vld [vmem:[%s1230 + $0x45] sm:$0xff]
        %v1236 = vld [vmem:[%s1230 + $0x4d] sm:$0xff]
        %v1237 = vld [vmem:[%s1230 + $0x65] sm:$0xff]
        %v1238 = vld [vmem:[%s1230 + $0x6d] sm:$0xff]
        %v1239 = vld [vmem:[%s1230 + $0x85] sm:$0xff]
        %v1240 = vld [vmem:[%s1230 + $0x8d] sm:$0xff]
        %v1241 = vld [vmem:[%s1230 + $0xa5] sm:$0xff]
        %v1242 = vld [vmem:[%s1230 + $0xad] sm:$0xff]
        %v1243 = vld [vmem:[%s1230 + $0xc5] sm:$0xff]
        %v1244 = vld [vmem:[%s1230 + $0xcd] sm:$0xff]
        %v1245 = vld [vmem:[%s1230 + $0xe5] sm:$0xff]
        %v1246 = vld [vmem:[%s1230 + $0xed] sm:$0xff]
        %v1247 = vlaneseq
        %v1248 = vshrl.u32 %v1247, 7
        %v1249 = vsub.s32 0, %v1248
        %v1250 = vrot.slane %v481, %v1249
        %v1251 = vmul.f32 %v1231, %v1250
        %v1252 = vmul.f32 %v1232, %v1250
        %v1253 = vmul.f32 %v1233, %v1250
        %v1254 = vmul.f32 %v1234, %v1250
        %v1255 = vmul.f32 %v1235, %v1250
        %v1256 = vmul.f32 %v1236, %v1250
        %v1257 = vmul.f32 %v1237, %v1250
        %v1258 = vmul.f32 %v1238, %v1250
        %v1259 = vmul.f32 %v1239, %v1250
        %v1260 = vmul.f32 %v1240, %v1250
        %v1261 = vmul.f32 %v1241, %v1250
        %v1262 = vmul.f32 %v1242, %v1250
        %v1263 = vmul.f32 %v1243, %v1250
        %v1264 = vmul.f32 %v1244, %v1250
        %v1265 = vmul.f32 %v1245, %v1250
        %v1266 = vmul.f32 %v1246, %v1250
        %v1267 = vadd.f32 %v1214, %v1251
        %v1268 = vadd.f32 %v1215, %v1252
        %v1269 = vadd.f32 %v1216, %v1253
        %v1270 = vadd.f32 %v1217, %v1254
        %v1271 = vadd.f32 %v1218, %v1255
        %v1272 = vadd.f32 %v1219, %v1256
        %v1273 = vadd.f32 %v1220, %v1257
        %v1274 = vadd.f32 %v1221, %v1258
        %v1275 = vadd.f32 %v1222, %v1259
        %v1276 = vadd.f32 %v1223, %v1260
        %v1277 = vadd.f32 %v1224, %v1261
        %v1278 = vadd.f32 %v1225, %v1262
        %v1279 = vadd.f32 %v1226, %v1263
        %v1280 = vadd.f32 %v1227, %v1264
        %v1281 = vadd.f32 %v1228, %v1265
        %v1282 = vadd.f32 %v1229, %v1266
        %v1283 = vld [vmem:[%s1230 + $0x6] sm:$0xff]
        %v1284 = vld [vmem:[%s1230 + $0xe] sm:$0xff]
        %v1285 = vld [vmem:[%s1230 + $0x26] sm:$0xff]
        %v1286 = vld [vmem:[%s1230 + $0x2e] sm:$0xff]
        %v1287 = vld [vmem:[%s1230 + $0x46] sm:$0xff]
        %v1288 = vld [vmem:[%s1230 + $0x4e] sm:$0xff]
        %v1289 = vld [vmem:[%s1230 + $0x66] sm:$0xff]
        %v1290 = vld [vmem:[%s1230 + $0x6e] sm:$0xff]
        %v1291 = vld [vmem:[%s1230 + $0x86] sm:$0xff]
        %v1292 = vld [vmem:[%s1230 + $0x8e] sm:$0xff]
        %v1293 = vld [vmem:[%s1230 + $0xa6] sm:$0xff]
        %v1294 = vld [vmem:[%s1230 + $0xae] sm:$0xff]
        %v1295 = vld [vmem:[%s1230 + $0xc6] sm:$0xff]
        %v1296 = vld [vmem:[%s1230 + $0xce] sm:$0xff]
        %v1297 = vld [vmem:[%s1230 + $0xe6] sm:$0xff]
        %v1298 = vld [vmem:[%s1230 + $0xee] sm:$0xff]
        %v1299 = vlaneseq
        %v1300 = vshrl.u32 %v1299, 7
        %v1301 = vsub.s32 0, %v1300
        %v1302 = vrot.slane %v482, %v1301
        %v1303 = vmul.f32 %v1283, %v1302
        %v1304 = vmul.f32 %v1284, %v1302
        %v1305 = vmul.f32 %v1285, %v1302
        %v1306 = vmul.f32 %v1286, %v1302
        %v1307 = vmul.f32 %v1287, %v1302
        %v1308 = vmul.f32 %v1288, %v1302
        %v1309 = vmul.f32 %v1289, %v1302
        %v1310 = vmul.f32 %v1290, %v1302
        %v1311 = vmul.f32 %v1291, %v1302
        %v1312 = vmul.f32 %v1292, %v1302
        %v1313 = vmul.f32 %v1293, %v1302
        %v1314 = vmul.f32 %v1294, %v1302
        %v1315 = vmul.f32 %v1295, %v1302
        %v1316 = vmul.f32 %v1296, %v1302
        %v1317 = vmul.f32 %v1297, %v1302
        %v1318 = vmul.f32 %v1298, %v1302
        %v1319 = vadd.f32 %v1267, %v1303
        %v1320 = vadd.f32 %v1268, %v1304
        %v1321 = vadd.f32 %v1269, %v1305
        %v1322 = vadd.f32 %v1270, %v1306
        %v1323 = vadd.f32 %v1271, %v1307
        %v1324 = vadd.f32 %v1272, %v1308
        %v1325 = vadd.f32 %v1273, %v1309
        %v1326 = vadd.f32 %v1274, %v1310
        %v1327 = vadd.f32 %v1275, %v1311
        %v1328 = vadd.f32 %v1276, %v1312
        %v1329 = vadd.f32 %v1277, %v1313
        %v1330 = vadd.f32 %v1278, %v1314
        %v1331 = vadd.f32 %v1279, %v1315
        %v1332 = vadd.f32 %v1280, %v1316
        %v1333 = vadd.f32 %v1281, %v1317
        %v1334 = vadd.f32 %v1282, %v1318
        %v1335 = vld [vmem:[%s1230 + $0x7] sm:$0xff]
        %v1336 = vld [vmem:[%s1230 + $0xf] sm:$0xff]
        %v1337 = vld [vmem:[%s1230 + $0x27] sm:$0xff]
        %v1338 = vld [vmem:[%s1230 + $0x2f] sm:$0xff]
        %v1339 = vld [vmem:[%s1230 + $0x47] sm:$0xff]
        %v1340 = vld [vmem:[%s1230 + $0x4f] sm:$0xff]
        %v1341 = vld [vmem:[%s1230 + $0x67] sm:$0xff]
        %v1342 = vld [vmem:[%s1230 + $0x6f] sm:$0xff]
        %v1343 = vld [vmem:[%s1230 + $0x87] sm:$0xff]
        %v1344 = vld [vmem:[%s1230 + $0x8f] sm:$0xff]
        %v1345 = vld [vmem:[%s1230 + $0xa7] sm:$0xff]
        %v1346 = vld [vmem:[%s1230 + $0xaf] sm:$0xff]
        %v1347 = vld [vmem:[%s1230 + $0xc7] sm:$0xff]
        %v1348 = vld [vmem:[%s1230 + $0xcf] sm:$0xff]
        %v1349 = vld [vmem:[%s1230 + $0xe7] sm:$0xff]
        %v1350 = vld [vmem:[%s1230 + $0xef] sm:$0xff]
        %v1351 = vlaneseq
        %v1352 = vshrl.u32 %v1351, 7
        %v1353 = vsub.s32 0, %v1352
        %v1354 = vrot.slane %v483, %v1353
        %v1355 = vmul.f32 %v1335, %v1354
        %v1356 = vmul.f32 %v1336, %v1354
        %v1357 = vmul.f32 %v1337, %v1354
        %v1358 = vmul.f32 %v1338, %v1354
        %v1359 = vmul.f32 %v1339, %v1354
        %v1360 = vmul.f32 %v1340, %v1354
        %v1361 = vmul.f32 %v1341, %v1354
        %v1362 = vmul.f32 %v1342, %v1354
        %v1363 = vmul.f32 %v1343, %v1354
        %v1364 = vmul.f32 %v1344, %v1354
        %v1365 = vmul.f32 %v1345, %v1354
        %v1366 = vmul.f32 %v1346, %v1354
        %v1367 = vmul.f32 %v1347, %v1354
        %v1368 = vmul.f32 %v1348, %v1354
        %v1369 = vmul.f32 %v1349, %v1354
        %v1370 = vmul.f32 %v1350, %v1354
        %v1371 = vadd.f32 %v1319, %v1355
        %v1372 = vadd.f32 %v1320, %v1356
        %v1373 = vadd.f32 %v1321, %v1357
        %v1374 = vadd.f32 %v1322, %v1358
        %v1375 = vadd.f32 %v1323, %v1359
        %v1376 = vadd.f32 %v1324, %v1360
        %v1377 = vadd.f32 %v1325, %v1361
        %v1378 = vadd.f32 %v1326, %v1362
        %v1379 = vadd.f32 %v1327, %v1363
        %v1380 = vadd.f32 %v1328, %v1364
        %v1381 = vadd.f32 %v1329, %v1365
        %v1382 = vadd.f32 %v1330, %v1366
        %v1383 = vadd.f32 %v1331, %v1367
        %v1384 = vadd.f32 %v1332, %v1368
        %v1385 = vadd.f32 %v1333, %v1369
        %v1386 = vadd.f32 %v1334, %v1370
        %v1387 = vld [vmem:[%s1230 + $0x8] sm:$0xff]
        %v1388 = vld [vmem:[%s1230 + $0x10] sm:$0xff]
        %v1389 = vld [vmem:[%s1230 + $0x28] sm:$0xff]
        %v1390 = vld [vmem:[%s1230 + $0x30] sm:$0xff]
        %v1391 = vld [vmem:[%s1230 + $0x48] sm:$0xff]
        %v1392 = vld [vmem:[%s1230 + $0x50] sm:$0xff]
        %v1393 = vld [vmem:[%s1230 + $0x68] sm:$0xff]
        %v1394 = vld [vmem:[%s1230 + $0x70] sm:$0xff]
        %v1395 = vld [vmem:[%s1230 + $0x88] sm:$0xff]
        %v1396 = vld [vmem:[%s1230 + $0x90] sm:$0xff]
        %v1397 = vld [vmem:[%s1230 + $0xa8] sm:$0xff]
        %v1398 = vld [vmem:[%s1230 + $0xb0] sm:$0xff]
        %v1399 = vld [vmem:[%s1230 + $0xc8] sm:$0xff]
        %v1400 = vld [vmem:[%s1230 + $0xd0] sm:$0xff]
        %v1401 = vld [vmem:[%s1230 + $0xe8] sm:$0xff]
        %v1402 = vld [vmem:[%s1230 + $0xf0] sm:$0xff]
        %v1403 = vlaneseq
        %v1404 = vshrl.u32 %v1403, 7
        %v1405 = vsub.s32 0, %v1404
        %v1406 = vrot.slane %v484, %v1405
        %v1407 = vmul.f32 %v1387, %v1406
        %v1408 = vmul.f32 %v1388, %v1406
        %v1409 = vmul.f32 %v1389, %v1406
        %v1410 = vmul.f32 %v1390, %v1406
        %v1411 = vmul.f32 %v1391, %v1406
        %v1412 = vmul.f32 %v1392, %v1406
        %v1413 = vmul.f32 %v1393, %v1406
        %v1414 = vmul.f32 %v1394, %v1406
        %v1415 = vmul.f32 %v1395, %v1406
        %v1416 = vmul.f32 %v1396, %v1406
        %v1417 = vmul.f32 %v1397, %v1406
        %v1418 = vmul.f32 %v1398, %v1406
        %v1419 = vmul.f32 %v1399, %v1406
        %v1420 = vmul.f32 %v1400, %v1406
        %v1421 = vmul.f32 %v1401, %v1406
        %v1422 = vmul.f32 %v1402, %v1406
        %v1423 = vadd.f32 %v1371, %v1407
        %v1424 = vadd.f32 %v1372, %v1408
        %v1425 = vadd.f32 %v1373, %v1409
        %v1426 = vadd.f32 %v1374, %v1410
        %v1427 = vadd.f32 %v1375, %v1411
        %v1428 = vadd.f32 %v1376, %v1412
        %v1429 = vadd.f32 %v1377, %v1413
        %v1430 = vadd.f32 %v1378, %v1414
        %v1431 = vadd.f32 %v1379, %v1415
        %v1432 = vadd.f32 %v1380, %v1416
        %v1433 = vadd.f32 %v1381, %v1417
        %v1434 = vadd.f32 %v1382, %v1418
        %v1435 = vadd.f32 %v1383, %v1419
        %v1436 = vadd.f32 %v1384, %v1420
        %v1437 = vadd.f32 %v1385, %v1421
        %v1438 = vadd.f32 %v1386, %v1422
        %v1439 = vld [vmem:[%s1230 + $0x9] sm:$0xff]
        %v1440 = vld [vmem:[%s1230 + $0x11] sm:$0xff]
        %v1441 = vld [vmem:[%s1230 + $0x29] sm:$0xff]
        %v1442 = vld [vmem:[%s1230 + $0x31] sm:$0xff]
        %v1443 = vld [vmem:[%s1230 + $0x49] sm:$0xff]
        %v1444 = vld [vmem:[%s1230 + $0x51] sm:$0xff]
        %v1445 = vld [vmem:[%s1230 + $0x69] sm:$0xff]
        %v1446 = vld [vmem:[%s1230 + $0x71] sm:$0xff]
        %v1447 = vld [vmem:[%s1230 + $0x89] sm:$0xff]
        %v1448 = vld [vmem:[%s1230 + $0x91] sm:$0xff]
        %v1449 = vld [vmem:[%s1230 + $0xa9] sm:$0xff]
        %v1450 = vld [vmem:[%s1230 + $0xb1] sm:$0xff]
        %v1451 = vld [vmem:[%s1230 + $0xc9] sm:$0xff]
        %v1452 = vld [vmem:[%s1230 + $0xd1] sm:$0xff]
        %v1453 = vld [vmem:[%s1230 + $0xe9] sm:$0xff]
        %v1454 = vld [vmem:[%s1230 + $0xf1] sm:$0xff]
        %v1455 = vlaneseq
        %v1456 = vshrl.u32 %v1455, 7
        %v1457 = vsub.s32 0, %v1456
        %v1458 = vrot.slane %v485, %v1457
        %v1459 = vmul.f32 %v1439, %v1458
        %v1460 = vmul.f32 %v1440, %v1458
        %v1461 = vmul.f32 %v1441, %v1458
        %v1462 = vmul.f32 %v1442, %v1458
        %v1463 = vmul.f32 %v1443, %v1458
        %v1464 = vmul.f32 %v1444, %v1458
        %v1465 = vmul.f32 %v1445, %v1458
        %v1466 = vmul.f32 %v1446, %v1458
        %v1467 = vmul.f32 %v1447, %v1458
        %v1468 = vmul.f32 %v1448, %v1458
        %v1469 = vmul.f32 %v1449, %v1458
        %v1470 = vmul.f32 %v1450, %v1458
        %v1471 = vmul.f32 %v1451, %v1458
        %v1472 = vmul.f32 %v1452, %v1458
        %v1473 = vmul.f32 %v1453, %v1458
        %v1474 = vmul.f32 %v1454, %v1458
        %v1475 = vadd.f32 %v1423, %v1459
        %v1476 = vadd.f32 %v1424, %v1460
        %v1477 = vadd.f32 %v1425, %v1461
        %v1478 = vadd.f32 %v1426, %v1462
        %v1479 = vadd.f32 %v1427, %v1463
        %v1480 = vadd.f32 %v1428, %v1464
        %v1481 = vadd.f32 %v1429, %v1465
        %v1482 = vadd.f32 %v1430, %v1466
        %v1483 = vadd.f32 %v1431, %v1467
        %v1484 = vadd.f32 %v1432, %v1468
        %v1485 = vadd.f32 %v1433, %v1469
        %v1486 = vadd.f32 %v1434, %v1470
        %v1487 = vadd.f32 %v1435, %v1471
        %v1488 = vadd.f32 %v1436, %v1472
        %v1489 = vadd.f32 %v1437, %v1473
        %v1490 = vadd.f32 %v1438, %v1474
        %v1491 = vld [vmem:[%s1230 + $0xa] sm:$0xff]
        %v1492 = vld [vmem:[%s1230 + $0x12] sm:$0xff]
        %v1493 = vld [vmem:[%s1230 + $0x2a] sm:$0xff]
        %v1494 = vld [vmem:[%s1230 + $0x32] sm:$0xff]
        %v1495 = vld [vmem:[%s1230 + $0x4a] sm:$0xff]
        %v1496 = vld [vmem:[%s1230 + $0x52] sm:$0xff]
        %v1497 = vld [vmem:[%s1230 + $0x6a] sm:$0xff]
        %v1498 = vld [vmem:[%s1230 + $0x72] sm:$0xff]
        %v1499 = vld [vmem:[%s1230 + $0x8a] sm:$0xff]
        %v1500 = vld [vmem:[%s1230 + $0x92] sm:$0xff]
        %v1501 = vld [vmem:[%s1230 + $0xaa] sm:$0xff]
        %v1502 = vld [vmem:[%s1230 + $0xb2] sm:$0xff]
        %v1503 = vld [vmem:[%s1230 + $0xca] sm:$0xff]
        %v1504 = vld [vmem:[%s1230 + $0xd2] sm:$0xff]
        %v1505 = vld [vmem:[%s1230 + $0xea] sm:$0xff]
        %v1506 = vld [vmem:[%s1230 + $0xf2] sm:$0xff]
        %v1507 = vlaneseq
        %v1508 = vshrl.u32 %v1507, 7
        %v1509 = vsub.s32 0, %v1508
        %v1510 = vrot.slane %v486, %v1509
        %v1511 = vmul.f32 %v1491, %v1510
        %v1512 = vmul.f32 %v1492, %v1510
        %v1513 = vmul.f32 %v1493, %v1510
        %v1514 = vmul.f32 %v1494, %v1510
        %v1515 = vmul.f32 %v1495, %v1510
        %v1516 = vmul.f32 %v1496, %v1510
        %v1517 = vmul.f32 %v1497, %v1510
        %v1518 = vmul.f32 %v1498, %v1510
        %v1519 = vmul.f32 %v1499, %v1510
        %v1520 = vmul.f32 %v1500, %v1510
        %v1521 = vmul.f32 %v1501, %v1510
        %v1522 = vmul.f32 %v1502, %v1510
        %v1523 = vmul.f32 %v1503, %v1510
        %v1524 = vmul.f32 %v1504, %v1510
        %v1525 = vmul.f32 %v1505, %v1510
        %v1526 = vmul.f32 %v1506, %v1510
        %v1527 = vadd.f32 %v1475, %v1511
        %v1528 = vadd.f32 %v1476, %v1512
        %v1529 = vadd.f32 %v1477, %v1513
        %v1530 = vadd.f32 %v1478, %v1514
        %v1531 = vadd.f32 %v1479, %v1515
        %v1532 = vadd.f32 %v1480, %v1516
        %v1533 = vadd.f32 %v1481, %v1517
        %v1534 = vadd.f32 %v1482, %v1518
        %v1535 = vadd.f32 %v1483, %v1519
        %v1536 = vadd.f32 %v1484, %v1520
        %v1537 = vadd.f32 %v1485, %v1521
        %v1538 = vadd.f32 %v1486, %v1522
        %v1539 = vadd.f32 %v1487, %v1523
        %v1540 = vadd.f32 %v1488, %v1524
        %v1541 = vadd.f32 %v1489, %v1525
        %v1542 = vadd.f32 %v1490, %v1526
        %v1543 = vld [vmem:[%s1230 + $0xb] sm:$0xff]
        %v1544 = vld [vmem:[%s1230 + $0x13] sm:$0xff]
        %v1545 = vld [vmem:[%s1230 + $0x2b] sm:$0xff]
        %v1546 = vld [vmem:[%s1230 + $0x33] sm:$0xff]
        %v1547 = vld [vmem:[%s1230 + $0x4b] sm:$0xff]
        %v1548 = vld [vmem:[%s1230 + $0x53] sm:$0xff]
        %v1549 = vld [vmem:[%s1230 + $0x6b] sm:$0xff]
        %v1550 = vld [vmem:[%s1230 + $0x73] sm:$0xff]
        %v1551 = vld [vmem:[%s1230 + $0x8b] sm:$0xff]
        %v1552 = vld [vmem:[%s1230 + $0x93] sm:$0xff]
        %v1553 = vld [vmem:[%s1230 + $0xab] sm:$0xff]
        %v1554 = vld [vmem:[%s1230 + $0xb3] sm:$0xff]
        %v1555 = vld [vmem:[%s1230 + $0xcb] sm:$0xff]
        %v1556 = vld [vmem:[%s1230 + $0xd3] sm:$0xff]
        %v1557 = vld [vmem:[%s1230 + $0xeb] sm:$0xff]
        %v1558 = vld [vmem:[%s1230 + $0xf3] sm:$0xff]
        %v1559 = vlaneseq
        %v1560 = vshrl.u32 %v1559, 7
        %v1561 = vsub.s32 0, %v1560
        %v1562 = vrot.slane %v487, %v1561
        %v1563 = vmul.f32 %v1543, %v1562
        %v1564 = vmul.f32 %v1544, %v1562
        %v1565 = vmul.f32 %v1545, %v1562
        %v1566 = vmul.f32 %v1546, %v1562
        %v1567 = vmul.f32 %v1547, %v1562
        %v1568 = vmul.f32 %v1548, %v1562
        %v1569 = vmul.f32 %v1549, %v1562
        %v1570 = vmul.f32 %v1550, %v1562
        %v1571 = vmul.f32 %v1551, %v1562
        %v1572 = vmul.f32 %v1552, %v1562
        %v1573 = vmul.f32 %v1553, %v1562
        %v1574 = vmul.f32 %v1554, %v1562
        %v1575 = vmul.f32 %v1555, %v1562
        %v1576 = vmul.f32 %v1556, %v1562
        %v1577 = vmul.f32 %v1557, %v1562
        %v1578 = vmul.f32 %v1558, %v1562
        %v1579 = vadd.f32 %v1527, %v1563
        %v1580 = vadd.f32 %v1528, %v1564
        %v1581 = vadd.f32 %v1529, %v1565
        %v1582 = vadd.f32 %v1530, %v1566
        %v1583 = vadd.f32 %v1531, %v1567
        %v1584 = vadd.f32 %v1532, %v1568
        %v1585 = vadd.f32 %v1533, %v1569
        %v1586 = vadd.f32 %v1534, %v1570
        %v1587 = vadd.f32 %v1535, %v1571
        %v1588 = vadd.f32 %v1536, %v1572
        %v1589 = vadd.f32 %v1537, %v1573
        %v1590 = vadd.f32 %v1538, %v1574
        %v1591 = vadd.f32 %v1539, %v1575
        %v1592 = vadd.f32 %v1540, %v1576
        %v1593 = vadd.f32 %v1541, %v1577
        %v1594 = vadd.f32 %v1542, %v1578
        %s1595 = scalar_lea.vmem [#allocation2], 96
        %v1596 = vld [vmem:[%s1595 + $0x5] sm:$0xff]
        %v1597 = vld [vmem:[%s1595 + $0xd] sm:$0xff]
        %v1598 = vld [vmem:[%s1595 + $0x25] sm:$0xff]
        %v1599 = vld [vmem:[%s1595 + $0x2d] sm:$0xff]
        %v1600 = vld [vmem:[%s1595 + $0x45] sm:$0xff]
        %v1601 = vld [vmem:[%s1595 + $0x4d] sm:$0xff]
        %v1602 = vld [vmem:[%s1595 + $0x65] sm:$0xff]
        %v1603 = vld [vmem:[%s1595 + $0x6d] sm:$0xff]
        %v1604 = vld [vmem:[%s1595 + $0x85] sm:$0xff]
        %v1605 = vld [vmem:[%s1595 + $0x8d] sm:$0xff]
        %v1606 = vld [vmem:[%s1595 + $0xa5] sm:$0xff]
        %v1607 = vld [vmem:[%s1595 + $0xad] sm:$0xff]
        %v1608 = vld [vmem:[%s1595 + $0xc5] sm:$0xff]
        %v1609 = vld [vmem:[%s1595 + $0xcd] sm:$0xff]
        %v1610 = vld [vmem:[%s1595 + $0xe5] sm:$0xff]
        %v1611 = vld [vmem:[%s1595 + $0xed] sm:$0xff]
        %v1612 = vlaneseq
        %v1613 = vshrl.u32 %v1612, 7
        %v1614 = vsub.s32 0, %v1613
        %v1615 = vrot.slane %v488, %v1614
        %v1616 = vmul.f32 %v1596, %v1615
        %v1617 = vmul.f32 %v1597, %v1615
        %v1618 = vmul.f32 %v1598, %v1615
        %v1619 = vmul.f32 %v1599, %v1615
        %v1620 = vmul.f32 %v1600, %v1615
        %v1621 = vmul.f32 %v1601, %v1615
        %v1622 = vmul.f32 %v1602, %v1615
        %v1623 = vmul.f32 %v1603, %v1615
        %v1624 = vmul.f32 %v1604, %v1615
        %v1625 = vmul.f32 %v1605, %v1615
        %v1626 = vmul.f32 %v1606, %v1615
        %v1627 = vmul.f32 %v1607, %v1615
        %v1628 = vmul.f32 %v1608, %v1615
        %v1629 = vmul.f32 %v1609, %v1615
        %v1630 = vmul.f32 %v1610, %v1615
        %v1631 = vmul.f32 %v1611, %v1615
        %v1632 = vadd.f32 %v1579, %v1616
        %v1633 = vadd.f32 %v1580, %v1617
        %v1634 = vadd.f32 %v1581, %v1618
        %v1635 = vadd.f32 %v1582, %v1619
        %v1636 = vadd.f32 %v1583, %v1620
        %v1637 = vadd.f32 %v1584, %v1621
        %v1638 = vadd.f32 %v1585, %v1622
        %v1639 = vadd.f32 %v1586, %v1623
        %v1640 = vadd.f32 %v1587, %v1624
        %v1641 = vadd.f32 %v1588, %v1625
        %v1642 = vadd.f32 %v1589, %v1626
        %v1643 = vadd.f32 %v1590, %v1627
        %v1644 = vadd.f32 %v1591, %v1628
        %v1645 = vadd.f32 %v1592, %v1629
        %v1646 = vadd.f32 %v1593, %v1630
        %v1647 = vadd.f32 %v1594, %v1631
        %v1648 = vld [vmem:[%s1595 + $0x6] sm:$0xff]
        %v1649 = vld [vmem:[%s1595 + $0xe] sm:$0xff]
        %v1650 = vld [vmem:[%s1595 + $0x26] sm:$0xff]
        %v1651 = vld [vmem:[%s1595 + $0x2e] sm:$0xff]
        %v1652 = vld [vmem:[%s1595 + $0x46] sm:$0xff]
        %v1653 = vld [vmem:[%s1595 + $0x4e] sm:$0xff]
        %v1654 = vld [vmem:[%s1595 + $0x66] sm:$0xff]
        %v1655 = vld [vmem:[%s1595 + $0x6e] sm:$0xff]
        %v1656 = vld [vmem:[%s1595 + $0x86] sm:$0xff]
        %v1657 = vld [vmem:[%s1595 + $0x8e] sm:$0xff]
        %v1658 = vld [vmem:[%s1595 + $0xa6] sm:$0xff]
        %v1659 = vld [vmem:[%s1595 + $0xae] sm:$0xff]
        %v1660 = vld [vmem:[%s1595 + $0xc6] sm:$0xff]
        %v1661 = vld [vmem:[%s1595 + $0xce] sm:$0xff]
        %v1662 = vld [vmem:[%s1595 + $0xe6] sm:$0xff]
        %v1663 = vld [vmem:[%s1595 + $0xee] sm:$0xff]
        %v1664 = vlaneseq
        %v1665 = vshrl.u32 %v1664, 7
        %v1666 = vsub.s32 0, %v1665
        %v1667 = vrot.slane %v489, %v1666
        %v1668 = vmul.f32 %v1648, %v1667
        %v1669 = vmul.f32 %v1649, %v1667
        %v1670 = vmul.f32 %v1650, %v1667
        %v1671 = vmul.f32 %v1651, %v1667
        %v1672 = vmul.f32 %v1652, %v1667
        %v1673 = vmul.f32 %v1653, %v1667
        %v1674 = vmul.f32 %v1654, %v1667
        %v1675 = vmul.f32 %v1655, %v1667
        %v1676 = vmul.f32 %v1656, %v1667
        %v1677 = vmul.f32 %v1657, %v1667
        %v1678 = vmul.f32 %v1658, %v1667
        %v1679 = vmul.f32 %v1659, %v1667
        %v1680 = vmul.f32 %v1660, %v1667
        %v1681 = vmul.f32 %v1661, %v1667
        %v1682 = vmul.f32 %v1662, %v1667
        %v1683 = vmul.f32 %v1663, %v1667
        %v1684 = vadd.f32 %v1632, %v1668
        %v1685 = vadd.f32 %v1633, %v1669
        %v1686 = vadd.f32 %v1634, %v1670
        %v1687 = vadd.f32 %v1635, %v1671
        %v1688 = vadd.f32 %v1636, %v1672
        %v1689 = vadd.f32 %v1637, %v1673
        %v1690 = vadd.f32 %v1638, %v1674
        %v1691 = vadd.f32 %v1639, %v1675
        %v1692 = vadd.f32 %v1640, %v1676
        %v1693 = vadd.f32 %v1641, %v1677
        %v1694 = vadd.f32 %v1642, %v1678
        %v1695 = vadd.f32 %v1643, %v1679
        %v1696 = vadd.f32 %v1644, %v1680
        %v1697 = vadd.f32 %v1645, %v1681
        %v1698 = vadd.f32 %v1646, %v1682
        %v1699 = vadd.f32 %v1647, %v1683
        %v1700 = vld [vmem:[%s1595 + $0x7] sm:$0xff]
        %v1701 = vld [vmem:[%s1595 + $0xf] sm:$0xff]
        %v1702 = vld [vmem:[%s1595 + $0x27] sm:$0xff]
        %v1703 = vld [vmem:[%s1595 + $0x2f] sm:$0xff]
        %v1704 = vld [vmem:[%s1595 + $0x47] sm:$0xff]
        %v1705 = vld [vmem:[%s1595 + $0x4f] sm:$0xff]
        %v1706 = vld [vmem:[%s1595 + $0x67] sm:$0xff]
        %v1707 = vld [vmem:[%s1595 + $0x6f] sm:$0xff]
        %v1708 = vld [vmem:[%s1595 + $0x87] sm:$0xff]
        %v1709 = vld [vmem:[%s1595 + $0x8f] sm:$0xff]
        %v1710 = vld [vmem:[%s1595 + $0xa7] sm:$0xff]
        %v1711 = vld [vmem:[%s1595 + $0xaf] sm:$0xff]
        %v1712 = vld [vmem:[%s1595 + $0xc7] sm:$0xff]
        %v1713 = vld [vmem:[%s1595 + $0xcf] sm:$0xff]
        %v1714 = vld [vmem:[%s1595 + $0xe7] sm:$0xff]
        %v1715 = vld [vmem:[%s1595 + $0xef] sm:$0xff]
        %v1716 = vlaneseq
        %v1717 = vshrl.u32 %v1716, 7
        %v1718 = vsub.s32 0, %v1717
        %v1719 = vrot.slane %v490, %v1718
        %v1720 = vmul.f32 %v1700, %v1719
        %v1721 = vmul.f32 %v1701, %v1719
        %v1722 = vmul.f32 %v1702, %v1719
        %v1723 = vmul.f32 %v1703, %v1719
        %v1724 = vmul.f32 %v1704, %v1719
        %v1725 = vmul.f32 %v1705, %v1719
        %v1726 = vmul.f32 %v1706, %v1719
        %v1727 = vmul.f32 %v1707, %v1719
        %v1728 = vmul.f32 %v1708, %v1719
        %v1729 = vmul.f32 %v1709, %v1719
        %v1730 = vmul.f32 %v1710, %v1719
        %v1731 = vmul.f32 %v1711, %v1719
        %v1732 = vmul.f32 %v1712, %v1719
        %v1733 = vmul.f32 %v1713, %v1719
        %v1734 = vmul.f32 %v1714, %v1719
        %v1735 = vmul.f32 %v1715, %v1719
        %v1736 = vadd.f32 %v1684, %v1720
        %v1737 = vadd.f32 %v1685, %v1721
        %v1738 = vadd.f32 %v1686, %v1722
        %v1739 = vadd.f32 %v1687, %v1723
        %v1740 = vadd.f32 %v1688, %v1724
        %v1741 = vadd.f32 %v1689, %v1725
        %v1742 = vadd.f32 %v1690, %v1726
        %v1743 = vadd.f32 %v1691, %v1727
        %v1744 = vadd.f32 %v1692, %v1728
        %v1745 = vadd.f32 %v1693, %v1729
        %v1746 = vadd.f32 %v1694, %v1730
        %v1747 = vadd.f32 %v1695, %v1731
        %v1748 = vadd.f32 %v1696, %v1732
        %v1749 = vadd.f32 %v1697, %v1733
        %v1750 = vadd.f32 %v1698, %v1734
        %v1751 = vadd.f32 %v1699, %v1735
        %v1752 = vld [vmem:[%s1595 + $0x8] sm:$0xff]
        %v1753 = vld [vmem:[%s1595 + $0x10] sm:$0xff]
        %v1754 = vld [vmem:[%s1595 + $0x28] sm:$0xff]
        %v1755 = vld [vmem:[%s1595 + $0x30] sm:$0xff]
        %v1756 = vld [vmem:[%s1595 + $0x48] sm:$0xff]
        %v1757 = vld [vmem:[%s1595 + $0x50] sm:$0xff]
        %v1758 = vld [vmem:[%s1595 + $0x68] sm:$0xff]
        %v1759 = vld [vmem:[%s1595 + $0x70] sm:$0xff]
        %v1760 = vld [vmem:[%s1595 + $0x88] sm:$0xff]
        %v1761 = vld [vmem:[%s1595 + $0x90] sm:$0xff]
        %v1762 = vld [vmem:[%s1595 + $0xa8] sm:$0xff]
        %v1763 = vld [vmem:[%s1595 + $0xb0] sm:$0xff]
        %v1764 = vld [vmem:[%s1595 + $0xc8] sm:$0xff]
        %v1765 = vld [vmem:[%s1595 + $0xd0] sm:$0xff]
        %v1766 = vld [vmem:[%s1595 + $0xe8] sm:$0xff]
        %v1767 = vld [vmem:[%s1595 + $0xf0] sm:$0xff]
        %v1768 = vlaneseq
        %v1769 = vshrl.u32 %v1768, 7
        %v1770 = vsub.s32 0, %v1769
        %v1771 = vrot.slane %v491, %v1770
        %v1772 = vmul.f32 %v1752, %v1771
        %v1773 = vmul.f32 %v1753, %v1771
        %v1774 = vmul.f32 %v1754, %v1771
        %v1775 = vmul.f32 %v1755, %v1771
        %v1776 = vmul.f32 %v1756, %v1771
        %v1777 = vmul.f32 %v1757, %v1771
        %v1778 = vmul.f32 %v1758, %v1771
        %v1779 = vmul.f32 %v1759, %v1771
        %v1780 = vmul.f32 %v1760, %v1771
        %v1781 = vmul.f32 %v1761, %v1771
        %v1782 = vmul.f32 %v1762, %v1771
        %v1783 = vmul.f32 %v1763, %v1771
        %v1784 = vmul.f32 %v1764, %v1771
        %v1785 = vmul.f32 %v1765, %v1771
        %v1786 = vmul.f32 %v1766, %v1771
        %v1787 = vmul.f32 %v1767, %v1771
        %v1788 = vadd.f32 %v1736, %v1772
        %v1789 = vadd.f32 %v1737, %v1773
        %v1790 = vadd.f32 %v1738, %v1774
        %v1791 = vadd.f32 %v1739, %v1775
        %v1792 = vadd.f32 %v1740, %v1776
        %v1793 = vadd.f32 %v1741, %v1777
        %v1794 = vadd.f32 %v1742, %v1778
        %v1795 = vadd.f32 %v1743, %v1779
        %v1796 = vadd.f32 %v1744, %v1780
        %v1797 = vadd.f32 %v1745, %v1781
        %v1798 = vadd.f32 %v1746, %v1782
        %v1799 = vadd.f32 %v1747, %v1783
        %v1800 = vadd.f32 %v1748, %v1784
        %v1801 = vadd.f32 %v1749, %v1785
        %v1802 = vadd.f32 %v1750, %v1786
        %v1803 = vadd.f32 %v1751, %v1787
        %v1804 = vld [vmem:[%s1595 + $0x9] sm:$0xff]
        %v1805 = vld [vmem:[%s1595 + $0x11] sm:$0xff]
        %v1806 = vld [vmem:[%s1595 + $0x29] sm:$0xff]
        %v1807 = vld [vmem:[%s1595 + $0x31] sm:$0xff]
        %v1808 = vld [vmem:[%s1595 + $0x49] sm:$0xff]
        %v1809 = vld [vmem:[%s1595 + $0x51] sm:$0xff]
        %v1810 = vld [vmem:[%s1595 + $0x69] sm:$0xff]
        %v1811 = vld [vmem:[%s1595 + $0x71] sm:$0xff]
        %v1812 = vld [vmem:[%s1595 + $0x89] sm:$0xff]
        %v1813 = vld [vmem:[%s1595 + $0x91] sm:$0xff]
        %v1814 = vld [vmem:[%s1595 + $0xa9] sm:$0xff]
        %v1815 = vld [vmem:[%s1595 + $0xb1] sm:$0xff]
        %v1816 = vld [vmem:[%s1595 + $0xc9] sm:$0xff]
        %v1817 = vld [vmem:[%s1595 + $0xd1] sm:$0xff]
        %v1818 = vld [vmem:[%s1595 + $0xe9] sm:$0xff]
        %v1819 = vld [vmem:[%s1595 + $0xf1] sm:$0xff]
        %v1820 = vlaneseq
        %v1821 = vshrl.u32 %v1820, 7
        %v1822 = vsub.s32 0, %v1821
        %v1823 = vrot.slane %v492, %v1822
        %v1824 = vmul.f32 %v1804, %v1823
        %v1825 = vmul.f32 %v1805, %v1823
        %v1826 = vmul.f32 %v1806, %v1823
        %v1827 = vmul.f32 %v1807, %v1823
        %v1828 = vmul.f32 %v1808, %v1823
        %v1829 = vmul.f32 %v1809, %v1823
        %v1830 = vmul.f32 %v1810, %v1823
        %v1831 = vmul.f32 %v1811, %v1823
        %v1832 = vmul.f32 %v1812, %v1823
        %v1833 = vmul.f32 %v1813, %v1823
        %v1834 = vmul.f32 %v1814, %v1823
        %v1835 = vmul.f32 %v1815, %v1823
        %v1836 = vmul.f32 %v1816, %v1823
        %v1837 = vmul.f32 %v1817, %v1823
        %v1838 = vmul.f32 %v1818, %v1823
        %v1839 = vmul.f32 %v1819, %v1823
        %v1840 = vadd.f32 %v1788, %v1824
        %v1841 = vadd.f32 %v1789, %v1825
        %v1842 = vadd.f32 %v1790, %v1826
        %v1843 = vadd.f32 %v1791, %v1827
        %v1844 = vadd.f32 %v1792, %v1828
        %v1845 = vadd.f32 %v1793, %v1829
        %v1846 = vadd.f32 %v1794, %v1830
        %v1847 = vadd.f32 %v1795, %v1831
        %v1848 = vadd.f32 %v1796, %v1832
        %v1849 = vadd.f32 %v1797, %v1833
        %v1850 = vadd.f32 %v1798, %v1834
        %v1851 = vadd.f32 %v1799, %v1835
        %v1852 = vadd.f32 %v1800, %v1836
        %v1853 = vadd.f32 %v1801, %v1837
        %v1854 = vadd.f32 %v1802, %v1838
        %v1855 = vadd.f32 %v1803, %v1839
        %v1856 = vld [vmem:[%s1595 + $0xa] sm:$0xff]
        %v1857 = vld [vmem:[%s1595 + $0x12] sm:$0xff]
        %v1858 = vld [vmem:[%s1595 + $0x2a] sm:$0xff]
        %v1859 = vld [vmem:[%s1595 + $0x32] sm:$0xff]
        %v1860 = vld [vmem:[%s1595 + $0x4a] sm:$0xff]
        %v1861 = vld [vmem:[%s1595 + $0x52] sm:$0xff]
        %v1862 = vld [vmem:[%s1595 + $0x6a] sm:$0xff]
        %v1863 = vld [vmem:[%s1595 + $0x72] sm:$0xff]
        %v1864 = vld [vmem:[%s1595 + $0x8a] sm:$0xff]
        %v1865 = vld [vmem:[%s1595 + $0x92] sm:$0xff]
        %v1866 = vld [vmem:[%s1595 + $0xaa] sm:$0xff]
        %v1867 = vld [vmem:[%s1595 + $0xb2] sm:$0xff]
        %v1868 = vld [vmem:[%s1595 + $0xca] sm:$0xff]
        %v1869 = vld [vmem:[%s1595 + $0xd2] sm:$0xff]
        %v1870 = vld [vmem:[%s1595 + $0xea] sm:$0xff]
        %v1871 = vld [vmem:[%s1595 + $0xf2] sm:$0xff]
        %v1872 = vlaneseq
        %v1873 = vshrl.u32 %v1872, 7
        %v1874 = vsub.s32 0, %v1873
        %v1875 = vrot.slane %v493, %v1874
        %v1876 = vmul.f32 %v1856, %v1875
        %v1877 = vmul.f32 %v1857, %v1875
        %v1878 = vmul.f32 %v1858, %v1875
        %v1879 = vmul.f32 %v1859, %v1875
        %v1880 = vmul.f32 %v1860, %v1875
        %v1881 = vmul.f32 %v1861, %v1875
        %v1882 = vmul.f32 %v1862, %v1875
        %v1883 = vmul.f32 %v1863, %v1875
        %v1884 = vmul.f32 %v1864, %v1875
        %v1885 = vmul.f32 %v1865, %v1875
        %v1886 = vmul.f32 %v1866, %v1875
        %v1887 = vmul.f32 %v1867, %v1875
        %v1888 = vmul.f32 %v1868, %v1875
        %v1889 = vmul.f32 %v1869, %v1875
        %v1890 = vmul.f32 %v1870, %v1875
        %v1891 = vmul.f32 %v1871, %v1875
        %v1892 = vadd.f32 %v1840, %v1876
        %v1893 = vadd.f32 %v1841, %v1877
        %v1894 = vadd.f32 %v1842, %v1878
        %v1895 = vadd.f32 %v1843, %v1879
        %v1896 = vadd.f32 %v1844, %v1880
        %v1897 = vadd.f32 %v1845, %v1881
        %v1898 = vadd.f32 %v1846, %v1882
        %v1899 = vadd.f32 %v1847, %v1883
        %v1900 = vadd.f32 %v1848, %v1884
        %v1901 = vadd.f32 %v1849, %v1885
        %v1902 = vadd.f32 %v1850, %v1886
        %v1903 = vadd.f32 %v1851, %v1887
        %v1904 = vadd.f32 %v1852, %v1888
        %v1905 = vadd.f32 %v1853, %v1889
        %v1906 = vadd.f32 %v1854, %v1890
        %v1907 = vadd.f32 %v1855, %v1891
        %v1908 = vld [vmem:[%s1595 + $0xb] sm:$0xff]
        %v1909 = vld [vmem:[%s1595 + $0x13] sm:$0xff]
        %v1910 = vld [vmem:[%s1595 + $0x2b] sm:$0xff]
        %v1911 = vld [vmem:[%s1595 + $0x33] sm:$0xff]
        %v1912 = vld [vmem:[%s1595 + $0x4b] sm:$0xff]
        %v1913 = vld [vmem:[%s1595 + $0x53] sm:$0xff]
        %v1914 = vld [vmem:[%s1595 + $0x6b] sm:$0xff]
        %v1915 = vld [vmem:[%s1595 + $0x73] sm:$0xff]
        %v1916 = vld [vmem:[%s1595 + $0x8b] sm:$0xff]
        %v1917 = vld [vmem:[%s1595 + $0x93] sm:$0xff]
        %v1918 = vld [vmem:[%s1595 + $0xab] sm:$0xff]
        %v1919 = vld [vmem:[%s1595 + $0xb3] sm:$0xff]
        %v1920 = vld [vmem:[%s1595 + $0xcb] sm:$0xff]
        %v1921 = vld [vmem:[%s1595 + $0xd3] sm:$0xff]
        %v1922 = vld [vmem:[%s1595 + $0xeb] sm:$0xff]
        %v1923 = vld [vmem:[%s1595 + $0xf3] sm:$0xff]
        %v1924 = vlaneseq
        %v1925 = vshrl.u32 %v1924, 7
        %v1926 = vsub.s32 0, %v1925
        %v1927 = vrot.slane %v494, %v1926
        %v1928 = vmul.f32 %v1908, %v1927
        %v1929 = vmul.f32 %v1909, %v1927
        %v1930 = vmul.f32 %v1910, %v1927
        %v1931 = vmul.f32 %v1911, %v1927
        %v1932 = vmul.f32 %v1912, %v1927
        %v1933 = vmul.f32 %v1913, %v1927
        %v1934 = vmul.f32 %v1914, %v1927
        %v1935 = vmul.f32 %v1915, %v1927
        %v1936 = vmul.f32 %v1916, %v1927
        %v1937 = vmul.f32 %v1917, %v1927
        %v1938 = vmul.f32 %v1918, %v1927
        %v1939 = vmul.f32 %v1919, %v1927
        %v1940 = vmul.f32 %v1920, %v1927
        %v1941 = vmul.f32 %v1921, %v1927
        %v1942 = vmul.f32 %v1922, %v1927
        %v1943 = vmul.f32 %v1923, %v1927
        %v1944 = vadd.f32 %v1892, %v1928
        %v1945 = vadd.f32 %v1893, %v1929
        %v1946 = vadd.f32 %v1894, %v1930
        %v1947 = vadd.f32 %v1895, %v1931
        %v1948 = vadd.f32 %v1896, %v1932
        %v1949 = vadd.f32 %v1897, %v1933
        %v1950 = vadd.f32 %v1898, %v1934
        %v1951 = vadd.f32 %v1899, %v1935
        %v1952 = vadd.f32 %v1900, %v1936
        %v1953 = vadd.f32 %v1901, %v1937
        %v1954 = vadd.f32 %v1902, %v1938
        %v1955 = vadd.f32 %v1903, %v1939
        %v1956 = vadd.f32 %v1904, %v1940
        %v1957 = vadd.f32 %v1905, %v1941
        %v1958 = vadd.f32 %v1906, %v1942
        %v1959 = vadd.f32 %v1907, %v1943
        %s1960 = scalar_lea.vmem [#allocation2], 128
        %v1961 = vld [vmem:[%s1960 + $0x5] sm:$0xff]
        %v1962 = vld [vmem:[%s1960 + $0xd] sm:$0xff]
        %v1963 = vld [vmem:[%s1960 + $0x25] sm:$0xff]
        %v1964 = vld [vmem:[%s1960 + $0x2d] sm:$0xff]
        %v1965 = vld [vmem:[%s1960 + $0x45] sm:$0xff]
        %v1966 = vld [vmem:[%s1960 + $0x4d] sm:$0xff]
        %v1967 = vld [vmem:[%s1960 + $0x65] sm:$0xff]
        %v1968 = vld [vmem:[%s1960 + $0x6d] sm:$0xff]
        %v1969 = vld [vmem:[%s1960 + $0x85] sm:$0xff]
        %v1970 = vld [vmem:[%s1960 + $0x8d] sm:$0xff]
        %v1971 = vld [vmem:[%s1960 + $0xa5] sm:$0xff]
        %v1972 = vld [vmem:[%s1960 + $0xad] sm:$0xff]
        %v1973 = vld [vmem:[%s1960 + $0xc5] sm:$0xff]
        %v1974 = vld [vmem:[%s1960 + $0xcd] sm:$0xff]
        %v1975 = vld [vmem:[%s1960 + $0xe5] sm:$0xff]
        %v1976 = vld [vmem:[%s1960 + $0xed] sm:$0xff]
        %v1977 = vlaneseq
        %v1978 = vshrl.u32 %v1977, 7
        %v1979 = vsub.s32 0, %v1978
        %v1980 = vrot.slane %v495, %v1979
        %v1981 = vmul.f32 %v1961, %v1980
        %v1982 = vmul.f32 %v1962, %v1980
        %v1983 = vmul.f32 %v1963, %v1980
        %v1984 = vmul.f32 %v1964, %v1980
        %v1985 = vmul.f32 %v1965, %v1980
        %v1986 = vmul.f32 %v1966, %v1980
        %v1987 = vmul.f32 %v1967, %v1980
        %v1988 = vmul.f32 %v1968, %v1980
        %v1989 = vmul.f32 %v1969, %v1980
        %v1990 = vmul.f32 %v1970, %v1980
        %v1991 = vmul.f32 %v1971, %v1980
        %v1992 = vmul.f32 %v1972, %v1980
        %v1993 = vmul.f32 %v1973, %v1980
        %v1994 = vmul.f32 %v1974, %v1980
        %v1995 = vmul.f32 %v1975, %v1980
        %v1996 = vmul.f32 %v1976, %v1980
        %v1997 = vadd.f32 %v1944, %v1981
        %v1998 = vadd.f32 %v1945, %v1982
        %v1999 = vadd.f32 %v1946, %v1983
        %v2000 = vadd.f32 %v1947, %v1984
        %v2001 = vadd.f32 %v1948, %v1985
        %v2002 = vadd.f32 %v1949, %v1986
        %v2003 = vadd.f32 %v1950, %v1987
        %v2004 = vadd.f32 %v1951, %v1988
        %v2005 = vadd.f32 %v1952, %v1989
        %v2006 = vadd.f32 %v1953, %v1990
        %v2007 = vadd.f32 %v1954, %v1991
        %v2008 = vadd.f32 %v1955, %v1992
        %v2009 = vadd.f32 %v1956, %v1993
        %v2010 = vadd.f32 %v1957, %v1994
        %v2011 = vadd.f32 %v1958, %v1995
        %v2012 = vadd.f32 %v1959, %v1996
        %v2013 = vld [vmem:[%s1960 + $0x6] sm:$0xff]
        %v2014 = vld [vmem:[%s1960 + $0xe] sm:$0xff]
        %v2015 = vld [vmem:[%s1960 + $0x26] sm:$0xff]
        %v2016 = vld [vmem:[%s1960 + $0x2e] sm:$0xff]
        %v2017 = vld [vmem:[%s1960 + $0x46] sm:$0xff]
        %v2018 = vld [vmem:[%s1960 + $0x4e] sm:$0xff]
        %v2019 = vld [vmem:[%s1960 + $0x66] sm:$0xff]
        %v2020 = vld [vmem:[%s1960 + $0x6e] sm:$0xff]
        %v2021 = vld [vmem:[%s1960 + $0x86] sm:$0xff]
        %v2022 = vld [vmem:[%s1960 + $0x8e] sm:$0xff]
        %v2023 = vld [vmem:[%s1960 + $0xa6] sm:$0xff]
        %v2024 = vld [vmem:[%s1960 + $0xae] sm:$0xff]
        %v2025 = vld [vmem:[%s1960 + $0xc6] sm:$0xff]
        %v2026 = vld [vmem:[%s1960 + $0xce] sm:$0xff]
        %v2027 = vld [vmem:[%s1960 + $0xe6] sm:$0xff]
        %v2028 = vld [vmem:[%s1960 + $0xee] sm:$0xff]
        %v2029 = vlaneseq
        %v2030 = vshrl.u32 %v2029, 7
        %v2031 = vsub.s32 0, %v2030
        %v2032 = vrot.slane %v496, %v2031
        %v2033 = vmul.f32 %v2013, %v2032
        %v2034 = vmul.f32 %v2014, %v2032
        %v2035 = vmul.f32 %v2015, %v2032
        %v2036 = vmul.f32 %v2016, %v2032
        %v2037 = vmul.f32 %v2017, %v2032
        %v2038 = vmul.f32 %v2018, %v2032
        %v2039 = vmul.f32 %v2019, %v2032
        %v2040 = vmul.f32 %v2020, %v2032
        %v2041 = vmul.f32 %v2021, %v2032
        %v2042 = vmul.f32 %v2022, %v2032
        %v2043 = vmul.f32 %v2023, %v2032
        %v2044 = vmul.f32 %v2024, %v2032
        %v2045 = vmul.f32 %v2025, %v2032
        %v2046 = vmul.f32 %v2026, %v2032
        %v2047 = vmul.f32 %v2027, %v2032
        %v2048 = vmul.f32 %v2028, %v2032
        %v2049 = vadd.f32 %v1997, %v2033
        %v2050 = vadd.f32 %v1998, %v2034
        %v2051 = vadd.f32 %v1999, %v2035
        %v2052 = vadd.f32 %v2000, %v2036
        %v2053 = vadd.f32 %v2001, %v2037
        %v2054 = vadd.f32 %v2002, %v2038
        %v2055 = vadd.f32 %v2003, %v2039
        %v2056 = vadd.f32 %v2004, %v2040
        %v2057 = vadd.f32 %v2005, %v2041
        %v2058 = vadd.f32 %v2006, %v2042
        %v2059 = vadd.f32 %v2007, %v2043
        %v2060 = vadd.f32 %v2008, %v2044
        %v2061 = vadd.f32 %v2009, %v2045
        %v2062 = vadd.f32 %v2010, %v2046
        %v2063 = vadd.f32 %v2011, %v2047
        %v2064 = vadd.f32 %v2012, %v2048
        %v2065 = vld [vmem:[%s1960 + $0x7] sm:$0xff]
        %v2066 = vld [vmem:[%s1960 + $0xf] sm:$0xff]
        %v2067 = vld [vmem:[%s1960 + $0x27] sm:$0xff]
        %v2068 = vld [vmem:[%s1960 + $0x2f] sm:$0xff]
        %v2069 = vld [vmem:[%s1960 + $0x47] sm:$0xff]
        %v2070 = vld [vmem:[%s1960 + $0x4f] sm:$0xff]
        %v2071 = vld [vmem:[%s1960 + $0x67] sm:$0xff]
        %v2072 = vld [vmem:[%s1960 + $0x6f] sm:$0xff]
        %v2073 = vld [vmem:[%s1960 + $0x87] sm:$0xff]
        %v2074 = vld [vmem:[%s1960 + $0x8f] sm:$0xff]
        %v2075 = vld [vmem:[%s1960 + $0xa7] sm:$0xff]
        %v2076 = vld [vmem:[%s1960 + $0xaf] sm:$0xff]
        %v2077 = vld [vmem:[%s1960 + $0xc7] sm:$0xff]
        %v2078 = vld [vmem:[%s1960 + $0xcf] sm:$0xff]
        %v2079 = vld [vmem:[%s1960 + $0xe7] sm:$0xff]
        %v2080 = vld [vmem:[%s1960 + $0xef] sm:$0xff]
        %v2081 = vlaneseq
        %v2082 = vshrl.u32 %v2081, 7
        %v2083 = vsub.s32 0, %v2082
        %v2084 = vrot.slane %v497, %v2083
        %v2085 = vmul.f32 %v2065, %v2084
        %v2086 = vmul.f32 %v2066, %v2084
        %v2087 = vmul.f32 %v2067, %v2084
        %v2088 = vmul.f32 %v2068, %v2084
        %v2089 = vmul.f32 %v2069, %v2084
        %v2090 = vmul.f32 %v2070, %v2084
        %v2091 = vmul.f32 %v2071, %v2084
        %v2092 = vmul.f32 %v2072, %v2084
        %v2093 = vmul.f32 %v2073, %v2084
        %v2094 = vmul.f32 %v2074, %v2084
        %v2095 = vmul.f32 %v2075, %v2084
        %v2096 = vmul.f32 %v2076, %v2084
        %v2097 = vmul.f32 %v2077, %v2084
        %v2098 = vmul.f32 %v2078, %v2084
        %v2099 = vmul.f32 %v2079, %v2084
        %v2100 = vmul.f32 %v2080, %v2084
        %v2101 = vadd.f32 %v2049, %v2085
        %v2102 = vadd.f32 %v2050, %v2086
        %v2103 = vadd.f32 %v2051, %v2087
        %v2104 = vadd.f32 %v2052, %v2088
        %v2105 = vadd.f32 %v2053, %v2089
        %v2106 = vadd.f32 %v2054, %v2090
        %v2107 = vadd.f32 %v2055, %v2091
        %v2108 = vadd.f32 %v2056, %v2092
        %v2109 = vadd.f32 %v2057, %v2093
        %v2110 = vadd.f32 %v2058, %v2094
        %v2111 = vadd.f32 %v2059, %v2095
        %v2112 = vadd.f32 %v2060, %v2096
        %v2113 = vadd.f32 %v2061, %v2097
        %v2114 = vadd.f32 %v2062, %v2098
        %v2115 = vadd.f32 %v2063, %v2099
        %v2116 = vadd.f32 %v2064, %v2100
        %v2117 = vld [vmem:[%s1960 + $0x8] sm:$0xff]
        %v2118 = vld [vmem:[%s1960 + $0x10] sm:$0xff]
        %v2119 = vld [vmem:[%s1960 + $0x28] sm:$0xff]
        %v2120 = vld [vmem:[%s1960 + $0x30] sm:$0xff]
        %v2121 = vld [vmem:[%s1960 + $0x48] sm:$0xff]
        %v2122 = vld [vmem:[%s1960 + $0x50] sm:$0xff]
        %v2123 = vld [vmem:[%s1960 + $0x68] sm:$0xff]
        %v2124 = vld [vmem:[%s1960 + $0x70] sm:$0xff]
        %v2125 = vld [vmem:[%s1960 + $0x88] sm:$0xff]
        %v2126 = vld [vmem:[%s1960 + $0x90] sm:$0xff]
        %v2127 = vld [vmem:[%s1960 + $0xa8] sm:$0xff]
        %v2128 = vld [vmem:[%s1960 + $0xb0] sm:$0xff]
        %v2129 = vld [vmem:[%s1960 + $0xc8] sm:$0xff]
        %v2130 = vld [vmem:[%s1960 + $0xd0] sm:$0xff]
        %v2131 = vld [vmem:[%s1960 + $0xe8] sm:$0xff]
        %v2132 = vld [vmem:[%s1960 + $0xf0] sm:$0xff]
        %v2133 = vlaneseq
        %v2134 = vshrl.u32 %v2133, 7
        %v2135 = vsub.s32 0, %v2134
        %v2136 = vrot.slane %v498, %v2135
        %v2137 = vmul.f32 %v2117, %v2136
        %v2138 = vmul.f32 %v2118, %v2136
        %v2139 = vmul.f32 %v2119, %v2136
        %v2140 = vmul.f32 %v2120, %v2136
        %v2141 = vmul.f32 %v2121, %v2136
        %v2142 = vmul.f32 %v2122, %v2136
        %v2143 = vmul.f32 %v2123, %v2136
        %v2144 = vmul.f32 %v2124, %v2136
        %v2145 = vmul.f32 %v2125, %v2136
        %v2146 = vmul.f32 %v2126, %v2136
        %v2147 = vmul.f32 %v2127, %v2136
        %v2148 = vmul.f32 %v2128, %v2136
        %v2149 = vmul.f32 %v2129, %v2136
        %v2150 = vmul.f32 %v2130, %v2136
        %v2151 = vmul.f32 %v2131, %v2136
        %v2152 = vmul.f32 %v2132, %v2136
        %v2153 = vadd.f32 %v2101, %v2137
        %v2154 = vadd.f32 %v2102, %v2138
        %v2155 = vadd.f32 %v2103, %v2139
        %v2156 = vadd.f32 %v2104, %v2140
        %v2157 = vadd.f32 %v2105, %v2141
        %v2158 = vadd.f32 %v2106, %v2142
        %v2159 = vadd.f32 %v2107, %v2143
        %v2160 = vadd.f32 %v2108, %v2144
        %v2161 = vadd.f32 %v2109, %v2145
        %v2162 = vadd.f32 %v2110, %v2146
        %v2163 = vadd.f32 %v2111, %v2147
        %v2164 = vadd.f32 %v2112, %v2148
        %v2165 = vadd.f32 %v2113, %v2149
        %v2166 = vadd.f32 %v2114, %v2150
        %v2167 = vadd.f32 %v2115, %v2151
        %v2168 = vadd.f32 %v2116, %v2152
        %v2169 = vld [vmem:[%s1960 + $0x9] sm:$0xff]
        %v2170 = vld [vmem:[%s1960 + $0x11] sm:$0xff]
        %v2171 = vld [vmem:[%s1960 + $0x29] sm:$0xff]
        %v2172 = vld [vmem:[%s1960 + $0x31] sm:$0xff]
        %v2173 = vld [vmem:[%s1960 + $0x49] sm:$0xff]
        %v2174 = vld [vmem:[%s1960 + $0x51] sm:$0xff]
        %v2175 = vld [vmem:[%s1960 + $0x69] sm:$0xff]
        %v2176 = vld [vmem:[%s1960 + $0x71] sm:$0xff]
        %v2177 = vld [vmem:[%s1960 + $0x89] sm:$0xff]
        %v2178 = vld [vmem:[%s1960 + $0x91] sm:$0xff]
        %v2179 = vld [vmem:[%s1960 + $0xa9] sm:$0xff]
        %v2180 = vld [vmem:[%s1960 + $0xb1] sm:$0xff]
        %v2181 = vld [vmem:[%s1960 + $0xc9] sm:$0xff]
        %v2182 = vld [vmem:[%s1960 + $0xd1] sm:$0xff]
        %v2183 = vld [vmem:[%s1960 + $0xe9] sm:$0xff]
        %v2184 = vld [vmem:[%s1960 + $0xf1] sm:$0xff]
        %v2185 = vlaneseq
        %v2186 = vshrl.u32 %v2185, 7
        %v2187 = vsub.s32 0, %v2186
        %v2188 = vrot.slane %v499, %v2187
        %v2189 = vmul.f32 %v2169, %v2188
        %v2190 = vmul.f32 %v2170, %v2188
        %v2191 = vmul.f32 %v2171, %v2188
        %v2192 = vmul.f32 %v2172, %v2188
        %v2193 = vmul.f32 %v2173, %v2188
        %v2194 = vmul.f32 %v2174, %v2188
        %v2195 = vmul.f32 %v2175, %v2188
        %v2196 = vmul.f32 %v2176, %v2188
        %v2197 = vmul.f32 %v2177, %v2188
        %v2198 = vmul.f32 %v2178, %v2188
        %v2199 = vmul.f32 %v2179, %v2188
        %v2200 = vmul.f32 %v2180, %v2188
        %v2201 = vmul.f32 %v2181, %v2188
        %v2202 = vmul.f32 %v2182, %v2188
        %v2203 = vmul.f32 %v2183, %v2188
        %v2204 = vmul.f32 %v2184, %v2188
        %v2205 = vadd.f32 %v2153, %v2189
        %v2206 = vadd.f32 %v2154, %v2190
        %v2207 = vadd.f32 %v2155, %v2191
        %v2208 = vadd.f32 %v2156, %v2192
        %v2209 = vadd.f32 %v2157, %v2193
        %v2210 = vadd.f32 %v2158, %v2194
        %v2211 = vadd.f32 %v2159, %v2195
        %v2212 = vadd.f32 %v2160, %v2196
        %v2213 = vadd.f32 %v2161, %v2197
        %v2214 = vadd.f32 %v2162, %v2198
        %v2215 = vadd.f32 %v2163, %v2199
        %v2216 = vadd.f32 %v2164, %v2200
        %v2217 = vadd.f32 %v2165, %v2201
        %v2218 = vadd.f32 %v2166, %v2202
        %v2219 = vadd.f32 %v2167, %v2203
        %v2220 = vadd.f32 %v2168, %v2204
        %v2221 = vld [vmem:[%s1960 + $0xa] sm:$0xff]
        %v2222 = vld [vmem:[%s1960 + $0x12] sm:$0xff]
        %v2223 = vld [vmem:[%s1960 + $0x2a] sm:$0xff]
        %v2224 = vld [vmem:[%s1960 + $0x32] sm:$0xff]
        %v2225 = vld [vmem:[%s1960 + $0x4a] sm:$0xff]
        %v2226 = vld [vmem:[%s1960 + $0x52] sm:$0xff]
        %v2227 = vld [vmem:[%s1960 + $0x6a] sm:$0xff]
        %v2228 = vld [vmem:[%s1960 + $0x72] sm:$0xff]
        %v2229 = vld [vmem:[%s1960 + $0x8a] sm:$0xff]
        %v2230 = vld [vmem:[%s1960 + $0x92] sm:$0xff]
        %v2231 = vld [vmem:[%s1960 + $0xaa] sm:$0xff]
        %v2232 = vld [vmem:[%s1960 + $0xb2] sm:$0xff]
        %v2233 = vld [vmem:[%s1960 + $0xca] sm:$0xff]
        %v2234 = vld [vmem:[%s1960 + $0xd2] sm:$0xff]
        %v2235 = vld [vmem:[%s1960 + $0xea] sm:$0xff]
        %v2236 = vld [vmem:[%s1960 + $0xf2] sm:$0xff]
        %v2237 = vlaneseq
        %v2238 = vshrl.u32 %v2237, 7
        %v2239 = vsub.s32 0, %v2238
        %v2240 = vrot.slane %v500, %v2239
        %v2241 = vmul.f32 %v2221, %v2240
        %v2242 = vmul.f32 %v2222, %v2240
        %v2243 = vmul.f32 %v2223, %v2240
        %v2244 = vmul.f32 %v2224, %v2240
        %v2245 = vmul.f32 %v2225, %v2240
        %v2246 = vmul.f32 %v2226, %v2240
        %v2247 = vmul.f32 %v2227, %v2240
        %v2248 = vmul.f32 %v2228, %v2240
        %v2249 = vmul.f32 %v2229, %v2240
        %v2250 = vmul.f32 %v2230, %v2240
        %v2251 = vmul.f32 %v2231, %v2240
        %v2252 = vmul.f32 %v2232, %v2240
        %v2253 = vmul.f32 %v2233, %v2240
        %v2254 = vmul.f32 %v2234, %v2240
        %v2255 = vmul.f32 %v2235, %v2240
        %v2256 = vmul.f32 %v2236, %v2240
        %v2257 = vadd.f32 %v2205, %v2241
        %v2258 = vadd.f32 %v2206, %v2242
        %v2259 = vadd.f32 %v2207, %v2243
        %v2260 = vadd.f32 %v2208, %v2244
        %v2261 = vadd.f32 %v2209, %v2245
        %v2262 = vadd.f32 %v2210, %v2246
        %v2263 = vadd.f32 %v2211, %v2247
        %v2264 = vadd.f32 %v2212, %v2248
        %v2265 = vadd.f32 %v2213, %v2249
        %v2266 = vadd.f32 %v2214, %v2250
        %v2267 = vadd.f32 %v2215, %v2251
        %v2268 = vadd.f32 %v2216, %v2252
        %v2269 = vadd.f32 %v2217, %v2253
        %v2270 = vadd.f32 %v2218, %v2254
        %v2271 = vadd.f32 %v2219, %v2255
        %v2272 = vadd.f32 %v2220, %v2256
        %v2273 = vld [vmem:[%s1960 + $0xb] sm:$0xff]
        %v2274 = vld [vmem:[%s1960 + $0x13] sm:$0xff]
        %v2275 = vld [vmem:[%s1960 + $0x2b] sm:$0xff]
        %v2276 = vld [vmem:[%s1960 + $0x33] sm:$0xff]
        %v2277 = vld [vmem:[%s1960 + $0x4b] sm:$0xff]
        %v2278 = vld [vmem:[%s1960 + $0x53] sm:$0xff]
        %v2279 = vld [vmem:[%s1960 + $0x6b] sm:$0xff]
        %v2280 = vld [vmem:[%s1960 + $0x73] sm:$0xff]
        %v2281 = vld [vmem:[%s1960 + $0x8b] sm:$0xff]
        %v2282 = vld [vmem:[%s1960 + $0x93] sm:$0xff]
        %v2283 = vld [vmem:[%s1960 + $0xab] sm:$0xff]
        %v2284 = vld [vmem:[%s1960 + $0xb3] sm:$0xff]
        %v2285 = vld [vmem:[%s1960 + $0xcb] sm:$0xff]
        %v2286 = vld [vmem:[%s1960 + $0xd3] sm:$0xff]
        %v2287 = vld [vmem:[%s1960 + $0xeb] sm:$0xff]
        %v2288 = vld [vmem:[%s1960 + $0xf3] sm:$0xff]
        %v2289 = vlaneseq
        %v2290 = vshrl.u32 %v2289, 7
        %v2291 = vsub.s32 0, %v2290
        %v2292 = vrot.slane %v501, %v2291
        %v2293 = vmul.f32 %v2273, %v2292
        %v2294 = vmul.f32 %v2274, %v2292
        %v2295 = vmul.f32 %v2275, %v2292
        %v2296 = vmul.f32 %v2276, %v2292
        %v2297 = vmul.f32 %v2277, %v2292
        %v2298 = vmul.f32 %v2278, %v2292
        %v2299 = vmul.f32 %v2279, %v2292
        %v2300 = vmul.f32 %v2280, %v2292
        %v2301 = vmul.f32 %v2281, %v2292
        %v2302 = vmul.f32 %v2282, %v2292
        %v2303 = vmul.f32 %v2283, %v2292
        %v2304 = vmul.f32 %v2284, %v2292
        %v2305 = vmul.f32 %v2285, %v2292
        %v2306 = vmul.f32 %v2286, %v2292
        %v2307 = vmul.f32 %v2287, %v2292
        %v2308 = vmul.f32 %v2288, %v2292
        %v2309 = vadd.f32 %v2257, %v2293
        %v2310 = vadd.f32 %v2258, %v2294
        %v2311 = vadd.f32 %v2259, %v2295
        %v2312 = vadd.f32 %v2260, %v2296
        %v2313 = vadd.f32 %v2261, %v2297
        %v2314 = vadd.f32 %v2262, %v2298
        %v2315 = vadd.f32 %v2263, %v2299
        %v2316 = vadd.f32 %v2264, %v2300
        %v2317 = vadd.f32 %v2265, %v2301
        %v2318 = vadd.f32 %v2266, %v2302
        %v2319 = vadd.f32 %v2267, %v2303
        %v2320 = vadd.f32 %v2268, %v2304
        %v2321 = vadd.f32 %v2269, %v2305
        %v2322 = vadd.f32 %v2270, %v2306
        %v2323 = vadd.f32 %v2271, %v2307
        %v2324 = vadd.f32 %v2272, %v2308
        %s2325 = scalar_lea.vmem [#allocation2], 160
        %v2326 = vld [vmem:[%s2325 + $0x5] sm:$0xff]
        %v2327 = vld [vmem:[%s2325 + $0xd] sm:$0xff]
        %v2328 = vld [vmem:[%s2325 + $0x25] sm:$0xff]
        %v2329 = vld [vmem:[%s2325 + $0x2d] sm:$0xff]
        %v2330 = vld [vmem:[%s2325 + $0x45] sm:$0xff]
        %v2331 = vld [vmem:[%s2325 + $0x4d] sm:$0xff]
        %v2332 = vld [vmem:[%s2325 + $0x65] sm:$0xff]
        %v2333 = vld [vmem:[%s2325 + $0x6d] sm:$0xff]
        %v2334 = vld [vmem:[%s2325 + $0x85] sm:$0xff]
        %v2335 = vld [vmem:[%s2325 + $0x8d] sm:$0xff]
        %v2336 = vld [vmem:[%s2325 + $0xa5] sm:$0xff]
        %v2337 = vld [vmem:[%s2325 + $0xad] sm:$0xff]
        %v2338 = vld [vmem:[%s2325 + $0xc5] sm:$0xff]
        %v2339 = vld [vmem:[%s2325 + $0xcd] sm:$0xff]
        %v2340 = vld [vmem:[%s2325 + $0xe5] sm:$0xff]
        %v2341 = vld [vmem:[%s2325 + $0xed] sm:$0xff]
        %v2342 = vlaneseq
        %v2343 = vshrl.u32 %v2342, 7
        %v2344 = vsub.s32 0, %v2343
        %v2345 = vrot.slane %v502, %v2344
        %v2346 = vmul.f32 %v2326, %v2345
        %v2347 = vmul.f32 %v2327, %v2345
        %v2348 = vmul.f32 %v2328, %v2345
        %v2349 = vmul.f32 %v2329, %v2345
        %v2350 = vmul.f32 %v2330, %v2345
        %v2351 = vmul.f32 %v2331, %v2345
        %v2352 = vmul.f32 %v2332, %v2345
        %v2353 = vmul.f32 %v2333, %v2345
        %v2354 = vmul.f32 %v2334, %v2345
        %v2355 = vmul.f32 %v2335, %v2345
        %v2356 = vmul.f32 %v2336, %v2345
        %v2357 = vmul.f32 %v2337, %v2345
        %v2358 = vmul.f32 %v2338, %v2345
        %v2359 = vmul.f32 %v2339, %v2345
        %v2360 = vmul.f32 %v2340, %v2345
        %v2361 = vmul.f32 %v2341, %v2345
        %v2362 = vadd.f32 %v2309, %v2346
        %v2363 = vadd.f32 %v2310, %v2347
        %v2364 = vadd.f32 %v2311, %v2348
        %v2365 = vadd.f32 %v2312, %v2349
        %v2366 = vadd.f32 %v2313, %v2350
        %v2367 = vadd.f32 %v2314, %v2351
        %v2368 = vadd.f32 %v2315, %v2352
        %v2369 = vadd.f32 %v2316, %v2353
        %v2370 = vadd.f32 %v2317, %v2354
        %v2371 = vadd.f32 %v2318, %v2355
        %v2372 = vadd.f32 %v2319, %v2356
        %v2373 = vadd.f32 %v2320, %v2357
        %v2374 = vadd.f32 %v2321, %v2358
        %v2375 = vadd.f32 %v2322, %v2359
        %v2376 = vadd.f32 %v2323, %v2360
        %v2377 = vadd.f32 %v2324, %v2361
        %v2378 = vld [vmem:[%s2325 + $0x6] sm:$0xff]
        %v2379 = vld [vmem:[%s2325 + $0xe] sm:$0xff]
        %v2380 = vld [vmem:[%s2325 + $0x26] sm:$0xff]
        %v2381 = vld [vmem:[%s2325 + $0x2e] sm:$0xff]
        %v2382 = vld [vmem:[%s2325 + $0x46] sm:$0xff]
        %v2383 = vld [vmem:[%s2325 + $0x4e] sm:$0xff]
        %v2384 = vld [vmem:[%s2325 + $0x66] sm:$0xff]
        %v2385 = vld [vmem:[%s2325 + $0x6e] sm:$0xff]
        %v2386 = vld [vmem:[%s2325 + $0x86] sm:$0xff]
        %v2387 = vld [vmem:[%s2325 + $0x8e] sm:$0xff]
        %v2388 = vld [vmem:[%s2325 + $0xa6] sm:$0xff]
        %v2389 = vld [vmem:[%s2325 + $0xae] sm:$0xff]
        %v2390 = vld [vmem:[%s2325 + $0xc6] sm:$0xff]
        %v2391 = vld [vmem:[%s2325 + $0xce] sm:$0xff]
        %v2392 = vld [vmem:[%s2325 + $0xe6] sm:$0xff]
        %v2393 = vld [vmem:[%s2325 + $0xee] sm:$0xff]
        %v2394 = vlaneseq
        %v2395 = vshrl.u32 %v2394, 7
        %v2396 = vsub.s32 0, %v2395
        %v2397 = vrot.slane %v503, %v2396
        %v2398 = vmul.f32 %v2378, %v2397
        %v2399 = vmul.f32 %v2379, %v2397
        %v2400 = vmul.f32 %v2380, %v2397
        %v2401 = vmul.f32 %v2381, %v2397
        %v2402 = vmul.f32 %v2382, %v2397
        %v2403 = vmul.f32 %v2383, %v2397
        %v2404 = vmul.f32 %v2384, %v2397
        %v2405 = vmul.f32 %v2385, %v2397
        %v2406 = vmul.f32 %v2386, %v2397
        %v2407 = vmul.f32 %v2387, %v2397
        %v2408 = vmul.f32 %v2388, %v2397
        %v2409 = vmul.f32 %v2389, %v2397
        %v2410 = vmul.f32 %v2390, %v2397
        %v2411 = vmul.f32 %v2391, %v2397
        %v2412 = vmul.f32 %v2392, %v2397
        %v2413 = vmul.f32 %v2393, %v2397
        %v2414 = vadd.f32 %v2362, %v2398
        %v2415 = vadd.f32 %v2363, %v2399
        %v2416 = vadd.f32 %v2364, %v2400
        %v2417 = vadd.f32 %v2365, %v2401
        %v2418 = vadd.f32 %v2366, %v2402
        %v2419 = vadd.f32 %v2367, %v2403
        %v2420 = vadd.f32 %v2368, %v2404
        %v2421 = vadd.f32 %v2369, %v2405
        %v2422 = vadd.f32 %v2370, %v2406
        %v2423 = vadd.f32 %v2371, %v2407
        %v2424 = vadd.f32 %v2372, %v2408
        %v2425 = vadd.f32 %v2373, %v2409
        %v2426 = vadd.f32 %v2374, %v2410
        %v2427 = vadd.f32 %v2375, %v2411
        %v2428 = vadd.f32 %v2376, %v2412
        %v2429 = vadd.f32 %v2377, %v2413
        %v2430 = vld [vmem:[%s2325 + $0x7] sm:$0xff]
        %v2431 = vld [vmem:[%s2325 + $0xf] sm:$0xff]
        %v2432 = vld [vmem:[%s2325 + $0x27] sm:$0xff]
        %v2433 = vld [vmem:[%s2325 + $0x2f] sm:$0xff]
        %v2434 = vld [vmem:[%s2325 + $0x47] sm:$0xff]
        %v2435 = vld [vmem:[%s2325 + $0x4f] sm:$0xff]
        %v2436 = vld [vmem:[%s2325 + $0x67] sm:$0xff]
        %v2437 = vld [vmem:[%s2325 + $0x6f] sm:$0xff]
        %v2438 = vld [vmem:[%s2325 + $0x87] sm:$0xff]
        %v2439 = vld [vmem:[%s2325 + $0x8f] sm:$0xff]
        %v2440 = vld [vmem:[%s2325 + $0xa7] sm:$0xff]
        %v2441 = vld [vmem:[%s2325 + $0xaf] sm:$0xff]
        %v2442 = vld [vmem:[%s2325 + $0xc7] sm:$0xff]
        %v2443 = vld [vmem:[%s2325 + $0xcf] sm:$0xff]
        %v2444 = vld [vmem:[%s2325 + $0xe7] sm:$0xff]
        %v2445 = vld [vmem:[%s2325 + $0xef] sm:$0xff]
        %v2446 = vlaneseq
        %v2447 = vshrl.u32 %v2446, 7
        %v2448 = vsub.s32 0, %v2447
        %v2449 = vrot.slane %v504, %v2448
        %v2450 = vmul.f32 %v2430, %v2449
        %v2451 = vmul.f32 %v2431, %v2449
        %v2452 = vmul.f32 %v2432, %v2449
        %v2453 = vmul.f32 %v2433, %v2449
        %v2454 = vmul.f32 %v2434, %v2449
        %v2455 = vmul.f32 %v2435, %v2449
        %v2456 = vmul.f32 %v2436, %v2449
        %v2457 = vmul.f32 %v2437, %v2449
        %v2458 = vmul.f32 %v2438, %v2449
        %v2459 = vmul.f32 %v2439, %v2449
        %v2460 = vmul.f32 %v2440, %v2449
        %v2461 = vmul.f32 %v2441, %v2449
        %v2462 = vmul.f32 %v2442, %v2449
        %v2463 = vmul.f32 %v2443, %v2449
        %v2464 = vmul.f32 %v2444, %v2449
        %v2465 = vmul.f32 %v2445, %v2449
        %v2466 = vadd.f32 %v2414, %v2450
        %v2467 = vadd.f32 %v2415, %v2451
        %v2468 = vadd.f32 %v2416, %v2452
        %v2469 = vadd.f32 %v2417, %v2453
        %v2470 = vadd.f32 %v2418, %v2454
        %v2471 = vadd.f32 %v2419, %v2455
        %v2472 = vadd.f32 %v2420, %v2456
        %v2473 = vadd.f32 %v2421, %v2457
        %v2474 = vadd.f32 %v2422, %v2458
        %v2475 = vadd.f32 %v2423, %v2459
        %v2476 = vadd.f32 %v2424, %v2460
        %v2477 = vadd.f32 %v2425, %v2461
        %v2478 = vadd.f32 %v2426, %v2462
        %v2479 = vadd.f32 %v2427, %v2463
        %v2480 = vadd.f32 %v2428, %v2464
        %v2481 = vadd.f32 %v2429, %v2465
        %v2482 = vld [vmem:[%s2325 + $0x8] sm:$0xff]
        %v2483 = vld [vmem:[%s2325 + $0x10] sm:$0xff]
        %v2484 = vld [vmem:[%s2325 + $0x28] sm:$0xff]
        %v2485 = vld [vmem:[%s2325 + $0x30] sm:$0xff]
        %v2486 = vld [vmem:[%s2325 + $0x48] sm:$0xff]
        %v2487 = vld [vmem:[%s2325 + $0x50] sm:$0xff]
        %v2488 = vld [vmem:[%s2325 + $0x68] sm:$0xff]
        %v2489 = vld [vmem:[%s2325 + $0x70] sm:$0xff]
        %v2490 = vld [vmem:[%s2325 + $0x88] sm:$0xff]
        %v2491 = vld [vmem:[%s2325 + $0x90] sm:$0xff]
        %v2492 = vld [vmem:[%s2325 + $0xa8] sm:$0xff]
        %v2493 = vld [vmem:[%s2325 + $0xb0] sm:$0xff]
        %v2494 = vld [vmem:[%s2325 + $0xc8] sm:$0xff]
        %v2495 = vld [vmem:[%s2325 + $0xd0] sm:$0xff]
        %v2496 = vld [vmem:[%s2325 + $0xe8] sm:$0xff]
        %v2497 = vld [vmem:[%s2325 + $0xf0] sm:$0xff]
        %v2498 = vlaneseq
        %v2499 = vshrl.u32 %v2498, 7
        %v2500 = vsub.s32 0, %v2499
        %v2501 = vrot.slane %v505, %v2500
        %v2502 = vmul.f32 %v2482, %v2501
        %v2503 = vmul.f32 %v2483, %v2501
        %v2504 = vmul.f32 %v2484, %v2501
        %v2505 = vmul.f32 %v2485, %v2501
        %v2506 = vmul.f32 %v2486, %v2501
        %v2507 = vmul.f32 %v2487, %v2501
        %v2508 = vmul.f32 %v2488, %v2501
        %v2509 = vmul.f32 %v2489, %v2501
        %v2510 = vmul.f32 %v2490, %v2501
        %v2511 = vmul.f32 %v2491, %v2501
        %v2512 = vmul.f32 %v2492, %v2501
        %v2513 = vmul.f32 %v2493, %v2501
        %v2514 = vmul.f32 %v2494, %v2501
        %v2515 = vmul.f32 %v2495, %v2501
        %v2516 = vmul.f32 %v2496, %v2501
        %v2517 = vmul.f32 %v2497, %v2501
        %v2518 = vadd.f32 %v2466, %v2502
        %v2519 = vadd.f32 %v2467, %v2503
        %v2520 = vadd.f32 %v2468, %v2504
        %v2521 = vadd.f32 %v2469, %v2505
        %v2522 = vadd.f32 %v2470, %v2506
        %v2523 = vadd.f32 %v2471, %v2507
        %v2524 = vadd.f32 %v2472, %v2508
        %v2525 = vadd.f32 %v2473, %v2509
        %v2526 = vadd.f32 %v2474, %v2510
        %v2527 = vadd.f32 %v2475, %v2511
        %v2528 = vadd.f32 %v2476, %v2512
        %v2529 = vadd.f32 %v2477, %v2513
        %v2530 = vadd.f32 %v2478, %v2514
        %v2531 = vadd.f32 %v2479, %v2515
        %v2532 = vadd.f32 %v2480, %v2516
        %v2533 = vadd.f32 %v2481, %v2517
        %v2534 = vld [vmem:[%s2325 + $0x9] sm:$0xff]
        %v2535 = vld [vmem:[%s2325 + $0x11] sm:$0xff]
        %v2536 = vld [vmem:[%s2325 + $0x29] sm:$0xff]
        %v2537 = vld [vmem:[%s2325 + $0x31] sm:$0xff]
        %v2538 = vld [vmem:[%s2325 + $0x49] sm:$0xff]
        %v2539 = vld [vmem:[%s2325 + $0x51] sm:$0xff]
        %v2540 = vld [vmem:[%s2325 + $0x69] sm:$0xff]
        %v2541 = vld [vmem:[%s2325 + $0x71] sm:$0xff]
        %v2542 = vld [vmem:[%s2325 + $0x89] sm:$0xff]
        %v2543 = vld [vmem:[%s2325 + $0x91] sm:$0xff]
        %v2544 = vld [vmem:[%s2325 + $0xa9] sm:$0xff]
        %v2545 = vld [vmem:[%s2325 + $0xb1] sm:$0xff]
        %v2546 = vld [vmem:[%s2325 + $0xc9] sm:$0xff]
        %v2547 = vld [vmem:[%s2325 + $0xd1] sm:$0xff]
        %v2548 = vld [vmem:[%s2325 + $0xe9] sm:$0xff]
        %v2549 = vld [vmem:[%s2325 + $0xf1] sm:$0xff]
        %v2550 = vlaneseq
        %v2551 = vshrl.u32 %v2550, 7
        %v2552 = vsub.s32 0, %v2551
        %v2553 = vrot.slane %v506, %v2552
        %v2554 = vmul.f32 %v2534, %v2553
        %v2555 = vmul.f32 %v2535, %v2553
        %v2556 = vmul.f32 %v2536, %v2553
        %v2557 = vmul.f32 %v2537, %v2553
        %v2558 = vmul.f32 %v2538, %v2553
        %v2559 = vmul.f32 %v2539, %v2553
        %v2560 = vmul.f32 %v2540, %v2553
        %v2561 = vmul.f32 %v2541, %v2553
        %v2562 = vmul.f32 %v2542, %v2553
        %v2563 = vmul.f32 %v2543, %v2553
        %v2564 = vmul.f32 %v2544, %v2553
        %v2565 = vmul.f32 %v2545, %v2553
        %v2566 = vmul.f32 %v2546, %v2553
        %v2567 = vmul.f32 %v2547, %v2553
        %v2568 = vmul.f32 %v2548, %v2553
        %v2569 = vmul.f32 %v2549, %v2553
        %v2570 = vadd.f32 %v2518, %v2554
        %v2571 = vadd.f32 %v2519, %v2555
        %v2572 = vadd.f32 %v2520, %v2556
        %v2573 = vadd.f32 %v2521, %v2557
        %v2574 = vadd.f32 %v2522, %v2558
        %v2575 = vadd.f32 %v2523, %v2559
        %v2576 = vadd.f32 %v2524, %v2560
        %v2577 = vadd.f32 %v2525, %v2561
        %v2578 = vadd.f32 %v2526, %v2562
        %v2579 = vadd.f32 %v2527, %v2563
        %v2580 = vadd.f32 %v2528, %v2564
        %v2581 = vadd.f32 %v2529, %v2565
        %v2582 = vadd.f32 %v2530, %v2566
        %v2583 = vadd.f32 %v2531, %v2567
        %v2584 = vadd.f32 %v2532, %v2568
        %v2585 = vadd.f32 %v2533, %v2569
        %v2586 = vld [vmem:[%s2325 + $0xa] sm:$0xff]
        %v2587 = vld [vmem:[%s2325 + $0x12] sm:$0xff]
        %v2588 = vld [vmem:[%s2325 + $0x2a] sm:$0xff]
        %v2589 = vld [vmem:[%s2325 + $0x32] sm:$0xff]
        %v2590 = vld [vmem:[%s2325 + $0x4a] sm:$0xff]
        %v2591 = vld [vmem:[%s2325 + $0x52] sm:$0xff]
        %v2592 = vld [vmem:[%s2325 + $0x6a] sm:$0xff]
        %v2593 = vld [vmem:[%s2325 + $0x72] sm:$0xff]
        %v2594 = vld [vmem:[%s2325 + $0x8a] sm:$0xff]
        %v2595 = vld [vmem:[%s2325 + $0x92] sm:$0xff]
        %v2596 = vld [vmem:[%s2325 + $0xaa] sm:$0xff]
        %v2597 = vld [vmem:[%s2325 + $0xb2] sm:$0xff]
        %v2598 = vld [vmem:[%s2325 + $0xca] sm:$0xff]
        %v2599 = vld [vmem:[%s2325 + $0xd2] sm:$0xff]
        %v2600 = vld [vmem:[%s2325 + $0xea] sm:$0xff]
        %v2601 = vld [vmem:[%s2325 + $0xf2] sm:$0xff]
        %v2602 = vlaneseq
        %v2603 = vshrl.u32 %v2602, 7
        %v2604 = vsub.s32 0, %v2603
        %v2605 = vrot.slane %v507, %v2604
        %v2606 = vmul.f32 %v2586, %v2605
        %v2607 = vmul.f32 %v2587, %v2605
        %v2608 = vmul.f32 %v2588, %v2605
        %v2609 = vmul.f32 %v2589, %v2605
        %v2610 = vmul.f32 %v2590, %v2605
        %v2611 = vmul.f32 %v2591, %v2605
        %v2612 = vmul.f32 %v2592, %v2605
        %v2613 = vmul.f32 %v2593, %v2605
        %v2614 = vmul.f32 %v2594, %v2605
        %v2615 = vmul.f32 %v2595, %v2605
        %v2616 = vmul.f32 %v2596, %v2605
        %v2617 = vmul.f32 %v2597, %v2605
        %v2618 = vmul.f32 %v2598, %v2605
        %v2619 = vmul.f32 %v2599, %v2605
        %v2620 = vmul.f32 %v2600, %v2605
        %v2621 = vmul.f32 %v2601, %v2605
        %v2622 = vadd.f32 %v2570, %v2606
        %v2623 = vadd.f32 %v2571, %v2607
        %v2624 = vadd.f32 %v2572, %v2608
        %v2625 = vadd.f32 %v2573, %v2609
        %v2626 = vadd.f32 %v2574, %v2610
        %v2627 = vadd.f32 %v2575, %v2611
        %v2628 = vadd.f32 %v2576, %v2612
        %v2629 = vadd.f32 %v2577, %v2613
        %v2630 = vadd.f32 %v2578, %v2614
        %v2631 = vadd.f32 %v2579, %v2615
        %v2632 = vadd.f32 %v2580, %v2616
        %v2633 = vadd.f32 %v2581, %v2617
        %v2634 = vadd.f32 %v2582, %v2618
        %v2635 = vadd.f32 %v2583, %v2619
        %v2636 = vadd.f32 %v2584, %v2620
        %v2637 = vadd.f32 %v2585, %v2621
        %v2638 = vld [vmem:[%s2325 + $0xb] sm:$0xff]
        %v2639 = vld [vmem:[%s2325 + $0x13] sm:$0xff]
        %v2640 = vld [vmem:[%s2325 + $0x2b] sm:$0xff]
        %v2641 = vld [vmem:[%s2325 + $0x33] sm:$0xff]
        %v2642 = vld [vmem:[%s2325 + $0x4b] sm:$0xff]
        %v2643 = vld [vmem:[%s2325 + $0x53] sm:$0xff]
        %v2644 = vld [vmem:[%s2325 + $0x6b] sm:$0xff]
        %v2645 = vld [vmem:[%s2325 + $0x73] sm:$0xff]
        %v2646 = vld [vmem:[%s2325 + $0x8b] sm:$0xff]
        %v2647 = vld [vmem:[%s2325 + $0x93] sm:$0xff]
        %v2648 = vld [vmem:[%s2325 + $0xab] sm:$0xff]
        %v2649 = vld [vmem:[%s2325 + $0xb3] sm:$0xff]
        %v2650 = vld [vmem:[%s2325 + $0xcb] sm:$0xff]
        %v2651 = vld [vmem:[%s2325 + $0xd3] sm:$0xff]
        %v2652 = vld [vmem:[%s2325 + $0xeb] sm:$0xff]
        %v2653 = vld [vmem:[%s2325 + $0xf3] sm:$0xff]
        %v2654 = vlaneseq
        %v2655 = vshrl.u32 %v2654, 7
        %v2656 = vsub.s32 0, %v2655
        %v2657 = vrot.slane %v508, %v2656
        %v2658 = vmul.f32 %v2638, %v2657
        %v2659 = vmul.f32 %v2639, %v2657
        %v2660 = vmul.f32 %v2640, %v2657
        %v2661 = vmul.f32 %v2641, %v2657
        %v2662 = vmul.f32 %v2642, %v2657
        %v2663 = vmul.f32 %v2643, %v2657
        %v2664 = vmul.f32 %v2644, %v2657
        %v2665 = vmul.f32 %v2645, %v2657
        %v2666 = vmul.f32 %v2646, %v2657
        %v2667 = vmul.f32 %v2647, %v2657
        %v2668 = vmul.f32 %v2648, %v2657
        %v2669 = vmul.f32 %v2649, %v2657
        %v2670 = vmul.f32 %v2650, %v2657
        %v2671 = vmul.f32 %v2651, %v2657
        %v2672 = vmul.f32 %v2652, %v2657
        %v2673 = vmul.f32 %v2653, %v2657
        %v2674 = vadd.f32 %v2622, %v2658
        %v2675 = vadd.f32 %v2623, %v2659
        %v2676 = vadd.f32 %v2624, %v2660
        %v2677 = vadd.f32 %v2625, %v2661
        %v2678 = vadd.f32 %v2626, %v2662
        %v2679 = vadd.f32 %v2627, %v2663
        %v2680 = vadd.f32 %v2628, %v2664
        %v2681 = vadd.f32 %v2629, %v2665
        %v2682 = vadd.f32 %v2630, %v2666
        %v2683 = vadd.f32 %v2631, %v2667
        %v2684 = vadd.f32 %v2632, %v2668
        %v2685 = vadd.f32 %v2633, %v2669
        %v2686 = vadd.f32 %v2634, %v2670
        %v2687 = vadd.f32 %v2635, %v2671
        %v2688 = vadd.f32 %v2636, %v2672
        %v2689 = vadd.f32 %v2637, %v2673
        %s2690 = scalar_lea.vmem [#allocation2], 192
        %v2691 = vld [vmem:[%s2690 + $0x5] sm:$0xff]
        %v2692 = vld [vmem:[%s2690 + $0xd] sm:$0xff]
        %v2693 = vld [vmem:[%s2690 + $0x25] sm:$0xff]
        %v2694 = vld [vmem:[%s2690 + $0x2d] sm:$0xff]
        %v2695 = vld [vmem:[%s2690 + $0x45] sm:$0xff]
        %v2696 = vld [vmem:[%s2690 + $0x4d] sm:$0xff]
        %v2697 = vld [vmem:[%s2690 + $0x65] sm:$0xff]
        %v2698 = vld [vmem:[%s2690 + $0x6d] sm:$0xff]
        %v2699 = vld [vmem:[%s2690 + $0x85] sm:$0xff]
        %v2700 = vld [vmem:[%s2690 + $0x8d] sm:$0xff]
        %v2701 = vld [vmem:[%s2690 + $0xa5] sm:$0xff]
        %v2702 = vld [vmem:[%s2690 + $0xad] sm:$0xff]
        %v2703 = vld [vmem:[%s2690 + $0xc5] sm:$0xff]
        %v2704 = vld [vmem:[%s2690 + $0xcd] sm:$0xff]
        %v2705 = vld [vmem:[%s2690 + $0xe5] sm:$0xff]
        %v2706 = vld [vmem:[%s2690 + $0xed] sm:$0xff]
        %v2707 = vlaneseq
        %v2708 = vshrl.u32 %v2707, 7
        %v2709 = vsub.s32 0, %v2708
        %v2710 = vrot.slane %v509, %v2709
        %v2711 = vmul.f32 %v2691, %v2710
        %v2712 = vmul.f32 %v2692, %v2710
        %v2713 = vmul.f32 %v2693, %v2710
        %v2714 = vmul.f32 %v2694, %v2710
        %v2715 = vmul.f32 %v2695, %v2710
        %v2716 = vmul.f32 %v2696, %v2710
        %v2717 = vmul.f32 %v2697, %v2710
        %v2718 = vmul.f32 %v2698, %v2710
        %v2719 = vmul.f32 %v2699, %v2710
        %v2720 = vmul.f32 %v2700, %v2710
        %v2721 = vmul.f32 %v2701, %v2710
        %v2722 = vmul.f32 %v2702, %v2710
        %v2723 = vmul.f32 %v2703, %v2710
        %v2724 = vmul.f32 %v2704, %v2710
        %v2725 = vmul.f32 %v2705, %v2710
        %v2726 = vmul.f32 %v2706, %v2710
        %v2727 = vadd.f32 %v2674, %v2711
        %v2728 = vadd.f32 %v2675, %v2712
        %v2729 = vadd.f32 %v2676, %v2713
        %v2730 = vadd.f32 %v2677, %v2714
        %v2731 = vadd.f32 %v2678, %v2715
        %v2732 = vadd.f32 %v2679, %v2716
        %v2733 = vadd.f32 %v2680, %v2717
        %v2734 = vadd.f32 %v2681, %v2718
        %v2735 = vadd.f32 %v2682, %v2719
        %v2736 = vadd.f32 %v2683, %v2720
        %v2737 = vadd.f32 %v2684, %v2721
        %v2738 = vadd.f32 %v2685, %v2722
        %v2739 = vadd.f32 %v2686, %v2723
        %v2740 = vadd.f32 %v2687, %v2724
        %v2741 = vadd.f32 %v2688, %v2725
        %v2742 = vadd.f32 %v2689, %v2726
        %v2743 = vld [vmem:[%s2690 + $0x6] sm:$0xff]
        %v2744 = vld [vmem:[%s2690 + $0xe] sm:$0xff]
        %v2745 = vld [vmem:[%s2690 + $0x26] sm:$0xff]
        %v2746 = vld [vmem:[%s2690 + $0x2e] sm:$0xff]
        %v2747 = vld [vmem:[%s2690 + $0x46] sm:$0xff]
        %v2748 = vld [vmem:[%s2690 + $0x4e] sm:$0xff]
        %v2749 = vld [vmem:[%s2690 + $0x66] sm:$0xff]
        %v2750 = vld [vmem:[%s2690 + $0x6e] sm:$0xff]
        %v2751 = vld [vmem:[%s2690 + $0x86] sm:$0xff]
        %v2752 = vld [vmem:[%s2690 + $0x8e] sm:$0xff]
        %v2753 = vld [vmem:[%s2690 + $0xa6] sm:$0xff]
        %v2754 = vld [vmem:[%s2690 + $0xae] sm:$0xff]
        %v2755 = vld [vmem:[%s2690 + $0xc6] sm:$0xff]
        %v2756 = vld [vmem:[%s2690 + $0xce] sm:$0xff]
        %v2757 = vld [vmem:[%s2690 + $0xe6] sm:$0xff]
        %v2758 = vld [vmem:[%s2690 + $0xee] sm:$0xff]
        %v2759 = vlaneseq
        %v2760 = vshrl.u32 %v2759, 7
        %v2761 = vsub.s32 0, %v2760
        %v2762 = vrot.slane %v510, %v2761
        %v2763 = vmul.f32 %v2743, %v2762
        %v2764 = vmul.f32 %v2744, %v2762
        %v2765 = vmul.f32 %v2745, %v2762
        %v2766 = vmul.f32 %v2746, %v2762
        %v2767 = vmul.f32 %v2747, %v2762
        %v2768 = vmul.f32 %v2748, %v2762
        %v2769 = vmul.f32 %v2749, %v2762
        %v2770 = vmul.f32 %v2750, %v2762
        %v2771 = vmul.f32 %v2751, %v2762
        %v2772 = vmul.f32 %v2752, %v2762
        %v2773 = vmul.f32 %v2753, %v2762
        %v2774 = vmul.f32 %v2754, %v2762
        %v2775 = vmul.f32 %v2755, %v2762
        %v2776 = vmul.f32 %v2756, %v2762
        %v2777 = vmul.f32 %v2757, %v2762
        %v2778 = vmul.f32 %v2758, %v2762
        %v2779 = vadd.f32 %v2727, %v2763
        %v2780 = vadd.f32 %v2728, %v2764
        %v2781 = vadd.f32 %v2729, %v2765
        %v2782 = vadd.f32 %v2730, %v2766
        %v2783 = vadd.f32 %v2731, %v2767
        %v2784 = vadd.f32 %v2732, %v2768
        %v2785 = vadd.f32 %v2733, %v2769
        %v2786 = vadd.f32 %v2734, %v2770
        %v2787 = vadd.f32 %v2735, %v2771
        %v2788 = vadd.f32 %v2736, %v2772
        %v2789 = vadd.f32 %v2737, %v2773
        %v2790 = vadd.f32 %v2738, %v2774
        %v2791 = vadd.f32 %v2739, %v2775
        %v2792 = vadd.f32 %v2740, %v2776
        %v2793 = vadd.f32 %v2741, %v2777
        %v2794 = vadd.f32 %v2742, %v2778
        %v2795 = vld [vmem:[%s2690 + $0x7] sm:$0xff]
        %v2796 = vld [vmem:[%s2690 + $0xf] sm:$0xff]
        %v2797 = vld [vmem:[%s2690 + $0x27] sm:$0xff]
        %v2798 = vld [vmem:[%s2690 + $0x2f] sm:$0xff]
        %v2799 = vld [vmem:[%s2690 + $0x47] sm:$0xff]
        %v2800 = vld [vmem:[%s2690 + $0x4f] sm:$0xff]
        %v2801 = vld [vmem:[%s2690 + $0x67] sm:$0xff]
        %v2802 = vld [vmem:[%s2690 + $0x6f] sm:$0xff]
        %v2803 = vld [vmem:[%s2690 + $0x87] sm:$0xff]
        %v2804 = vld [vmem:[%s2690 + $0x8f] sm:$0xff]
        %v2805 = vld [vmem:[%s2690 + $0xa7] sm:$0xff]
        %v2806 = vld [vmem:[%s2690 + $0xaf] sm:$0xff]
        %v2807 = vld [vmem:[%s2690 + $0xc7] sm:$0xff]
        %v2808 = vld [vmem:[%s2690 + $0xcf] sm:$0xff]
        %v2809 = vld [vmem:[%s2690 + $0xe7] sm:$0xff]
        %v2810 = vld [vmem:[%s2690 + $0xef] sm:$0xff]
        %v2811 = vlaneseq
        %v2812 = vshrl.u32 %v2811, 7
        %v2813 = vsub.s32 0, %v2812
        %v2814 = vrot.slane %v511, %v2813
        %v2815 = vmul.f32 %v2795, %v2814
        %v2816 = vmul.f32 %v2796, %v2814
        %v2817 = vmul.f32 %v2797, %v2814
        %v2818 = vmul.f32 %v2798, %v2814
        %v2819 = vmul.f32 %v2799, %v2814
        %v2820 = vmul.f32 %v2800, %v2814
        %v2821 = vmul.f32 %v2801, %v2814
        %v2822 = vmul.f32 %v2802, %v2814
        %v2823 = vmul.f32 %v2803, %v2814
        %v2824 = vmul.f32 %v2804, %v2814
        %v2825 = vmul.f32 %v2805, %v2814
        %v2826 = vmul.f32 %v2806, %v2814
        %v2827 = vmul.f32 %v2807, %v2814
        %v2828 = vmul.f32 %v2808, %v2814
        %v2829 = vmul.f32 %v2809, %v2814
        %v2830 = vmul.f32 %v2810, %v2814
        %v2831 = vadd.f32 %v2779, %v2815
        %v2832 = vadd.f32 %v2780, %v2816
        %v2833 = vadd.f32 %v2781, %v2817
        %v2834 = vadd.f32 %v2782, %v2818
        %v2835 = vadd.f32 %v2783, %v2819
        %v2836 = vadd.f32 %v2784, %v2820
        %v2837 = vadd.f32 %v2785, %v2821
        %v2838 = vadd.f32 %v2786, %v2822
        %v2839 = vadd.f32 %v2787, %v2823
        %v2840 = vadd.f32 %v2788, %v2824
        %v2841 = vadd.f32 %v2789, %v2825
        %v2842 = vadd.f32 %v2790, %v2826
        %v2843 = vadd.f32 %v2791, %v2827
        %v2844 = vadd.f32 %v2792, %v2828
        %v2845 = vadd.f32 %v2793, %v2829
        %v2846 = vadd.f32 %v2794, %v2830
        %v2847 = vld [vmem:[%s2690 + $0x8] sm:$0xff]
        %v2848 = vld [vmem:[%s2690 + $0x10] sm:$0xff]
        %v2849 = vld [vmem:[%s2690 + $0x28] sm:$0xff]
        %v2850 = vld [vmem:[%s2690 + $0x30] sm:$0xff]
        %v2851 = vld [vmem:[%s2690 + $0x48] sm:$0xff]
        %v2852 = vld [vmem:[%s2690 + $0x50] sm:$0xff]
        %v2853 = vld [vmem:[%s2690 + $0x68] sm:$0xff]
        %v2854 = vld [vmem:[%s2690 + $0x70] sm:$0xff]
        %v2855 = vld [vmem:[%s2690 + $0x88] sm:$0xff]
        %v2856 = vld [vmem:[%s2690 + $0x90] sm:$0xff]
        %v2857 = vld [vmem:[%s2690 + $0xa8] sm:$0xff]
        %v2858 = vld [vmem:[%s2690 + $0xb0] sm:$0xff]
        %v2859 = vld [vmem:[%s2690 + $0xc8] sm:$0xff]
        %v2860 = vld [vmem:[%s2690 + $0xd0] sm:$0xff]
        %v2861 = vld [vmem:[%s2690 + $0xe8] sm:$0xff]
        %v2862 = vld [vmem:[%s2690 + $0xf0] sm:$0xff]
        %v2863 = vlaneseq
        %v2864 = vshrl.u32 %v2863, 7
        %v2865 = vsub.s32 0, %v2864
        %v2866 = vrot.slane %v512, %v2865
        %v2867 = vmul.f32 %v2847, %v2866
        %v2868 = vmul.f32 %v2848, %v2866
        %v2869 = vmul.f32 %v2849, %v2866
        %v2870 = vmul.f32 %v2850, %v2866
        %v2871 = vmul.f32 %v2851, %v2866
        %v2872 = vmul.f32 %v2852, %v2866
        %v2873 = vmul.f32 %v2853, %v2866
        %v2874 = vmul.f32 %v2854, %v2866
        %v2875 = vmul.f32 %v2855, %v2866
        %v2876 = vmul.f32 %v2856, %v2866
        %v2877 = vmul.f32 %v2857, %v2866
        %v2878 = vmul.f32 %v2858, %v2866
        %v2879 = vmul.f32 %v2859, %v2866
        %v2880 = vmul.f32 %v2860, %v2866
        %v2881 = vmul.f32 %v2861, %v2866
        %v2882 = vmul.f32 %v2862, %v2866
        %v2883 = vadd.f32 %v2831, %v2867
        %v2884 = vadd.f32 %v2832, %v2868
        %v2885 = vadd.f32 %v2833, %v2869
        %v2886 = vadd.f32 %v2834, %v2870
        %v2887 = vadd.f32 %v2835, %v2871
        %v2888 = vadd.f32 %v2836, %v2872
        %v2889 = vadd.f32 %v2837, %v2873
        %v2890 = vadd.f32 %v2838, %v2874
        %v2891 = vadd.f32 %v2839, %v2875
        %v2892 = vadd.f32 %v2840, %v2876
        %v2893 = vadd.f32 %v2841, %v2877
        %v2894 = vadd.f32 %v2842, %v2878
        %v2895 = vadd.f32 %v2843, %v2879
        %v2896 = vadd.f32 %v2844, %v2880
        %v2897 = vadd.f32 %v2845, %v2881
        %v2898 = vadd.f32 %v2846, %v2882
        %v2899 = vld [vmem:[%s2690 + $0x9] sm:$0xff]
        %v2900 = vld [vmem:[%s2690 + $0x11] sm:$0xff]
        %v2901 = vld [vmem:[%s2690 + $0x29] sm:$0xff]
        %v2902 = vld [vmem:[%s2690 + $0x31] sm:$0xff]
        %v2903 = vld [vmem:[%s2690 + $0x49] sm:$0xff]
        %v2904 = vld [vmem:[%s2690 + $0x51] sm:$0xff]
        %v2905 = vld [vmem:[%s2690 + $0x69] sm:$0xff]
        %v2906 = vld [vmem:[%s2690 + $0x71] sm:$0xff]
        %v2907 = vld [vmem:[%s2690 + $0x89] sm:$0xff]
        %v2908 = vld [vmem:[%s2690 + $0x91] sm:$0xff]
        %v2909 = vld [vmem:[%s2690 + $0xa9] sm:$0xff]
        %v2910 = vld [vmem:[%s2690 + $0xb1] sm:$0xff]
        %v2911 = vld [vmem:[%s2690 + $0xc9] sm:$0xff]
        %v2912 = vld [vmem:[%s2690 + $0xd1] sm:$0xff]
        %v2913 = vld [vmem:[%s2690 + $0xe9] sm:$0xff]
        %v2914 = vld [vmem:[%s2690 + $0xf1] sm:$0xff]
        %v2915 = vlaneseq
        %v2916 = vshrl.u32 %v2915, 7
        %v2917 = vsub.s32 0, %v2916
        %v2918 = vrot.slane %v513, %v2917
        %v2919 = vmul.f32 %v2899, %v2918
        %v2920 = vmul.f32 %v2900, %v2918
        %v2921 = vmul.f32 %v2901, %v2918
        %v2922 = vmul.f32 %v2902, %v2918
        %v2923 = vmul.f32 %v2903, %v2918
        %v2924 = vmul.f32 %v2904, %v2918
        %v2925 = vmul.f32 %v2905, %v2918
        %v2926 = vmul.f32 %v2906, %v2918
        %v2927 = vmul.f32 %v2907, %v2918
        %v2928 = vmul.f32 %v2908, %v2918
        %v2929 = vmul.f32 %v2909, %v2918
        %v2930 = vmul.f32 %v2910, %v2918
        %v2931 = vmul.f32 %v2911, %v2918
        %v2932 = vmul.f32 %v2912, %v2918
        %v2933 = vmul.f32 %v2913, %v2918
        %v2934 = vmul.f32 %v2914, %v2918
        %v2935 = vadd.f32 %v2883, %v2919
        %v2936 = vadd.f32 %v2884, %v2920
        %v2937 = vadd.f32 %v2885, %v2921
        %v2938 = vadd.f32 %v2886, %v2922
        %v2939 = vadd.f32 %v2887, %v2923
        %v2940 = vadd.f32 %v2888, %v2924
        %v2941 = vadd.f32 %v2889, %v2925
        %v2942 = vadd.f32 %v2890, %v2926
        %v2943 = vadd.f32 %v2891, %v2927
        %v2944 = vadd.f32 %v2892, %v2928
        %v2945 = vadd.f32 %v2893, %v2929
        %v2946 = vadd.f32 %v2894, %v2930
        %v2947 = vadd.f32 %v2895, %v2931
        %v2948 = vadd.f32 %v2896, %v2932
        %v2949 = vadd.f32 %v2897, %v2933
        %v2950 = vadd.f32 %v2898, %v2934
        %v2951 = vld [vmem:[%s2690 + $0xa] sm:$0xff]
        %v2952 = vld [vmem:[%s2690 + $0x12] sm:$0xff]
        %v2953 = vld [vmem:[%s2690 + $0x2a] sm:$0xff]
        %v2954 = vld [vmem:[%s2690 + $0x32] sm:$0xff]
        %v2955 = vld [vmem:[%s2690 + $0x4a] sm:$0xff]
        %v2956 = vld [vmem:[%s2690 + $0x52] sm:$0xff]
        %v2957 = vld [vmem:[%s2690 + $0x6a] sm:$0xff]
        %v2958 = vld [vmem:[%s2690 + $0x72] sm:$0xff]
        %v2959 = vld [vmem:[%s2690 + $0x8a] sm:$0xff]
        %v2960 = vld [vmem:[%s2690 + $0x92] sm:$0xff]
        %v2961 = vld [vmem:[%s2690 + $0xaa] sm:$0xff]
        %v2962 = vld [vmem:[%s2690 + $0xb2] sm:$0xff]
        %v2963 = vld [vmem:[%s2690 + $0xca] sm:$0xff]
        %v2964 = vld [vmem:[%s2690 + $0xd2] sm:$0xff]
        %v2965 = vld [vmem:[%s2690 + $0xea] sm:$0xff]
        %v2966 = vld [vmem:[%s2690 + $0xf2] sm:$0xff]
        %v2967 = vlaneseq
        %v2968 = vshrl.u32 %v2967, 7
        %v2969 = vsub.s32 0, %v2968
        %v2970 = vrot.slane %v514, %v2969
        %v2971 = vmul.f32 %v2951, %v2970
        %v2972 = vmul.f32 %v2952, %v2970
        %v2973 = vmul.f32 %v2953, %v2970
        %v2974 = vmul.f32 %v2954, %v2970
        %v2975 = vmul.f32 %v2955, %v2970
        %v2976 = vmul.f32 %v2956, %v2970
        %v2977 = vmul.f32 %v2957, %v2970
        %v2978 = vmul.f32 %v2958, %v2970
        %v2979 = vmul.f32 %v2959, %v2970
        %v2980 = vmul.f32 %v2960, %v2970
        %v2981 = vmul.f32 %v2961, %v2970
        %v2982 = vmul.f32 %v2962, %v2970
        %v2983 = vmul.f32 %v2963, %v2970
        %v2984 = vmul.f32 %v2964, %v2970
        %v2985 = vmul.f32 %v2965, %v2970
        %v2986 = vmul.f32 %v2966, %v2970
        %v2987 = vadd.f32 %v2935, %v2971
        %v2988 = vadd.f32 %v2936, %v2972
        %v2989 = vadd.f32 %v2937, %v2973
        %v2990 = vadd.f32 %v2938, %v2974
        %v2991 = vadd.f32 %v2939, %v2975
        %v2992 = vadd.f32 %v2940, %v2976
        %v2993 = vadd.f32 %v2941, %v2977
        %v2994 = vadd.f32 %v2942, %v2978
        %v2995 = vadd.f32 %v2943, %v2979
        %v2996 = vadd.f32 %v2944, %v2980
        %v2997 = vadd.f32 %v2945, %v2981
        %v2998 = vadd.f32 %v2946, %v2982
        %v2999 = vadd.f32 %v2947, %v2983
        %v3000 = vadd.f32 %v2948, %v2984
        %v3001 = vadd.f32 %v2949, %v2985
        %v3002 = vadd.f32 %v2950, %v2986
        %v3003 = vld [vmem:[%s2690 + $0xb] sm:$0xff]
        %v3004 = vld [vmem:[%s2690 + $0x13] sm:$0xff]
        %v3005 = vld [vmem:[%s2690 + $0x2b] sm:$0xff]
        %v3006 = vld [vmem:[%s2690 + $0x33] sm:$0xff]
        %v3007 = vld [vmem:[%s2690 + $0x4b] sm:$0xff]
        %v3008 = vld [vmem:[%s2690 + $0x53] sm:$0xff]
        %v3009 = vld [vmem:[%s2690 + $0x6b] sm:$0xff]
        %v3010 = vld [vmem:[%s2690 + $0x73] sm:$0xff]
        %v3011 = vld [vmem:[%s2690 + $0x8b] sm:$0xff]
        %v3012 = vld [vmem:[%s2690 + $0x93] sm:$0xff]
        %v3013 = vld [vmem:[%s2690 + $0xab] sm:$0xff]
        %v3014 = vld [vmem:[%s2690 + $0xb3] sm:$0xff]
        %v3015 = vld [vmem:[%s2690 + $0xcb] sm:$0xff]
        %v3016 = vld [vmem:[%s2690 + $0xd3] sm:$0xff]
        %v3017 = vld [vmem:[%s2690 + $0xeb] sm:$0xff]
        %v3018 = vld [vmem:[%s2690 + $0xf3] sm:$0xff]
        %v3019 = vlaneseq
        %v3020 = vshrl.u32 %v3019, 7
        %v3021 = vsub.s32 0, %v3020
        %v3022 = vrot.slane %v515, %v3021
        %v3023 = vmul.f32 %v3003, %v3022
        %v3024 = vmul.f32 %v3004, %v3022
        %v3025 = vmul.f32 %v3005, %v3022
        %v3026 = vmul.f32 %v3006, %v3022
        %v3027 = vmul.f32 %v3007, %v3022
        %v3028 = vmul.f32 %v3008, %v3022
        %v3029 = vmul.f32 %v3009, %v3022
        %v3030 = vmul.f32 %v3010, %v3022
        %v3031 = vmul.f32 %v3011, %v3022
        %v3032 = vmul.f32 %v3012, %v3022
        %v3033 = vmul.f32 %v3013, %v3022
        %v3034 = vmul.f32 %v3014, %v3022
        %v3035 = vmul.f32 %v3015, %v3022
        %v3036 = vmul.f32 %v3016, %v3022
        %v3037 = vmul.f32 %v3017, %v3022
        %v3038 = vmul.f32 %v3018, %v3022
        %v3039 = vadd.f32 %v2987, %v3023
        %v3040 = vadd.f32 %v2988, %v3024
        %v3041 = vadd.f32 %v2989, %v3025
        %v3042 = vadd.f32 %v2990, %v3026
        %v3043 = vadd.f32 %v2991, %v3027
        %v3044 = vadd.f32 %v2992, %v3028
        %v3045 = vadd.f32 %v2993, %v3029
        %v3046 = vadd.f32 %v2994, %v3030
        %v3047 = vadd.f32 %v2995, %v3031
        %v3048 = vadd.f32 %v2996, %v3032
        %v3049 = vadd.f32 %v2997, %v3033
        %v3050 = vadd.f32 %v2998, %v3034
        %v3051 = vadd.f32 %v2999, %v3035
        %v3052 = vadd.f32 %v3000, %v3036
        %v3053 = vadd.f32 %v3001, %v3037
        %v3054 = vadd.f32 %v3002, %v3038
        %3055 = vrot.lane.b32.xlu0 %v3039, 64
        %v3056 = vpop.permute.xlu0 %3055
        %3057 = vrot.lane.b32.xlu0 %v3040, 64
        %v3058 = vpop.permute.xlu0 %3057
        %3059 = vrot.lane.b32.xlu0 %v3041, 64
        %v3060 = vpop.permute.xlu0 %3059
        %3061 = vrot.lane.b32.xlu0 %v3042, 64
        %v3062 = vpop.permute.xlu0 %3061
        %3063 = vrot.lane.b32.xlu0 %v3043, 64
        %v3064 = vpop.permute.xlu0 %3063
        %3065 = vrot.lane.b32.xlu0 %v3044, 64
        %v3066 = vpop.permute.xlu0 %3065
        %3067 = vrot.lane.b32.xlu0 %v3045, 64
        %v3068 = vpop.permute.xlu0 %3067
        %3069 = vrot.lane.b32.xlu0 %v3046, 64
        %v3070 = vpop.permute.xlu0 %3069
        %3071 = vrot.lane.b32.xlu0 %v3047, 64
        %v3072 = vpop.permute.xlu0 %3071
        %3073 = vrot.lane.b32.xlu0 %v3048, 64
        %v3074 = vpop.permute.xlu0 %3073
        %3075 = vrot.lane.b32.xlu0 %v3049, 64
        %v3076 = vpop.permute.xlu0 %3075
        %3077 = vrot.lane.b32.xlu0 %v3050, 64
        %v3078 = vpop.permute.xlu0 %3077
        %3079 = vrot.lane.b32.xlu0 %v3051, 64
        %v3080 = vpop.permute.xlu0 %3079
        %3081 = vrot.lane.b32.xlu0 %v3052, 64
        %v3082 = vpop.permute.xlu0 %3081
        %3083 = vrot.lane.b32.xlu0 %v3053, 64
        %v3084 = vpop.permute.xlu0 %3083
        %3085 = vrot.lane.b32.xlu0 %v3054, 64
        %v3086 = vpop.permute.xlu0 %3085
        %v3087 = vadd.f32 %v3039, %v3056
        %v3088 = vadd.f32 %v3040, %v3058
        %v3089 = vadd.f32 %v3041, %v3060
        %v3090 = vadd.f32 %v3042, %v3062
        %v3091 = vadd.f32 %v3043, %v3064
        %v3092 = vadd.f32 %v3044, %v3066
        %v3093 = vadd.f32 %v3045, %v3068
        %v3094 = vadd.f32 %v3046, %v3070
        %v3095 = vadd.f32 %v3047, %v3072
        %v3096 = vadd.f32 %v3048, %v3074
        %v3097 = vadd.f32 %v3049, %v3076
        %v3098 = vadd.f32 %v3050, %v3078
        %v3099 = vadd.f32 %v3051, %v3080
        %v3100 = vadd.f32 %v3052, %v3082
        %v3101 = vadd.f32 %v3053, %v3084
        %v3102 = vadd.f32 %v3054, %v3086
        %v3104 = vlaneseq
        %v3105 = vshrl.u32 %v3104, 7
        %v3106 = vsub.s32 0, %v3105
        %v3107 = vrot.slane %v516, %v3106
        %v3109 = vadd.f32 %v3087, %v3107
        %v3110 = vadd.f32 %v3088, %v3107
        %v3111 = vadd.f32 %v3089, %v3107
        %v3112 = vadd.f32 %v3090, %v3107
        %v3113 = vadd.f32 %v3091, %v3107
        %v3114 = vadd.f32 %v3092, %v3107
        %v3115 = vadd.f32 %v3093, %v3107
        %v3116 = vadd.f32 %v3094, %v3107
        %v3117 = vadd.f32 %v3095, %v3107
        %v3118 = vadd.f32 %v3096, %v3107
        %v3119 = vadd.f32 %v3097, %v3107
        %v3120 = vadd.f32 %v3098, %v3107
        %v3121 = vadd.f32 %v3099, %v3107
        %v3122 = vadd.f32 %v3100, %v3107
        %v3123 = vadd.f32 %v3101, %v3107
        %v3124 = vadd.f32 %v3102, %v3107
        %v3125 = vsub.f32 0.0, %v3109
        %v3126 = vsub.f32 0.0, %v3110
        %v3127 = vsub.f32 0.0, %v3111
        %v3128 = vsub.f32 0.0, %v3112
        %v3129 = vsub.f32 0.0, %v3113
        %v3130 = vsub.f32 0.0, %v3114
        %v3131 = vsub.f32 0.0, %v3115
        %v3132 = vsub.f32 0.0, %v3116
        %v3133 = vsub.f32 0.0, %v3117
        %v3134 = vsub.f32 0.0, %v3118
        %v3135 = vsub.f32 0.0, %v3119
        %v3136 = vsub.f32 0.0, %v3120
        %v3137 = vsub.f32 0.0, %v3121
        %v3138 = vsub.f32 0.0, %v3122
        %v3139 = vsub.f32 0.0, %v3123
        %v3140 = vsub.f32 0.0, %v3124
        %v3141 = vmul.f32 %v3125, 1.442695
        %v3142 = vpow.pop %v3141
        %v3143 = vmul.f32 %v3126, 1.442695
        %v3144 = vpow.pop %v3143
        %v3145 = vmul.f32 %v3127, 1.442695
        %v3146 = vpow.pop %v3145
        %v3147 = vmul.f32 %v3128, 1.442695
        %v3148 = vpow.pop %v3147
        %v3149 = vmul.f32 %v3129, 1.442695
        %v3150 = vpow.pop %v3149
        %v3151 = vmul.f32 %v3130, 1.442695
        %v3152 = vpow.pop %v3151
        %v3153 = vmul.f32 %v3131, 1.442695
        %v3154 = vpow.pop %v3153
        %v3155 = vmul.f32 %v3132, 1.442695
        %v3156 = vpow.pop %v3155
        %v3157 = vmul.f32 %v3133, 1.442695
        %v3158 = vpow.pop %v3157
        %v3159 = vmul.f32 %v3134, 1.442695
        %v3160 = vpow.pop %v3159
        %v3161 = vmul.f32 %v3135, 1.442695
        %v3162 = vpow.pop %v3161
        %v3163 = vmul.f32 %v3136, 1.442695
        %v3164 = vpow.pop %v3163
        %v3165 = vmul.f32 %v3137, 1.442695
        %v3166 = vpow.pop %v3165
        %v3167 = vmul.f32 %v3138, 1.442695
        %v3168 = vpow.pop %v3167
        %v3169 = vmul.f32 %v3139, 1.442695
        %v3170 = vpow.pop %v3169
        %v3171 = vmul.f32 %v3140, 1.442695
        %v3172 = vpow.pop %v3171
        %v3173 = vadd.f32 %v3142, 1.0
        %v3174 = vadd.f32 %v3144, 1.0
        %v3175 = vadd.f32 %v3146, 1.0
        %v3176 = vadd.f32 %v3148, 1.0
        %v3177 = vadd.f32 %v3150, 1.0
        %v3178 = vadd.f32 %v3152, 1.0
        %v3179 = vadd.f32 %v3154, 1.0
        %v3180 = vadd.f32 %v3156, 1.0
        %v3181 = vadd.f32 %v3158, 1.0
        %v3182 = vadd.f32 %v3160, 1.0
        %v3183 = vadd.f32 %v3162, 1.0
        %v3184 = vadd.f32 %v3164, 1.0
        %v3185 = vadd.f32 %v3166, 1.0
        %v3186 = vadd.f32 %v3168, 1.0
        %v3187 = vadd.f32 %v3170, 1.0
        %v3188 = vadd.f32 %v3172, 1.0
        %v3189 = vrcp.pop %v3173
        %v3190 = vrcp.pop %v3174
        %v3191 = vrcp.pop %v3175
        %v3192 = vrcp.pop %v3176
        %v3193 = vrcp.pop %v3177
        %v3194 = vrcp.pop %v3178
        %v3195 = vrcp.pop %v3179
        %v3196 = vrcp.pop %v3180
        %v3197 = vrcp.pop %v3181
        %v3198 = vrcp.pop %v3182
        %v3199 = vrcp.pop %v3183
        %v3200 = vrcp.pop %v3184
        %v3201 = vrcp.pop %v3185
        %v3202 = vrcp.pop %v3186
        %v3203 = vrcp.pop %v3187
        %v3204 = vrcp.pop %v3188
        %3205 = vst [vmem:[%s178] sm:$0xff] %v3189
        %3206 = vst [vmem:[%s178 + $0x8] sm:$0xff] %v3190
        %3207 = vst [vmem:[%s178 + $0x10] sm:$0xff] %v3191
        %3208 = vst [vmem:[%s178 + $0x18] sm:$0xff] %v3192
        %3209 = vst [vmem:[%s178 + $0x20] sm:$0xff] %v3193
        %3210 = vst [vmem:[%s178 + $0x28] sm:$0xff] %v3194
        %3211 = vst [vmem:[%s178 + $0x30] sm:$0xff] %v3195
        %3212 = vst [vmem:[%s178 + $0x38] sm:$0xff] %v3196
        %3213 = vst [vmem:[%s178 + $0x40] sm:$0xff] %v3197
        %3214 = vst [vmem:[%s178 + $0x48] sm:$0xff] %v3198
        %3215 = vst [vmem:[%s178 + $0x50] sm:$0xff] %v3199
        %3216 = vst [vmem:[%s178 + $0x58] sm:$0xff] %v3200
        %3217 = vst [vmem:[%s178 + $0x60] sm:$0xff] %v3201
        %3218 = vst [vmem:[%s178 + $0x68] sm:$0xff] %v3202
        %3219 = vst [vmem:[%s178 + $0x70] sm:$0xff] %v3203
        %3220 = vst [vmem:[%s178 + $0x78] sm:$0xff] %v3204
        %s3221 = scalar_lea.vmem [#allocation2], 256
        %v3222 = vld [vmem:[%s3221 + $0x5] sm:$0xff]
        %v3223 = vld [vmem:[%s3221 + $0xd] sm:$0xff]
        %v3224 = vld [vmem:[%s3221 + $0x25] sm:$0xff]
        %v3225 = vld [vmem:[%s3221 + $0x2d] sm:$0xff]
        %v3226 = vld [vmem:[%s3221 + $0x45] sm:$0xff]
        %v3227 = vld [vmem:[%s3221 + $0x4d] sm:$0xff]
        %v3228 = vld [vmem:[%s3221 + $0x65] sm:$0xff]
        %v3229 = vld [vmem:[%s3221 + $0x6d] sm:$0xff]
        %v3230 = vld [vmem:[%s3221 + $0x85] sm:$0xff]
        %v3231 = vld [vmem:[%s3221 + $0x8d] sm:$0xff]
        %v3232 = vld [vmem:[%s3221 + $0xa5] sm:$0xff]
        %v3233 = vld [vmem:[%s3221 + $0xad] sm:$0xff]
        %v3234 = vld [vmem:[%s3221 + $0xc5] sm:$0xff]
        %v3235 = vld [vmem:[%s3221 + $0xcd] sm:$0xff]
        %v3236 = vld [vmem:[%s3221 + $0xe5] sm:$0xff]
        %v3237 = vld [vmem:[%s3221 + $0xed] sm:$0xff]
        %v3238 = vmul.f32 %v3222, %v536
        %v3239 = vmul.f32 %v3223, %v536
        %v3240 = vmul.f32 %v3224, %v536
        %v3241 = vmul.f32 %v3225, %v536
        %v3242 = vmul.f32 %v3226, %v536
        %v3243 = vmul.f32 %v3227, %v536
        %v3244 = vmul.f32 %v3228, %v536
        %v3245 = vmul.f32 %v3229, %v536
        %v3246 = vmul.f32 %v3230, %v536
        %v3247 = vmul.f32 %v3231, %v536
        %v3248 = vmul.f32 %v3232, %v536
        %v3249 = vmul.f32 %v3233, %v536
        %v3250 = vmul.f32 %v3234, %v536
        %v3251 = vmul.f32 %v3235, %v536
        %v3252 = vmul.f32 %v3236, %v536
        %v3253 = vmul.f32 %v3237, %v536
        %v3254 = vld [vmem:[%s3221 + $0x6] sm:$0xff]
        %v3255 = vld [vmem:[%s3221 + $0xe] sm:$0xff]
        %v3256 = vld [vmem:[%s3221 + $0x26] sm:$0xff]
        %v3257 = vld [vmem:[%s3221 + $0x2e] sm:$0xff]
        %v3258 = vld [vmem:[%s3221 + $0x46] sm:$0xff]
        %v3259 = vld [vmem:[%s3221 + $0x4e] sm:$0xff]
        %v3260 = vld [vmem:[%s3221 + $0x66] sm:$0xff]
        %v3261 = vld [vmem:[%s3221 + $0x6e] sm:$0xff]
        %v3262 = vld [vmem:[%s3221 + $0x86] sm:$0xff]
        %v3263 = vld [vmem:[%s3221 + $0x8e] sm:$0xff]
        %v3264 = vld [vmem:[%s3221 + $0xa6] sm:$0xff]
        %v3265 = vld [vmem:[%s3221 + $0xae] sm:$0xff]
        %v3266 = vld [vmem:[%s3221 + $0xc6] sm:$0xff]
        %v3267 = vld [vmem:[%s3221 + $0xce] sm:$0xff]
        %v3268 = vld [vmem:[%s3221 + $0xe6] sm:$0xff]
        %v3269 = vld [vmem:[%s3221 + $0xee] sm:$0xff]
        %v3270 = vmul.f32 %v3254, %v572
        %v3271 = vmul.f32 %v3255, %v572
        %v3272 = vmul.f32 %v3256, %v572
        %v3273 = vmul.f32 %v3257, %v572
        %v3274 = vmul.f32 %v3258, %v572
        %v3275 = vmul.f32 %v3259, %v572
        %v3276 = vmul.f32 %v3260, %v572
        %v3277 = vmul.f32 %v3261, %v572
        %v3278 = vmul.f32 %v3262, %v572
        %v3279 = vmul.f32 %v3263, %v572
        %v3280 = vmul.f32 %v3264, %v572
        %v3281 = vmul.f32 %v3265, %v572
        %v3282 = vmul.f32 %v3266, %v572
        %v3283 = vmul.f32 %v3267, %v572
        %v3284 = vmul.f32 %v3268, %v572
        %v3285 = vmul.f32 %v3269, %v572
        %v3286 = vadd.f32 %v3238, %v3270
        %v3287 = vadd.f32 %v3239, %v3271
        %v3288 = vadd.f32 %v3240, %v3272
        %v3289 = vadd.f32 %v3241, %v3273
        %v3290 = vadd.f32 %v3242, %v3274
        %v3291 = vadd.f32 %v3243, %v3275
        %v3292 = vadd.f32 %v3244, %v3276
        %v3293 = vadd.f32 %v3245, %v3277
        %v3294 = vadd.f32 %v3246, %v3278
        %v3295 = vadd.f32 %v3247, %v3279
        %v3296 = vadd.f32 %v3248, %v3280
        %v3297 = vadd.f32 %v3249, %v3281
        %v3298 = vadd.f32 %v3250, %v3282
        %v3299 = vadd.f32 %v3251, %v3283
        %v3300 = vadd.f32 %v3252, %v3284
        %v3301 = vadd.f32 %v3253, %v3285
        %v3302 = vld [vmem:[%s3221 + $0x7] sm:$0xff]
        %v3303 = vld [vmem:[%s3221 + $0xf] sm:$0xff]
        %v3304 = vld [vmem:[%s3221 + $0x27] sm:$0xff]
        %v3305 = vld [vmem:[%s3221 + $0x2f] sm:$0xff]
        %v3306 = vld [vmem:[%s3221 + $0x47] sm:$0xff]
        %v3307 = vld [vmem:[%s3221 + $0x4f] sm:$0xff]
        %v3308 = vld [vmem:[%s3221 + $0x67] sm:$0xff]
        %v3309 = vld [vmem:[%s3221 + $0x6f] sm:$0xff]
        %v3310 = vld [vmem:[%s3221 + $0x87] sm:$0xff]
        %v3311 = vld [vmem:[%s3221 + $0x8f] sm:$0xff]
        %v3312 = vld [vmem:[%s3221 + $0xa7] sm:$0xff]
        %v3313 = vld [vmem:[%s3221 + $0xaf] sm:$0xff]
        %v3314 = vld [vmem:[%s3221 + $0xc7] sm:$0xff]
        %v3315 = vld [vmem:[%s3221 + $0xcf] sm:$0xff]
        %v3316 = vld [vmem:[%s3221 + $0xe7] sm:$0xff]
        %v3317 = vld [vmem:[%s3221 + $0xef] sm:$0xff]
        %v3318 = vmul.f32 %v3302, %v624
        %v3319 = vmul.f32 %v3303, %v624
        %v3320 = vmul.f32 %v3304, %v624
        %v3321 = vmul.f32 %v3305, %v624
        %v3322 = vmul.f32 %v3306, %v624
        %v3323 = vmul.f32 %v3307, %v624
        %v3324 = vmul.f32 %v3308, %v624
        %v3325 = vmul.f32 %v3309, %v624
        %v3326 = vmul.f32 %v3310, %v624
        %v3327 = vmul.f32 %v3311, %v624
        %v3328 = vmul.f32 %v3312, %v624
        %v3329 = vmul.f32 %v3313, %v624
        %v3330 = vmul.f32 %v3314, %v624
        %v3331 = vmul.f32 %v3315, %v624
        %v3332 = vmul.f32 %v3316, %v624
        %v3333 = vmul.f32 %v3317, %v624
        %v3334 = vadd.f32 %v3286, %v3318
        %v3335 = vadd.f32 %v3287, %v3319
        %v3336 = vadd.f32 %v3288, %v3320
        %v3337 = vadd.f32 %v3289, %v3321
        %v3338 = vadd.f32 %v3290, %v3322
        %v3339 = vadd.f32 %v3291, %v3323
        %v3340 = vadd.f32 %v3292, %v3324
        %v3341 = vadd.f32 %v3293, %v3325
        %v3342 = vadd.f32 %v3294, %v3326
        %v3343 = vadd.f32 %v3295, %v3327
        %v3344 = vadd.f32 %v3296, %v3328
        %v3345 = vadd.f32 %v3297, %v3329
        %v3346 = vadd.f32 %v3298, %v3330
        %v3347 = vadd.f32 %v3299, %v3331
        %v3348 = vadd.f32 %v3300, %v3332
        %v3349 = vadd.f32 %v3301, %v3333
        %v3350 = vld [vmem:[%s3221 + $0x8] sm:$0xff]
        %v3351 = vld [vmem:[%s3221 + $0x10] sm:$0xff]
        %v3352 = vld [vmem:[%s3221 + $0x28] sm:$0xff]
        %v3353 = vld [vmem:[%s3221 + $0x30] sm:$0xff]
        %v3354 = vld [vmem:[%s3221 + $0x48] sm:$0xff]
        %v3355 = vld [vmem:[%s3221 + $0x50] sm:$0xff]
        %v3356 = vld [vmem:[%s3221 + $0x68] sm:$0xff]
        %v3357 = vld [vmem:[%s3221 + $0x70] sm:$0xff]
        %v3358 = vld [vmem:[%s3221 + $0x88] sm:$0xff]
        %v3359 = vld [vmem:[%s3221 + $0x90] sm:$0xff]
        %v3360 = vld [vmem:[%s3221 + $0xa8] sm:$0xff]
        %v3361 = vld [vmem:[%s3221 + $0xb0] sm:$0xff]
        %v3362 = vld [vmem:[%s3221 + $0xc8] sm:$0xff]
        %v3363 = vld [vmem:[%s3221 + $0xd0] sm:$0xff]
        %v3364 = vld [vmem:[%s3221 + $0xe8] sm:$0xff]
        %v3365 = vld [vmem:[%s3221 + $0xf0] sm:$0xff]
        %v3366 = vmul.f32 %v3350, %v676
        %v3367 = vmul.f32 %v3351, %v676
        %v3368 = vmul.f32 %v3352, %v676
        %v3369 = vmul.f32 %v3353, %v676
        %v3370 = vmul.f32 %v3354, %v676
        %v3371 = vmul.f32 %v3355, %v676
        %v3372 = vmul.f32 %v3356, %v676
        %v3373 = vmul.f32 %v3357, %v676
        %v3374 = vmul.f32 %v3358, %v676
        %v3375 = vmul.f32 %v3359, %v676
        %v3376 = vmul.f32 %v3360, %v676
        %v3377 = vmul.f32 %v3361, %v676
        %v3378 = vmul.f32 %v3362, %v676
        %v3379 = vmul.f32 %v3363, %v676
        %v3380 = vmul.f32 %v3364, %v676
        %v3381 = vmul.f32 %v3365, %v676
        %v3382 = vadd.f32 %v3334, %v3366
        %v3383 = vadd.f32 %v3335, %v3367
        %v3384 = vadd.f32 %v3336, %v3368
        %v3385 = vadd.f32 %v3337, %v3369
        %v3386 = vadd.f32 %v3338, %v3370
        %v3387 = vadd.f32 %v3339, %v3371
        %v3388 = vadd.f32 %v3340, %v3372
        %v3389 = vadd.f32 %v3341, %v3373
        %v3390 = vadd.f32 %v3342, %v3374
        %v3391 = vadd.f32 %v3343, %v3375
        %v3392 = vadd.f32 %v3344, %v3376
        %v3393 = vadd.f32 %v3345, %v3377
        %v3394 = vadd.f32 %v3346, %v3378
        %v3395 = vadd.f32 %v3347, %v3379
        %v3396 = vadd.f32 %v3348, %v3380
        %v3397 = vadd.f32 %v3349, %v3381
        %v3398 = vld [vmem:[%s3221 + $0x9] sm:$0xff]
        %v3399 = vld [vmem:[%s3221 + $0x11] sm:$0xff]
        %v3400 = vld [vmem:[%s3221 + $0x29] sm:$0xff]
        %v3401 = vld [vmem:[%s3221 + $0x31] sm:$0xff]
        %v3402 = vld [vmem:[%s3221 + $0x49] sm:$0xff]
        %v3403 = vld [vmem:[%s3221 + $0x51] sm:$0xff]
        %v3404 = vld [vmem:[%s3221 + $0x69] sm:$0xff]
        %v3405 = vld [vmem:[%s3221 + $0x71] sm:$0xff]
        %v3406 = vld [vmem:[%s3221 + $0x89] sm:$0xff]
        %v3407 = vld [vmem:[%s3221 + $0x91] sm:$0xff]
        %v3408 = vld [vmem:[%s3221 + $0xa9] sm:$0xff]
        %v3409 = vld [vmem:[%s3221 + $0xb1] sm:$0xff]
        %v3410 = vld [vmem:[%s3221 + $0xc9] sm:$0xff]
        %v3411 = vld [vmem:[%s3221 + $0xd1] sm:$0xff]
        %v3412 = vld [vmem:[%s3221 + $0xe9] sm:$0xff]
        %v3413 = vld [vmem:[%s3221 + $0xf1] sm:$0xff]
        %v3414 = vmul.f32 %v3398, %v728
        %v3415 = vmul.f32 %v3399, %v728
        %v3416 = vmul.f32 %v3400, %v728
        %v3417 = vmul.f32 %v3401, %v728
        %v3418 = vmul.f32 %v3402, %v728
        %v3419 = vmul.f32 %v3403, %v728
        %v3420 = vmul.f32 %v3404, %v728
        %v3421 = vmul.f32 %v3405, %v728
        %v3422 = vmul.f32 %v3406, %v728
        %v3423 = vmul.f32 %v3407, %v728
        %v3424 = vmul.f32 %v3408, %v728
        %v3425 = vmul.f32 %v3409, %v728
        %v3426 = vmul.f32 %v3410, %v728
        %v3427 = vmul.f32 %v3411, %v728
        %v3428 = vmul.f32 %v3412, %v728
        %v3429 = vmul.f32 %v3413, %v728
        %v3430 = vadd.f32 %v3382, %v3414
        %v3431 = vadd.f32 %v3383, %v3415
        %v3432 = vadd.f32 %v3384, %v3416
        %v3433 = vadd.f32 %v3385, %v3417
        %v3434 = vadd.f32 %v3386, %v3418
        %v3435 = vadd.f32 %v3387, %v3419
        %v3436 = vadd.f32 %v3388, %v3420
        %v3437 = vadd.f32 %v3389, %v3421
        %v3438 = vadd.f32 %v3390, %v3422
        %v3439 = vadd.f32 %v3391, %v3423
        %v3440 = vadd.f32 %v3392, %v3424
        %v3441 = vadd.f32 %v3393, %v3425
        %v3442 = vadd.f32 %v3394, %v3426
        %v3443 = vadd.f32 %v3395, %v3427
        %v3444 = vadd.f32 %v3396, %v3428
        %v3445 = vadd.f32 %v3397, %v3429
        %v3446 = vld [vmem:[%s3221 + $0xa] sm:$0xff]
        %v3447 = vld [vmem:[%s3221 + $0x12] sm:$0xff]
        %v3448 = vld [vmem:[%s3221 + $0x2a] sm:$0xff]
        %v3449 = vld [vmem:[%s3221 + $0x32] sm:$0xff]
        %v3450 = vld [vmem:[%s3221 + $0x4a] sm:$0xff]
        %v3451 = vld [vmem:[%s3221 + $0x52] sm:$0xff]
        %v3452 = vld [vmem:[%s3221 + $0x6a] sm:$0xff]
        %v3453 = vld [vmem:[%s3221 + $0x72] sm:$0xff]
        %v3454 = vld [vmem:[%s3221 + $0x8a] sm:$0xff]
        %v3455 = vld [vmem:[%s3221 + $0x92] sm:$0xff]
        %v3456 = vld [vmem:[%s3221 + $0xaa] sm:$0xff]
        %v3457 = vld [vmem:[%s3221 + $0xb2] sm:$0xff]
        %v3458 = vld [vmem:[%s3221 + $0xca] sm:$0xff]
        %v3459 = vld [vmem:[%s3221 + $0xd2] sm:$0xff]
        %v3460 = vld [vmem:[%s3221 + $0xea] sm:$0xff]
        %v3461 = vld [vmem:[%s3221 + $0xf2] sm:$0xff]
        %v3462 = vmul.f32 %v3446, %v780
        %v3463 = vmul.f32 %v3447, %v780
        %v3464 = vmul.f32 %v3448, %v780
        %v3465 = vmul.f32 %v3449, %v780
        %v3466 = vmul.f32 %v3450, %v780
        %v3467 = vmul.f32 %v3451, %v780
        %v3468 = vmul.f32 %v3452, %v780
        %v3469 = vmul.f32 %v3453, %v780
        %v3470 = vmul.f32 %v3454, %v780
        %v3471 = vmul.f32 %v3455, %v780
        %v3472 = vmul.f32 %v3456, %v780
        %v3473 = vmul.f32 %v3457, %v780
        %v3474 = vmul.f32 %v3458, %v780
        %v3475 = vmul.f32 %v3459, %v780
        %v3476 = vmul.f32 %v3460, %v780
        %v3477 = vmul.f32 %v3461, %v780
        %v3478 = vadd.f32 %v3430, %v3462
        %v3479 = vadd.f32 %v3431, %v3463
        %v3480 = vadd.f32 %v3432, %v3464
        %v3481 = vadd.f32 %v3433, %v3465
        %v3482 = vadd.f32 %v3434, %v3466
        %v3483 = vadd.f32 %v3435, %v3467
        %v3484 = vadd.f32 %v3436, %v3468
        %v3485 = vadd.f32 %v3437, %v3469
        %v3486 = vadd.f32 %v3438, %v3470
        %v3487 = vadd.f32 %v3439, %v3471
        %v3488 = vadd.f32 %v3440, %v3472
        %v3489 = vadd.f32 %v3441, %v3473
        %v3490 = vadd.f32 %v3442, %v3474
        %v3491 = vadd.f32 %v3443, %v3475
        %v3492 = vadd.f32 %v3444, %v3476
        %v3493 = vadd.f32 %v3445, %v3477
        %v3494 = vld [vmem:[%s3221 + $0xb] sm:$0xff]
        %v3495 = vld [vmem:[%s3221 + $0x13] sm:$0xff]
        %v3496 = vld [vmem:[%s3221 + $0x2b] sm:$0xff]
        %v3497 = vld [vmem:[%s3221 + $0x33] sm:$0xff]
        %v3498 = vld [vmem:[%s3221 + $0x4b] sm:$0xff]
        %v3499 = vld [vmem:[%s3221 + $0x53] sm:$0xff]
        %v3500 = vld [vmem:[%s3221 + $0x6b] sm:$0xff]
        %v3501 = vld [vmem:[%s3221 + $0x73] sm:$0xff]
        %v3502 = vld [vmem:[%s3221 + $0x8b] sm:$0xff]
        %v3503 = vld [vmem:[%s3221 + $0x93] sm:$0xff]
        %v3504 = vld [vmem:[%s3221 + $0xab] sm:$0xff]
        %v3505 = vld [vmem:[%s3221 + $0xb3] sm:$0xff]
        %v3506 = vld [vmem:[%s3221 + $0xcb] sm:$0xff]
        %v3507 = vld [vmem:[%s3221 + $0xd3] sm:$0xff]
        %v3508 = vld [vmem:[%s3221 + $0xeb] sm:$0xff]
        %v3509 = vld [vmem:[%s3221 + $0xf3] sm:$0xff]
        %v3510 = vmul.f32 %v3494, %v832
        %v3511 = vmul.f32 %v3495, %v832
        %v3512 = vmul.f32 %v3496, %v832
        %v3513 = vmul.f32 %v3497, %v832
        %v3514 = vmul.f32 %v3498, %v832
        %v3515 = vmul.f32 %v3499, %v832
        %v3516 = vmul.f32 %v3500, %v832
        %v3517 = vmul.f32 %v3501, %v832
        %v3518 = vmul.f32 %v3502, %v832
        %v3519 = vmul.f32 %v3503, %v832
        %v3520 = vmul.f32 %v3504, %v832
        %v3521 = vmul.f32 %v3505, %v832
        %v3522 = vmul.f32 %v3506, %v832
        %v3523 = vmul.f32 %v3507, %v832
        %v3524 = vmul.f32 %v3508, %v832
        %v3525 = vmul.f32 %v3509, %v832
        %v3526 = vadd.f32 %v3478, %v3510
        %v3527 = vadd.f32 %v3479, %v3511
        %v3528 = vadd.f32 %v3480, %v3512
        %v3529 = vadd.f32 %v3481, %v3513
        %v3530 = vadd.f32 %v3482, %v3514
        %v3531 = vadd.f32 %v3483, %v3515
        %v3532 = vadd.f32 %v3484, %v3516
        %v3533 = vadd.f32 %v3485, %v3517
        %v3534 = vadd.f32 %v3486, %v3518
        %v3535 = vadd.f32 %v3487, %v3519
        %v3536 = vadd.f32 %v3488, %v3520
        %v3537 = vadd.f32 %v3489, %v3521
        %v3538 = vadd.f32 %v3490, %v3522
        %v3539 = vadd.f32 %v3491, %v3523
        %v3540 = vadd.f32 %v3492, %v3524
        %v3541 = vadd.f32 %v3493, %v3525
        %s3542 = scalar_lea.vmem [#allocation2], 288
        %v3543 = vld [vmem:[%s3542 + $0x5] sm:$0xff]
        %v3544 = vld [vmem:[%s3542 + $0xd] sm:$0xff]
        %v3545 = vld [vmem:[%s3542 + $0x25] sm:$0xff]
        %v3546 = vld [vmem:[%s3542 + $0x2d] sm:$0xff]
        %v3547 = vld [vmem:[%s3542 + $0x45] sm:$0xff]
        %v3548 = vld [vmem:[%s3542 + $0x4d] sm:$0xff]
        %v3549 = vld [vmem:[%s3542 + $0x65] sm:$0xff]
        %v3550 = vld [vmem:[%s3542 + $0x6d] sm:$0xff]
        %v3551 = vld [vmem:[%s3542 + $0x85] sm:$0xff]
        %v3552 = vld [vmem:[%s3542 + $0x8d] sm:$0xff]
        %v3553 = vld [vmem:[%s3542 + $0xa5] sm:$0xff]
        %v3554 = vld [vmem:[%s3542 + $0xad] sm:$0xff]
        %v3555 = vld [vmem:[%s3542 + $0xc5] sm:$0xff]
        %v3556 = vld [vmem:[%s3542 + $0xcd] sm:$0xff]
        %v3557 = vld [vmem:[%s3542 + $0xe5] sm:$0xff]
        %v3558 = vld [vmem:[%s3542 + $0xed] sm:$0xff]
        %v3559 = vmul.f32 %v3543, %v885
        %v3560 = vmul.f32 %v3544, %v885
        %v3561 = vmul.f32 %v3545, %v885
        %v3562 = vmul.f32 %v3546, %v885
        %v3563 = vmul.f32 %v3547, %v885
        %v3564 = vmul.f32 %v3548, %v885
        %v3565 = vmul.f32 %v3549, %v885
        %v3566 = vmul.f32 %v3550, %v885
        %v3567 = vmul.f32 %v3551, %v885
        %v3568 = vmul.f32 %v3552, %v885
        %v3569 = vmul.f32 %v3553, %v885
        %v3570 = vmul.f32 %v3554, %v885
        %v3571 = vmul.f32 %v3555, %v885
        %v3572 = vmul.f32 %v3556, %v885
        %v3573 = vmul.f32 %v3557, %v885
        %v3574 = vmul.f32 %v3558, %v885
        %v3575 = vadd.f32 %v3526, %v3559
        %v3576 = vadd.f32 %v3527, %v3560
        %v3577 = vadd.f32 %v3528, %v3561
        %v3578 = vadd.f32 %v3529, %v3562
        %v3579 = vadd.f32 %v3530, %v3563
        %v3580 = vadd.f32 %v3531, %v3564
        %v3581 = vadd.f32 %v3532, %v3565
        %v3582 = vadd.f32 %v3533, %v3566
        %v3583 = vadd.f32 %v3534, %v3567
        %v3584 = vadd.f32 %v3535, %v3568
        %v3585 = vadd.f32 %v3536, %v3569
        %v3586 = vadd.f32 %v3537, %v3570
        %v3587 = vadd.f32 %v3538, %v3571
        %v3588 = vadd.f32 %v3539, %v3572
        %v3589 = vadd.f32 %v3540, %v3573
        %v3590 = vadd.f32 %v3541, %v3574
        %v3591 = vld [vmem:[%s3542 + $0x6] sm:$0xff]
        %v3592 = vld [vmem:[%s3542 + $0xe] sm:$0xff]
        %v3593 = vld [vmem:[%s3542 + $0x26] sm:$0xff]
        %v3594 = vld [vmem:[%s3542 + $0x2e] sm:$0xff]
        %v3595 = vld [vmem:[%s3542 + $0x46] sm:$0xff]
        %v3596 = vld [vmem:[%s3542 + $0x4e] sm:$0xff]
        %v3597 = vld [vmem:[%s3542 + $0x66] sm:$0xff]
        %v3598 = vld [vmem:[%s3542 + $0x6e] sm:$0xff]
        %v3599 = vld [vmem:[%s3542 + $0x86] sm:$0xff]
        %v3600 = vld [vmem:[%s3542 + $0x8e] sm:$0xff]
        %v3601 = vld [vmem:[%s3542 + $0xa6] sm:$0xff]
        %v3602 = vld [vmem:[%s3542 + $0xae] sm:$0xff]
        %v3603 = vld [vmem:[%s3542 + $0xc6] sm:$0xff]
        %v3604 = vld [vmem:[%s3542 + $0xce] sm:$0xff]
        %v3605 = vld [vmem:[%s3542 + $0xe6] sm:$0xff]
        %v3606 = vld [vmem:[%s3542 + $0xee] sm:$0xff]
        %v3607 = vmul.f32 %v3591, %v937
        %v3608 = vmul.f32 %v3592, %v937
        %v3609 = vmul.f32 %v3593, %v937
        %v3610 = vmul.f32 %v3594, %v937
        %v3611 = vmul.f32 %v3595, %v937
        %v3612 = vmul.f32 %v3596, %v937
        %v3613 = vmul.f32 %v3597, %v937
        %v3614 = vmul.f32 %v3598, %v937
        %v3615 = vmul.f32 %v3599, %v937
        %v3616 = vmul.f32 %v3600, %v937
        %v3617 = vmul.f32 %v3601, %v937
        %v3618 = vmul.f32 %v3602, %v937
        %v3619 = vmul.f32 %v3603, %v937
        %v3620 = vmul.f32 %v3604, %v937
        %v3621 = vmul.f32 %v3605, %v937
        %v3622 = vmul.f32 %v3606, %v937
        %v3623 = vadd.f32 %v3575, %v3607
        %v3624 = vadd.f32 %v3576, %v3608
        %v3625 = vadd.f32 %v3577, %v3609
        %v3626 = vadd.f32 %v3578, %v3610
        %v3627 = vadd.f32 %v3579, %v3611
        %v3628 = vadd.f32 %v3580, %v3612
        %v3629 = vadd.f32 %v3581, %v3613
        %v3630 = vadd.f32 %v3582, %v3614
        %v3631 = vadd.f32 %v3583, %v3615
        %v3632 = vadd.f32 %v3584, %v3616
        %v3633 = vadd.f32 %v3585, %v3617
        %v3634 = vadd.f32 %v3586, %v3618
        %v3635 = vadd.f32 %v3587, %v3619
        %v3636 = vadd.f32 %v3588, %v3620
        %v3637 = vadd.f32 %v3589, %v3621
        %v3638 = vadd.f32 %v3590, %v3622
        %v3639 = vld [vmem:[%s3542 + $0x7] sm:$0xff]
        %v3640 = vld [vmem:[%s3542 + $0xf] sm:$0xff]
        %v3641 = vld [vmem:[%s3542 + $0x27] sm:$0xff]
        %v3642 = vld [vmem:[%s3542 + $0x2f] sm:$0xff]
        %v3643 = vld [vmem:[%s3542 + $0x47] sm:$0xff]
        %v3644 = vld [vmem:[%s3542 + $0x4f] sm:$0xff]
        %v3645 = vld [vmem:[%s3542 + $0x67] sm:$0xff]
        %v3646 = vld [vmem:[%s3542 + $0x6f] sm:$0xff]
        %v3647 = vld [vmem:[%s3542 + $0x87] sm:$0xff]
        %v3648 = vld [vmem:[%s3542 + $0x8f] sm:$0xff]
        %v3649 = vld [vmem:[%s3542 + $0xa7] sm:$0xff]
        %v3650 = vld [vmem:[%s3542 + $0xaf] sm:$0xff]
        %v3651 = vld [vmem:[%s3542 + $0xc7] sm:$0xff]
        %v3652 = vld [vmem:[%s3542 + $0xcf] sm:$0xff]
        %v3653 = vld [vmem:[%s3542 + $0xe7] sm:$0xff]
        %v3654 = vld [vmem:[%s3542 + $0xef] sm:$0xff]
        %v3655 = vmul.f32 %v3639, %v989
        %v3656 = vmul.f32 %v3640, %v989
        %v3657 = vmul.f32 %v3641, %v989
        %v3658 = vmul.f32 %v3642, %v989
        %v3659 = vmul.f32 %v3643, %v989
        %v3660 = vmul.f32 %v3644, %v989
        %v3661 = vmul.f32 %v3645, %v989
        %v3662 = vmul.f32 %v3646, %v989
        %v3663 = vmul.f32 %v3647, %v989
        %v3664 = vmul.f32 %v3648, %v989
        %v3665 = vmul.f32 %v3649, %v989
        %v3666 = vmul.f32 %v3650, %v989
        %v3667 = vmul.f32 %v3651, %v989
        %v3668 = vmul.f32 %v3652, %v989
        %v3669 = vmul.f32 %v3653, %v989
        %v3670 = vmul.f32 %v3654, %v989
        %v3671 = vadd.f32 %v3623, %v3655
        %v3672 = vadd.f32 %v3624, %v3656
        %v3673 = vadd.f32 %v3625, %v3657
        %v3674 = vadd.f32 %v3626, %v3658
        %v3675 = vadd.f32 %v3627, %v3659
        %v3676 = vadd.f32 %v3628, %v3660
        %v3677 = vadd.f32 %v3629, %v3661
        %v3678 = vadd.f32 %v3630, %v3662
        %v3679 = vadd.f32 %v3631, %v3663
        %v3680 = vadd.f32 %v3632, %v3664
        %v3681 = vadd.f32 %v3633, %v3665
        %v3682 = vadd.f32 %v3634, %v3666
        %v3683 = vadd.f32 %v3635, %v3667
        %v3684 = vadd.f32 %v3636, %v3668
        %v3685 = vadd.f32 %v3637, %v3669
        %v3686 = vadd.f32 %v3638, %v3670
        %v3687 = vld [vmem:[%s3542 + $0x8] sm:$0xff]
        %v3688 = vld [vmem:[%s3542 + $0x10] sm:$0xff]
        %v3689 = vld [vmem:[%s3542 + $0x28] sm:$0xff]
        %v3690 = vld [vmem:[%s3542 + $0x30] sm:$0xff]
        %v3691 = vld [vmem:[%s3542 + $0x48] sm:$0xff]
        %v3692 = vld [vmem:[%s3542 + $0x50] sm:$0xff]
        %v3693 = vld [vmem:[%s3542 + $0x68] sm:$0xff]
        %v3694 = vld [vmem:[%s3542 + $0x70] sm:$0xff]
        %v3695 = vld [vmem:[%s3542 + $0x88] sm:$0xff]
        %v3696 = vld [vmem:[%s3542 + $0x90] sm:$0xff]
        %v3697 = vld [vmem:[%s3542 + $0xa8] sm:$0xff]
        %v3698 = vld [vmem:[%s3542 + $0xb0] sm:$0xff]
        %v3699 = vld [vmem:[%s3542 + $0xc8] sm:$0xff]
        %v3700 = vld [vmem:[%s3542 + $0xd0] sm:$0xff]
        %v3701 = vld [vmem:[%s3542 + $0xe8] sm:$0xff]
        %v3702 = vld [vmem:[%s3542 + $0xf0] sm:$0xff]
        %v3703 = vmul.f32 %v3687, %v1041
        %v3704 = vmul.f32 %v3688, %v1041
        %v3705 = vmul.f32 %v3689, %v1041
        %v3706 = vmul.f32 %v3690, %v1041
        %v3707 = vmul.f32 %v3691, %v1041
        %v3708 = vmul.f32 %v3692, %v1041
        %v3709 = vmul.f32 %v3693, %v1041
        %v3710 = vmul.f32 %v3694, %v1041
        %v3711 = vmul.f32 %v3695, %v1041
        %v3712 = vmul.f32 %v3696, %v1041
        %v3713 = vmul.f32 %v3697, %v1041
        %v3714 = vmul.f32 %v3698, %v1041
        %v3715 = vmul.f32 %v3699, %v1041
        %v3716 = vmul.f32 %v3700, %v1041
        %v3717 = vmul.f32 %v3701, %v1041
        %v3718 = vmul.f32 %v3702, %v1041
        %v3719 = vadd.f32 %v3671, %v3703
        %v3720 = vadd.f32 %v3672, %v3704
        %v3721 = vadd.f32 %v3673, %v3705
        %v3722 = vadd.f32 %v3674, %v3706
        %v3723 = vadd.f32 %v3675, %v3707
        %v3724 = vadd.f32 %v3676, %v3708
        %v3725 = vadd.f32 %v3677, %v3709
        %v3726 = vadd.f32 %v3678, %v3710
        %v3727 = vadd.f32 %v3679, %v3711
        %v3728 = vadd.f32 %v3680, %v3712
        %v3729 = vadd.f32 %v3681, %v3713
        %v3730 = vadd.f32 %v3682, %v3714
        %v3731 = vadd.f32 %v3683, %v3715
        %v3732 = vadd.f32 %v3684, %v3716
        %v3733 = vadd.f32 %v3685, %v3717
        %v3734 = vadd.f32 %v3686, %v3718
        %v3735 = vld [vmem:[%s3542 + $0x9] sm:$0xff]
        %v3736 = vld [vmem:[%s3542 + $0x11] sm:$0xff]
        %v3737 = vld [vmem:[%s3542 + $0x29] sm:$0xff]
        %v3738 = vld [vmem:[%s3542 + $0x31] sm:$0xff]
        %v3739 = vld [vmem:[%s3542 + $0x49] sm:$0xff]
        %v3740 = vld [vmem:[%s3542 + $0x51] sm:$0xff]
        %v3741 = vld [vmem:[%s3542 + $0x69] sm:$0xff]
        %v3742 = vld [vmem:[%s3542 + $0x71] sm:$0xff]
        %v3743 = vld [vmem:[%s3542 + $0x89] sm:$0xff]
        %v3744 = vld [vmem:[%s3542 + $0x91] sm:$0xff]
        %v3745 = vld [vmem:[%s3542 + $0xa9] sm:$0xff]
        %v3746 = vld [vmem:[%s3542 + $0xb1] sm:$0xff]
        %v3747 = vld [vmem:[%s3542 + $0xc9] sm:$0xff]
        %v3748 = vld [vmem:[%s3542 + $0xd1] sm:$0xff]
        %v3749 = vld [vmem:[%s3542 + $0xe9] sm:$0xff]
        %v3750 = vld [vmem:[%s3542 + $0xf1] sm:$0xff]
        %v3751 = vmul.f32 %v3735, %v1093
        %v3752 = vmul.f32 %v3736, %v1093
        %v3753 = vmul.f32 %v3737, %v1093
        %v3754 = vmul.f32 %v3738, %v1093
        %v3755 = vmul.f32 %v3739, %v1093
        %v3756 = vmul.f32 %v3740, %v1093
        %v3757 = vmul.f32 %v3741, %v1093
        %v3758 = vmul.f32 %v3742, %v1093
        %v3759 = vmul.f32 %v3743, %v1093
        %v3760 = vmul.f32 %v3744, %v1093
        %v3761 = vmul.f32 %v3745, %v1093
        %v3762 = vmul.f32 %v3746, %v1093
        %v3763 = vmul.f32 %v3747, %v1093
        %v3764 = vmul.f32 %v3748, %v1093
        %v3765 = vmul.f32 %v3749, %v1093
        %v3766 = vmul.f32 %v3750, %v1093
        %v3767 = vadd.f32 %v3719, %v3751
        %v3768 = vadd.f32 %v3720, %v3752
        %v3769 = vadd.f32 %v3721, %v3753
        %v3770 = vadd.f32 %v3722, %v3754
        %v3771 = vadd.f32 %v3723, %v3755
        %v3772 = vadd.f32 %v3724, %v3756
        %v3773 = vadd.f32 %v3725, %v3757
        %v3774 = vadd.f32 %v3726, %v3758
        %v3775 = vadd.f32 %v3727, %v3759
        %v3776 = vadd.f32 %v3728, %v3760
        %v3777 = vadd.f32 %v3729, %v3761
        %v3778 = vadd.f32 %v3730, %v3762
        %v3779 = vadd.f32 %v3731, %v3763
        %v3780 = vadd.f32 %v3732, %v3764
        %v3781 = vadd.f32 %v3733, %v3765
        %v3782 = vadd.f32 %v3734, %v3766
        %v3783 = vld [vmem:[%s3542 + $0xa] sm:$0xff]
        %v3784 = vld [vmem:[%s3542 + $0x12] sm:$0xff]
        %v3785 = vld [vmem:[%s3542 + $0x2a] sm:$0xff]
        %v3786 = vld [vmem:[%s3542 + $0x32] sm:$0xff]
        %v3787 = vld [vmem:[%s3542 + $0x4a] sm:$0xff]
        %v3788 = vld [vmem:[%s3542 + $0x52] sm:$0xff]
        %v3789 = vld [vmem:[%s3542 + $0x6a] sm:$0xff]
        %v3790 = vld [vmem:[%s3542 + $0x72] sm:$0xff]
        %v3791 = vld [vmem:[%s3542 + $0x8a] sm:$0xff]
        %v3792 = vld [vmem:[%s3542 + $0x92] sm:$0xff]
        %v3793 = vld [vmem:[%s3542 + $0xaa] sm:$0xff]
        %v3794 = vld [vmem:[%s3542 + $0xb2] sm:$0xff]
        %v3795 = vld [vmem:[%s3542 + $0xca] sm:$0xff]
        %v3796 = vld [vmem:[%s3542 + $0xd2] sm:$0xff]
        %v3797 = vld [vmem:[%s3542 + $0xea] sm:$0xff]
        %v3798 = vld [vmem:[%s3542 + $0xf2] sm:$0xff]
        %v3799 = vmul.f32 %v3783, %v1145
        %v3800 = vmul.f32 %v3784, %v1145
        %v3801 = vmul.f32 %v3785, %v1145
        %v3802 = vmul.f32 %v3786, %v1145
        %v3803 = vmul.f32 %v3787, %v1145
        %v3804 = vmul.f32 %v3788, %v1145
        %v3805 = vmul.f32 %v3789, %v1145
        %v3806 = vmul.f32 %v3790, %v1145
        %v3807 = vmul.f32 %v3791, %v1145
        %v3808 = vmul.f32 %v3792, %v1145
        %v3809 = vmul.f32 %v3793, %v1145
        %v3810 = vmul.f32 %v3794, %v1145
        %v3811 = vmul.f32 %v3795, %v1145
        %v3812 = vmul.f32 %v3796, %v1145
        %v3813 = vmul.f32 %v3797, %v1145
        %v3814 = vmul.f32 %v3798, %v1145
        %v3815 = vadd.f32 %v3767, %v3799
        %v3816 = vadd.f32 %v3768, %v3800
        %v3817 = vadd.f32 %v3769, %v3801
        %v3818 = vadd.f32 %v3770, %v3802
        %v3819 = vadd.f32 %v3771, %v3803
        %v3820 = vadd.f32 %v3772, %v3804
        %v3821 = vadd.f32 %v3773, %v3805
        %v3822 = vadd.f32 %v3774, %v3806
        %v3823 = vadd.f32 %v3775, %v3807
        %v3824 = vadd.f32 %v3776, %v3808
        %v3825 = vadd.f32 %v3777, %v3809
        %v3826 = vadd.f32 %v3778, %v3810
        %v3827 = vadd.f32 %v3779, %v3811
        %v3828 = vadd.f32 %v3780, %v3812
        %v3829 = vadd.f32 %v3781, %v3813
        %v3830 = vadd.f32 %v3782, %v3814
        %v3831 = vld [vmem:[%s3542 + $0xb] sm:$0xff]
        %v3832 = vld [vmem:[%s3542 + $0x13] sm:$0xff]
        %v3833 = vld [vmem:[%s3542 + $0x2b] sm:$0xff]
        %v3834 = vld [vmem:[%s3542 + $0x33] sm:$0xff]
        %v3835 = vld [vmem:[%s3542 + $0x4b] sm:$0xff]
        %v3836 = vld [vmem:[%s3542 + $0x53] sm:$0xff]
        %v3837 = vld [vmem:[%s3542 + $0x6b] sm:$0xff]
        %v3838 = vld [vmem:[%s3542 + $0x73] sm:$0xff]
        %v3839 = vld [vmem:[%s3542 + $0x8b] sm:$0xff]
        %v3840 = vld [vmem:[%s3542 + $0x93] sm:$0xff]
        %v3841 = vld [vmem:[%s3542 + $0xab] sm:$0xff]
        %v3842 = vld [vmem:[%s3542 + $0xb3] sm:$0xff]
        %v3843 = vld [vmem:[%s3542 + $0xcb] sm:$0xff]
        %v3844 = vld [vmem:[%s3542 + $0xd3] sm:$0xff]
        %v3845 = vld [vmem:[%s3542 + $0xeb] sm:$0xff]
        %v3846 = vld [vmem:[%s3542 + $0xf3] sm:$0xff]
        %v3847 = vmul.f32 %v3831, %v1197
        %v3848 = vmul.f32 %v3832, %v1197
        %v3849 = vmul.f32 %v3833, %v1197
        %v3850 = vmul.f32 %v3834, %v1197
        %v3851 = vmul.f32 %v3835, %v1197
        %v3852 = vmul.f32 %v3836, %v1197
        %v3853 = vmul.f32 %v3837, %v1197
        %v3854 = vmul.f32 %v3838, %v1197
        %v3855 = vmul.f32 %v3839, %v1197
        %v3856 = vmul.f32 %v3840, %v1197
        %v3857 = vmul.f32 %v3841, %v1197
        %v3858 = vmul.f32 %v3842, %v1197
        %v3859 = vmul.f32 %v3843, %v1197
        %v3860 = vmul.f32 %v3844, %v1197
        %v3861 = vmul.f32 %v3845, %v1197
        %v3862 = vmul.f32 %v3846, %v1197
        %v3863 = vadd.f32 %v3815, %v3847
        %v3864 = vadd.f32 %v3816, %v3848
        %v3865 = vadd.f32 %v3817, %v3849
        %v3866 = vadd.f32 %v3818, %v3850
        %v3867 = vadd.f32 %v3819, %v3851
        %v3868 = vadd.f32 %v3820, %v3852
        %v3869 = vadd.f32 %v3821, %v3853
        %v3870 = vadd.f32 %v3822, %v3854
        %v3871 = vadd.f32 %v3823, %v3855
        %v3872 = vadd.f32 %v3824, %v3856
        %v3873 = vadd.f32 %v3825, %v3857
        %v3874 = vadd.f32 %v3826, %v3858
        %v3875 = vadd.f32 %v3827, %v3859
        %v3876 = vadd.f32 %v3828, %v3860
        %v3877 = vadd.f32 %v3829, %v3861
        %v3878 = vadd.f32 %v3830, %v3862
        %s3879 = scalar_lea.vmem [#allocation2], 320
        %v3880 = vld [vmem:[%s3879 + $0x5] sm:$0xff]
        %v3881 = vld [vmem:[%s3879 + $0xd] sm:$0xff]
        %v3882 = vld [vmem:[%s3879 + $0x25] sm:$0xff]
        %v3883 = vld [vmem:[%s3879 + $0x2d] sm:$0xff]
        %v3884 = vld [vmem:[%s3879 + $0x45] sm:$0xff]
        %v3885 = vld [vmem:[%s3879 + $0x4d] sm:$0xff]
        %v3886 = vld [vmem:[%s3879 + $0x65] sm:$0xff]
        %v3887 = vld [vmem:[%s3879 + $0x6d] sm:$0xff]
        %v3888 = vld [vmem:[%s3879 + $0x85] sm:$0xff]
        %v3889 = vld [vmem:[%s3879 + $0x8d] sm:$0xff]
        %v3890 = vld [vmem:[%s3879 + $0xa5] sm:$0xff]
        %v3891 = vld [vmem:[%s3879 + $0xad] sm:$0xff]
        %v3892 = vld [vmem:[%s3879 + $0xc5] sm:$0xff]
        %v3893 = vld [vmem:[%s3879 + $0xcd] sm:$0xff]
        %v3894 = vld [vmem:[%s3879 + $0xe5] sm:$0xff]
        %v3895 = vld [vmem:[%s3879 + $0xed] sm:$0xff]
        %v3896 = vmul.f32 %v3880, %v1250
        %v3897 = vmul.f32 %v3881, %v1250
        %v3898 = vmul.f32 %v3882, %v1250
        %v3899 = vmul.f32 %v3883, %v1250
        %v3900 = vmul.f32 %v3884, %v1250
        %v3901 = vmul.f32 %v3885, %v1250
        %v3902 = vmul.f32 %v3886, %v1250
        %v3903 = vmul.f32 %v3887, %v1250
        %v3904 = vmul.f32 %v3888, %v1250
        %v3905 = vmul.f32 %v3889, %v1250
        %v3906 = vmul.f32 %v3890, %v1250
        %v3907 = vmul.f32 %v3891, %v1250
        %v3908 = vmul.f32 %v3892, %v1250
        %v3909 = vmul.f32 %v3893, %v1250
        %v3910 = vmul.f32 %v3894, %v1250
        %v3911 = vmul.f32 %v3895, %v1250
        %v3912 = vadd.f32 %v3863, %v3896
        %v3913 = vadd.f32 %v3864, %v3897
        %v3914 = vadd.f32 %v3865, %v3898
        %v3915 = vadd.f32 %v3866, %v3899
        %v3916 = vadd.f32 %v3867, %v3900
        %v3917 = vadd.f32 %v3868, %v3901
        %v3918 = vadd.f32 %v3869, %v3902
        %v3919 = vadd.f32 %v3870, %v3903
        %v3920 = vadd.f32 %v3871, %v3904
        %v3921 = vadd.f32 %v3872, %v3905
        %v3922 = vadd.f32 %v3873, %v3906
        %v3923 = vadd.f32 %v3874, %v3907
        %v3924 = vadd.f32 %v3875, %v3908
        %v3925 = vadd.f32 %v3876, %v3909
        %v3926 = vadd.f32 %v3877, %v3910
        %v3927 = vadd.f32 %v3878, %v3911
        %v3928 = vld [vmem:[%s3879 + $0x6] sm:$0xff]
        %v3929 = vld [vmem:[%s3879 + $0xe] sm:$0xff]
        %v3930 = vld [vmem:[%s3879 + $0x26] sm:$0xff]
        %v3931 = vld [vmem:[%s3879 + $0x2e] sm:$0xff]
        %v3932 = vld [vmem:[%s3879 + $0x46] sm:$0xff]
        %v3933 = vld [vmem:[%s3879 + $0x4e] sm:$0xff]
        %v3934 = vld [vmem:[%s3879 + $0x66] sm:$0xff]
        %v3935 = vld [vmem:[%s3879 + $0x6e] sm:$0xff]
        %v3936 = vld [vmem:[%s3879 + $0x86] sm:$0xff]
        %v3937 = vld [vmem:[%s3879 + $0x8e] sm:$0xff]
        %v3938 = vld [vmem:[%s3879 + $0xa6] sm:$0xff]
        %v3939 = vld [vmem:[%s3879 + $0xae] sm:$0xff]
        %v3940 = vld [vmem:[%s3879 + $0xc6] sm:$0xff]
        %v3941 = vld [vmem:[%s3879 + $0xce] sm:$0xff]
        %v3942 = vld [vmem:[%s3879 + $0xe6] sm:$0xff]
        %v3943 = vld [vmem:[%s3879 + $0xee] sm:$0xff]
        %v3944 = vmul.f32 %v3928, %v1302
        %v3945 = vmul.f32 %v3929, %v1302
        %v3946 = vmul.f32 %v3930, %v1302
        %v3947 = vmul.f32 %v3931, %v1302
        %v3948 = vmul.f32 %v3932, %v1302
        %v3949 = vmul.f32 %v3933, %v1302
        %v3950 = vmul.f32 %v3934, %v1302
        %v3951 = vmul.f32 %v3935, %v1302
        %v3952 = vmul.f32 %v3936, %v1302
        %v3953 = vmul.f32 %v3937, %v1302
        %v3954 = vmul.f32 %v3938, %v1302
        %v3955 = vmul.f32 %v3939, %v1302
        %v3956 = vmul.f32 %v3940, %v1302
        %v3957 = vmul.f32 %v3941, %v1302
        %v3958 = vmul.f32 %v3942, %v1302
        %v3959 = vmul.f32 %v3943, %v1302
        %v3960 = vadd.f32 %v3912, %v3944
        %v3961 = vadd.f32 %v3913, %v3945
        %v3962 = vadd.f32 %v3914, %v3946
        %v3963 = vadd.f32 %v3915, %v3947
        %v3964 = vadd.f32 %v3916, %v3948
        %v3965 = vadd.f32 %v3917, %v3949
        %v3966 = vadd.f32 %v3918, %v3950
        %v3967 = vadd.f32 %v3919, %v3951
        %v3968 = vadd.f32 %v3920, %v3952
        %v3969 = vadd.f32 %v3921, %v3953
        %v3970 = vadd.f32 %v3922, %v3954
        %v3971 = vadd.f32 %v3923, %v3955
        %v3972 = vadd.f32 %v3924, %v3956
        %v3973 = vadd.f32 %v3925, %v3957
        %v3974 = vadd.f32 %v3926, %v3958
        %v3975 = vadd.f32 %v3927, %v3959
        %v3976 = vld [vmem:[%s3879 + $0x7] sm:$0xff]
        %v3977 = vld [vmem:[%s3879 + $0xf] sm:$0xff]
        %v3978 = vld [vmem:[%s3879 + $0x27] sm:$0xff]
        %v3979 = vld [vmem:[%s3879 + $0x2f] sm:$0xff]
        %v3980 = vld [vmem:[%s3879 + $0x47] sm:$0xff]
        %v3981 = vld [vmem:[%s3879 + $0x4f] sm:$0xff]
        %v3982 = vld [vmem:[%s3879 + $0x67] sm:$0xff]
        %v3983 = vld [vmem:[%s3879 + $0x6f] sm:$0xff]
        %v3984 = vld [vmem:[%s3879 + $0x87] sm:$0xff]
        %v3985 = vld [vmem:[%s3879 + $0x8f] sm:$0xff]
        %v3986 = vld [vmem:[%s3879 + $0xa7] sm:$0xff]
        %v3987 = vld [vmem:[%s3879 + $0xaf] sm:$0xff]
        %v3988 = vld [vmem:[%s3879 + $0xc7] sm:$0xff]
        %v3989 = vld [vmem:[%s3879 + $0xcf] sm:$0xff]
        %v3990 = vld [vmem:[%s3879 + $0xe7] sm:$0xff]
        %v3991 = vld [vmem:[%s3879 + $0xef] sm:$0xff]
        %v3992 = vmul.f32 %v3976, %v1354
        %v3993 = vmul.f32 %v3977, %v1354
        %v3994 = vmul.f32 %v3978, %v1354
        %v3995 = vmul.f32 %v3979, %v1354
        %v3996 = vmul.f32 %v3980, %v1354
        %v3997 = vmul.f32 %v3981, %v1354
        %v3998 = vmul.f32 %v3982, %v1354
        %v3999 = vmul.f32 %v3983, %v1354
        %v4000 = vmul.f32 %v3984, %v1354
        %v4001 = vmul.f32 %v3985, %v1354
        %v4002 = vmul.f32 %v3986, %v1354
        %v4003 = vmul.f32 %v3987, %v1354
        %v4004 = vmul.f32 %v3988, %v1354
        %v4005 = vmul.f32 %v3989, %v1354
        %v4006 = vmul.f32 %v3990, %v1354
        %v4007 = vmul.f32 %v3991, %v1354
        %v4008 = vadd.f32 %v3960, %v3992
        %v4009 = vadd.f32 %v3961, %v3993
        %v4010 = vadd.f32 %v3962, %v3994
        %v4011 = vadd.f32 %v3963, %v3995
        %v4012 = vadd.f32 %v3964, %v3996
        %v4013 = vadd.f32 %v3965, %v3997
        %v4014 = vadd.f32 %v3966, %v3998
        %v4015 = vadd.f32 %v3967, %v3999
        %v4016 = vadd.f32 %v3968, %v4000
        %v4017 = vadd.f32 %v3969, %v4001
        %v4018 = vadd.f32 %v3970, %v4002
        %v4019 = vadd.f32 %v3971, %v4003
        %v4020 = vadd.f32 %v3972, %v4004
        %v4021 = vadd.f32 %v3973, %v4005
        %v4022 = vadd.f32 %v3974, %v4006
        %v4023 = vadd.f32 %v3975, %v4007
        %v4024 = vld [vmem:[%s3879 + $0x8] sm:$0xff]
        %v4025 = vld [vmem:[%s3879 + $0x10] sm:$0xff]
        %v4026 = vld [vmem:[%s3879 + $0x28] sm:$0xff]
        %v4027 = vld [vmem:[%s3879 + $0x30] sm:$0xff]
        %v4028 = vld [vmem:[%s3879 + $0x48] sm:$0xff]
        %v4029 = vld [vmem:[%s3879 + $0x50] sm:$0xff]
        %v4030 = vld [vmem:[%s3879 + $0x68] sm:$0xff]
        %v4031 = vld [vmem:[%s3879 + $0x70] sm:$0xff]
        %v4032 = vld [vmem:[%s3879 + $0x88] sm:$0xff]
        %v4033 = vld [vmem:[%s3879 + $0x90] sm:$0xff]
        %v4034 = vld [vmem:[%s3879 + $0xa8] sm:$0xff]
        %v4035 = vld [vmem:[%s3879 + $0xb0] sm:$0xff]
        %v4036 = vld [vmem:[%s3879 + $0xc8] sm:$0xff]
        %v4037 = vld [vmem:[%s3879 + $0xd0] sm:$0xff]
        %v4038 = vld [vmem:[%s3879 + $0xe8] sm:$0xff]
        %v4039 = vld [vmem:[%s3879 + $0xf0] sm:$0xff]
        %v4040 = vmul.f32 %v4024, %v1406
        %v4041 = vmul.f32 %v4025, %v1406
        %v4042 = vmul.f32 %v4026, %v1406
        %v4043 = vmul.f32 %v4027, %v1406
        %v4044 = vmul.f32 %v4028, %v1406
        %v4045 = vmul.f32 %v4029, %v1406
        %v4046 = vmul.f32 %v4030, %v1406
        %v4047 = vmul.f32 %v4031, %v1406
        %v4048 = vmul.f32 %v4032, %v1406
        %v4049 = vmul.f32 %v4033, %v1406
        %v4050 = vmul.f32 %v4034, %v1406
        %v4051 = vmul.f32 %v4035, %v1406
        %v4052 = vmul.f32 %v4036, %v1406
        %v4053 = vmul.f32 %v4037, %v1406
        %v4054 = vmul.f32 %v4038, %v1406
        %v4055 = vmul.f32 %v4039, %v1406
        %v4056 = vadd.f32 %v4008, %v4040
        %v4057 = vadd.f32 %v4009, %v4041
        %v4058 = vadd.f32 %v4010, %v4042
        %v4059 = vadd.f32 %v4011, %v4043
        %v4060 = vadd.f32 %v4012, %v4044
        %v4061 = vadd.f32 %v4013, %v4045
        %v4062 = vadd.f32 %v4014, %v4046
        %v4063 = vadd.f32 %v4015, %v4047
        %v4064 = vadd.f32 %v4016, %v4048
        %v4065 = vadd.f32 %v4017, %v4049
        %v4066 = vadd.f32 %v4018, %v4050
        %v4067 = vadd.f32 %v4019, %v4051
        %v4068 = vadd.f32 %v4020, %v4052
        %v4069 = vadd.f32 %v4021, %v4053
        %v4070 = vadd.f32 %v4022, %v4054
        %v4071 = vadd.f32 %v4023, %v4055
        %v4072 = vld [vmem:[%s3879 + $0x9] sm:$0xff]
        %v4073 = vld [vmem:[%s3879 + $0x11] sm:$0xff]
        %v4074 = vld [vmem:[%s3879 + $0x29] sm:$0xff]
        %v4075 = vld [vmem:[%s3879 + $0x31] sm:$0xff]
        %v4076 = vld [vmem:[%s3879 + $0x49] sm:$0xff]
        %v4077 = vld [vmem:[%s3879 + $0x51] sm:$0xff]
        %v4078 = vld [vmem:[%s3879 + $0x69] sm:$0xff]
        %v4079 = vld [vmem:[%s3879 + $0x71] sm:$0xff]
        %v4080 = vld [vmem:[%s3879 + $0x89] sm:$0xff]
        %v4081 = vld [vmem:[%s3879 + $0x91] sm:$0xff]
        %v4082 = vld [vmem:[%s3879 + $0xa9] sm:$0xff]
        %v4083 = vld [vmem:[%s3879 + $0xb1] sm:$0xff]
        %v4084 = vld [vmem:[%s3879 + $0xc9] sm:$0xff]
        %v4085 = vld [vmem:[%s3879 + $0xd1] sm:$0xff]
        %v4086 = vld [vmem:[%s3879 + $0xe9] sm:$0xff]
        %v4087 = vld [vmem:[%s3879 + $0xf1] sm:$0xff]
        %v4088 = vmul.f32 %v4072, %v1458
        %v4089 = vmul.f32 %v4073, %v1458
        %v4090 = vmul.f32 %v4074, %v1458
        %v4091 = vmul.f32 %v4075, %v1458
        %v4092 = vmul.f32 %v4076, %v1458
        %v4093 = vmul.f32 %v4077, %v1458
        %v4094 = vmul.f32 %v4078, %v1458
        %v4095 = vmul.f32 %v4079, %v1458
        %v4096 = vmul.f32 %v4080, %v1458
        %v4097 = vmul.f32 %v4081, %v1458
        %v4098 = vmul.f32 %v4082, %v1458
        %v4099 = vmul.f32 %v4083, %v1458
        %v4100 = vmul.f32 %v4084, %v1458
        %v4101 = vmul.f32 %v4085, %v1458
        %v4102 = vmul.f32 %v4086, %v1458
        %v4103 = vmul.f32 %v4087, %v1458
        %v4104 = vadd.f32 %v4056, %v4088
        %v4105 = vadd.f32 %v4057, %v4089
        %v4106 = vadd.f32 %v4058, %v4090
        %v4107 = vadd.f32 %v4059, %v4091
        %v4108 = vadd.f32 %v4060, %v4092
        %v4109 = vadd.f32 %v4061, %v4093
        %v4110 = vadd.f32 %v4062, %v4094
        %v4111 = vadd.f32 %v4063, %v4095
        %v4112 = vadd.f32 %v4064, %v4096
        %v4113 = vadd.f32 %v4065, %v4097
        %v4114 = vadd.f32 %v4066, %v4098
        %v4115 = vadd.f32 %v4067, %v4099
        %v4116 = vadd.f32 %v4068, %v4100
        %v4117 = vadd.f32 %v4069, %v4101
        %v4118 = vadd.f32 %v4070, %v4102
        %v4119 = vadd.f32 %v4071, %v4103
        %v4120 = vld [vmem:[%s3879 + $0xa] sm:$0xff]
        %v4121 = vld [vmem:[%s3879 + $0x12] sm:$0xff]
        %v4122 = vld [vmem:[%s3879 + $0x2a] sm:$0xff]
        %v4123 = vld [vmem:[%s3879 + $0x32] sm:$0xff]
        %v4124 = vld [vmem:[%s3879 + $0x4a] sm:$0xff]
        %v4125 = vld [vmem:[%s3879 + $0x52] sm:$0xff]
        %v4126 = vld [vmem:[%s3879 + $0x6a] sm:$0xff]
        %v4127 = vld [vmem:[%s3879 + $0x72] sm:$0xff]
        %v4128 = vld [vmem:[%s3879 + $0x8a] sm:$0xff]
        %v4129 = vld [vmem:[%s3879 + $0x92] sm:$0xff]
        %v4130 = vld [vmem:[%s3879 + $0xaa] sm:$0xff]
        %v4131 = vld [vmem:[%s3879 + $0xb2] sm:$0xff]
        %v4132 = vld [vmem:[%s3879 + $0xca] sm:$0xff]
        %v4133 = vld [vmem:[%s3879 + $0xd2] sm:$0xff]
        %v4134 = vld [vmem:[%s3879 + $0xea] sm:$0xff]
        %v4135 = vld [vmem:[%s3879 + $0xf2] sm:$0xff]
        %v4136 = vmul.f32 %v4120, %v1510
        %v4137 = vmul.f32 %v4121, %v1510
        %v4138 = vmul.f32 %v4122, %v1510
        %v4139 = vmul.f32 %v4123, %v1510
        %v4140 = vmul.f32 %v4124, %v1510
        %v4141 = vmul.f32 %v4125, %v1510
        %v4142 = vmul.f32 %v4126, %v1510
        %v4143 = vmul.f32 %v4127, %v1510
        %v4144 = vmul.f32 %v4128, %v1510
        %v4145 = vmul.f32 %v4129, %v1510
        %v4146 = vmul.f32 %v4130, %v1510
        %v4147 = vmul.f32 %v4131, %v1510
        %v4148 = vmul.f32 %v4132, %v1510
        %v4149 = vmul.f32 %v4133, %v1510
        %v4150 = vmul.f32 %v4134, %v1510
        %v4151 = vmul.f32 %v4135, %v1510
        %v4152 = vadd.f32 %v4104, %v4136
        %v4153 = vadd.f32 %v4105, %v4137
        %v4154 = vadd.f32 %v4106, %v4138
        %v4155 = vadd.f32 %v4107, %v4139
        %v4156 = vadd.f32 %v4108, %v4140
        %v4157 = vadd.f32 %v4109, %v4141
        %v4158 = vadd.f32 %v4110, %v4142
        %v4159 = vadd.f32 %v4111, %v4143
        %v4160 = vadd.f32 %v4112, %v4144
        %v4161 = vadd.f32 %v4113, %v4145
        %v4162 = vadd.f32 %v4114, %v4146
        %v4163 = vadd.f32 %v4115, %v4147
        %v4164 = vadd.f32 %v4116, %v4148
        %v4165 = vadd.f32 %v4117, %v4149
        %v4166 = vadd.f32 %v4118, %v4150
        %v4167 = vadd.f32 %v4119, %v4151
        %v4168 = vld [vmem:[%s3879 + $0xb] sm:$0xff]
        %v4169 = vld [vmem:[%s3879 + $0x13] sm:$0xff]
        %v4170 = vld [vmem:[%s3879 + $0x2b] sm:$0xff]
        %v4171 = vld [vmem:[%s3879 + $0x33] sm:$0xff]
        %v4172 = vld [vmem:[%s3879 + $0x4b] sm:$0xff]
        %v4173 = vld [vmem:[%s3879 + $0x53] sm:$0xff]
        %v4174 = vld [vmem:[%s3879 + $0x6b] sm:$0xff]
        %v4175 = vld [vmem:[%s3879 + $0x73] sm:$0xff]
        %v4176 = vld [vmem:[%s3879 + $0x8b] sm:$0xff]
        %v4177 = vld [vmem:[%s3879 + $0x93] sm:$0xff]
        %v4178 = vld [vmem:[%s3879 + $0xab] sm:$0xff]
        %v4179 = vld [vmem:[%s3879 + $0xb3] sm:$0xff]
        %v4180 = vld [vmem:[%s3879 + $0xcb] sm:$0xff]
        %v4181 = vld [vmem:[%s3879 + $0xd3] sm:$0xff]
        %v4182 = vld [vmem:[%s3879 + $0xeb] sm:$0xff]
        %v4183 = vld [vmem:[%s3879 + $0xf3] sm:$0xff]
        %v4184 = vmul.f32 %v4168, %v1562
        %v4185 = vmul.f32 %v4169, %v1562
        %v4186 = vmul.f32 %v4170, %v1562
        %v4187 = vmul.f32 %v4171, %v1562
        %v4188 = vmul.f32 %v4172, %v1562
        %v4189 = vmul.f32 %v4173, %v1562
        %v4190 = vmul.f32 %v4174, %v1562
        %v4191 = vmul.f32 %v4175, %v1562
        %v4192 = vmul.f32 %v4176, %v1562
        %v4193 = vmul.f32 %v4177, %v1562
        %v4194 = vmul.f32 %v4178, %v1562
        %v4195 = vmul.f32 %v4179, %v1562
        %v4196 = vmul.f32 %v4180, %v1562
        %v4197 = vmul.f32 %v4181, %v1562
        %v4198 = vmul.f32 %v4182, %v1562
        %v4199 = vmul.f32 %v4183, %v1562
        %v4200 = vadd.f32 %v4152, %v4184
        %v4201 = vadd.f32 %v4153, %v4185
        %v4202 = vadd.f32 %v4154, %v4186
        %v4203 = vadd.f32 %v4155, %v4187
        %v4204 = vadd.f32 %v4156, %v4188
        %v4205 = vadd.f32 %v4157, %v4189
        %v4206 = vadd.f32 %v4158, %v4190
        %v4207 = vadd.f32 %v4159, %v4191
        %v4208 = vadd.f32 %v4160, %v4192
        %v4209 = vadd.f32 %v4161, %v4193
        %v4210 = vadd.f32 %v4162, %v4194
        %v4211 = vadd.f32 %v4163, %v4195
        %v4212 = vadd.f32 %v4164, %v4196
        %v4213 = vadd.f32 %v4165, %v4197
        %v4214 = vadd.f32 %v4166, %v4198
        %v4215 = vadd.f32 %v4167, %v4199
        %s4216 = scalar_lea.vmem [#allocation2], 352
        %v4217 = vld [vmem:[%s4216 + $0x5] sm:$0xff]
        %v4218 = vld [vmem:[%s4216 + $0xd] sm:$0xff]
        %v4219 = vld [vmem:[%s4216 + $0x25] sm:$0xff]
        %v4220 = vld [vmem:[%s4216 + $0x2d] sm:$0xff]
        %v4221 = vld [vmem:[%s4216 + $0x45] sm:$0xff]
        %v4222 = vld [vmem:[%s4216 + $0x4d] sm:$0xff]
        %v4223 = vld [vmem:[%s4216 + $0x65] sm:$0xff]
        %v4224 = vld [vmem:[%s4216 + $0x6d] sm:$0xff]
        %v4225 = vld [vmem:[%s4216 + $0x85] sm:$0xff]
        %v4226 = vld [vmem:[%s4216 + $0x8d] sm:$0xff]
        %v4227 = vld [vmem:[%s4216 + $0xa5] sm:$0xff]
        %v4228 = vld [vmem:[%s4216 + $0xad] sm:$0xff]
        %v4229 = vld [vmem:[%s4216 + $0xc5] sm:$0xff]
        %v4230 = vld [vmem:[%s4216 + $0xcd] sm:$0xff]
        %v4231 = vld [vmem:[%s4216 + $0xe5] sm:$0xff]
        %v4232 = vld [vmem:[%s4216 + $0xed] sm:$0xff]
        %v4233 = vmul.f32 %v4217, %v1615
        %v4234 = vmul.f32 %v4218, %v1615
        %v4235 = vmul.f32 %v4219, %v1615
        %v4236 = vmul.f32 %v4220, %v1615
        %v4237 = vmul.f32 %v4221, %v1615
        %v4238 = vmul.f32 %v4222, %v1615
        %v4239 = vmul.f32 %v4223, %v1615
        %v4240 = vmul.f32 %v4224, %v1615
        %v4241 = vmul.f32 %v4225, %v1615
        %v4242 = vmul.f32 %v4226, %v1615
        %v4243 = vmul.f32 %v4227, %v1615
        %v4244 = vmul.f32 %v4228, %v1615
        %v4245 = vmul.f32 %v4229, %v1615
        %v4246 = vmul.f32 %v4230, %v1615
        %v4247 = vmul.f32 %v4231, %v1615
        %v4248 = vmul.f32 %v4232, %v1615
        %v4249 = vadd.f32 %v4200, %v4233
        %v4250 = vadd.f32 %v4201, %v4234
        %v4251 = vadd.f32 %v4202, %v4235
        %v4252 = vadd.f32 %v4203, %v4236
        %v4253 = vadd.f32 %v4204, %v4237
        %v4254 = vadd.f32 %v4205, %v4238
        %v4255 = vadd.f32 %v4206, %v4239
        %v4256 = vadd.f32 %v4207, %v4240
        %v4257 = vadd.f32 %v4208, %v4241
        %v4258 = vadd.f32 %v4209, %v4242
        %v4259 = vadd.f32 %v4210, %v4243
        %v4260 = vadd.f32 %v4211, %v4244
        %v4261 = vadd.f32 %v4212, %v4245
        %v4262 = vadd.f32 %v4213, %v4246
        %v4263 = vadd.f32 %v4214, %v4247
        %v4264 = vadd.f32 %v4215, %v4248
        %v4265 = vld [vmem:[%s4216 + $0x6] sm:$0xff]
        %v4266 = vld [vmem:[%s4216 + $0xe] sm:$0xff]
        %v4267 = vld [vmem:[%s4216 + $0x26] sm:$0xff]
        %v4268 = vld [vmem:[%s4216 + $0x2e] sm:$0xff]
        %v4269 = vld [vmem:[%s4216 + $0x46] sm:$0xff]
        %v4270 = vld [vmem:[%s4216 + $0x4e] sm:$0xff]
        %v4271 = vld [vmem:[%s4216 + $0x66] sm:$0xff]
        %v4272 = vld [vmem:[%s4216 + $0x6e] sm:$0xff]
        %v4273 = vld [vmem:[%s4216 + $0x86] sm:$0xff]
        %v4274 = vld [vmem:[%s4216 + $0x8e] sm:$0xff]
        %v4275 = vld [vmem:[%s4216 + $0xa6] sm:$0xff]
        %v4276 = vld [vmem:[%s4216 + $0xae] sm:$0xff]
        %v4277 = vld [vmem:[%s4216 + $0xc6] sm:$0xff]
        %v4278 = vld [vmem:[%s4216 + $0xce] sm:$0xff]
        %v4279 = vld [vmem:[%s4216 + $0xe6] sm:$0xff]
        %v4280 = vld [vmem:[%s4216 + $0xee] sm:$0xff]
        %v4281 = vmul.f32 %v4265, %v1667
        %v4282 = vmul.f32 %v4266, %v1667
        %v4283 = vmul.f32 %v4267, %v1667
        %v4284 = vmul.f32 %v4268, %v1667
        %v4285 = vmul.f32 %v4269, %v1667
        %v4286 = vmul.f32 %v4270, %v1667
        %v4287 = vmul.f32 %v4271, %v1667
        %v4288 = vmul.f32 %v4272, %v1667
        %v4289 = vmul.f32 %v4273, %v1667
        %v4290 = vmul.f32 %v4274, %v1667
        %v4291 = vmul.f32 %v4275, %v1667
        %v4292 = vmul.f32 %v4276, %v1667
        %v4293 = vmul.f32 %v4277, %v1667
        %v4294 = vmul.f32 %v4278, %v1667
        %v4295 = vmul.f32 %v4279, %v1667
        %v4296 = vmul.f32 %v4280, %v1667
        %v4297 = vadd.f32 %v4249, %v4281
        %v4298 = vadd.f32 %v4250, %v4282
        %v4299 = vadd.f32 %v4251, %v4283
        %v4300 = vadd.f32 %v4252, %v4284
        %v4301 = vadd.f32 %v4253, %v4285
        %v4302 = vadd.f32 %v4254, %v4286
        %v4303 = vadd.f32 %v4255, %v4287
        %v4304 = vadd.f32 %v4256, %v4288
        %v4305 = vadd.f32 %v4257, %v4289
        %v4306 = vadd.f32 %v4258, %v4290
        %v4307 = vadd.f32 %v4259, %v4291
        %v4308 = vadd.f32 %v4260, %v4292
        %v4309 = vadd.f32 %v4261, %v4293
        %v4310 = vadd.f32 %v4262, %v4294
        %v4311 = vadd.f32 %v4263, %v4295
        %v4312 = vadd.f32 %v4264, %v4296
        %v4313 = vld [vmem:[%s4216 + $0x7] sm:$0xff]
        %v4314 = vld [vmem:[%s4216 + $0xf] sm:$0xff]
        %v4315 = vld [vmem:[%s4216 + $0x27] sm:$0xff]
        %v4316 = vld [vmem:[%s4216 + $0x2f] sm:$0xff]
        %v4317 = vld [vmem:[%s4216 + $0x47] sm:$0xff]
        %v4318 = vld [vmem:[%s4216 + $0x4f] sm:$0xff]
        %v4319 = vld [vmem:[%s4216 + $0x67] sm:$0xff]
        %v4320 = vld [vmem:[%s4216 + $0x6f] sm:$0xff]
        %v4321 = vld [vmem:[%s4216 + $0x87] sm:$0xff]
        %v4322 = vld [vmem:[%s4216 + $0x8f] sm:$0xff]
        %v4323 = vld [vmem:[%s4216 + $0xa7] sm:$0xff]
        %v4324 = vld [vmem:[%s4216 + $0xaf] sm:$0xff]
        %v4325 = vld [vmem:[%s4216 + $0xc7] sm:$0xff]
        %v4326 = vld [vmem:[%s4216 + $0xcf] sm:$0xff]
        %v4327 = vld [vmem:[%s4216 + $0xe7] sm:$0xff]
        %v4328 = vld [vmem:[%s4216 + $0xef] sm:$0xff]
        %v4329 = vmul.f32 %v4313, %v1719
        %v4330 = vmul.f32 %v4314, %v1719
        %v4331 = vmul.f32 %v4315, %v1719
        %v4332 = vmul.f32 %v4316, %v1719
        %v4333 = vmul.f32 %v4317, %v1719
        %v4334 = vmul.f32 %v4318, %v1719
        %v4335 = vmul.f32 %v4319, %v1719
        %v4336 = vmul.f32 %v4320, %v1719
        %v4337 = vmul.f32 %v4321, %v1719
        %v4338 = vmul.f32 %v4322, %v1719
        %v4339 = vmul.f32 %v4323, %v1719
        %v4340 = vmul.f32 %v4324, %v1719
        %v4341 = vmul.f32 %v4325, %v1719
        %v4342 = vmul.f32 %v4326, %v1719
        %v4343 = vmul.f32 %v4327, %v1719
        %v4344 = vmul.f32 %v4328, %v1719
        %v4345 = vadd.f32 %v4297, %v4329
        %v4346 = vadd.f32 %v4298, %v4330
        %v4347 = vadd.f32 %v4299, %v4331
        %v4348 = vadd.f32 %v4300, %v4332
        %v4349 = vadd.f32 %v4301, %v4333
        %v4350 = vadd.f32 %v4302, %v4334
        %v4351 = vadd.f32 %v4303, %v4335
        %v4352 = vadd.f32 %v4304, %v4336
        %v4353 = vadd.f32 %v4305, %v4337
        %v4354 = vadd.f32 %v4306, %v4338
        %v4355 = vadd.f32 %v4307, %v4339
        %v4356 = vadd.f32 %v4308, %v4340
        %v4357 = vadd.f32 %v4309, %v4341
        %v4358 = vadd.f32 %v4310, %v4342
        %v4359 = vadd.f32 %v4311, %v4343
        %v4360 = vadd.f32 %v4312, %v4344
        %v4361 = vld [vmem:[%s4216 + $0x8] sm:$0xff]
        %v4362 = vld [vmem:[%s4216 + $0x10] sm:$0xff]
        %v4363 = vld [vmem:[%s4216 + $0x28] sm:$0xff]
        %v4364 = vld [vmem:[%s4216 + $0x30] sm:$0xff]
        %v4365 = vld [vmem:[%s4216 + $0x48] sm:$0xff]
        %v4366 = vld [vmem:[%s4216 + $0x50] sm:$0xff]
        %v4367 = vld [vmem:[%s4216 + $0x68] sm:$0xff]
        %v4368 = vld [vmem:[%s4216 + $0x70] sm:$0xff]
        %v4369 = vld [vmem:[%s4216 + $0x88] sm:$0xff]
        %v4370 = vld [vmem:[%s4216 + $0x90] sm:$0xff]
        %v4371 = vld [vmem:[%s4216 + $0xa8] sm:$0xff]
        %v4372 = vld [vmem:[%s4216 + $0xb0] sm:$0xff]
        %v4373 = vld [vmem:[%s4216 + $0xc8] sm:$0xff]
        %v4374 = vld [vmem:[%s4216 + $0xd0] sm:$0xff]
        %v4375 = vld [vmem:[%s4216 + $0xe8] sm:$0xff]
        %v4376 = vld [vmem:[%s4216 + $0xf0] sm:$0xff]
        %v4377 = vmul.f32 %v4361, %v1771
        %v4378 = vmul.f32 %v4362, %v1771
        %v4379 = vmul.f32 %v4363, %v1771
        %v4380 = vmul.f32 %v4364, %v1771
        %v4381 = vmul.f32 %v4365, %v1771
        %v4382 = vmul.f32 %v4366, %v1771
        %v4383 = vmul.f32 %v4367, %v1771
        %v4384 = vmul.f32 %v4368, %v1771
        %v4385 = vmul.f32 %v4369, %v1771
        %v4386 = vmul.f32 %v4370, %v1771
        %v4387 = vmul.f32 %v4371, %v1771
        %v4388 = vmul.f32 %v4372, %v1771
        %v4389 = vmul.f32 %v4373, %v1771
        %v4390 = vmul.f32 %v4374, %v1771
        %v4391 = vmul.f32 %v4375, %v1771
        %v4392 = vmul.f32 %v4376, %v1771
        %v4393 = vadd.f32 %v4345, %v4377
        %v4394 = vadd.f32 %v4346, %v4378
        %v4395 = vadd.f32 %v4347, %v4379
        %v4396 = vadd.f32 %v4348, %v4380
        %v4397 = vadd.f32 %v4349, %v4381
        %v4398 = vadd.f32 %v4350, %v4382
        %v4399 = vadd.f32 %v4351, %v4383
        %v4400 = vadd.f32 %v4352, %v4384
        %v4401 = vadd.f32 %v4353, %v4385
        %v4402 = vadd.f32 %v4354, %v4386
        %v4403 = vadd.f32 %v4355, %v4387
        %v4404 = vadd.f32 %v4356, %v4388
        %v4405 = vadd.f32 %v4357, %v4389
        %v4406 = vadd.f32 %v4358, %v4390
        %v4407 = vadd.f32 %v4359, %v4391
        %v4408 = vadd.f32 %v4360, %v4392
        %v4409 = vld [vmem:[%s4216 + $0x9] sm:$0xff]
        %v4410 = vld [vmem:[%s4216 + $0x11] sm:$0xff]
        %v4411 = vld [vmem:[%s4216 + $0x29] sm:$0xff]
        %v4412 = vld [vmem:[%s4216 + $0x31] sm:$0xff]
        %v4413 = vld [vmem:[%s4216 + $0x49] sm:$0xff]
        %v4414 = vld [vmem:[%s4216 + $0x51] sm:$0xff]
        %v4415 = vld [vmem:[%s4216 + $0x69] sm:$0xff]
        %v4416 = vld [vmem:[%s4216 + $0x71] sm:$0xff]
        %v4417 = vld [vmem:[%s4216 + $0x89] sm:$0xff]
        %v4418 = vld [vmem:[%s4216 + $0x91] sm:$0xff]
        %v4419 = vld [vmem:[%s4216 + $0xa9] sm:$0xff]
        %v4420 = vld [vmem:[%s4216 + $0xb1] sm:$0xff]
        %v4421 = vld [vmem:[%s4216 + $0xc9] sm:$0xff]
        %v4422 = vld [vmem:[%s4216 + $0xd1] sm:$0xff]
        %v4423 = vld [vmem:[%s4216 + $0xe9] sm:$0xff]
        %v4424 = vld [vmem:[%s4216 + $0xf1] sm:$0xff]
        %v4425 = vmul.f32 %v4409, %v1823
        %v4426 = vmul.f32 %v4410, %v1823
        %v4427 = vmul.f32 %v4411, %v1823
        %v4428 = vmul.f32 %v4412, %v1823
        %v4429 = vmul.f32 %v4413, %v1823
        %v4430 = vmul.f32 %v4414, %v1823
        %v4431 = vmul.f32 %v4415, %v1823
        %v4432 = vmul.f32 %v4416, %v1823
        %v4433 = vmul.f32 %v4417, %v1823
        %v4434 = vmul.f32 %v4418, %v1823
        %v4435 = vmul.f32 %v4419, %v1823
        %v4436 = vmul.f32 %v4420, %v1823
        %v4437 = vmul.f32 %v4421, %v1823
        %v4438 = vmul.f32 %v4422, %v1823
        %v4439 = vmul.f32 %v4423, %v1823
        %v4440 = vmul.f32 %v4424, %v1823
        %v4441 = vadd.f32 %v4393, %v4425
        %v4442 = vadd.f32 %v4394, %v4426
        %v4443 = vadd.f32 %v4395, %v4427
        %v4444 = vadd.f32 %v4396, %v4428
        %v4445 = vadd.f32 %v4397, %v4429
        %v4446 = vadd.f32 %v4398, %v4430
        %v4447 = vadd.f32 %v4399, %v4431
        %v4448 = vadd.f32 %v4400, %v4432
        %v4449 = vadd.f32 %v4401, %v4433
        %v4450 = vadd.f32 %v4402, %v4434
        %v4451 = vadd.f32 %v4403, %v4435
        %v4452 = vadd.f32 %v4404, %v4436
        %v4453 = vadd.f32 %v4405, %v4437
        %v4454 = vadd.f32 %v4406, %v4438
        %v4455 = vadd.f32 %v4407, %v4439
        %v4456 = vadd.f32 %v4408, %v4440
        %v4457 = vld [vmem:[%s4216 + $0xa] sm:$0xff]
        %v4458 = vld [vmem:[%s4216 + $0x12] sm:$0xff]
        %v4459 = vld [vmem:[%s4216 + $0x2a] sm:$0xff]
        %v4460 = vld [vmem:[%s4216 + $0x32] sm:$0xff]
        %v4461 = vld [vmem:[%s4216 + $0x4a] sm:$0xff]
        %v4462 = vld [vmem:[%s4216 + $0x52] sm:$0xff]
        %v4463 = vld [vmem:[%s4216 + $0x6a] sm:$0xff]
        %v4464 = vld [vmem:[%s4216 + $0x72] sm:$0xff]
        %v4465 = vld [vmem:[%s4216 + $0x8a] sm:$0xff]
        %v4466 = vld [vmem:[%s4216 + $0x92] sm:$0xff]
        %v4467 = vld [vmem:[%s4216 + $0xaa] sm:$0xff]
        %v4468 = vld [vmem:[%s4216 + $0xb2] sm:$0xff]
        %v4469 = vld [vmem:[%s4216 + $0xca] sm:$0xff]
        %v4470 = vld [vmem:[%s4216 + $0xd2] sm:$0xff]
        %v4471 = vld [vmem:[%s4216 + $0xea] sm:$0xff]
        %v4472 = vld [vmem:[%s4216 + $0xf2] sm:$0xff]
        %v4473 = vmul.f32 %v4457, %v1875
        %v4474 = vmul.f32 %v4458, %v1875
        %v4475 = vmul.f32 %v4459, %v1875
        %v4476 = vmul.f32 %v4460, %v1875
        %v4477 = vmul.f32 %v4461, %v1875
        %v4478 = vmul.f32 %v4462, %v1875
        %v4479 = vmul.f32 %v4463, %v1875
        %v4480 = vmul.f32 %v4464, %v1875
        %v4481 = vmul.f32 %v4465, %v1875
        %v4482 = vmul.f32 %v4466, %v1875
        %v4483 = vmul.f32 %v4467, %v1875
        %v4484 = vmul.f32 %v4468, %v1875
        %v4485 = vmul.f32 %v4469, %v1875
        %v4486 = vmul.f32 %v4470, %v1875
        %v4487 = vmul.f32 %v4471, %v1875
        %v4488 = vmul.f32 %v4472, %v1875
        %v4489 = vadd.f32 %v4441, %v4473
        %v4490 = vadd.f32 %v4442, %v4474
        %v4491 = vadd.f32 %v4443, %v4475
        %v4492 = vadd.f32 %v4444, %v4476
        %v4493 = vadd.f32 %v4445, %v4477
        %v4494 = vadd.f32 %v4446, %v4478
        %v4495 = vadd.f32 %v4447, %v4479
        %v4496 = vadd.f32 %v4448, %v4480
        %v4497 = vadd.f32 %v4449, %v4481
        %v4498 = vadd.f32 %v4450, %v4482
        %v4499 = vadd.f32 %v4451, %v4483
        %v4500 = vadd.f32 %v4452, %v4484
        %v4501 = vadd.f32 %v4453, %v4485
        %v4502 = vadd.f32 %v4454, %v4486
        %v4503 = vadd.f32 %v4455, %v4487
        %v4504 = vadd.f32 %v4456, %v4488
        %v4505 = vld [vmem:[%s4216 + $0xb] sm:$0xff]
        %v4506 = vld [vmem:[%s4216 + $0x13] sm:$0xff]
        %v4507 = vld [vmem:[%s4216 + $0x2b] sm:$0xff]
        %v4508 = vld [vmem:[%s4216 + $0x33] sm:$0xff]
        %v4509 = vld [vmem:[%s4216 + $0x4b] sm:$0xff]
        %v4510 = vld [vmem:[%s4216 + $0x53] sm:$0xff]
        %v4511 = vld [vmem:[%s4216 + $0x6b] sm:$0xff]
        %v4512 = vld [vmem:[%s4216 + $0x73] sm:$0xff]
        %v4513 = vld [vmem:[%s4216 + $0x8b] sm:$0xff]
        %v4514 = vld [vmem:[%s4216 + $0x93] sm:$0xff]
        %v4515 = vld [vmem:[%s4216 + $0xab] sm:$0xff]
        %v4516 = vld [vmem:[%s4216 + $0xb3] sm:$0xff]
        %v4517 = vld [vmem:[%s4216 + $0xcb] sm:$0xff]
        %v4518 = vld [vmem:[%s4216 + $0xd3] sm:$0xff]
        %v4519 = vld [vmem:[%s4216 + $0xeb] sm:$0xff]
        %v4520 = vld [vmem:[%s4216 + $0xf3] sm:$0xff]
        %v4521 = vmul.f32 %v4505, %v1927
        %v4522 = vmul.f32 %v4506, %v1927
        %v4523 = vmul.f32 %v4507, %v1927
        %v4524 = vmul.f32 %v4508, %v1927
        %v4525 = vmul.f32 %v4509, %v1927
        %v4526 = vmul.f32 %v4510, %v1927
        %v4527 = vmul.f32 %v4511, %v1927
        %v4528 = vmul.f32 %v4512, %v1927
        %v4529 = vmul.f32 %v4513, %v1927
        %v4530 = vmul.f32 %v4514, %v1927
        %v4531 = vmul.f32 %v4515, %v1927
        %v4532 = vmul.f32 %v4516, %v1927
        %v4533 = vmul.f32 %v4517, %v1927
        %v4534 = vmul.f32 %v4518, %v1927
        %v4535 = vmul.f32 %v4519, %v1927
        %v4536 = vmul.f32 %v4520, %v1927
        %v4537 = vadd.f32 %v4489, %v4521
        %v4538 = vadd.f32 %v4490, %v4522
        %v4539 = vadd.f32 %v4491, %v4523
        %v4540 = vadd.f32 %v4492, %v4524
        %v4541 = vadd.f32 %v4493, %v4525
        %v4542 = vadd.f32 %v4494, %v4526
        %v4543 = vadd.f32 %v4495, %v4527
        %v4544 = vadd.f32 %v4496, %v4528
        %v4545 = vadd.f32 %v4497, %v4529
        %v4546 = vadd.f32 %v4498, %v4530
        %v4547 = vadd.f32 %v4499, %v4531
        %v4548 = vadd.f32 %v4500, %v4532
        %v4549 = vadd.f32 %v4501, %v4533
        %v4550 = vadd.f32 %v4502, %v4534
        %v4551 = vadd.f32 %v4503, %v4535
        %v4552 = vadd.f32 %v4504, %v4536
        %s4553 = scalar_lea.vmem [#allocation2], 384
        %v4554 = vld [vmem:[%s4553 + $0x5] sm:$0xff]
        %v4555 = vld [vmem:[%s4553 + $0xd] sm:$0xff]
        %v4556 = vld [vmem:[%s4553 + $0x25] sm:$0xff]
        %v4557 = vld [vmem:[%s4553 + $0x2d] sm:$0xff]
        %v4558 = vld [vmem:[%s4553 + $0x45] sm:$0xff]
        %v4559 = vld [vmem:[%s4553 + $0x4d] sm:$0xff]
        %v4560 = vld [vmem:[%s4553 + $0x65] sm:$0xff]
        %v4561 = vld [vmem:[%s4553 + $0x6d] sm:$0xff]
        %v4562 = vld [vmem:[%s4553 + $0x85] sm:$0xff]
        %v4563 = vld [vmem:[%s4553 + $0x8d] sm:$0xff]
        %v4564 = vld [vmem:[%s4553 + $0xa5] sm:$0xff]
        %v4565 = vld [vmem:[%s4553 + $0xad] sm:$0xff]
        %v4566 = vld [vmem:[%s4553 + $0xc5] sm:$0xff]
        %v4567 = vld [vmem:[%s4553 + $0xcd] sm:$0xff]
        %v4568 = vld [vmem:[%s4553 + $0xe5] sm:$0xff]
        %v4569 = vld [vmem:[%s4553 + $0xed] sm:$0xff]
        %v4570 = vmul.f32 %v4554, %v1980
        %v4571 = vmul.f32 %v4555, %v1980
        %v4572 = vmul.f32 %v4556, %v1980
        %v4573 = vmul.f32 %v4557, %v1980
        %v4574 = vmul.f32 %v4558, %v1980
        %v4575 = vmul.f32 %v4559, %v1980
        %v4576 = vmul.f32 %v4560, %v1980
        %v4577 = vmul.f32 %v4561, %v1980
        %v4578 = vmul.f32 %v4562, %v1980
        %v4579 = vmul.f32 %v4563, %v1980
        %v4580 = vmul.f32 %v4564, %v1980
        %v4581 = vmul.f32 %v4565, %v1980
        %v4582 = vmul.f32 %v4566, %v1980
        %v4583 = vmul.f32 %v4567, %v1980
        %v4584 = vmul.f32 %v4568, %v1980
        %v4585 = vmul.f32 %v4569, %v1980
        %v4586 = vadd.f32 %v4537, %v4570
        %v4587 = vadd.f32 %v4538, %v4571
        %v4588 = vadd.f32 %v4539, %v4572
        %v4589 = vadd.f32 %v4540, %v4573
        %v4590 = vadd.f32 %v4541, %v4574
        %v4591 = vadd.f32 %v4542, %v4575
        %v4592 = vadd.f32 %v4543, %v4576
        %v4593 = vadd.f32 %v4544, %v4577
        %v4594 = vadd.f32 %v4545, %v4578
        %v4595 = vadd.f32 %v4546, %v4579
        %v4596 = vadd.f32 %v4547, %v4580
        %v4597 = vadd.f32 %v4548, %v4581
        %v4598 = vadd.f32 %v4549, %v4582
        %v4599 = vadd.f32 %v4550, %v4583
        %v4600 = vadd.f32 %v4551, %v4584
        %v4601 = vadd.f32 %v4552, %v4585
        %v4602 = vld [vmem:[%s4553 + $0x6] sm:$0xff]
        %v4603 = vld [vmem:[%s4553 + $0xe] sm:$0xff]
        %v4604 = vld [vmem:[%s4553 + $0x26] sm:$0xff]
        %v4605 = vld [vmem:[%s4553 + $0x2e] sm:$0xff]
        %v4606 = vld [vmem:[%s4553 + $0x46] sm:$0xff]
        %v4607 = vld [vmem:[%s4553 + $0x4e] sm:$0xff]
        %v4608 = vld [vmem:[%s4553 + $0x66] sm:$0xff]
        %v4609 = vld [vmem:[%s4553 + $0x6e] sm:$0xff]
        %v4610 = vld [vmem:[%s4553 + $0x86] sm:$0xff]
        %v4611 = vld [vmem:[%s4553 + $0x8e] sm:$0xff]
        %v4612 = vld [vmem:[%s4553 + $0xa6] sm:$0xff]
        %v4613 = vld [vmem:[%s4553 + $0xae] sm:$0xff]
        %v4614 = vld [vmem:[%s4553 + $0xc6] sm:$0xff]
        %v4615 = vld [vmem:[%s4553 + $0xce] sm:$0xff]
        %v4616 = vld [vmem:[%s4553 + $0xe6] sm:$0xff]
        %v4617 = vld [vmem:[%s4553 + $0xee] sm:$0xff]
        %v4618 = vmul.f32 %v4602, %v2032
        %v4619 = vmul.f32 %v4603, %v2032
        %v4620 = vmul.f32 %v4604, %v2032
        %v4621 = vmul.f32 %v4605, %v2032
        %v4622 = vmul.f32 %v4606, %v2032
        %v4623 = vmul.f32 %v4607, %v2032
        %v4624 = vmul.f32 %v4608, %v2032
        %v4625 = vmul.f32 %v4609, %v2032
        %v4626 = vmul.f32 %v4610, %v2032
        %v4627 = vmul.f32 %v4611, %v2032
        %v4628 = vmul.f32 %v4612, %v2032
        %v4629 = vmul.f32 %v4613, %v2032
        %v4630 = vmul.f32 %v4614, %v2032
        %v4631 = vmul.f32 %v4615, %v2032
        %v4632 = vmul.f32 %v4616, %v2032
        %v4633 = vmul.f32 %v4617, %v2032
        %v4634 = vadd.f32 %v4586, %v4618
        %v4635 = vadd.f32 %v4587, %v4619
        %v4636 = vadd.f32 %v4588, %v4620
        %v4637 = vadd.f32 %v4589, %v4621
        %v4638 = vadd.f32 %v4590, %v4622
        %v4639 = vadd.f32 %v4591, %v4623
        %v4640 = vadd.f32 %v4592, %v4624
        %v4641 = vadd.f32 %v4593, %v4625
        %v4642 = vadd.f32 %v4594, %v4626
        %v4643 = vadd.f32 %v4595, %v4627
        %v4644 = vadd.f32 %v4596, %v4628
        %v4645 = vadd.f32 %v4597, %v4629
        %v4646 = vadd.f32 %v4598, %v4630
        %v4647 = vadd.f32 %v4599, %v4631
        %v4648 = vadd.f32 %v4600, %v4632
        %v4649 = vadd.f32 %v4601, %v4633
        %v4650 = vld [vmem:[%s4553 + $0x7] sm:$0xff]
        %v4651 = vld [vmem:[%s4553 + $0xf] sm:$0xff]
        %v4652 = vld [vmem:[%s4553 + $0x27] sm:$0xff]
        %v4653 = vld [vmem:[%s4553 + $0x2f] sm:$0xff]
        %v4654 = vld [vmem:[%s4553 + $0x47] sm:$0xff]
        %v4655 = vld [vmem:[%s4553 + $0x4f] sm:$0xff]
        %v4656 = vld [vmem:[%s4553 + $0x67] sm:$0xff]
        %v4657 = vld [vmem:[%s4553 + $0x6f] sm:$0xff]
        %v4658 = vld [vmem:[%s4553 + $0x87] sm:$0xff]
        %v4659 = vld [vmem:[%s4553 + $0x8f] sm:$0xff]
        %v4660 = vld [vmem:[%s4553 + $0xa7] sm:$0xff]
        %v4661 = vld [vmem:[%s4553 + $0xaf] sm:$0xff]
        %v4662 = vld [vmem:[%s4553 + $0xc7] sm:$0xff]
        %v4663 = vld [vmem:[%s4553 + $0xcf] sm:$0xff]
        %v4664 = vld [vmem:[%s4553 + $0xe7] sm:$0xff]
        %v4665 = vld [vmem:[%s4553 + $0xef] sm:$0xff]
        %v4666 = vmul.f32 %v4650, %v2084
        %v4667 = vmul.f32 %v4651, %v2084
        %v4668 = vmul.f32 %v4652, %v2084
        %v4669 = vmul.f32 %v4653, %v2084
        %v4670 = vmul.f32 %v4654, %v2084
        %v4671 = vmul.f32 %v4655, %v2084
        %v4672 = vmul.f32 %v4656, %v2084
        %v4673 = vmul.f32 %v4657, %v2084
        %v4674 = vmul.f32 %v4658, %v2084
        %v4675 = vmul.f32 %v4659, %v2084
        %v4676 = vmul.f32 %v4660, %v2084
        %v4677 = vmul.f32 %v4661, %v2084
        %v4678 = vmul.f32 %v4662, %v2084
        %v4679 = vmul.f32 %v4663, %v2084
        %v4680 = vmul.f32 %v4664, %v2084
        %v4681 = vmul.f32 %v4665, %v2084
        %v4682 = vadd.f32 %v4634, %v4666
        %v4683 = vadd.f32 %v4635, %v4667
        %v4684 = vadd.f32 %v4636, %v4668
        %v4685 = vadd.f32 %v4637, %v4669
        %v4686 = vadd.f32 %v4638, %v4670
        %v4687 = vadd.f32 %v4639, %v4671
        %v4688 = vadd.f32 %v4640, %v4672
        %v4689 = vadd.f32 %v4641, %v4673
        %v4690 = vadd.f32 %v4642, %v4674
        %v4691 = vadd.f32 %v4643, %v4675
        %v4692 = vadd.f32 %v4644, %v4676
        %v4693 = vadd.f32 %v4645, %v4677
        %v4694 = vadd.f32 %v4646, %v4678
        %v4695 = vadd.f32 %v4647, %v4679
        %v4696 = vadd.f32 %v4648, %v4680
        %v4697 = vadd.f32 %v4649, %v4681
        %v4698 = vld [vmem:[%s4553 + $0x8] sm:$0xff]
        %v4699 = vld [vmem:[%s4553 + $0x10] sm:$0xff]
        %v4700 = vld [vmem:[%s4553 + $0x28] sm:$0xff]
        %v4701 = vld [vmem:[%s4553 + $0x30] sm:$0xff]
        %v4702 = vld [vmem:[%s4553 + $0x48] sm:$0xff]
        %v4703 = vld [vmem:[%s4553 + $0x50] sm:$0xff]
        %v4704 = vld [vmem:[%s4553 + $0x68] sm:$0xff]
        %v4705 = vld [vmem:[%s4553 + $0x70] sm:$0xff]
        %v4706 = vld [vmem:[%s4553 + $0x88] sm:$0xff]
        %v4707 = vld [vmem:[%s4553 + $0x90] sm:$0xff]
        %v4708 = vld [vmem:[%s4553 + $0xa8] sm:$0xff]
        %v4709 = vld [vmem:[%s4553 + $0xb0] sm:$0xff]
        %v4710 = vld [vmem:[%s4553 + $0xc8] sm:$0xff]
        %v4711 = vld [vmem:[%s4553 + $0xd0] sm:$0xff]
        %v4712 = vld [vmem:[%s4553 + $0xe8] sm:$0xff]
        %v4713 = vld [vmem:[%s4553 + $0xf0] sm:$0xff]
        %v4714 = vmul.f32 %v4698, %v2136
        %v4715 = vmul.f32 %v4699, %v2136
        %v4716 = vmul.f32 %v4700, %v2136
        %v4717 = vmul.f32 %v4701, %v2136
        %v4718 = vmul.f32 %v4702, %v2136
        %v4719 = vmul.f32 %v4703, %v2136
        %v4720 = vmul.f32 %v4704, %v2136
        %v4721 = vmul.f32 %v4705, %v2136
        %v4722 = vmul.f32 %v4706, %v2136
        %v4723 = vmul.f32 %v4707, %v2136
        %v4724 = vmul.f32 %v4708, %v2136
        %v4725 = vmul.f32 %v4709, %v2136
        %v4726 = vmul.f32 %v4710, %v2136
        %v4727 = vmul.f32 %v4711, %v2136
        %v4728 = vmul.f32 %v4712, %v2136
        %v4729 = vmul.f32 %v4713, %v2136
        %v4730 = vadd.f32 %v4682, %v4714
        %v4731 = vadd.f32 %v4683, %v4715
        %v4732 = vadd.f32 %v4684, %v4716
        %v4733 = vadd.f32 %v4685, %v4717
        %v4734 = vadd.f32 %v4686, %v4718
        %v4735 = vadd.f32 %v4687, %v4719
        %v4736 = vadd.f32 %v4688, %v4720
        %v4737 = vadd.f32 %v4689, %v4721
        %v4738 = vadd.f32 %v4690, %v4722
        %v4739 = vadd.f32 %v4691, %v4723
        %v4740 = vadd.f32 %v4692, %v4724
        %v4741 = vadd.f32 %v4693, %v4725
        %v4742 = vadd.f32 %v4694, %v4726
        %v4743 = vadd.f32 %v4695, %v4727
        %v4744 = vadd.f32 %v4696, %v4728
        %v4745 = vadd.f32 %v4697, %v4729
        %v4746 = vld [vmem:[%s4553 + $0x9] sm:$0xff]
        %v4747 = vld [vmem:[%s4553 + $0x11] sm:$0xff]
        %v4748 = vld [vmem:[%s4553 + $0x29] sm:$0xff]
        %v4749 = vld [vmem:[%s4553 + $0x31] sm:$0xff]
        %v4750 = vld [vmem:[%s4553 + $0x49] sm:$0xff]
        %v4751 = vld [vmem:[%s4553 + $0x51] sm:$0xff]
        %v4752 = vld [vmem:[%s4553 + $0x69] sm:$0xff]
        %v4753 = vld [vmem:[%s4553 + $0x71] sm:$0xff]
        %v4754 = vld [vmem:[%s4553 + $0x89] sm:$0xff]
        %v4755 = vld [vmem:[%s4553 + $0x91] sm:$0xff]
        %v4756 = vld [vmem:[%s4553 + $0xa9] sm:$0xff]
        %v4757 = vld [vmem:[%s4553 + $0xb1] sm:$0xff]
        %v4758 = vld [vmem:[%s4553 + $0xc9] sm:$0xff]
        %v4759 = vld [vmem:[%s4553 + $0xd1] sm:$0xff]
        %v4760 = vld [vmem:[%s4553 + $0xe9] sm:$0xff]
        %v4761 = vld [vmem:[%s4553 + $0xf1] sm:$0xff]
        %v4762 = vmul.f32 %v4746, %v2188
        %v4763 = vmul.f32 %v4747, %v2188
        %v4764 = vmul.f32 %v4748, %v2188
        %v4765 = vmul.f32 %v4749, %v2188
        %v4766 = vmul.f32 %v4750, %v2188
        %v4767 = vmul.f32 %v4751, %v2188
        %v4768 = vmul.f32 %v4752, %v2188
        %v4769 = vmul.f32 %v4753, %v2188
        %v4770 = vmul.f32 %v4754, %v2188
        %v4771 = vmul.f32 %v4755, %v2188
        %v4772 = vmul.f32 %v4756, %v2188
        %v4773 = vmul.f32 %v4757, %v2188
        %v4774 = vmul.f32 %v4758, %v2188
        %v4775 = vmul.f32 %v4759, %v2188
        %v4776 = vmul.f32 %v4760, %v2188
        %v4777 = vmul.f32 %v4761, %v2188
        %v4778 = vadd.f32 %v4730, %v4762
        %v4779 = vadd.f32 %v4731, %v4763
        %v4780 = vadd.f32 %v4732, %v4764
        %v4781 = vadd.f32 %v4733, %v4765
        %v4782 = vadd.f32 %v4734, %v4766
        %v4783 = vadd.f32 %v4735, %v4767
        %v4784 = vadd.f32 %v4736, %v4768
        %v4785 = vadd.f32 %v4737, %v4769
        %v4786 = vadd.f32 %v4738, %v4770
        %v4787 = vadd.f32 %v4739, %v4771
        %v4788 = vadd.f32 %v4740, %v4772
        %v4789 = vadd.f32 %v4741, %v4773
        %v4790 = vadd.f32 %v4742, %v4774
        %v4791 = vadd.f32 %v4743, %v4775
        %v4792 = vadd.f32 %v4744, %v4776
        %v4793 = vadd.f32 %v4745, %v4777
        %v4794 = vld [vmem:[%s4553 + $0xa] sm:$0xff]
        %v4795 = vld [vmem:[%s4553 + $0x12] sm:$0xff]
        %v4796 = vld [vmem:[%s4553 + $0x2a] sm:$0xff]
        %v4797 = vld [vmem:[%s4553 + $0x32] sm:$0xff]
        %v4798 = vld [vmem:[%s4553 + $0x4a] sm:$0xff]
        %v4799 = vld [vmem:[%s4553 + $0x52] sm:$0xff]
        %v4800 = vld [vmem:[%s4553 + $0x6a] sm:$0xff]
        %v4801 = vld [vmem:[%s4553 + $0x72] sm:$0xff]
        %v4802 = vld [vmem:[%s4553 + $0x8a] sm:$0xff]
        %v4803 = vld [vmem:[%s4553 + $0x92] sm:$0xff]
        %v4804 = vld [vmem:[%s4553 + $0xaa] sm:$0xff]
        %v4805 = vld [vmem:[%s4553 + $0xb2] sm:$0xff]
        %v4806 = vld [vmem:[%s4553 + $0xca] sm:$0xff]
        %v4807 = vld [vmem:[%s4553 + $0xd2] sm:$0xff]
        %v4808 = vld [vmem:[%s4553 + $0xea] sm:$0xff]
        %v4809 = vld [vmem:[%s4553 + $0xf2] sm:$0xff]
        %v4810 = vmul.f32 %v4794, %v2240
        %v4811 = vmul.f32 %v4795, %v2240
        %v4812 = vmul.f32 %v4796, %v2240
        %v4813 = vmul.f32 %v4797, %v2240
        %v4814 = vmul.f32 %v4798, %v2240
        %v4815 = vmul.f32 %v4799, %v2240
        %v4816 = vmul.f32 %v4800, %v2240
        %v4817 = vmul.f32 %v4801, %v2240
        %v4818 = vmul.f32 %v4802, %v2240
        %v4819 = vmul.f32 %v4803, %v2240
        %v4820 = vmul.f32 %v4804, %v2240
        %v4821 = vmul.f32 %v4805, %v2240
        %v4822 = vmul.f32 %v4806, %v2240
        %v4823 = vmul.f32 %v4807, %v2240
        %v4824 = vmul.f32 %v4808, %v2240
        %v4825 = vmul.f32 %v4809, %v2240
        %v4826 = vadd.f32 %v4778, %v4810
        %v4827 = vadd.f32 %v4779, %v4811
        %v4828 = vadd.f32 %v4780, %v4812
        %v4829 = vadd.f32 %v4781, %v4813
        %v4830 = vadd.f32 %v4782, %v4814
        %v4831 = vadd.f32 %v4783, %v4815
        %v4832 = vadd.f32 %v4784, %v4816
        %v4833 = vadd.f32 %v4785, %v4817
        %v4834 = vadd.f32 %v4786, %v4818
        %v4835 = vadd.f32 %v4787, %v4819
        %v4836 = vadd.f32 %v4788, %v4820
        %v4837 = vadd.f32 %v4789, %v4821
        %v4838 = vadd.f32 %v4790, %v4822
        %v4839 = vadd.f32 %v4791, %v4823
        %v4840 = vadd.f32 %v4792, %v4824
        %v4841 = vadd.f32 %v4793, %v4825
        %v4842 = vld [vmem:[%s4553 + $0xb] sm:$0xff]
        %v4843 = vld [vmem:[%s4553 + $0x13] sm:$0xff]
        %v4844 = vld [vmem:[%s4553 + $0x2b] sm:$0xff]
        %v4845 = vld [vmem:[%s4553 + $0x33] sm:$0xff]
        %v4846 = vld [vmem:[%s4553 + $0x4b] sm:$0xff]
        %v4847 = vld [vmem:[%s4553 + $0x53] sm:$0xff]
        %v4848 = vld [vmem:[%s4553 + $0x6b] sm:$0xff]
        %v4849 = vld [vmem:[%s4553 + $0x73] sm:$0xff]
        %v4850 = vld [vmem:[%s4553 + $0x8b] sm:$0xff]
        %v4851 = vld [vmem:[%s4553 + $0x93] sm:$0xff]
        %v4852 = vld [vmem:[%s4553 + $0xab] sm:$0xff]
        %v4853 = vld [vmem:[%s4553 + $0xb3] sm:$0xff]
        %v4854 = vld [vmem:[%s4553 + $0xcb] sm:$0xff]
        %v4855 = vld [vmem:[%s4553 + $0xd3] sm:$0xff]
        %v4856 = vld [vmem:[%s4553 + $0xeb] sm:$0xff]
        %v4857 = vld [vmem:[%s4553 + $0xf3] sm:$0xff]
        %v4858 = vmul.f32 %v4842, %v2292
        %v4859 = vmul.f32 %v4843, %v2292
        %v4860 = vmul.f32 %v4844, %v2292
        %v4861 = vmul.f32 %v4845, %v2292
        %v4862 = vmul.f32 %v4846, %v2292
        %v4863 = vmul.f32 %v4847, %v2292
        %v4864 = vmul.f32 %v4848, %v2292
        %v4865 = vmul.f32 %v4849, %v2292
        %v4866 = vmul.f32 %v4850, %v2292
        %v4867 = vmul.f32 %v4851, %v2292
        %v4868 = vmul.f32 %v4852, %v2292
        %v4869 = vmul.f32 %v4853, %v2292
        %v4870 = vmul.f32 %v4854, %v2292
        %v4871 = vmul.f32 %v4855, %v2292
        %v4872 = vmul.f32 %v4856, %v2292
        %v4873 = vmul.f32 %v4857, %v2292
        %v4874 = vadd.f32 %v4826, %v4858
        %v4875 = vadd.f32 %v4827, %v4859
        %v4876 = vadd.f32 %v4828, %v4860
        %v4877 = vadd.f32 %v4829, %v4861
        %v4878 = vadd.f32 %v4830, %v4862
        %v4879 = vadd.f32 %v4831, %v4863
        %v4880 = vadd.f32 %v4832, %v4864
        %v4881 = vadd.f32 %v4833, %v4865
        %v4882 = vadd.f32 %v4834, %v4866
        %v4883 = vadd.f32 %v4835, %v4867
        %v4884 = vadd.f32 %v4836, %v4868
        %v4885 = vadd.f32 %v4837, %v4869
        %v4886 = vadd.f32 %v4838, %v4870
        %v4887 = vadd.f32 %v4839, %v4871
        %v4888 = vadd.f32 %v4840, %v4872
        %v4889 = vadd.f32 %v4841, %v4873
        %s4890 = scalar_lea.vmem [#allocation2], 416
        %v4891 = vld [vmem:[%s4890 + $0x5] sm:$0xff]
        %v4892 = vld [vmem:[%s4890 + $0xd] sm:$0xff]
        %v4893 = vld [vmem:[%s4890 + $0x25] sm:$0xff]
        %v4894 = vld [vmem:[%s4890 + $0x2d] sm:$0xff]
        %v4895 = vld [vmem:[%s4890 + $0x45] sm:$0xff]
        %v4896 = vld [vmem:[%s4890 + $0x4d] sm:$0xff]
        %v4897 = vld [vmem:[%s4890 + $0x65] sm:$0xff]
        %v4898 = vld [vmem:[%s4890 + $0x6d] sm:$0xff]
        %v4899 = vld [vmem:[%s4890 + $0x85] sm:$0xff]
        %v4900 = vld [vmem:[%s4890 + $0x8d] sm:$0xff]
        %v4901 = vld [vmem:[%s4890 + $0xa5] sm:$0xff]
        %v4902 = vld [vmem:[%s4890 + $0xad] sm:$0xff]
        %v4903 = vld [vmem:[%s4890 + $0xc5] sm:$0xff]
        %v4904 = vld [vmem:[%s4890 + $0xcd] sm:$0xff]
        %v4905 = vld [vmem:[%s4890 + $0xe5] sm:$0xff]
        %v4906 = vld [vmem:[%s4890 + $0xed] sm:$0xff]
        %v4907 = vmul.f32 %v4891, %v2345
        %v4908 = vmul.f32 %v4892, %v2345
        %v4909 = vmul.f32 %v4893, %v2345
        %v4910 = vmul.f32 %v4894, %v2345
        %v4911 = vmul.f32 %v4895, %v2345
        %v4912 = vmul.f32 %v4896, %v2345
        %v4913 = vmul.f32 %v4897, %v2345
        %v4914 = vmul.f32 %v4898, %v2345
        %v4915 = vmul.f32 %v4899, %v2345
        %v4916 = vmul.f32 %v4900, %v2345
        %v4917 = vmul.f32 %v4901, %v2345
        %v4918 = vmul.f32 %v4902, %v2345
        %v4919 = vmul.f32 %v4903, %v2345
        %v4920 = vmul.f32 %v4904, %v2345
        %v4921 = vmul.f32 %v4905, %v2345
        %v4922 = vmul.f32 %v4906, %v2345
        %v4923 = vadd.f32 %v4874, %v4907
        %v4924 = vadd.f32 %v4875, %v4908
        %v4925 = vadd.f32 %v4876, %v4909
        %v4926 = vadd.f32 %v4877, %v4910
        %v4927 = vadd.f32 %v4878, %v4911
        %v4928 = vadd.f32 %v4879, %v4912
        %v4929 = vadd.f32 %v4880, %v4913
        %v4930 = vadd.f32 %v4881, %v4914
        %v4931 = vadd.f32 %v4882, %v4915
        %v4932 = vadd.f32 %v4883, %v4916
        %v4933 = vadd.f32 %v4884, %v4917
        %v4934 = vadd.f32 %v4885, %v4918
        %v4935 = vadd.f32 %v4886, %v4919
        %v4936 = vadd.f32 %v4887, %v4920
        %v4937 = vadd.f32 %v4888, %v4921
        %v4938 = vadd.f32 %v4889, %v4922
        %v4939 = vld [vmem:[%s4890 + $0x6] sm:$0xff]
        %v4940 = vld [vmem:[%s4890 + $0xe] sm:$0xff]
        %v4941 = vld [vmem:[%s4890 + $0x26] sm:$0xff]
        %v4942 = vld [vmem:[%s4890 + $0x2e] sm:$0xff]
        %v4943 = vld [vmem:[%s4890 + $0x46] sm:$0xff]
        %v4944 = vld [vmem:[%s4890 + $0x4e] sm:$0xff]
        %v4945 = vld [vmem:[%s4890 + $0x66] sm:$0xff]
        %v4946 = vld [vmem:[%s4890 + $0x6e] sm:$0xff]
        %v4947 = vld [vmem:[%s4890 + $0x86] sm:$0xff]
        %v4948 = vld [vmem:[%s4890 + $0x8e] sm:$0xff]
        %v4949 = vld [vmem:[%s4890 + $0xa6] sm:$0xff]
        %v4950 = vld [vmem:[%s4890 + $0xae] sm:$0xff]
        %v4951 = vld [vmem:[%s4890 + $0xc6] sm:$0xff]
        %v4952 = vld [vmem:[%s4890 + $0xce] sm:$0xff]
        %v4953 = vld [vmem:[%s4890 + $0xe6] sm:$0xff]
        %v4954 = vld [vmem:[%s4890 + $0xee] sm:$0xff]
        %v4955 = vmul.f32 %v4939, %v2397
        %v4956 = vmul.f32 %v4940, %v2397
        %v4957 = vmul.f32 %v4941, %v2397
        %v4958 = vmul.f32 %v4942, %v2397
        %v4959 = vmul.f32 %v4943, %v2397
        %v4960 = vmul.f32 %v4944, %v2397
        %v4961 = vmul.f32 %v4945, %v2397
        %v4962 = vmul.f32 %v4946, %v2397
        %v4963 = vmul.f32 %v4947, %v2397
        %v4964 = vmul.f32 %v4948, %v2397
        %v4965 = vmul.f32 %v4949, %v2397
        %v4966 = vmul.f32 %v4950, %v2397
        %v4967 = vmul.f32 %v4951, %v2397
        %v4968 = vmul.f32 %v4952, %v2397
        %v4969 = vmul.f32 %v4953, %v2397
        %v4970 = vmul.f32 %v4954, %v2397
        %v4971 = vadd.f32 %v4923, %v4955
        %v4972 = vadd.f32 %v4924, %v4956
        %v4973 = vadd.f32 %v4925, %v4957
        %v4974 = vadd.f32 %v4926, %v4958
        %v4975 = vadd.f32 %v4927, %v4959
        %v4976 = vadd.f32 %v4928, %v4960
        %v4977 = vadd.f32 %v4929, %v4961
        %v4978 = vadd.f32 %v4930, %v4962
        %v4979 = vadd.f32 %v4931, %v4963
        %v4980 = vadd.f32 %v4932, %v4964
        %v4981 = vadd.f32 %v4933, %v4965
        %v4982 = vadd.f32 %v4934, %v4966
        %v4983 = vadd.f32 %v4935, %v4967
        %v4984 = vadd.f32 %v4936, %v4968
        %v4985 = vadd.f32 %v4937, %v4969
        %v4986 = vadd.f32 %v4938, %v4970
        %v4987 = vld [vmem:[%s4890 + $0x7] sm:$0xff]
        %v4988 = vld [vmem:[%s4890 + $0xf] sm:$0xff]
        %v4989 = vld [vmem:[%s4890 + $0x27] sm:$0xff]
        %v4990 = vld [vmem:[%s4890 + $0x2f] sm:$0xff]
        %v4991 = vld [vmem:[%s4890 + $0x47] sm:$0xff]
        %v4992 = vld [vmem:[%s4890 + $0x4f] sm:$0xff]
        %v4993 = vld [vmem:[%s4890 + $0x67] sm:$0xff]
        %v4994 = vld [vmem:[%s4890 + $0x6f] sm:$0xff]
        %v4995 = vld [vmem:[%s4890 + $0x87] sm:$0xff]
        %v4996 = vld [vmem:[%s4890 + $0x8f] sm:$0xff]
        %v4997 = vld [vmem:[%s4890 + $0xa7] sm:$0xff]
        %v4998 = vld [vmem:[%s4890 + $0xaf] sm:$0xff]
        %v4999 = vld [vmem:[%s4890 + $0xc7] sm:$0xff]
        %v5000 = vld [vmem:[%s4890 + $0xcf] sm:$0xff]
        %v5001 = vld [vmem:[%s4890 + $0xe7] sm:$0xff]
        %v5002 = vld [vmem:[%s4890 + $0xef] sm:$0xff]
        %v5003 = vmul.f32 %v4987, %v2449
        %v5004 = vmul.f32 %v4988, %v2449
        %v5005 = vmul.f32 %v4989, %v2449
        %v5006 = vmul.f32 %v4990, %v2449
        %v5007 = vmul.f32 %v4991, %v2449
        %v5008 = vmul.f32 %v4992, %v2449
        %v5009 = vmul.f32 %v4993, %v2449
        %v5010 = vmul.f32 %v4994, %v2449
        %v5011 = vmul.f32 %v4995, %v2449
        %v5012 = vmul.f32 %v4996, %v2449
        %v5013 = vmul.f32 %v4997, %v2449
        %v5014 = vmul.f32 %v4998, %v2449
        %v5015 = vmul.f32 %v4999, %v2449
        %v5016 = vmul.f32 %v5000, %v2449
        %v5017 = vmul.f32 %v5001, %v2449
        %v5018 = vmul.f32 %v5002, %v2449
        %v5019 = vadd.f32 %v4971, %v5003
        %v5020 = vadd.f32 %v4972, %v5004
        %v5021 = vadd.f32 %v4973, %v5005
        %v5022 = vadd.f32 %v4974, %v5006
        %v5023 = vadd.f32 %v4975, %v5007
        %v5024 = vadd.f32 %v4976, %v5008
        %v5025 = vadd.f32 %v4977, %v5009
        %v5026 = vadd.f32 %v4978, %v5010
        %v5027 = vadd.f32 %v4979, %v5011
        %v5028 = vadd.f32 %v4980, %v5012
        %v5029 = vadd.f32 %v4981, %v5013
        %v5030 = vadd.f32 %v4982, %v5014
        %v5031 = vadd.f32 %v4983, %v5015
        %v5032 = vadd.f32 %v4984, %v5016
        %v5033 = vadd.f32 %v4985, %v5017
        %v5034 = vadd.f32 %v4986, %v5018
        %v5035 = vld [vmem:[%s4890 + $0x8] sm:$0xff]
        %v5036 = vld [vmem:[%s4890 + $0x10] sm:$0xff]
        %v5037 = vld [vmem:[%s4890 + $0x28] sm:$0xff]
        %v5038 = vld [vmem:[%s4890 + $0x30] sm:$0xff]
        %v5039 = vld [vmem:[%s4890 + $0x48] sm:$0xff]
        %v5040 = vld [vmem:[%s4890 + $0x50] sm:$0xff]
        %v5041 = vld [vmem:[%s4890 + $0x68] sm:$0xff]
        %v5042 = vld [vmem:[%s4890 + $0x70] sm:$0xff]
        %v5043 = vld [vmem:[%s4890 + $0x88] sm:$0xff]
        %v5044 = vld [vmem:[%s4890 + $0x90] sm:$0xff]
        %v5045 = vld [vmem:[%s4890 + $0xa8] sm:$0xff]
        %v5046 = vld [vmem:[%s4890 + $0xb0] sm:$0xff]
        %v5047 = vld [vmem:[%s4890 + $0xc8] sm:$0xff]
        %v5048 = vld [vmem:[%s4890 + $0xd0] sm:$0xff]
        %v5049 = vld [vmem:[%s4890 + $0xe8] sm:$0xff]
        %v5050 = vld [vmem:[%s4890 + $0xf0] sm:$0xff]
        %v5051 = vmul.f32 %v5035, %v2501
        %v5052 = vmul.f32 %v5036, %v2501
        %v5053 = vmul.f32 %v5037, %v2501
        %v5054 = vmul.f32 %v5038, %v2501
        %v5055 = vmul.f32 %v5039, %v2501
        %v5056 = vmul.f32 %v5040, %v2501
        %v5057 = vmul.f32 %v5041, %v2501
        %v5058 = vmul.f32 %v5042, %v2501
        %v5059 = vmul.f32 %v5043, %v2501
        %v5060 = vmul.f32 %v5044, %v2501
        %v5061 = vmul.f32 %v5045, %v2501
        %v5062 = vmul.f32 %v5046, %v2501
        %v5063 = vmul.f32 %v5047, %v2501
        %v5064 = vmul.f32 %v5048, %v2501
        %v5065 = vmul.f32 %v5049, %v2501
        %v5066 = vmul.f32 %v5050, %v2501
        %v5067 = vadd.f32 %v5019, %v5051
        %v5068 = vadd.f32 %v5020, %v5052
        %v5069 = vadd.f32 %v5021, %v5053
        %v5070 = vadd.f32 %v5022, %v5054
        %v5071 = vadd.f32 %v5023, %v5055
        %v5072 = vadd.f32 %v5024, %v5056
        %v5073 = vadd.f32 %v5025, %v5057
        %v5074 = vadd.f32 %v5026, %v5058
        %v5075 = vadd.f32 %v5027, %v5059
        %v5076 = vadd.f32 %v5028, %v5060
        %v5077 = vadd.f32 %v5029, %v5061
        %v5078 = vadd.f32 %v5030, %v5062
        %v5079 = vadd.f32 %v5031, %v5063
        %v5080 = vadd.f32 %v5032, %v5064
        %v5081 = vadd.f32 %v5033, %v5065
        %v5082 = vadd.f32 %v5034, %v5066
        %v5083 = vld [vmem:[%s4890 + $0x9] sm:$0xff]
        %v5084 = vld [vmem:[%s4890 + $0x11] sm:$0xff]
        %v5085 = vld [vmem:[%s4890 + $0x29] sm:$0xff]
        %v5086 = vld [vmem:[%s4890 + $0x31] sm:$0xff]
        %v5087 = vld [vmem:[%s4890 + $0x49] sm:$0xff]
        %v5088 = vld [vmem:[%s4890 + $0x51] sm:$0xff]
        %v5089 = vld [vmem:[%s4890 + $0x69] sm:$0xff]
        %v5090 = vld [vmem:[%s4890 + $0x71] sm:$0xff]
        %v5091 = vld [vmem:[%s4890 + $0x89] sm:$0xff]
        %v5092 = vld [vmem:[%s4890 + $0x91] sm:$0xff]
        %v5093 = vld [vmem:[%s4890 + $0xa9] sm:$0xff]
        %v5094 = vld [vmem:[%s4890 + $0xb1] sm:$0xff]
        %v5095 = vld [vmem:[%s4890 + $0xc9] sm:$0xff]
        %v5096 = vld [vmem:[%s4890 + $0xd1] sm:$0xff]
        %v5097 = vld [vmem:[%s4890 + $0xe9] sm:$0xff]
        %v5098 = vld [vmem:[%s4890 + $0xf1] sm:$0xff]
        %v5099 = vmul.f32 %v5083, %v2553
        %v5100 = vmul.f32 %v5084, %v2553
        %v5101 = vmul.f32 %v5085, %v2553
        %v5102 = vmul.f32 %v5086, %v2553
        %v5103 = vmul.f32 %v5087, %v2553
        %v5104 = vmul.f32 %v5088, %v2553
        %v5105 = vmul.f32 %v5089, %v2553
        %v5106 = vmul.f32 %v5090, %v2553
        %v5107 = vmul.f32 %v5091, %v2553
        %v5108 = vmul.f32 %v5092, %v2553
        %v5109 = vmul.f32 %v5093, %v2553
        %v5110 = vmul.f32 %v5094, %v2553
        %v5111 = vmul.f32 %v5095, %v2553
        %v5112 = vmul.f32 %v5096, %v2553
        %v5113 = vmul.f32 %v5097, %v2553
        %v5114 = vmul.f32 %v5098, %v2553
        %v5115 = vadd.f32 %v5067, %v5099
        %v5116 = vadd.f32 %v5068, %v5100
        %v5117 = vadd.f32 %v5069, %v5101
        %v5118 = vadd.f32 %v5070, %v5102
        %v5119 = vadd.f32 %v5071, %v5103
        %v5120 = vadd.f32 %v5072, %v5104
        %v5121 = vadd.f32 %v5073, %v5105
        %v5122 = vadd.f32 %v5074, %v5106
        %v5123 = vadd.f32 %v5075, %v5107
        %v5124 = vadd.f32 %v5076, %v5108
        %v5125 = vadd.f32 %v5077, %v5109
        %v5126 = vadd.f32 %v5078, %v5110
        %v5127 = vadd.f32 %v5079, %v5111
        %v5128 = vadd.f32 %v5080, %v5112
        %v5129 = vadd.f32 %v5081, %v5113
        %v5130 = vadd.f32 %v5082, %v5114
        %v5131 = vld [vmem:[%s4890 + $0xa] sm:$0xff]
        %v5132 = vld [vmem:[%s4890 + $0x12] sm:$0xff]
        %v5133 = vld [vmem:[%s4890 + $0x2a] sm:$0xff]
        %v5134 = vld [vmem:[%s4890 + $0x32] sm:$0xff]
        %v5135 = vld [vmem:[%s4890 + $0x4a] sm:$0xff]
        %v5136 = vld [vmem:[%s4890 + $0x52] sm:$0xff]
        %v5137 = vld [vmem:[%s4890 + $0x6a] sm:$0xff]
        %v5138 = vld [vmem:[%s4890 + $0x72] sm:$0xff]
        %v5139 = vld [vmem:[%s4890 + $0x8a] sm:$0xff]
        %v5140 = vld [vmem:[%s4890 + $0x92] sm:$0xff]
        %v5141 = vld [vmem:[%s4890 + $0xaa] sm:$0xff]
        %v5142 = vld [vmem:[%s4890 + $0xb2] sm:$0xff]
        %v5143 = vld [vmem:[%s4890 + $0xca] sm:$0xff]
        %v5144 = vld [vmem:[%s4890 + $0xd2] sm:$0xff]
        %v5145 = vld [vmem:[%s4890 + $0xea] sm:$0xff]
        %v5146 = vld [vmem:[%s4890 + $0xf2] sm:$0xff]
        %v5147 = vmul.f32 %v5131, %v2605
        %v5148 = vmul.f32 %v5132, %v2605
        %v5149 = vmul.f32 %v5133, %v2605
        %v5150 = vmul.f32 %v5134, %v2605
        %v5151 = vmul.f32 %v5135, %v2605
        %v5152 = vmul.f32 %v5136, %v2605
        %v5153 = vmul.f32 %v5137, %v2605
        %v5154 = vmul.f32 %v5138, %v2605
        %v5155 = vmul.f32 %v5139, %v2605
        %v5156 = vmul.f32 %v5140, %v2605
        %v5157 = vmul.f32 %v5141, %v2605
        %v5158 = vmul.f32 %v5142, %v2605
        %v5159 = vmul.f32 %v5143, %v2605
        %v5160 = vmul.f32 %v5144, %v2605
        %v5161 = vmul.f32 %v5145, %v2605
        %v5162 = vmul.f32 %v5146, %v2605
        %v5163 = vadd.f32 %v5115, %v5147
        %v5164 = vadd.f32 %v5116, %v5148
        %v5165 = vadd.f32 %v5117, %v5149
        %v5166 = vadd.f32 %v5118, %v5150
        %v5167 = vadd.f32 %v5119, %v5151
        %v5168 = vadd.f32 %v5120, %v5152
        %v5169 = vadd.f32 %v5121, %v5153
        %v5170 = vadd.f32 %v5122, %v5154
        %v5171 = vadd.f32 %v5123, %v5155
        %v5172 = vadd.f32 %v5124, %v5156
        %v5173 = vadd.f32 %v5125, %v5157
        %v5174 = vadd.f32 %v5126, %v5158
        %v5175 = vadd.f32 %v5127, %v5159
        %v5176 = vadd.f32 %v5128, %v5160
        %v5177 = vadd.f32 %v5129, %v5161
        %v5178 = vadd.f32 %v5130, %v5162
        %v5179 = vld [vmem:[%s4890 + $0xb] sm:$0xff]
        %v5180 = vld [vmem:[%s4890 + $0x13] sm:$0xff]
        %v5181 = vld [vmem:[%s4890 + $0x2b] sm:$0xff]
        %v5182 = vld [vmem:[%s4890 + $0x33] sm:$0xff]
        %v5183 = vld [vmem:[%s4890 + $0x4b] sm:$0xff]
        %v5184 = vld [vmem:[%s4890 + $0x53] sm:$0xff]
        %v5185 = vld [vmem:[%s4890 + $0x6b] sm:$0xff]
        %v5186 = vld [vmem:[%s4890 + $0x73] sm:$0xff]
        %v5187 = vld [vmem:[%s4890 + $0x8b] sm:$0xff]
        %v5188 = vld [vmem:[%s4890 + $0x93] sm:$0xff]
        %v5189 = vld [vmem:[%s4890 + $0xab] sm:$0xff]
        %v5190 = vld [vmem:[%s4890 + $0xb3] sm:$0xff]
        %v5191 = vld [vmem:[%s4890 + $0xcb] sm:$0xff]
        %v5192 = vld [vmem:[%s4890 + $0xd3] sm:$0xff]
        %v5193 = vld [vmem:[%s4890 + $0xeb] sm:$0xff]
        %v5194 = vld [vmem:[%s4890 + $0xf3] sm:$0xff]
        %v5195 = vmul.f32 %v5179, %v2657
        %v5196 = vmul.f32 %v5180, %v2657
        %v5197 = vmul.f32 %v5181, %v2657
        %v5198 = vmul.f32 %v5182, %v2657
        %v5199 = vmul.f32 %v5183, %v2657
        %v5200 = vmul.f32 %v5184, %v2657
        %v5201 = vmul.f32 %v5185, %v2657
        %v5202 = vmul.f32 %v5186, %v2657
        %v5203 = vmul.f32 %v5187, %v2657
        %v5204 = vmul.f32 %v5188, %v2657
        %v5205 = vmul.f32 %v5189, %v2657
        %v5206 = vmul.f32 %v5190, %v2657
        %v5207 = vmul.f32 %v5191, %v2657
        %v5208 = vmul.f32 %v5192, %v2657
        %v5209 = vmul.f32 %v5193, %v2657
        %v5210 = vmul.f32 %v5194, %v2657
        %v5211 = vadd.f32 %v5163, %v5195
        %v5212 = vadd.f32 %v5164, %v5196
        %v5213 = vadd.f32 %v5165, %v5197
        %v5214 = vadd.f32 %v5166, %v5198
        %v5215 = vadd.f32 %v5167, %v5199
        %v5216 = vadd.f32 %v5168, %v5200
        %v5217 = vadd.f32 %v5169, %v5201
        %v5218 = vadd.f32 %v5170, %v5202
        %v5219 = vadd.f32 %v5171, %v5203
        %v5220 = vadd.f32 %v5172, %v5204
        %v5221 = vadd.f32 %v5173, %v5205
        %v5222 = vadd.f32 %v5174, %v5206
        %v5223 = vadd.f32 %v5175, %v5207
        %v5224 = vadd.f32 %v5176, %v5208
        %v5225 = vadd.f32 %v5177, %v5209
        %v5226 = vadd.f32 %v5178, %v5210
        %s5227 = scalar_lea.vmem [#allocation2], 448
        %v5228 = vld [vmem:[%s5227 + $0x5] sm:$0xff]
        %v5229 = vld [vmem:[%s5227 + $0xd] sm:$0xff]
        %v5230 = vld [vmem:[%s5227 + $0x25] sm:$0xff]
        %v5231 = vld [vmem:[%s5227 + $0x2d] sm:$0xff]
        %v5232 = vld [vmem:[%s5227 + $0x45] sm:$0xff]
        %v5233 = vld [vmem:[%s5227 + $0x4d] sm:$0xff]
        %v5234 = vld [vmem:[%s5227 + $0x65] sm:$0xff]
        %v5235 = vld [vmem:[%s5227 + $0x6d] sm:$0xff]
        %v5236 = vld [vmem:[%s5227 + $0x85] sm:$0xff]
        %v5237 = vld [vmem:[%s5227 + $0x8d] sm:$0xff]
        %v5238 = vld [vmem:[%s5227 + $0xa5] sm:$0xff]
        %v5239 = vld [vmem:[%s5227 + $0xad] sm:$0xff]
        %v5240 = vld [vmem:[%s5227 + $0xc5] sm:$0xff]
        %v5241 = vld [vmem:[%s5227 + $0xcd] sm:$0xff]
        %v5242 = vld [vmem:[%s5227 + $0xe5] sm:$0xff]
        %v5243 = vld [vmem:[%s5227 + $0xed] sm:$0xff]
        %v5244 = vmul.f32 %v5228, %v2710
        %v5245 = vmul.f32 %v5229, %v2710
        %v5246 = vmul.f32 %v5230, %v2710
        %v5247 = vmul.f32 %v5231, %v2710
        %v5248 = vmul.f32 %v5232, %v2710
        %v5249 = vmul.f32 %v5233, %v2710
        %v5250 = vmul.f32 %v5234, %v2710
        %v5251 = vmul.f32 %v5235, %v2710
        %v5252 = vmul.f32 %v5236, %v2710
        %v5253 = vmul.f32 %v5237, %v2710
        %v5254 = vmul.f32 %v5238, %v2710
        %v5255 = vmul.f32 %v5239, %v2710
        %v5256 = vmul.f32 %v5240, %v2710
        %v5257 = vmul.f32 %v5241, %v2710
        %v5258 = vmul.f32 %v5242, %v2710
        %v5259 = vmul.f32 %v5243, %v2710
        %v5260 = vadd.f32 %v5211, %v5244
        %v5261 = vadd.f32 %v5212, %v5245
        %v5262 = vadd.f32 %v5213, %v5246
        %v5263 = vadd.f32 %v5214, %v5247
        %v5264 = vadd.f32 %v5215, %v5248
        %v5265 = vadd.f32 %v5216, %v5249
        %v5266 = vadd.f32 %v5217, %v5250
        %v5267 = vadd.f32 %v5218, %v5251
        %v5268 = vadd.f32 %v5219, %v5252
        %v5269 = vadd.f32 %v5220, %v5253
        %v5270 = vadd.f32 %v5221, %v5254
        %v5271 = vadd.f32 %v5222, %v5255
        %v5272 = vadd.f32 %v5223, %v5256
        %v5273 = vadd.f32 %v5224, %v5257
        %v5274 = vadd.f32 %v5225, %v5258
        %v5275 = vadd.f32 %v5226, %v5259
        %v5276 = vld [vmem:[%s5227 + $0x6] sm:$0xff]
        %v5277 = vld [vmem:[%s5227 + $0xe] sm:$0xff]
        %v5278 = vld [vmem:[%s5227 + $0x26] sm:$0xff]
        %v5279 = vld [vmem:[%s5227 + $0x2e] sm:$0xff]
        %v5280 = vld [vmem:[%s5227 + $0x46] sm:$0xff]
        %v5281 = vld [vmem:[%s5227 + $0x4e] sm:$0xff]
        %v5282 = vld [vmem:[%s5227 + $0x66] sm:$0xff]
        %v5283 = vld [vmem:[%s5227 + $0x6e] sm:$0xff]
        %v5284 = vld [vmem:[%s5227 + $0x86] sm:$0xff]
        %v5285 = vld [vmem:[%s5227 + $0x8e] sm:$0xff]
        %v5286 = vld [vmem:[%s5227 + $0xa6] sm:$0xff]
        %v5287 = vld [vmem:[%s5227 + $0xae] sm:$0xff]
        %v5288 = vld [vmem:[%s5227 + $0xc6] sm:$0xff]
        %v5289 = vld [vmem:[%s5227 + $0xce] sm:$0xff]
        %v5290 = vld [vmem:[%s5227 + $0xe6] sm:$0xff]
        %v5291 = vld [vmem:[%s5227 + $0xee] sm:$0xff]
        %v5292 = vmul.f32 %v5276, %v2762
        %v5293 = vmul.f32 %v5277, %v2762
        %v5294 = vmul.f32 %v5278, %v2762
        %v5295 = vmul.f32 %v5279, %v2762
        %v5296 = vmul.f32 %v5280, %v2762
        %v5297 = vmul.f32 %v5281, %v2762
        %v5298 = vmul.f32 %v5282, %v2762
        %v5299 = vmul.f32 %v5283, %v2762
        %v5300 = vmul.f32 %v5284, %v2762
        %v5301 = vmul.f32 %v5285, %v2762
        %v5302 = vmul.f32 %v5286, %v2762
        %v5303 = vmul.f32 %v5287, %v2762
        %v5304 = vmul.f32 %v5288, %v2762
        %v5305 = vmul.f32 %v5289, %v2762
        %v5306 = vmul.f32 %v5290, %v2762
        %v5307 = vmul.f32 %v5291, %v2762
        %v5308 = vadd.f32 %v5260, %v5292
        %v5309 = vadd.f32 %v5261, %v5293
        %v5310 = vadd.f32 %v5262, %v5294
        %v5311 = vadd.f32 %v5263, %v5295
        %v5312 = vadd.f32 %v5264, %v5296
        %v5313 = vadd.f32 %v5265, %v5297
        %v5314 = vadd.f32 %v5266, %v5298
        %v5315 = vadd.f32 %v5267, %v5299
        %v5316 = vadd.f32 %v5268, %v5300
        %v5317 = vadd.f32 %v5269, %v5301
        %v5318 = vadd.f32 %v5270, %v5302
        %v5319 = vadd.f32 %v5271, %v5303
        %v5320 = vadd.f32 %v5272, %v5304
        %v5321 = vadd.f32 %v5273, %v5305
        %v5322 = vadd.f32 %v5274, %v5306
        %v5323 = vadd.f32 %v5275, %v5307
        %v5324 = vld [vmem:[%s5227 + $0x7] sm:$0xff]
        %v5325 = vld [vmem:[%s5227 + $0xf] sm:$0xff]
        %v5326 = vld [vmem:[%s5227 + $0x27] sm:$0xff]
        %v5327 = vld [vmem:[%s5227 + $0x2f] sm:$0xff]
        %v5328 = vld [vmem:[%s5227 + $0x47] sm:$0xff]
        %v5329 = vld [vmem:[%s5227 + $0x4f] sm:$0xff]
        %v5330 = vld [vmem:[%s5227 + $0x67] sm:$0xff]
        %v5331 = vld [vmem:[%s5227 + $0x6f] sm:$0xff]
        %v5332 = vld [vmem:[%s5227 + $0x87] sm:$0xff]
        %v5333 = vld [vmem:[%s5227 + $0x8f] sm:$0xff]
        %v5334 = vld [vmem:[%s5227 + $0xa7] sm:$0xff]
        %v5335 = vld [vmem:[%s5227 + $0xaf] sm:$0xff]
        %v5336 = vld [vmem:[%s5227 + $0xc7] sm:$0xff]
        %v5337 = vld [vmem:[%s5227 + $0xcf] sm:$0xff]
        %v5338 = vld [vmem:[%s5227 + $0xe7] sm:$0xff]
        %v5339 = vld [vmem:[%s5227 + $0xef] sm:$0xff]
        %v5340 = vmul.f32 %v5324, %v2814
        %v5341 = vmul.f32 %v5325, %v2814
        %v5342 = vmul.f32 %v5326, %v2814
        %v5343 = vmul.f32 %v5327, %v2814
        %v5344 = vmul.f32 %v5328, %v2814
        %v5345 = vmul.f32 %v5329, %v2814
        %v5346 = vmul.f32 %v5330, %v2814
        %v5347 = vmul.f32 %v5331, %v2814
        %v5348 = vmul.f32 %v5332, %v2814
        %v5349 = vmul.f32 %v5333, %v2814
        %v5350 = vmul.f32 %v5334, %v2814
        %v5351 = vmul.f32 %v5335, %v2814
        %v5352 = vmul.f32 %v5336, %v2814
        %v5353 = vmul.f32 %v5337, %v2814
        %v5354 = vmul.f32 %v5338, %v2814
        %v5355 = vmul.f32 %v5339, %v2814
        %v5356 = vadd.f32 %v5308, %v5340
        %v5357 = vadd.f32 %v5309, %v5341
        %v5358 = vadd.f32 %v5310, %v5342
        %v5359 = vadd.f32 %v5311, %v5343
        %v5360 = vadd.f32 %v5312, %v5344
        %v5361 = vadd.f32 %v5313, %v5345
        %v5362 = vadd.f32 %v5314, %v5346
        %v5363 = vadd.f32 %v5315, %v5347
        %v5364 = vadd.f32 %v5316, %v5348
        %v5365 = vadd.f32 %v5317, %v5349
        %v5366 = vadd.f32 %v5318, %v5350
        %v5367 = vadd.f32 %v5319, %v5351
        %v5368 = vadd.f32 %v5320, %v5352
        %v5369 = vadd.f32 %v5321, %v5353
        %v5370 = vadd.f32 %v5322, %v5354
        %v5371 = vadd.f32 %v5323, %v5355
        %v5372 = vld [vmem:[%s5227 + $0x8] sm:$0xff]
        %v5373 = vld [vmem:[%s5227 + $0x10] sm:$0xff]
        %v5374 = vld [vmem:[%s5227 + $0x28] sm:$0xff]
        %v5375 = vld [vmem:[%s5227 + $0x30] sm:$0xff]
        %v5376 = vld [vmem:[%s5227 + $0x48] sm:$0xff]
        %v5377 = vld [vmem:[%s5227 + $0x50] sm:$0xff]
        %v5378 = vld [vmem:[%s5227 + $0x68] sm:$0xff]
        %v5379 = vld [vmem:[%s5227 + $0x70] sm:$0xff]
        %v5380 = vld [vmem:[%s5227 + $0x88] sm:$0xff]
        %v5381 = vld [vmem:[%s5227 + $0x90] sm:$0xff]
        %v5382 = vld [vmem:[%s5227 + $0xa8] sm:$0xff]
        %v5383 = vld [vmem:[%s5227 + $0xb0] sm:$0xff]
        %v5384 = vld [vmem:[%s5227 + $0xc8] sm:$0xff]
        %v5385 = vld [vmem:[%s5227 + $0xd0] sm:$0xff]
        %v5386 = vld [vmem:[%s5227 + $0xe8] sm:$0xff]
        %v5387 = vld [vmem:[%s5227 + $0xf0] sm:$0xff]
        %v5388 = vmul.f32 %v5372, %v2866
        %v5389 = vmul.f32 %v5373, %v2866
        %v5390 = vmul.f32 %v5374, %v2866
        %v5391 = vmul.f32 %v5375, %v2866
        %v5392 = vmul.f32 %v5376, %v2866
        %v5393 = vmul.f32 %v5377, %v2866
        %v5394 = vmul.f32 %v5378, %v2866
        %v5395 = vmul.f32 %v5379, %v2866
        %v5396 = vmul.f32 %v5380, %v2866
        %v5397 = vmul.f32 %v5381, %v2866
        %v5398 = vmul.f32 %v5382, %v2866
        %v5399 = vmul.f32 %v5383, %v2866
        %v5400 = vmul.f32 %v5384, %v2866
        %v5401 = vmul.f32 %v5385, %v2866
        %v5402 = vmul.f32 %v5386, %v2866
        %v5403 = vmul.f32 %v5387, %v2866
        %v5404 = vadd.f32 %v5356, %v5388
        %v5405 = vadd.f32 %v5357, %v5389
        %v5406 = vadd.f32 %v5358, %v5390
        %v5407 = vadd.f32 %v5359, %v5391
        %v5408 = vadd.f32 %v5360, %v5392
        %v5409 = vadd.f32 %v5361, %v5393
        %v5410 = vadd.f32 %v5362, %v5394
        %v5411 = vadd.f32 %v5363, %v5395
        %v5412 = vadd.f32 %v5364, %v5396
        %v5413 = vadd.f32 %v5365, %v5397
        %v5414 = vadd.f32 %v5366, %v5398
        %v5415 = vadd.f32 %v5367, %v5399
        %v5416 = vadd.f32 %v5368, %v5400
        %v5417 = vadd.f32 %v5369, %v5401
        %v5418 = vadd.f32 %v5370, %v5402
        %v5419 = vadd.f32 %v5371, %v5403
        %v5420 = vld [vmem:[%s5227 + $0x9] sm:$0xff]
        %v5421 = vld [vmem:[%s5227 + $0x11] sm:$0xff]
        %v5422 = vld [vmem:[%s5227 + $0x29] sm:$0xff]
        %v5423 = vld [vmem:[%s5227 + $0x31] sm:$0xff]
        %v5424 = vld [vmem:[%s5227 + $0x49] sm:$0xff]
        %v5425 = vld [vmem:[%s5227 + $0x51] sm:$0xff]
        %v5426 = vld [vmem:[%s5227 + $0x69] sm:$0xff]
        %v5427 = vld [vmem:[%s5227 + $0x71] sm:$0xff]
        %v5428 = vld [vmem:[%s5227 + $0x89] sm:$0xff]
        %v5429 = vld [vmem:[%s5227 + $0x91] sm:$0xff]
        %v5430 = vld [vmem:[%s5227 + $0xa9] sm:$0xff]
        %v5431 = vld [vmem:[%s5227 + $0xb1] sm:$0xff]
        %v5432 = vld [vmem:[%s5227 + $0xc9] sm:$0xff]
        %v5433 = vld [vmem:[%s5227 + $0xd1] sm:$0xff]
        %v5434 = vld [vmem:[%s5227 + $0xe9] sm:$0xff]
        %v5435 = vld [vmem:[%s5227 + $0xf1] sm:$0xff]
        %v5436 = vmul.f32 %v5420, %v2918
        %v5437 = vmul.f32 %v5421, %v2918
        %v5438 = vmul.f32 %v5422, %v2918
        %v5439 = vmul.f32 %v5423, %v2918
        %v5440 = vmul.f32 %v5424, %v2918
        %v5441 = vmul.f32 %v5425, %v2918
        %v5442 = vmul.f32 %v5426, %v2918
        %v5443 = vmul.f32 %v5427, %v2918
        %v5444 = vmul.f32 %v5428, %v2918
        %v5445 = vmul.f32 %v5429, %v2918
        %v5446 = vmul.f32 %v5430, %v2918
        %v5447 = vmul.f32 %v5431, %v2918
        %v5448 = vmul.f32 %v5432, %v2918
        %v5449 = vmul.f32 %v5433, %v2918
        %v5450 = vmul.f32 %v5434, %v2918
        %v5451 = vmul.f32 %v5435, %v2918
        %v5452 = vadd.f32 %v5404, %v5436
        %v5453 = vadd.f32 %v5405, %v5437
        %v5454 = vadd.f32 %v5406, %v5438
        %v5455 = vadd.f32 %v5407, %v5439
        %v5456 = vadd.f32 %v5408, %v5440
        %v5457 = vadd.f32 %v5409, %v5441
        %v5458 = vadd.f32 %v5410, %v5442
        %v5459 = vadd.f32 %v5411, %v5443
        %v5460 = vadd.f32 %v5412, %v5444
        %v5461 = vadd.f32 %v5413, %v5445
        %v5462 = vadd.f32 %v5414, %v5446
        %v5463 = vadd.f32 %v5415, %v5447
        %v5464 = vadd.f32 %v5416, %v5448
        %v5465 = vadd.f32 %v5417, %v5449
        %v5466 = vadd.f32 %v5418, %v5450
        %v5467 = vadd.f32 %v5419, %v5451
        %v5468 = vld [vmem:[%s5227 + $0xa] sm:$0xff]
        %v5469 = vld [vmem:[%s5227 + $0x12] sm:$0xff]
        %v5470 = vld [vmem:[%s5227 + $0x2a] sm:$0xff]
        %v5471 = vld [vmem:[%s5227 + $0x32] sm:$0xff]
        %v5472 = vld [vmem:[%s5227 + $0x4a] sm:$0xff]
        %v5473 = vld [vmem:[%s5227 + $0x52] sm:$0xff]
        %v5474 = vld [vmem:[%s5227 + $0x6a] sm:$0xff]
        %v5475 = vld [vmem:[%s5227 + $0x72] sm:$0xff]
        %v5476 = vld [vmem:[%s5227 + $0x8a] sm:$0xff]
        %v5477 = vld [vmem:[%s5227 + $0x92] sm:$0xff]
        %v5478 = vld [vmem:[%s5227 + $0xaa] sm:$0xff]
        %v5479 = vld [vmem:[%s5227 + $0xb2] sm:$0xff]
        %v5480 = vld [vmem:[%s5227 + $0xca] sm:$0xff]
        %v5481 = vld [vmem:[%s5227 + $0xd2] sm:$0xff]
        %v5482 = vld [vmem:[%s5227 + $0xea] sm:$0xff]
        %v5483 = vld [vmem:[%s5227 + $0xf2] sm:$0xff]
        %v5484 = vmul.f32 %v5468, %v2970
        %v5485 = vmul.f32 %v5469, %v2970
        %v5486 = vmul.f32 %v5470, %v2970
        %v5487 = vmul.f32 %v5471, %v2970
        %v5488 = vmul.f32 %v5472, %v2970
        %v5489 = vmul.f32 %v5473, %v2970
        %v5490 = vmul.f32 %v5474, %v2970
        %v5491 = vmul.f32 %v5475, %v2970
        %v5492 = vmul.f32 %v5476, %v2970
        %v5493 = vmul.f32 %v5477, %v2970
        %v5494 = vmul.f32 %v5478, %v2970
        %v5495 = vmul.f32 %v5479, %v2970
        %v5496 = vmul.f32 %v5480, %v2970
        %v5497 = vmul.f32 %v5481, %v2970
        %v5498 = vmul.f32 %v5482, %v2970
        %v5499 = vmul.f32 %v5483, %v2970
        %v5500 = vadd.f32 %v5452, %v5484
        %v5501 = vadd.f32 %v5453, %v5485
        %v5502 = vadd.f32 %v5454, %v5486
        %v5503 = vadd.f32 %v5455, %v5487
        %v5504 = vadd.f32 %v5456, %v5488
        %v5505 = vadd.f32 %v5457, %v5489
        %v5506 = vadd.f32 %v5458, %v5490
        %v5507 = vadd.f32 %v5459, %v5491
        %v5508 = vadd.f32 %v5460, %v5492
        %v5509 = vadd.f32 %v5461, %v5493
        %v5510 = vadd.f32 %v5462, %v5494
        %v5511 = vadd.f32 %v5463, %v5495
        %v5512 = vadd.f32 %v5464, %v5496
        %v5513 = vadd.f32 %v5465, %v5497
        %v5514 = vadd.f32 %v5466, %v5498
        %v5515 = vadd.f32 %v5467, %v5499
        %v5516 = vld [vmem:[%s5227 + $0xb] sm:$0xff]
        %v5517 = vld [vmem:[%s5227 + $0x13] sm:$0xff]
        %v5518 = vld [vmem:[%s5227 + $0x2b] sm:$0xff]
        %v5519 = vld [vmem:[%s5227 + $0x33] sm:$0xff]
        %v5520 = vld [vmem:[%s5227 + $0x4b] sm:$0xff]
        %v5521 = vld [vmem:[%s5227 + $0x53] sm:$0xff]
        %v5522 = vld [vmem:[%s5227 + $0x6b] sm:$0xff]
        %v5523 = vld [vmem:[%s5227 + $0x73] sm:$0xff]
        %v5524 = vld [vmem:[%s5227 + $0x8b] sm:$0xff]
        %v5525 = vld [vmem:[%s5227 + $0x93] sm:$0xff]
        %v5526 = vld [vmem:[%s5227 + $0xab] sm:$0xff]
        %v5527 = vld [vmem:[%s5227 + $0xb3] sm:$0xff]
        %v5528 = vld [vmem:[%s5227 + $0xcb] sm:$0xff]
        %v5529 = vld [vmem:[%s5227 + $0xd3] sm:$0xff]
        %v5530 = vld [vmem:[%s5227 + $0xeb] sm:$0xff]
        %v5531 = vld [vmem:[%s5227 + $0xf3] sm:$0xff]
        %v5532 = vmul.f32 %v5516, %v3022
        %v5533 = vmul.f32 %v5517, %v3022
        %v5534 = vmul.f32 %v5518, %v3022
        %v5535 = vmul.f32 %v5519, %v3022
        %v5536 = vmul.f32 %v5520, %v3022
        %v5537 = vmul.f32 %v5521, %v3022
        %v5538 = vmul.f32 %v5522, %v3022
        %v5539 = vmul.f32 %v5523, %v3022
        %v5540 = vmul.f32 %v5524, %v3022
        %v5541 = vmul.f32 %v5525, %v3022
        %v5542 = vmul.f32 %v5526, %v3022
        %v5543 = vmul.f32 %v5527, %v3022
        %v5544 = vmul.f32 %v5528, %v3022
        %v5545 = vmul.f32 %v5529, %v3022
        %v5546 = vmul.f32 %v5530, %v3022
        %v5547 = vmul.f32 %v5531, %v3022
        %v5548 = vadd.f32 %v5500, %v5532
        %v5549 = vadd.f32 %v5501, %v5533
        %v5550 = vadd.f32 %v5502, %v5534
        %v5551 = vadd.f32 %v5503, %v5535
        %v5552 = vadd.f32 %v5504, %v5536
        %v5553 = vadd.f32 %v5505, %v5537
        %v5554 = vadd.f32 %v5506, %v5538
        %v5555 = vadd.f32 %v5507, %v5539
        %v5556 = vadd.f32 %v5508, %v5540
        %v5557 = vadd.f32 %v5509, %v5541
        %v5558 = vadd.f32 %v5510, %v5542
        %v5559 = vadd.f32 %v5511, %v5543
        %v5560 = vadd.f32 %v5512, %v5544
        %v5561 = vadd.f32 %v5513, %v5545
        %v5562 = vadd.f32 %v5514, %v5546
        %v5563 = vadd.f32 %v5515, %v5547
        %5564 = vrot.lane.b32.xlu0 %v5548, 64
        %v5565 = vpop.permute.xlu0 %5564
        %5566 = vrot.lane.b32.xlu0 %v5549, 64
        %v5567 = vpop.permute.xlu0 %5566
        %5568 = vrot.lane.b32.xlu0 %v5550, 64
        %v5569 = vpop.permute.xlu0 %5568
        %5570 = vrot.lane.b32.xlu0 %v5551, 64
        %v5571 = vpop.permute.xlu0 %5570
        %5572 = vrot.lane.b32.xlu0 %v5552, 64
        %v5573 = vpop.permute.xlu0 %5572
        %5574 = vrot.lane.b32.xlu0 %v5553, 64
        %v5575 = vpop.permute.xlu0 %5574
        %5576 = vrot.lane.b32.xlu0 %v5554, 64
        %v5577 = vpop.permute.xlu0 %5576
        %5578 = vrot.lane.b32.xlu0 %v5555, 64
        %v5579 = vpop.permute.xlu0 %5578
        %5580 = vrot.lane.b32.xlu0 %v5556, 64
        %v5581 = vpop.permute.xlu0 %5580
        %5582 = vrot.lane.b32.xlu0 %v5557, 64
        %v5583 = vpop.permute.xlu0 %5582
        %5584 = vrot.lane.b32.xlu0 %v5558, 64
        %v5585 = vpop.permute.xlu0 %5584
        %5586 = vrot.lane.b32.xlu0 %v5559, 64
        %v5587 = vpop.permute.xlu0 %5586
        %5588 = vrot.lane.b32.xlu0 %v5560, 64
        %v5589 = vpop.permute.xlu0 %5588
        %5590 = vrot.lane.b32.xlu0 %v5561, 64
        %v5591 = vpop.permute.xlu0 %5590
        %5592 = vrot.lane.b32.xlu0 %v5562, 64
        %v5593 = vpop.permute.xlu0 %5592
        %5594 = vrot.lane.b32.xlu0 %v5563, 64
        %v5595 = vpop.permute.xlu0 %5594
        %v5596 = vadd.f32 %v5548, %v5565
        %v5597 = vadd.f32 %v5549, %v5567
        %v5598 = vadd.f32 %v5550, %v5569
        %v5599 = vadd.f32 %v5551, %v5571
        %v5600 = vadd.f32 %v5552, %v5573
        %v5601 = vadd.f32 %v5553, %v5575
        %v5602 = vadd.f32 %v5554, %v5577
        %v5603 = vadd.f32 %v5555, %v5579
        %v5604 = vadd.f32 %v5556, %v5581
        %v5605 = vadd.f32 %v5557, %v5583
        %v5606 = vadd.f32 %v5558, %v5585
        %v5607 = vadd.f32 %v5559, %v5587
        %v5608 = vadd.f32 %v5560, %v5589
        %v5609 = vadd.f32 %v5561, %v5591
        %v5610 = vadd.f32 %v5562, %v5593
        %v5611 = vadd.f32 %v5563, %v5595
        %v5612 = vadd.f32 %v5596, %v3107
        %v5613 = vadd.f32 %v5597, %v3107
        %v5614 = vadd.f32 %v5598, %v3107
        %v5615 = vadd.f32 %v5599, %v3107
        %v5616 = vadd.f32 %v5600, %v3107
        %v5617 = vadd.f32 %v5601, %v3107
        %v5618 = vadd.f32 %v5602, %v3107
        %v5619 = vadd.f32 %v5603, %v3107
        %v5620 = vadd.f32 %v5604, %v3107
        %v5621 = vadd.f32 %v5605, %v3107
        %v5622 = vadd.f32 %v5606, %v3107
        %v5623 = vadd.f32 %v5607, %v3107
        %v5624 = vadd.f32 %v5608, %v3107
        %v5625 = vadd.f32 %v5609, %v3107
        %v5626 = vadd.f32 %v5610, %v3107
        %v5627 = vadd.f32 %v5611, %v3107
        %v5628 = vsub.f32 0.0, %v5612
        %v5629 = vsub.f32 0.0, %v5613
        %v5630 = vsub.f32 0.0, %v5614
        %v5631 = vsub.f32 0.0, %v5615
        %v5632 = vsub.f32 0.0, %v5616
        %v5633 = vsub.f32 0.0, %v5617
        %v5634 = vsub.f32 0.0, %v5618
        %v5635 = vsub.f32 0.0, %v5619
        %v5636 = vsub.f32 0.0, %v5620
        %v5637 = vsub.f32 0.0, %v5621
        %v5638 = vsub.f32 0.0, %v5622
        %v5639 = vsub.f32 0.0, %v5623
        %v5640 = vsub.f32 0.0, %v5624
        %v5641 = vsub.f32 0.0, %v5625
        %v5642 = vsub.f32 0.0, %v5626
        %v5643 = vsub.f32 0.0, %v5627
        %v5644 = vmul.f32 %v5628, 1.442695
        %v5645 = vpow.pop %v5644
        %v5646 = vmul.f32 %v5629, 1.442695
        %v5647 = vpow.pop %v5646
        %v5648 = vmul.f32 %v5630, 1.442695
        %v5649 = vpow.pop %v5648
        %v5650 = vmul.f32 %v5631, 1.442695
        %v5651 = vpow.pop %v5650
        %v5652 = vmul.f32 %v5632, 1.442695
        %v5653 = vpow.pop %v5652
        %v5654 = vmul.f32 %v5633, 1.442695
        %v5655 = vpow.pop %v5654
        %v5656 = vmul.f32 %v5634, 1.442695
        %v5657 = vpow.pop %v5656
        %v5658 = vmul.f32 %v5635, 1.442695
        %v5659 = vpow.pop %v5658
        %v5660 = vmul.f32 %v5636, 1.442695
        %v5661 = vpow.pop %v5660
        %v5662 = vmul.f32 %v5637, 1.442695
        %v5663 = vpow.pop %v5662
        %v5664 = vmul.f32 %v5638, 1.442695
        %v5665 = vpow.pop %v5664
        %v5666 = vmul.f32 %v5639, 1.442695
        %v5667 = vpow.pop %v5666
        %v5668 = vmul.f32 %v5640, 1.442695
        %v5669 = vpow.pop %v5668
        %v5670 = vmul.f32 %v5641, 1.442695
        %v5671 = vpow.pop %v5670
        %v5672 = vmul.f32 %v5642, 1.442695
        %v5673 = vpow.pop %v5672
        %v5674 = vmul.f32 %v5643, 1.442695
        %v5675 = vpow.pop %v5674
        %v5676 = vadd.f32 %v5645, 1.0
        %v5677 = vadd.f32 %v5647, 1.0
        %v5678 = vadd.f32 %v5649, 1.0
        %v5679 = vadd.f32 %v5651, 1.0
        %v5680 = vadd.f32 %v5653, 1.0
        %v5681 = vadd.f32 %v5655, 1.0
        %v5682 = vadd.f32 %v5657, 1.0
        %v5683 = vadd.f32 %v5659, 1.0
        %v5684 = vadd.f32 %v5661, 1.0
        %v5685 = vadd.f32 %v5663, 1.0
        %v5686 = vadd.f32 %v5665, 1.0
        %v5687 = vadd.f32 %v5667, 1.0
        %v5688 = vadd.f32 %v5669, 1.0
        %v5689 = vadd.f32 %v5671, 1.0
        %v5690 = vadd.f32 %v5673, 1.0
        %v5691 = vadd.f32 %v5675, 1.0
        %v5692 = vrcp.pop %v5676
        %v5693 = vrcp.pop %v5677
        %v5694 = vrcp.pop %v5678
        %v5695 = vrcp.pop %v5679
        %v5696 = vrcp.pop %v5680
        %v5697 = vrcp.pop %v5681
        %v5698 = vrcp.pop %v5682
        %v5699 = vrcp.pop %v5683
        %v5700 = vrcp.pop %v5684
        %v5701 = vrcp.pop %v5685
        %v5702 = vrcp.pop %v5686
        %v5703 = vrcp.pop %v5687
        %v5704 = vrcp.pop %v5688
        %v5705 = vrcp.pop %v5689
        %v5706 = vrcp.pop %v5690
        %v5707 = vrcp.pop %v5691
        %s5708 = scalar_lea.vmem %s178, 128 [#allocation7]
        %5709 = vst [vmem:[%s5708] sm:$0xff] %v5692
        %5710 = vst [vmem:[%s5708 + $0x8] sm:$0xff] %v5693
        %5711 = vst [vmem:[%s5708 + $0x10] sm:$0xff] %v5694
        %5712 = vst [vmem:[%s5708 + $0x18] sm:$0xff] %v5695
        %5713 = vst [vmem:[%s5708 + $0x20] sm:$0xff] %v5696
        %5714 = vst [vmem:[%s5708 + $0x28] sm:$0xff] %v5697
        %5715 = vst [vmem:[%s5708 + $0x30] sm:$0xff] %v5698
        %5716 = vst [vmem:[%s5708 + $0x38] sm:$0xff] %v5699
        %5717 = vst [vmem:[%s5708 + $0x40] sm:$0xff] %v5700
        %5718 = vst [vmem:[%s5708 + $0x48] sm:$0xff] %v5701
        %5719 = vst [vmem:[%s5708 + $0x50] sm:$0xff] %v5702
        %5720 = vst [vmem:[%s5708 + $0x58] sm:$0xff] %v5703
        %5721 = vst [vmem:[%s5708 + $0x60] sm:$0xff] %v5704
        %5722 = vst [vmem:[%s5708 + $0x68] sm:$0xff] %v5705
        %5723 = vst [vmem:[%s5708 + $0x70] sm:$0xff] %v5706
        %5724 = vst [vmem:[%s5708 + $0x78] sm:$0xff] %v5707
        %s5725 = sand.u32 %s101, 1
        %s5726 = scalar_lea.sflag [#allocation6], %s5725
        %s5727 = sand.u32 %s101, 1
        %s5728 = smul.addr %s5727, 256
        %s5729 = scalar_lea.vmem [#allocation7], %s5728
        // Predicated region
        $region33: #{tpu_custom_call.1} parent=27 // pred_check
          %p5730 = pneg %p111
        $region34: #{tpu_custom_call.1} parent=27 // pred_check_branch
          %5732 = sbr.rel (%p5730) target = $region36
        $region35: #{tpu_custom_call.1} parent=27 // pred_region
          %s5733 = smul.u32 16, %s25
          %s5735 = ssub.s32 4096, 4096
          %5736 = vsyncadd %s5726, %s5735
          %s5737 = smul.addr %s5733, 2
          %s5738 = sadd.s32 %s24, %s5737
          %s5739 = smul.addr %s23, 32
          %s5740 = sadd.s32 %s5738, %s5739
          %s5741 = smul.addr %s5740, 128
          %s5742 = scalar_lea.hbm %s3, %s5741
          %s5743 = sshll.u32 %s5729, 4
          %s5744 = int_to_ptr.vmem [resolvable:$true] %s5743
          %5749 = dma.vmem_to_hbm [thread:$0]  %s5744, 4096, %s5742, %s5726, 128, 128, 8
        $region36: #{tpu_custom_call.1} parent=27 // pred_fallthru
          _
      $region28: #{tpu_custom_call.1} parent=5 // pred_fallthru
        _
      %p5750 = scmp.le.s32.totalorder 2, %s13
      // Predicated region
      $region37: #{tpu_custom_call.1} parent=5 // pred_check
        %p5751 = pneg %p5750
      $region38: #{tpu_custom_call.1} parent=5 // pred_check_branch
        %5753 = sbr.rel (%p5751) target = $region40
      $region39: #{tpu_custom_call.1} parent=5 // pred_region
        %s5754 = ssub.s32 %s13, 2
        // Predicated region
        $region41: #{tpu_custom_call.1} parent=39 // pred_check
          %p5755 = pneg %p117
        $region42: #{tpu_custom_call.1} parent=39 // pred_check_branch
          %5757 = sbr.rel (%p5755) target = $region44
        $region43: #{tpu_custom_call.1} parent=39 // pred_region
          %s5758 = sand.u32 %s102, 1
          %s5759 = scalar_lea.sflag [#allocation6], %s5758
          %s5760 = sand.u32 %s102, 1
          %s5761 = smul.addr %s5760, 256
          %s5762 = scalar_lea.vmem [#allocation7], %s5761
          %5763 = dma.done %s5759, 4096
        $region44: #{tpu_custom_call.1} parent=39 // pred_fallthru
          _
      $region40: #{tpu_custom_call.1} parent=5 // pred_fallthru
        _
    $region6: #{tpu_custom_call.1} parent=1 // loop_footer
      %s17 = sadd.s32 1, %s13
    $region7: #{tpu_custom_call.1} parent=1 // loop_footer_branch
      %12 = sbr.rel target = $region3
    $region8: #{tpu_custom_call.1} parent=1 // loop_exit
      _
    %5764 = vsyncpa [#allocation5], 1
    %s5765 = scalar_lea.sflag [#allocation5], 1
    %5766 = vsyncpa %s5765, 1
    %5767 = vsyncpa [#allocation6], 1
    %s5768 = scalar_lea.sflag [#allocation6], 1
    %5769 = vsyncpa %s5768, 1
  %5770 = vsyncmov [#allocation3]
  %s5771 = vpop.sfrf %5770
  %p5772 = scmp.eq.s32.totalorder %s5771, 0
  %p5773 = pneg %p5772
  %5775 = shalt.err (%p5773)

</llo_original>
